<compile_context>
chip_gen: v6e
topology: v6e:2x2x1
jax: 0.10.0
libtpu: 0.0.40
codegen_flags: <defaults>
</compile_context>

<pallas_src>
import functools

import numpy as np

import jax
import jax.numpy as jnp
from jax.experimental import pallas as pl
from jax.experimental.pallas import tpu as pltpu

_BN_EPS = 1e-5


# ----------------------------------------------------------------------------
# In-kernel layer helpers (all operate on (C, P) values, P = H*W on lanes)
# ----------------------------------------------------------------------------
def _rolled_tap(a, off, npix):
    """Circular shift along the pixel (lane) axis so tap(off)[c, p] = a[c, p+off]."""
    if off == 0:
        return a
    return pltpu.roll(a, (-off) % npix, axis=1)


def _conv3x3(a, w_ref, b_ref, masks_ref, offs, *, relu):
    """3x3 conv (stride 1, pad 1) in transposed layout.

    a:         (Cin, P) f32 activation value
    w_ref:     (9, Cout, Cin) bf16 weights (BN scale pre-folded)
    b_ref:     (Cout, 1) f32 bias (conv bias + BN shift)
    masks_ref: (9, 1, P) bf16 border-validity masks
    offs:      9 static flat pixel offsets (dy*W + dx)
    """
    cout = w_ref.shape[1]
    npix = a.shape[1]
    acc = jnp.zeros((cout, npix), jnp.float32)
    for t, off in enumerate(offs):
        tap = _rolled_tap(a, off, npix).astype(jnp.bfloat16)
        if off != 0:                     # center tap needs no border mask
            tap = tap * masks_ref[t]
        acc = acc + jnp.dot(w_ref[t], tap, preferred_element_type=jnp.float32)
    y = acc + b_ref[...]
    if relu:
        y = jnp.maximum(y, 0.0)
    return y


def _conv3x3_cin1(x_row, w_ref, b_ref, masks_ref, offs):
    """First conv (Cin=1) as 9 VPU broadcast-FMAs (avoids K=1 MXU matmuls).

    x_row: (1, P) f32;  w_ref: (9, Cout, 1) f32;  b_ref: (Cout, 1) f32
    """
    cout = w_ref.shape[1]
    npix = x_row.shape[1]
    acc = jnp.zeros((cout, npix), jnp.float32)
    for t, off in enumerate(offs):
        tap = _rolled_tap(x_row, off, npix)
        if off != 0:
            tap = tap * masks_ref[t]                 # bf16 * f32 -> f32
        acc = acc + w_ref[t] * tap                   # (Cout,1)*(1,P) -> (Cout,P)
    return jnp.maximum(acc + b_ref[...], 0.0)        # conv1 always has BN+ReLU


def _pointwise(a, w_ref, b_ref):
    """ConvTranspose2d(k=1,s=1): (Cout, Cin) @ (Cin, P) + bias."""
    y = jnp.dot(w_ref[...], a.astype(jnp.bfloat16),
                preferred_element_type=jnp.float32)
    return y + b_ref[...]


# ----------------------------------------------------------------------------
# Fused whole-network kernel (one grid step per batch element)
# ----------------------------------------------------------------------------
def basemodel_fused_kernel(x_ref, masks_ref,
                           w1_ref, b1_ref, t1w_ref, t1b_ref,
                           w2_ref, b2_ref, w3_ref, b3_ref,
                           t2w_ref, t2b_ref, w4_ref, b4_ref,
                           w5_ref, b5_ref,
                           o_ref, *, W):
    offs = [dy * W + dx for dy in (-1, 0, 1) for dx in (-1, 0, 1)]

    x = x_ref[0]                                                   # (1, P) f32
    a = _conv3x3_cin1(x, w1_ref, b1_ref, masks_ref, offs)          # Conv(1,64)+BN+ReLU
    a = _pointwise(a, t1w_ref, t1b_ref)                            # ConvT(64,64,k=1)
    a = _conv3x3(a, w2_ref, b2_ref, masks_ref, offs, relu=True)    # Conv(64,64)+BN+ReLU
    # Dropout(0.5): inference identity.
    a = _conv3x3(a, w3_ref, b3_ref, masks_ref, offs, relu=True)    # Conv(64,32)+BN+ReLU
    a = _pointwise(a, t2w_ref, t2b_ref)                            # ConvT(32,64,k=1)
    a = _conv3x3(a, w4_ref, b4_ref, masks_ref, offs, relu=True)    # Conv(64,32)+BN+ReLU
    # Dropout(0.5): inference identity.
    y = _conv3x3(a, w5_ref, b5_ref, masks_ref, offs, relu=False)   # Conv(32,2) (+folded ConvT(2,2))
    o_ref[0] = y.astype(o_ref.dtype)                               # (2, P) lane-dense


# ----------------------------------------------------------------------------
# Parameter preparation (BN fold, t3 fold, transpose to kernel layout)
# ----------------------------------------------------------------------------
def _bn_fold(cout):
    """Eval-mode BatchNorm with default init -> per-channel scale/shift."""
    gamma = jnp.ones((cout,), jnp.float32)
    beta = jnp.zeros((cout,), jnp.float32)
    mean = jnp.zeros((cout,), jnp.float32)
    var = jnp.ones((cout,), jnp.float32)
    scale = gamma / jnp.sqrt(var + _BN_EPS)
    shift = beta - mean * scale
    return scale, shift


def _conv_to_kernel(w_hwio, b, *, bn, dtype=jnp.bfloat16):
    """(3,3,Cin,Cout) HWIO + (Cout,) -> (9, Cout, Cin) weights, (Cout,1) bias."""
    cout = w_hwio.shape[-1]
    if bn:
        scale, shift = _bn_fold(cout)
    else:
        scale = jnp.ones((cout,), jnp.float32)
        shift = jnp.zeros((cout,), jnp.float32)
    w = w_hwio * scale                               # fold BN scale over Cout
    b = b * scale + shift
    kh, kw, cin, _ = w.shape
    wk = jnp.transpose(w.reshape(kh * kw, cin, cout), (0, 2, 1))
    return wk.astype(dtype), b.reshape(cout, 1).astype(jnp.float32)


def _convt_to_kernel(w_io, b):
    """ConvTranspose2d(k=1) weight (Cin,Cout) -> (Cout,Cin) bf16, (Cout,1) f32."""
    return (jnp.transpose(w_io).astype(jnp.bfloat16),
            b.reshape(-1, 1).astype(jnp.float32))


def _fold_conv5_t3(w5, b5, t3w, t3b):
    """Fold the trailing 1x1 ConvTranspose(2,2) into the last conv (exact)."""
    w = jnp.einsum("hwic,co->hwio", w5, t3w)
    b = b5 @ t3w + t3b
    return w, b


def _make_tap_masks(H, W):
    """Per-tap border validity masks, (9, 1, H*W) bf16 (built at trace time)."""
    yy, xx = np.meshgrid(np.arange(H), np.arange(W), indexing="ij")
    yy = yy.reshape(1, H * W)
    xx = xx.reshape(1, H * W)
    ms = []
    for dy in (-1, 0, 1):
        for dx in (-1, 0, 1):
            valid = ((yy + dy >= 0) & (yy + dy < H) &
                     (xx + dx >= 0) & (xx + dx < W))
            ms.append(valid.astype(np.float32))
    return jnp.asarray(np.stack(ms, axis=0), dtype=jnp.bfloat16)


def init_params(key):
    """Synthetic parameters in PyTorch-equivalent shapes (HWIO convs)."""
    ks = list(jax.random.split(key, 16))
    p = {}

    def conv_w(k, cin, cout):          # HWIO
        return 0.1 * jax.random.normal(k, (3, 3, cin, cout), jnp.float32)

    def pw_w(k, cin, cout):            # ConvTranspose2d(k=1) weight (Cin, Cout)
        return 0.1 * jax.random.normal(k, (cin, cout), jnp.float32)

    def bias(k, c):
        return 0.05 * jax.random.normal(k, (c,), jnp.float32)

    p["c1_w"], p["c1_b"] = conv_w(ks[0], 1, 64), bias(ks[1], 64)     # Conv2d(1,64,3)
    p["t1_w"], p["t1_b"] = pw_w(ks[2], 64, 64), bias(ks[3], 64)      # ConvT(64,64,1)
    p["c2_w"], p["c2_b"] = conv_w(ks[4], 64, 64), bias(ks[5], 64)    # Conv2d(64,64,3)
    p["c3_w"], p["c3_b"] = conv_w(ks[6], 64, 32), bias(ks[7], 32)    # Conv2d(64,32,3)
    p["t2_w"], p["t2_b"] = pw_w(ks[8], 32, 64), bias(ks[9], 64)      # ConvT(32,64,1)
    p["c4_w"], p["c4_b"] = conv_w(ks[10], 64, 32), bias(ks[11], 32)  # Conv2d(64,32,3)
    p["c5_w"], p["c5_b"] = conv_w(ks[12], 32, 2), bias(ks[13], 2)    # Conv2d(32,2,3)
    p["t3_w"], p["t3_b"] = pw_w(ks[14], 2, 2), bias(ks[15], 2)       # ConvT(2,2,1)
    return p


def prepare_params(p, H, W):
    """One-time conversion of module parameters into kernel-ready arrays."""
    kp = {}
    kp["masks"] = _make_tap_masks(H, W)
    kp["w1"], kp["b1"] = _conv_to_kernel(p["c1_w"], p["c1_b"], bn=True,
                                         dtype=jnp.float32)          # VPU path
    kp["t1w"], kp["t1b"] = _convt_to_kernel(p["t1_w"], p["t1_b"])
    kp["w2"], kp["b2"] = _conv_to_kernel(p["c2_w"], p["c2_b"], bn=True)
    kp["w3"], kp["b3"] = _conv_to_kernel(p["c3_w"], p["c3_b"], bn=True)
    kp["t2w"], kp["t2b"] = _convt_to_kernel(p["t2_w"], p["t2_b"])
    kp["w4"], kp["b4"] = _conv_to_kernel(p["c4_w"], p["c4_b"], bn=True)
    w5c, b5c = _fold_conv5_t3(p["c5_w"], p["c5_b"], p["t3_w"], p["t3_b"])
    kp["w5"], kp["b5"] = _conv_to_kernel(w5c, b5c, bn=False)
    return kp


# ----------------------------------------------------------------------------
# Forward pass: reshape -> single fused pallas_call -> reshape
# ----------------------------------------------------------------------------
_PARAM_ORDER = ("masks", "w1", "b1", "t1w", "t1b", "w2", "b2", "w3", "b3",
                "t2w", "t2b", "w4", "b4", "w5", "b5")


def _const_spec(arr):
    nd = arr.ndim
    return pl.BlockSpec(arr.shape, lambda n, _nd=nd: (0,) * _nd)


def basemodel_forward(kernel_params, x_nchw):
    N, cin, H, W = x_nchw.shape
    assert cin == 1, "basemodel expects a single input channel"
    npix = H * W
    x = x_nchw.reshape(N, 1, npix).astype(jnp.float32)   # free reshape, no pad/transpose

    in_specs = ([pl.BlockSpec((1, 1, npix), lambda n: (n, 0, 0))] +
                [_const_spec(kernel_params[k]) for k in _PARAM_ORDER])

    out = pl.pallas_call(
        functools.partial(basemodel_fused_kernel, W=W),
        out_shape=jax.ShapeDtypeStruct((N, 2, npix), jnp.float32),
        grid=(N,),
        in_specs=in_specs,
        out_specs=pl.BlockSpec((1, 2, npix), lambda n: (n, 0, 0)),
        compiler_params=pltpu.CompilerParams(
            dimension_semantics=("parallel",)),
    )(x, *[kernel_params[k] for k in _PARAM_ORDER])

    return out.reshape(N, 2, H, W)                        # free reshape to NCHW


if __name__ == "__main__":
    key = jax.random.PRNGKey(0)
    k_params, k_x = jax.random.split(key)

    H = W = 16
    raw_params = init_params(k_params)
    kparams = prepare_params(raw_params, H, W)            # one-time prep (outside fwd)

    # PyTorch-convention input: (N=2, C=1, H=16, W=16)
    x = jax.random.normal(k_x, (2, 1, H, W), jnp.float32)

    fwd = jax.jit(basemodel_forward)
    out = jax.block_until_ready(fwd(kparams, x))

    assert out.shape == (2, 2, H, W), out.shape
    assert out.dtype == jnp.float32
    assert bool(jnp.all(jnp.isfinite(out)))
    print("KERNEL_OK")
</pallas_src>

<mosaic_0001>
module attributes {stable_mosaic.version = 11 : i64} {
  func.func @basemodel_fused_kernel(%arg0: i32, %arg1: memref<1x1x256xf32, #tpu.memory_space<vmem>>, %arg2: memref<9x1x256xbf16, #tpu.memory_space<vmem>>, %arg3: memref<9x64x1xf32, #tpu.memory_space<vmem>>, %arg4: memref<64x1xf32, #tpu.memory_space<vmem>>, %arg5: memref<64x64xbf16, #tpu.memory_space<vmem>>, %arg6: memref<64x1xf32, #tpu.memory_space<vmem>>, %arg7: memref<9x64x64xbf16, #tpu.memory_space<vmem>>, %arg8: memref<64x1xf32, #tpu.memory_space<vmem>>, %arg9: memref<9x32x64xbf16, #tpu.memory_space<vmem>>, %arg10: memref<32x1xf32, #tpu.memory_space<vmem>>, %arg11: memref<64x32xbf16, #tpu.memory_space<vmem>>, %arg12: memref<64x1xf32, #tpu.memory_space<vmem>>, %arg13: memref<9x32x64xbf16, #tpu.memory_space<vmem>>, %arg14: memref<32x1xf32, #tpu.memory_space<vmem>>, %arg15: memref<9x2x32xbf16, #tpu.memory_space<vmem>>, %arg16: memref<2x1xf32, #tpu.memory_space<vmem>>, %arg17: memref<1x2x256xf32, #tpu.memory_space<vmem>>) attributes {dimension_semantics = [#tpu.dimension_semantics<parallel>], iteration_bounds = array<i64: 2>, scalar_prefetch = 0 : i64, scratch_operands = 0 : i64, tpu.core_type = #tpu.core_type<tc>, window_params = [{transform_indices = @transform_0, window_bounds = array<i64: 1, 1, 256>}, {pipeline_mode = #tpu.pipeline_mode<synchronous>, transform_indices = @transform_1, window_bounds = array<i64: 9, 1, 256>}, {pipeline_mode = #tpu.pipeline_mode<synchronous>, transform_indices = @transform_2, window_bounds = array<i64: 9, 64, 1>}, {pipeline_mode = #tpu.pipeline_mode<synchronous>, transform_indices = @transform_3, window_bounds = array<i64: 64, 1>}, {pipeline_mode = #tpu.pipeline_mode<synchronous>, transform_indices = @transform_4, window_bounds = array<i64: 64, 64>}, {pipeline_mode = #tpu.pipeline_mode<synchronous>, transform_indices = @transform_5, window_bounds = array<i64: 64, 1>}, {pipeline_mode = #tpu.pipeline_mode<synchronous>, transform_indices = @transform_6, window_bounds = array<i64: 9, 64, 64>}, {pipeline_mode = #tpu.pipeline_mode<synchronous>, transform_indices = @transform_7, window_bounds = array<i64: 64, 1>}, {pipeline_mode = #tpu.pipeline_mode<synchronous>, transform_indices = @transform_8, window_bounds = array<i64: 9, 32, 64>}, {pipeline_mode = #tpu.pipeline_mode<synchronous>, transform_indices = @transform_9, window_bounds = array<i64: 32, 1>}, {pipeline_mode = #tpu.pipeline_mode<synchronous>, transform_indices = @transform_10, window_bounds = array<i64: 64, 32>}, {pipeline_mode = #tpu.pipeline_mode<synchronous>, transform_indices = @transform_11, window_bounds = array<i64: 64, 1>}, {pipeline_mode = #tpu.pipeline_mode<synchronous>, transform_indices = @transform_12, window_bounds = array<i64: 9, 32, 64>}, {pipeline_mode = #tpu.pipeline_mode<synchronous>, transform_indices = @transform_13, window_bounds = array<i64: 32, 1>}, {pipeline_mode = #tpu.pipeline_mode<synchronous>, transform_indices = @transform_14, window_bounds = array<i64: 9, 2, 32>}, {pipeline_mode = #tpu.pipeline_mode<synchronous>, transform_indices = @transform_15, window_bounds = array<i64: 2, 1>}, {transform_indices = @transform_16, window_bounds = array<i64: 1, 2, 256>}]} {
    %c0 = arith.constant 0 : index
    %c0_0 = arith.constant 0 : index
    %c0_1 = arith.constant 0 : index
    %0 = vector.load %arg1[%c0, %c0_0, %c0_1] : memref<1x1x256xf32, #tpu.memory_space<vmem>>, vector<1x1x256xf32>
    %1 = vector.shape_cast %0 : vector<1x1x256xf32> to vector<1x256xf32>
    %cst = arith.constant 0.000000e+00 : f32
    %2 = vector.broadcast %cst : f32 to vector<64x256xf32>
    %c17_i32 = arith.constant 17 : i32
    %3 = tpu.dynamic_rotate %1 by %c17_i32 dim 1 : vector<1x256xf32>, i32 -> vector<1x256xf32>
    %c0_2 = arith.constant 0 : index
    %c0_3 = arith.constant 0 : index
    %c0_4 = arith.constant 0 : index
    %4 = vector.load %arg2[%c0_2, %c0_3, %c0_4] : memref<9x1x256xbf16, #tpu.memory_space<vmem>>, vector<1x1x256xbf16>
    %5 = vector.shape_cast %4 : vector<1x1x256xbf16> to vector<1x256xbf16>
    %6 = arith.extf %5 : vector<1x256xbf16> to vector<1x256xf32>
    %7 = arith.mulf %3, %6 : vector<1x256xf32>
    %c0_5 = arith.constant 0 : index
    %c0_6 = arith.constant 0 : index
    %c0_7 = arith.constant 0 : index
    %8 = vector.load %arg3[%c0_5, %c0_6, %c0_7] : memref<9x64x1xf32, #tpu.memory_space<vmem>>, vector<1x64x1xf32>
    %9 = vector.shape_cast %8 : vector<1x64x1xf32> to vector<64x1xf32>
    %10 = vector.broadcast %9 : vector<64x1xf32> to vector<64x256xf32>
    %11 = vector.broadcast %7 : vector<1x256xf32> to vector<64x256xf32>
    %12 = arith.mulf %10, %11 : vector<64x256xf32>
    %13 = arith.addf %2, %12 : vector<64x256xf32>
    %c16_i32 = arith.constant 16 : i32
    %14 = tpu.dynamic_rotate %1 by %c16_i32 dim 1 : vector<1x256xf32>, i32 -> vector<1x256xf32>
    %c1 = arith.constant 1 : index
    %c0_8 = arith.constant 0 : index
    %c0_9 = arith.constant 0 : index
    %15 = vector.load %arg2[%c1, %c0_8, %c0_9] : memref<9x1x256xbf16, #tpu.memory_space<vmem>>, vector<1x1x256xbf16>
    %16 = vector.shape_cast %15 : vector<1x1x256xbf16> to vector<1x256xbf16>
    %17 = arith.extf %16 : vector<1x256xbf16> to vector<1x256xf32>
    %18 = arith.mulf %14, %17 : vector<1x256xf32>
    %c1_10 = arith.constant 1 : index
    %c0_11 = arith.constant 0 : index
    %c0_12 = arith.constant 0 : index
    %19 = vector.load %arg3[%c1_10, %c0_11, %c0_12] : memref<9x64x1xf32, #tpu.memory_space<vmem>>, vector<1x64x1xf32>
    %20 = vector.shape_cast %19 : vector<1x64x1xf32> to vector<64x1xf32>
    %21 = vector.broadcast %20 : vector<64x1xf32> to vector<64x256xf32>
    %22 = vector.broadcast %18 : vector<1x256xf32> to vector<64x256xf32>
    %23 = arith.mulf %21, %22 : vector<64x256xf32>
    %24 = arith.addf %13, %23 : vector<64x256xf32>
    %c15_i32 = arith.constant 15 : i32
    %25 = tpu.dynamic_rotate %1 by %c15_i32 dim 1 : vector<1x256xf32>, i32 -> vector<1x256xf32>
    %c2 = arith.constant 2 : index
    %c0_13 = arith.constant 0 : index
    %c0_14 = arith.constant 0 : index
    %26 = vector.load %arg2[%c2, %c0_13, %c0_14] : memref<9x1x256xbf16, #tpu.memory_space<vmem>>, vector<1x1x256xbf16>
    %27 = vector.shape_cast %26 : vector<1x1x256xbf16> to vector<1x256xbf16>
    %28 = arith.extf %27 : vector<1x256xbf16> to vector<1x256xf32>
    %29 = arith.mulf %25, %28 : vector<1x256xf32>
    %c2_15 = arith.constant 2 : index
    %c0_16 = arith.constant 0 : index
    %c0_17 = arith.constant 0 : index
    %30 = vector.load %arg3[%c2_15, %c0_16, %c0_17] : memref<9x64x1xf32, #tpu.memory_space<vmem>>, vector<1x64x1xf32>
    %31 = vector.shape_cast %30 : vector<1x64x1xf32> to vector<64x1xf32>
    %32 = vector.broadcast %31 : vector<64x1xf32> to vector<64x256xf32>
    %33 = vector.broadcast %29 : vector<1x256xf32> to vector<64x256xf32>
    %34 = arith.mulf %32, %33 : vector<64x256xf32>
    %35 = arith.addf %24, %34 : vector<64x256xf32>
    %c1_i32 = arith.constant 1 : i32
    %36 = tpu.dynamic_rotate %1 by %c1_i32 dim 1 : vector<1x256xf32>, i32 -> vector<1x256xf32>
    %c3 = arith.constant 3 : index
    %c0_18 = arith.constant 0 : index
    %c0_19 = arith.constant 0 : index
    %37 = vector.load %arg2[%c3, %c0_18, %c0_19] : memref<9x1x256xbf16, #tpu.memory_space<vmem>>, vector<1x1x256xbf16>
    %38 = vector.shape_cast %37 : vector<1x1x256xbf16> to vector<1x256xbf16>
    %39 = arith.extf %38 : vector<1x256xbf16> to vector<1x256xf32>
    %40 = arith.mulf %36, %39 : vector<1x256xf32>
    %c3_20 = arith.constant 3 : index
    %c0_21 = arith.constant 0 : index
    %c0_22 = arith.constant 0 : index
    %41 = vector.load %arg3[%c3_20, %c0_21, %c0_22] : memref<9x64x1xf32, #tpu.memory_space<vmem>>, vector<1x64x1xf32>
    %42 = vector.shape_cast %41 : vector<1x64x1xf32> to vector<64x1xf32>
    %43 = vector.broadcast %42 : vector<64x1xf32> to vector<64x256xf32>
    %44 = vector.broadcast %40 : vector<1x256xf32> to vector<64x256xf32>
    %45 = arith.mulf %43, %44 : vector<64x256xf32>
    %46 = arith.addf %35, %45 : vector<64x256xf32>
    %c4 = arith.constant 4 : index
    %c0_23 = arith.constant 0 : index
    %c0_24 = arith.constant 0 : index
    %47 = vector.load %arg3[%c4, %c0_23, %c0_24] : memref<9x64x1xf32, #tpu.memory_space<vmem>>, vector<1x64x1xf32>
    %48 = vector.shape_cast %47 : vector<1x64x1xf32> to vector<64x1xf32>
    %49 = vector.broadcast %48 : vector<64x1xf32> to vector<64x256xf32>
    %50 = vector.broadcast %1 : vector<1x256xf32> to vector<64x256xf32>
    %51 = arith.mulf %49, %50 : vector<64x256xf32>
    %52 = arith.addf %46, %51 : vector<64x256xf32>
    %c255_i32 = arith.constant 255 : i32
    %53 = tpu.dynamic_rotate %1 by %c255_i32 dim 1 : vector<1x256xf32>, i32 -> vector<1x256xf32>
    %c5 = arith.constant 5 : index
    %c0_25 = arith.constant 0 : index
    %c0_26 = arith.constant 0 : index
    %54 = vector.load %arg2[%c5, %c0_25, %c0_26] : memref<9x1x256xbf16, #tpu.memory_space<vmem>>, vector<1x1x256xbf16>
    %55 = vector.shape_cast %54 : vector<1x1x256xbf16> to vector<1x256xbf16>
    %56 = arith.extf %55 : vector<1x256xbf16> to vector<1x256xf32>
    %57 = arith.mulf %53, %56 : vector<1x256xf32>
    %c5_27 = arith.constant 5 : index
    %c0_28 = arith.constant 0 : index
    %c0_29 = arith.constant 0 : index
    %58 = vector.load %arg3[%c5_27, %c0_28, %c0_29] : memref<9x64x1xf32, #tpu.memory_space<vmem>>, vector<1x64x1xf32>
    %59 = vector.shape_cast %58 : vector<1x64x1xf32> to vector<64x1xf32>
    %60 = vector.broadcast %59 : vector<64x1xf32> to vector<64x256xf32>
    %61 = vector.broadcast %57 : vector<1x256xf32> to vector<64x256xf32>
    %62 = arith.mulf %60, %61 : vector<64x256xf32>
    %63 = arith.addf %52, %62 : vector<64x256xf32>
    %c241_i32 = arith.constant 241 : i32
    %64 = tpu.dynamic_rotate %1 by %c241_i32 dim 1 : vector<1x256xf32>, i32 -> vector<1x256xf32>
    %c6 = arith.constant 6 : index
    %c0_30 = arith.constant 0 : index
    %c0_31 = arith.constant 0 : index
    %65 = vector.load %arg2[%c6, %c0_30, %c0_31] : memref<9x1x256xbf16, #tpu.memory_space<vmem>>, vector<1x1x256xbf16>
    %66 = vector.shape_cast %65 : vector<1x1x256xbf16> to vector<1x256xbf16>
    %67 = arith.extf %66 : vector<1x256xbf16> to vector<1x256xf32>
    %68 = arith.mulf %64, %67 : vector<1x256xf32>
    %c6_32 = arith.constant 6 : index
    %c0_33 = arith.constant 0 : index
    %c0_34 = arith.constant 0 : index
    %69 = vector.load %arg3[%c6_32, %c0_33, %c0_34] : memref<9x64x1xf32, #tpu.memory_space<vmem>>, vector<1x64x1xf32>
    %70 = vector.shape_cast %69 : vector<1x64x1xf32> to vector<64x1xf32>
    %71 = vector.broadcast %70 : vector<64x1xf32> to vector<64x256xf32>
    %72 = vector.broadcast %68 : vector<1x256xf32> to vector<64x256xf32>
    %73 = arith.mulf %71, %72 : vector<64x256xf32>
    %74 = arith.addf %63, %73 : vector<64x256xf32>
    %c240_i32 = arith.constant 240 : i32
    %75 = tpu.dynamic_rotate %1 by %c240_i32 dim 1 : vector<1x256xf32>, i32 -> vector<1x256xf32>
    %c7 = arith.constant 7 : index
    %c0_35 = arith.constant 0 : index
    %c0_36 = arith.constant 0 : index
    %76 = vector.load %arg2[%c7, %c0_35, %c0_36] : memref<9x1x256xbf16, #tpu.memory_space<vmem>>, vector<1x1x256xbf16>
    %77 = vector.shape_cast %76 : vector<1x1x256xbf16> to vector<1x256xbf16>
    %78 = arith.extf %77 : vector<1x256xbf16> to vector<1x256xf32>
    %79 = arith.mulf %75, %78 : vector<1x256xf32>
    %c7_37 = arith.constant 7 : index
    %c0_38 = arith.constant 0 : index
    %c0_39 = arith.constant 0 : index
    %80 = vector.load %arg3[%c7_37, %c0_38, %c0_39] : memref<9x64x1xf32, #tpu.memory_space<vmem>>, vector<1x64x1xf32>
    %81 = vector.shape_cast %80 : vector<1x64x1xf32> to vector<64x1xf32>
    %82 = vector.broadcast %81 : vector<64x1xf32> to vector<64x256xf32>
    %83 = vector.broadcast %79 : vector<1x256xf32> to vector<64x256xf32>
    %84 = arith.mulf %82, %83 : vector<64x256xf32>
    %85 = arith.addf %74, %84 : vector<64x256xf32>
    %c239_i32 = arith.constant 239 : i32
    %86 = tpu.dynamic_rotate %1 by %c239_i32 dim 1 : vector<1x256xf32>, i32 -> vector<1x256xf32>
    %c8 = arith.constant 8 : index
    %c0_40 = arith.constant 0 : index
    %c0_41 = arith.constant 0 : index
    %87 = vector.load %arg2[%c8, %c0_40, %c0_41] : memref<9x1x256xbf16, #tpu.memory_space<vmem>>, vector<1x1x256xbf16>
    %88 = vector.shape_cast %87 : vector<1x1x256xbf16> to vector<1x256xbf16>
    %89 = arith.extf %88 : vector<1x256xbf16> to vector<1x256xf32>
    %90 = arith.mulf %86, %89 : vector<1x256xf32>
    %c8_42 = arith.constant 8 : index
    %c0_43 = arith.constant 0 : index
    %c0_44 = arith.constant 0 : index
    %91 = vector.load %arg3[%c8_42, %c0_43, %c0_44] : memref<9x64x1xf32, #tpu.memory_space<vmem>>, vector<1x64x1xf32>
    %92 = vector.shape_cast %91 : vector<1x64x1xf32> to vector<64x1xf32>
    %93 = vector.broadcast %92 : vector<64x1xf32> to vector<64x256xf32>
    %94 = vector.broadcast %90 : vector<1x256xf32> to vector<64x256xf32>
    %95 = arith.mulf %93, %94 : vector<64x256xf32>
    %96 = arith.addf %85, %95 : vector<64x256xf32>
    %c0_45 = arith.constant 0 : index
    %c0_46 = arith.constant 0 : index
    %97 = vector.load %arg4[%c0_45, %c0_46] : memref<64x1xf32, #tpu.memory_space<vmem>>, vector<64x1xf32>
    %98 = vector.broadcast %97 : vector<64x1xf32> to vector<64x256xf32>
    %99 = arith.addf %96, %98 : vector<64x256xf32>
    %cst_47 = arith.constant 0.000000e+00 : f32
    %100 = vector.broadcast %cst_47 : f32 to vector<64x256xf32>
    %101 = arith.maximumf %99, %100 : vector<64x256xf32>
    %c0_48 = arith.constant 0 : index
    %c0_49 = arith.constant 0 : index
    %102 = vector.load %arg5[%c0_48, %c0_49] : memref<64x64xbf16, #tpu.memory_space<vmem>>, vector<64x64xbf16>
    %103 = arith.truncf %101 : vector<64x256xf32> to vector<64x256xbf16>
    %cst_50 = arith.constant dense<0.000000e+00> : vector<64x256xf32>
    %104 = tpu.matmul %102, %103, %cst_50 {dimension_numbers = #tpu.dot_dimension_numbers<[1], [0], [0], [1], [0, 0, 1, 1], [], []>} : vector<64x64xbf16>, vector<64x256xbf16>, vector<64x256xf32> -> vector<64x256xf32>
    %c0_51 = arith.constant 0 : index
    %c0_52 = arith.constant 0 : index
    %105 = vector.load %arg6[%c0_51, %c0_52] : memref<64x1xf32, #tpu.memory_space<vmem>>, vector<64x1xf32>
    %106 = vector.broadcast %105 : vector<64x1xf32> to vector<64x256xf32>
    %107 = arith.addf %104, %106 : vector<64x256xf32>
    %cst_53 = arith.constant 0.000000e+00 : f32
    %108 = vector.broadcast %cst_53 : f32 to vector<64x256xf32>
    %c17_i32_54 = arith.constant 17 : i32
    %109 = tpu.dynamic_rotate %107 by %c17_i32_54 dim 1 : vector<64x256xf32>, i32 -> vector<64x256xf32>
    %110 = arith.truncf %109 : vector<64x256xf32> to vector<64x256xbf16>
    %c0_55 = arith.constant 0 : index
    %c0_56 = arith.constant 0 : index
    %c0_57 = arith.constant 0 : index
    %111 = vector.load %arg2[%c0_55, %c0_56, %c0_57] : memref<9x1x256xbf16, #tpu.memory_space<vmem>>, vector<1x1x256xbf16>
    %112 = vector.shape_cast %111 : vector<1x1x256xbf16> to vector<1x256xbf16>
    %113 = vector.broadcast %112 : vector<1x256xbf16> to vector<64x256xbf16>
    %114 = arith.mulf %110, %113 : vector<64x256xbf16>
    %c0_58 = arith.constant 0 : index
    %c0_59 = arith.constant 0 : index
    %c0_60 = arith.constant 0 : index
    %115 = vector.load %arg7[%c0_58, %c0_59, %c0_60] : memref<9x64x64xbf16, #tpu.memory_space<vmem>>, vector<1x64x64xbf16>
    %116 = vector.shape_cast %115 : vector<1x64x64xbf16> to vector<64x64xbf16>
    %cst_61 = arith.constant dense<0.000000e+00> : vector<64x256xf32>
    %117 = tpu.matmul %116, %114, %cst_61 {dimension_numbers = #tpu.dot_dimension_numbers<[1], [0], [0], [1], [0, 0, 1, 1], [], []>} : vector<64x64xbf16>, vector<64x256xbf16>, vector<64x256xf32> -> vector<64x256xf32>
    %118 = arith.addf %108, %117 : vector<64x256xf32>
    %c16_i32_62 = arith.constant 16 : i32
    %119 = tpu.dynamic_rotate %107 by %c16_i32_62 dim 1 : vector<64x256xf32>, i32 -> vector<64x256xf32>
    %120 = arith.truncf %119 : vector<64x256xf32> to vector<64x256xbf16>
    %c1_63 = arith.constant 1 : index
    %c0_64 = arith.constant 0 : index
    %c0_65 = arith.constant 0 : index
    %121 = vector.load %arg2[%c1_63, %c0_64, %c0_65] : memref<9x1x256xbf16, #tpu.memory_space<vmem>>, vector<1x1x256xbf16>
    %122 = vector.shape_cast %121 : vector<1x1x256xbf16> to vector<1x256xbf16>
    %123 = vector.broadcast %122 : vector<1x256xbf16> to vector<64x256xbf16>
    %124 = arith.mulf %120, %123 : vector<64x256xbf16>
    %c1_66 = arith.constant 1 : index
    %c0_67 = arith.constant 0 : index
    %c0_68 = arith.constant 0 : index
    %125 = vector.load %arg7[%c1_66, %c0_67, %c0_68] : memref<9x64x64xbf16, #tpu.memory_space<vmem>>, vector<1x64x64xbf16>
    %126 = vector.shape_cast %125 : vector<1x64x64xbf16> to vector<64x64xbf16>
    %cst_69 = arith.constant dense<0.000000e+00> : vector<64x256xf32>
    %127 = tpu.matmul %126, %124, %cst_69 {dimension_numbers = #tpu.dot_dimension_numbers<[1], [0], [0], [1], [0, 0, 1, 1], [], []>} : vector<64x64xbf16>, vector<64x256xbf16>, vector<64x256xf32> -> vector<64x256xf32>
    %128 = arith.addf %118, %127 : vector<64x256xf32>
    %c15_i32_70 = arith.constant 15 : i32
    %129 = tpu.dynamic_rotate %107 by %c15_i32_70 dim 1 : vector<64x256xf32>, i32 -> vector<64x256xf32>
    %130 = arith.truncf %129 : vector<64x256xf32> to vector<64x256xbf16>
    %c2_71 = arith.constant 2 : index
    %c0_72 = arith.constant 0 : index
    %c0_73 = arith.constant 0 : index
    %131 = vector.load %arg2[%c2_71, %c0_72, %c0_73] : memref<9x1x256xbf16, #tpu.memory_space<vmem>>, vector<1x1x256xbf16>
    %132 = vector.shape_cast %131 : vector<1x1x256xbf16> to vector<1x256xbf16>
    %133 = vector.broadcast %132 : vector<1x256xbf16> to vector<64x256xbf16>
    %134 = arith.mulf %130, %133 : vector<64x256xbf16>
    %c2_74 = arith.constant 2 : index
    %c0_75 = arith.constant 0 : index
    %c0_76 = arith.constant 0 : index
    %135 = vector.load %arg7[%c2_74, %c0_75, %c0_76] : memref<9x64x64xbf16, #tpu.memory_space<vmem>>, vector<1x64x64xbf16>
    %136 = vector.shape_cast %135 : vector<1x64x64xbf16> to vector<64x64xbf16>
    %cst_77 = arith.constant dense<0.000000e+00> : vector<64x256xf32>
    %137 = tpu.matmul %136, %134, %cst_77 {dimension_numbers = #tpu.dot_dimension_numbers<[1], [0], [0], [1], [0, 0, 1, 1], [], []>} : vector<64x64xbf16>, vector<64x256xbf16>, vector<64x256xf32> -> vector<64x256xf32>
    %138 = arith.addf %128, %137 : vector<64x256xf32>
    %c1_i32_78 = arith.constant 1 : i32
    %139 = tpu.dynamic_rotate %107 by %c1_i32_78 dim 1 : vector<64x256xf32>, i32 -> vector<64x256xf32>
    %140 = arith.truncf %139 : vector<64x256xf32> to vector<64x256xbf16>
    %c3_79 = arith.constant 3 : index
    %c0_80 = arith.constant 0 : index
    %c0_81 = arith.constant 0 : index
    %141 = vector.load %arg2[%c3_79, %c0_80, %c0_81] : memref<9x1x256xbf16, #tpu.memory_space<vmem>>, vector<1x1x256xbf16>
    %142 = vector.shape_cast %141 : vector<1x1x256xbf16> to vector<1x256xbf16>
    %143 = vector.broadcast %142 : vector<1x256xbf16> to vector<64x256xbf16>
    %144 = arith.mulf %140, %143 : vector<64x256xbf16>
    %c3_82 = arith.constant 3 : index
    %c0_83 = arith.constant 0 : index
    %c0_84 = arith.constant 0 : index
    %145 = vector.load %arg7[%c3_82, %c0_83, %c0_84] : memref<9x64x64xbf16, #tpu.memory_space<vmem>>, vector<1x64x64xbf16>
    %146 = vector.shape_cast %145 : vector<1x64x64xbf16> to vector<64x64xbf16>
    %cst_85 = arith.constant dense<0.000000e+00> : vector<64x256xf32>
    %147 = tpu.matmul %146, %144, %cst_85 {dimension_numbers = #tpu.dot_dimension_numbers<[1], [0], [0], [1], [0, 0, 1, 1], [], []>} : vector<64x64xbf16>, vector<64x256xbf16>, vector<64x256xf32> -> vector<64x256xf32>
    %148 = arith.addf %138, %147 : vector<64x256xf32>
    %149 = arith.truncf %107 : vector<64x256xf32> to vector<64x256xbf16>
    %c4_86 = arith.constant 4 : index
    %c0_87 = arith.constant 0 : index
    %c0_88 = arith.constant 0 : index
    %150 = vector.load %arg7[%c4_86, %c0_87, %c0_88] : memref<9x64x64xbf16, #tpu.memory_space<vmem>>, vector<1x64x64xbf16>
    %151 = vector.shape_cast %150 : vector<1x64x64xbf16> to vector<64x64xbf16>
    %cst_89 = arith.constant dense<0.000000e+00> : vector<64x256xf32>
    %152 = tpu.matmul %151, %149, %cst_89 {dimension_numbers = #tpu.dot_dimension_numbers<[1], [0], [0], [1], [0, 0, 1, 1], [], []>} : vector<64x64xbf16>, vector<64x256xbf16>, vector<64x256xf32> -> vector<64x256xf32>
    %153 = arith.addf %148, %152 : vector<64x256xf32>
    %c255_i32_90 = arith.constant 255 : i32
    %154 = tpu.dynamic_rotate %107 by %c255_i32_90 dim 1 : vector<64x256xf32>, i32 -> vector<64x256xf32>
    %155 = arith.truncf %154 : vector<64x256xf32> to vector<64x256xbf16>
    %c5_91 = arith.constant 5 : index
    %c0_92 = arith.constant 0 : index
    %c0_93 = arith.constant 0 : index
    %156 = vector.load %arg2[%c5_91, %c0_92, %c0_93] : memref<9x1x256xbf16, #tpu.memory_space<vmem>>, vector<1x1x256xbf16>
    %157 = vector.shape_cast %156 : vector<1x1x256xbf16> to vector<1x256xbf16>
    %158 = vector.broadcast %157 : vector<1x256xbf16> to vector<64x256xbf16>
    %159 = arith.mulf %155, %158 : vector<64x256xbf16>
    %c5_94 = arith.constant 5 : index
    %c0_95 = arith.constant 0 : index
    %c0_96 = arith.constant 0 : index
    %160 = vector.load %arg7[%c5_94, %c0_95, %c0_96] : memref<9x64x64xbf16, #tpu.memory_space<vmem>>, vector<1x64x64xbf16>
    %161 = vector.shape_cast %160 : vector<1x64x64xbf16> to vector<64x64xbf16>
    %cst_97 = arith.constant dense<0.000000e+00> : vector<64x256xf32>
    %162 = tpu.matmul %161, %159, %cst_97 {dimension_numbers = #tpu.dot_dimension_numbers<[1], [0], [0], [1], [0, 0, 1, 1], [], []>} : vector<64x64xbf16>, vector<64x256xbf16>, vector<64x256xf32> -> vector<64x256xf32>
    %163 = arith.addf %153, %162 : vector<64x256xf32>
    %c241_i32_98 = arith.constant 241 : i32
    %164 = tpu.dynamic_rotate %107 by %c241_i32_98 dim 1 : vector<64x256xf32>, i32 -> vector<64x256xf32>
    %165 = arith.truncf %164 : vector<64x256xf32> to vector<64x256xbf16>
    %c6_99 = arith.constant 6 : index
    %c0_100 = arith.constant 0 : index
    %c0_101 = arith.constant 0 : index
    %166 = vector.load %arg2[%c6_99, %c0_100, %c0_101] : memref<9x1x256xbf16, #tpu.memory_space<vmem>>, vector<1x1x256xbf16>
    %167 = vector.shape_cast %166 : vector<1x1x256xbf16> to vector<1x256xbf16>
    %168 = vector.broadcast %167 : vector<1x256xbf16> to vector<64x256xbf16>
    %169 = arith.mulf %165, %168 : vector<64x256xbf16>
    %c6_102 = arith.constant 6 : index
    %c0_103 = arith.constant 0 : index
    %c0_104 = arith.constant 0 : index
    %170 = vector.load %arg7[%c6_102, %c0_103, %c0_104] : memref<9x64x64xbf16, #tpu.memory_space<vmem>>, vector<1x64x64xbf16>
    %171 = vector.shape_cast %170 : vector<1x64x64xbf16> to vector<64x64xbf16>
    %cst_105 = arith.constant dense<0.000000e+00> : vector<64x256xf32>
    %172 = tpu.matmul %171, %169, %cst_105 {dimension_numbers = #tpu.dot_dimension_numbers<[1], [0], [0], [1], [0, 0, 1, 1], [], []>} : vector<64x64xbf16>, vector<64x256xbf16>, vector<64x256xf32> -> vector<64x256xf32>
    %173 = arith.addf %163, %172 : vector<64x256xf32>
    %c240_i32_106 = arith.constant 240 : i32
    %174 = tpu.dynamic_rotate %107 by %c240_i32_106 dim 1 : vector<64x256xf32>, i32 -> vector<64x256xf32>
    %175 = arith.truncf %174 : vector<64x256xf32> to vector<64x256xbf16>
    %c7_107 = arith.constant 7 : index
    %c0_108 = arith.constant 0 : index
    %c0_109 = arith.constant 0 : index
    %176 = vector.load %arg2[%c7_107, %c0_108, %c0_109] : memref<9x1x256xbf16, #tpu.memory_space<vmem>>, vector<1x1x256xbf16>
    %177 = vector.shape_cast %176 : vector<1x1x256xbf16> to vector<1x256xbf16>
    %178 = vector.broadcast %177 : vector<1x256xbf16> to vector<64x256xbf16>
    %179 = arith.mulf %175, %178 : vector<64x256xbf16>
    %c7_110 = arith.constant 7 : index
    %c0_111 = arith.constant 0 : index
    %c0_112 = arith.constant 0 : index
    %180 = vector.load %arg7[%c7_110, %c0_111, %c0_112] : memref<9x64x64xbf16, #tpu.memory_space<vmem>>, vector<1x64x64xbf16>
    %181 = vector.shape_cast %180 : vector<1x64x64xbf16> to vector<64x64xbf16>
    %cst_113 = arith.constant dense<0.000000e+00> : vector<64x256xf32>
    %182 = tpu.matmul %181, %179, %cst_113 {dimension_numbers = #tpu.dot_dimension_numbers<[1], [0], [0], [1], [0, 0, 1, 1], [], []>} : vector<64x64xbf16>, vector<64x256xbf16>, vector<64x256xf32> -> vector<64x256xf32>
    %183 = arith.addf %173, %182 : vector<64x256xf32>
    %c239_i32_114 = arith.constant 239 : i32
    %184 = tpu.dynamic_rotate %107 by %c239_i32_114 dim 1 : vector<64x256xf32>, i32 -> vector<64x256xf32>
    %185 = arith.truncf %184 : vector<64x256xf32> to vector<64x256xbf16>
    %c8_115 = arith.constant 8 : index
    %c0_116 = arith.constant 0 : index
    %c0_117 = arith.constant 0 : index
    %186 = vector.load %arg2[%c8_115, %c0_116, %c0_117] : memref<9x1x256xbf16, #tpu.memory_space<vmem>>, vector<1x1x256xbf16>
    %187 = vector.shape_cast %186 : vector<1x1x256xbf16> to vector<1x256xbf16>
    %188 = vector.broadcast %187 : vector<1x256xbf16> to vector<64x256xbf16>
    %189 = arith.mulf %185, %188 : vector<64x256xbf16>
    %c8_118 = arith.constant 8 : index
    %c0_119 = arith.constant 0 : index
    %c0_120 = arith.constant 0 : index
    %190 = vector.load %arg7[%c8_118, %c0_119, %c0_120] : memref<9x64x64xbf16, #tpu.memory_space<vmem>>, vector<1x64x64xbf16>
    %191 = vector.shape_cast %190 : vector<1x64x64xbf16> to vector<64x64xbf16>
    %cst_121 = arith.constant dense<0.000000e+00> : vector<64x256xf32>
    %192 = tpu.matmul %191, %189, %cst_121 {dimension_numbers = #tpu.dot_dimension_numbers<[1], [0], [0], [1], [0, 0, 1, 1], [], []>} : vector<64x64xbf16>, vector<64x256xbf16>, vector<64x256xf32> -> vector<64x256xf32>
    %193 = arith.addf %183, %192 : vector<64x256xf32>
    %c0_122 = arith.constant 0 : index
    %c0_123 = arith.constant 0 : index
    %194 = vector.load %arg8[%c0_122, %c0_123] : memref<64x1xf32, #tpu.memory_space<vmem>>, vector<64x1xf32>
    %195 = vector.broadcast %194 : vector<64x1xf32> to vector<64x256xf32>
    %196 = arith.addf %193, %195 : vector<64x256xf32>
    %cst_124 = arith.constant 0.000000e+00 : f32
    %197 = vector.broadcast %cst_124 : f32 to vector<64x256xf32>
    %198 = arith.maximumf %196, %197 : vector<64x256xf32>
    %cst_125 = arith.constant 0.000000e+00 : f32
    %199 = vector.broadcast %cst_125 : f32 to vector<32x256xf32>
    %c17_i32_126 = arith.constant 17 : i32
    %200 = tpu.dynamic_rotate %198 by %c17_i32_126 dim 1 : vector<64x256xf32>, i32 -> vector<64x256xf32>
    %201 = arith.truncf %200 : vector<64x256xf32> to vector<64x256xbf16>
    %c0_127 = arith.constant 0 : index
    %c0_128 = arith.constant 0 : index
    %c0_129 = arith.constant 0 : index
    %202 = vector.load %arg2[%c0_127, %c0_128, %c0_129] : memref<9x1x256xbf16, #tpu.memory_space<vmem>>, vector<1x1x256xbf16>
    %203 = vector.shape_cast %202 : vector<1x1x256xbf16> to vector<1x256xbf16>
    %204 = vector.broadcast %203 : vector<1x256xbf16> to vector<64x256xbf16>
    %205 = arith.mulf %201, %204 : vector<64x256xbf16>
    %c0_130 = arith.constant 0 : index
    %c0_131 = arith.constant 0 : index
    %c0_132 = arith.constant 0 : index
    %206 = vector.load %arg9[%c0_130, %c0_131, %c0_132] : memref<9x32x64xbf16, #tpu.memory_space<vmem>>, vector<1x32x64xbf16>
    %207 = vector.shape_cast %206 : vector<1x32x64xbf16> to vector<32x64xbf16>
    %cst_133 = arith.constant dense<0.000000e+00> : vector<32x256xf32>
    %208 = tpu.matmul %207, %205, %cst_133 {dimension_numbers = #tpu.dot_dimension_numbers<[1], [0], [0], [1], [0, 0, 1, 1], [], []>} : vector<32x64xbf16>, vector<64x256xbf16>, vector<32x256xf32> -> vector<32x256xf32>
    %209 = arith.addf %199, %208 : vector<32x256xf32>
    %c16_i32_134 = arith.constant 16 : i32
    %210 = tpu.dynamic_rotate %198 by %c16_i32_134 dim 1 : vector<64x256xf32>, i32 -> vector<64x256xf32>
    %211 = arith.truncf %210 : vector<64x256xf32> to vector<64x256xbf16>
    %c1_135 = arith.constant 1 : index
    %c0_136 = arith.constant 0 : index
    %c0_137 = arith.constant 0 : index
    %212 = vector.load %arg2[%c1_135, %c0_136, %c0_137] : memref<9x1x256xbf16, #tpu.memory_space<vmem>>, vector<1x1x256xbf16>
    %213 = vector.shape_cast %212 : vector<1x1x256xbf16> to vector<1x256xbf16>
    %214 = vector.broadcast %213 : vector<1x256xbf16> to vector<64x256xbf16>
    %215 = arith.mulf %211, %214 : vector<64x256xbf16>
    %c1_138 = arith.constant 1 : index
    %c0_139 = arith.constant 0 : index
    %c0_140 = arith.constant 0 : index
    %216 = vector.load %arg9[%c1_138, %c0_139, %c0_140] : memref<9x32x64xbf16, #tpu.memory_space<vmem>>, vector<1x32x64xbf16>
    %217 = vector.shape_cast %216 : vector<1x32x64xbf16> to vector<32x64xbf16>
    %cst_141 = arith.constant dense<0.000000e+00> : vector<32x256xf32>
    %218 = tpu.matmul %217, %215, %cst_141 {dimension_numbers = #tpu.dot_dimension_numbers<[1], [0], [0], [1], [0, 0, 1, 1], [], []>} : vector<32x64xbf16>, vector<64x256xbf16>, vector<32x256xf32> -> vector<32x256xf32>
    %219 = arith.addf %209, %218 : vector<32x256xf32>
    %c15_i32_142 = arith.constant 15 : i32
    %220 = tpu.dynamic_rotate %198 by %c15_i32_142 dim 1 : vector<64x256xf32>, i32 -> vector<64x256xf32>
    %221 = arith.truncf %220 : vector<64x256xf32> to vector<64x256xbf16>
    %c2_143 = arith.constant 2 : index
    %c0_144 = arith.constant 0 : index
    %c0_145 = arith.constant 0 : index
    %222 = vector.load %arg2[%c2_143, %c0_144, %c0_145] : memref<9x1x256xbf16, #tpu.memory_space<vmem>>, vector<1x1x256xbf16>
    %223 = vector.shape_cast %222 : vector<1x1x256xbf16> to vector<1x256xbf16>
    %224 = vector.broadcast %223 : vector<1x256xbf16> to vector<64x256xbf16>
    %225 = arith.mulf %221, %224 : vector<64x256xbf16>
    %c2_146 = arith.constant 2 : index
    %c0_147 = arith.constant 0 : index
    %c0_148 = arith.constant 0 : index
    %226 = vector.load %arg9[%c2_146, %c0_147, %c0_148] : memref<9x32x64xbf16, #tpu.memory_space<vmem>>, vector<1x32x64xbf16>
    %227 = vector.shape_cast %226 : vector<1x32x64xbf16> to vector<32x64xbf16>
    %cst_149 = arith.constant dense<0.000000e+00> : vector<32x256xf32>
    %228 = tpu.matmul %227, %225, %cst_149 {dimension_numbers = #tpu.dot_dimension_numbers<[1], [0], [0], [1], [0, 0, 1, 1], [], []>} : vector<32x64xbf16>, vector<64x256xbf16>, vector<32x256xf32> -> vector<32x256xf32>
    %229 = arith.addf %219, %228 : vector<32x256xf32>
    %c1_i32_150 = arith.constant 1 : i32
    %230 = tpu.dynamic_rotate %198 by %c1_i32_150 dim 1 : vector<64x256xf32>, i32 -> vector<64x256xf32>
    %231 = arith.truncf %230 : vector<64x256xf32> to vector<64x256xbf16>
    %c3_151 = arith.constant 3 : index
    %c0_152 = arith.constant 0 : index
    %c0_153 = arith.constant 0 : index
    %232 = vector.load %arg2[%c3_151, %c0_152, %c0_153] : memref<9x1x256xbf16, #tpu.memory_space<vmem>>, vector<1x1x256xbf16>
    %233 = vector.shape_cast %232 : vector<1x1x256xbf16> to vector<1x256xbf16>
    %234 = vector.broadcast %233 : vector<1x256xbf16> to vector<64x256xbf16>
    %235 = arith.mulf %231, %234 : vector<64x256xbf16>
    %c3_154 = arith.constant 3 : index
    %c0_155 = arith.constant 0 : index
    %c0_156 = arith.constant 0 : index
    %236 = vector.load %arg9[%c3_154, %c0_155, %c0_156] : memref<9x32x64xbf16, #tpu.memory_space<vmem>>, vector<1x32x64xbf16>
    %237 = vector.shape_cast %236 : vector<1x32x64xbf16> to vector<32x64xbf16>
    %cst_157 = arith.constant dense<0.000000e+00> : vector<32x256xf32>
    %238 = tpu.matmul %237, %235, %cst_157 {dimension_numbers = #tpu.dot_dimension_numbers<[1], [0], [0], [1], [0, 0, 1, 1], [], []>} : vector<32x64xbf16>, vector<64x256xbf16>, vector<32x256xf32> -> vector<32x256xf32>
    %239 = arith.addf %229, %238 : vector<32x256xf32>
    %240 = arith.truncf %198 : vector<64x256xf32> to vector<64x256xbf16>
    %c4_158 = arith.constant 4 : index
    %c0_159 = arith.constant 0 : index
    %c0_160 = arith.constant 0 : index
    %241 = vector.load %arg9[%c4_158, %c0_159, %c0_160] : memref<9x32x64xbf16, #tpu.memory_space<vmem>>, vector<1x32x64xbf16>
    %242 = vector.shape_cast %241 : vector<1x32x64xbf16> to vector<32x64xbf16>
    %cst_161 = arith.constant dense<0.000000e+00> : vector<32x256xf32>
    %243 = tpu.matmul %242, %240, %cst_161 {dimension_numbers = #tpu.dot_dimension_numbers<[1], [0], [0], [1], [0, 0, 1, 1], [], []>} : vector<32x64xbf16>, vector<64x256xbf16>, vector<32x256xf32> -> vector<32x256xf32>
    %244 = arith.addf %239, %243 : vector<32x256xf32>
    %c255_i32_162 = arith.constant 255 : i32
    %245 = tpu.dynamic_rotate %198 by %c255_i32_162 dim 1 : vector<64x256xf32>, i32 -> vector<64x256xf32>
    %246 = arith.truncf %245 : vector<64x256xf32> to vector<64x256xbf16>
    %c5_163 = arith.constant 5 : index
    %c0_164 = arith.constant 0 : index
    %c0_165 = arith.constant 0 : index
    %247 = vector.load %arg2[%c5_163, %c0_164, %c0_165] : memref<9x1x256xbf16, #tpu.memory_space<vmem>>, vector<1x1x256xbf16>
    %248 = vector.shape_cast %247 : vector<1x1x256xbf16> to vector<1x256xbf16>
    %249 = vector.broadcast %248 : vector<1x256xbf16> to vector<64x256xbf16>
    %250 = arith.mulf %246, %249 : vector<64x256xbf16>
    %c5_166 = arith.constant 5 : index
    %c0_167 = arith.constant 0 : index
    %c0_168 = arith.constant 0 : index
    %251 = vector.load %arg9[%c5_166, %c0_167, %c0_168] : memref<9x32x64xbf16, #tpu.memory_space<vmem>>, vector<1x32x64xbf16>
    %252 = vector.shape_cast %251 : vector<1x32x64xbf16> to vector<32x64xbf16>
    %cst_169 = arith.constant dense<0.000000e+00> : vector<32x256xf32>
    %253 = tpu.matmul %252, %250, %cst_169 {dimension_numbers = #tpu.dot_dimension_numbers<[1], [0], [0], [1], [0, 0, 1, 1], [], []>} : vector<32x64xbf16>, vector<64x256xbf16>, vector<32x256xf32> -> vector<32x256xf32>
    %254 = arith.addf %244, %253 : vector<32x256xf32>
    %c241_i32_170 = arith.constant 241 : i32
    %255 = tpu.dynamic_rotate %198 by %c241_i32_170 dim 1 : vector<64x256xf32>, i32 -> vector<64x256xf32>
    %256 = arith.truncf %255 : vector<64x256xf32> to vector<64x256xbf16>
    %c6_171 = arith.constant 6 : index
    %c0_172 = arith.constant 0 : index
    %c0_173 = arith.constant 0 : index
    %257 = vector.load %arg2[%c6_171, %c0_172, %c0_173] : memref<9x1x256xbf16, #tpu.memory_space<vmem>>, vector<1x1x256xbf16>
    %258 = vector.shape_cast %257 : vector<1x1x256xbf16> to vector<1x256xbf16>
    %259 = vector.broadcast %258 : vector<1x256xbf16> to vector<64x256xbf16>
    %260 = arith.mulf %256, %259 : vector<64x256xbf16>
    %c6_174 = arith.constant 6 : index
    %c0_175 = arith.constant 0 : index
    %c0_176 = arith.constant 0 : index
    %261 = vector.load %arg9[%c6_174, %c0_175, %c0_176] : memref<9x32x64xbf16, #tpu.memory_space<vmem>>, vector<1x32x64xbf16>
    %262 = vector.shape_cast %261 : vector<1x32x64xbf16> to vector<32x64xbf16>
    %cst_177 = arith.constant dense<0.000000e+00> : vector<32x256xf32>
    %263 = tpu.matmul %262, %260, %cst_177 {dimension_numbers = #tpu.dot_dimension_numbers<[1], [0], [0], [1], [0, 0, 1, 1], [], []>} : vector<32x64xbf16>, vector<64x256xbf16>, vector<32x256xf32> -> vector<32x256xf32>
    %264 = arith.addf %254, %263 : vector<32x256xf32>
    %c240_i32_178 = arith.constant 240 : i32
    %265 = tpu.dynamic_rotate %198 by %c240_i32_178 dim 1 : vector<64x256xf32>, i32 -> vector<64x256xf32>
    %266 = arith.truncf %265 : vector<64x256xf32> to vector<64x256xbf16>
    %c7_179 = arith.constant 7 : index
    %c0_180 = arith.constant 0 : index
    %c0_181 = arith.constant 0 : index
    %267 = vector.load %arg2[%c7_179, %c0_180, %c0_181] : memref<9x1x256xbf16, #tpu.memory_space<vmem>>, vector<1x1x256xbf16>
    %268 = vector.shape_cast %267 : vector<1x1x256xbf16> to vector<1x256xbf16>
    %269 = vector.broadcast %268 : vector<1x256xbf16> to vector<64x256xbf16>
    %270 = arith.mulf %266, %269 : vector<64x256xbf16>
    %c7_182 = arith.constant 7 : index
    %c0_183 = arith.constant 0 : index
    %c0_184 = arith.constant 0 : index
    %271 = vector.load %arg9[%c7_182, %c0_183, %c0_184] : memref<9x32x64xbf16, #tpu.memory_space<vmem>>, vector<1x32x64xbf16>
    %272 = vector.shape_cast %271 : vector<1x32x64xbf16> to vector<32x64xbf16>
    %cst_185 = arith.constant dense<0.000000e+00> : vector<32x256xf32>
    %273 = tpu.matmul %272, %270, %cst_185 {dimension_numbers = #tpu.dot_dimension_numbers<[1], [0], [0], [1], [0, 0, 1, 1], [], []>} : vector<32x64xbf16>, vector<64x256xbf16>, vector<32x256xf32> -> vector<32x256xf32>
    %274 = arith.addf %264, %273 : vector<32x256xf32>
    %c239_i32_186 = arith.constant 239 : i32
    %275 = tpu.dynamic_rotate %198 by %c239_i32_186 dim 1 : vector<64x256xf32>, i32 -> vector<64x256xf32>
    %276 = arith.truncf %275 : vector<64x256xf32> to vector<64x256xbf16>
    %c8_187 = arith.constant 8 : index
    %c0_188 = arith.constant 0 : index
    %c0_189 = arith.constant 0 : index
    %277 = vector.load %arg2[%c8_187, %c0_188, %c0_189] : memref<9x1x256xbf16, #tpu.memory_space<vmem>>, vector<1x1x256xbf16>
    %278 = vector.shape_cast %277 : vector<1x1x256xbf16> to vector<1x256xbf16>
    %279 = vector.broadcast %278 : vector<1x256xbf16> to vector<64x256xbf16>
    %280 = arith.mulf %276, %279 : vector<64x256xbf16>
    %c8_190 = arith.constant 8 : index
    %c0_191 = arith.constant 0 : index
    %c0_192 = arith.constant 0 : index
    %281 = vector.load %arg9[%c8_190, %c0_191, %c0_192] : memref<9x32x64xbf16, #tpu.memory_space<vmem>>, vector<1x32x64xbf16>
    %282 = vector.shape_cast %281 : vector<1x32x64xbf16> to vector<32x64xbf16>
    %cst_193 = arith.constant dense<0.000000e+00> : vector<32x256xf32>
    %283 = tpu.matmul %282, %280, %cst_193 {dimension_numbers = #tpu.dot_dimension_numbers<[1], [0], [0], [1], [0, 0, 1, 1], [], []>} : vector<32x64xbf16>, vector<64x256xbf16>, vector<32x256xf32> -> vector<32x256xf32>
    %284 = arith.addf %274, %283 : vector<32x256xf32>
    %c0_194 = arith.constant 0 : index
    %c0_195 = arith.constant 0 : index
    %285 = vector.load %arg10[%c0_194, %c0_195] : memref<32x1xf32, #tpu.memory_space<vmem>>, vector<32x1xf32>
    %286 = vector.broadcast %285 : vector<32x1xf32> to vector<32x256xf32>
    %287 = arith.addf %284, %286 : vector<32x256xf32>
    %cst_196 = arith.constant 0.000000e+00 : f32
    %288 = vector.broadcast %cst_196 : f32 to vector<32x256xf32>
    %289 = arith.maximumf %287, %288 : vector<32x256xf32>
    %c0_197 = arith.constant 0 : index
    %c0_198 = arith.constant 0 : index
    %290 = vector.load %arg11[%c0_197, %c0_198] : memref<64x32xbf16, #tpu.memory_space<vmem>>, vector<64x32xbf16>
    %291 = arith.truncf %289 : vector<32x256xf32> to vector<32x256xbf16>
    %cst_199 = arith.constant dense<0.000000e+00> : vector<64x256xf32>
    %292 = tpu.matmul %290, %291, %cst_199 {dimension_numbers = #tpu.dot_dimension_numbers<[1], [0], [0], [1], [0, 0, 1, 1], [], []>} : vector<64x32xbf16>, vector<32x256xbf16>, vector<64x256xf32> -> vector<64x256xf32>
    %c0_200 = arith.constant 0 : index
    %c0_201 = arith.constant 0 : index
    %293 = vector.load %arg12[%c0_200, %c0_201] : memref<64x1xf32, #tpu.memory_space<vmem>>, vector<64x1xf32>
    %294 = vector.broadcast %293 : vector<64x1xf32> to vector<64x256xf32>
    %295 = arith.addf %292, %294 : vector<64x256xf32>
    %cst_202 = arith.constant 0.000000e+00 : f32
    %296 = vector.broadcast %cst_202 : f32 to vector<32x256xf32>
    %c17_i32_203 = arith.constant 17 : i32
    %297 = tpu.dynamic_rotate %295 by %c17_i32_203 dim 1 : vector<64x256xf32>, i32 -> vector<64x256xf32>
    %298 = arith.truncf %297 : vector<64x256xf32> to vector<64x256xbf16>
    %c0_204 = arith.constant 0 : index
    %c0_205 = arith.constant 0 : index
    %c0_206 = arith.constant 0 : index
    %299 = vector.load %arg2[%c0_204, %c0_205, %c0_206] : memref<9x1x256xbf16, #tpu.memory_space<vmem>>, vector<1x1x256xbf16>
    %300 = vector.shape_cast %299 : vector<1x1x256xbf16> to vector<1x256xbf16>
    %301 = vector.broadcast %300 : vector<1x256xbf16> to vector<64x256xbf16>
    %302 = arith.mulf %298, %301 : vector<64x256xbf16>
    %c0_207 = arith.constant 0 : index
    %c0_208 = arith.constant 0 : index
    %c0_209 = arith.constant 0 : index
    %303 = vector.load %arg13[%c0_207, %c0_208, %c0_209] : memref<9x32x64xbf16, #tpu.memory_space<vmem>>, vector<1x32x64xbf16>
    %304 = vector.shape_cast %303 : vector<1x32x64xbf16> to vector<32x64xbf16>
    %cst_210 = arith.constant dense<0.000000e+00> : vector<32x256xf32>
    %305 = tpu.matmul %304, %302, %cst_210 {dimension_numbers = #tpu.dot_dimension_numbers<[1], [0], [0], [1], [0, 0, 1, 1], [], []>} : vector<32x64xbf16>, vector<64x256xbf16>, vector<32x256xf32> -> vector<32x256xf32>
    %306 = arith.addf %296, %305 : vector<32x256xf32>
    %c16_i32_211 = arith.constant 16 : i32
    %307 = tpu.dynamic_rotate %295 by %c16_i32_211 dim 1 : vector<64x256xf32>, i32 -> vector<64x256xf32>
    %308 = arith.truncf %307 : vector<64x256xf32> to vector<64x256xbf16>
    %c1_212 = arith.constant 1 : index
    %c0_213 = arith.constant 0 : index
    %c0_214 = arith.constant 0 : index
    %309 = vector.load %arg2[%c1_212, %c0_213, %c0_214] : memref<9x1x256xbf16, #tpu.memory_space<vmem>>, vector<1x1x256xbf16>
    %310 = vector.shape_cast %309 : vector<1x1x256xbf16> to vector<1x256xbf16>
    %311 = vector.broadcast %310 : vector<1x256xbf16> to vector<64x256xbf16>
    %312 = arith.mulf %308, %311 : vector<64x256xbf16>
    %c1_215 = arith.constant 1 : index
    %c0_216 = arith.constant 0 : index
    %c0_217 = arith.constant 0 : index
    %313 = vector.load %arg13[%c1_215, %c0_216, %c0_217] : memref<9x32x64xbf16, #tpu.memory_space<vmem>>, vector<1x32x64xbf16>
    %314 = vector.shape_cast %313 : vector<1x32x64xbf16> to vector<32x64xbf16>
    %cst_218 = arith.constant dense<0.000000e+00> : vector<32x256xf32>
    %315 = tpu.matmul %314, %312, %cst_218 {dimension_numbers = #tpu.dot_dimension_numbers<[1], [0], [0], [1], [0, 0, 1, 1], [], []>} : vector<32x64xbf16>, vector<64x256xbf16>, vector<32x256xf32> -> vector<32x256xf32>
    %316 = arith.addf %306, %315 : vector<32x256xf32>
    %c15_i32_219 = arith.constant 15 : i32
    %317 = tpu.dynamic_rotate %295 by %c15_i32_219 dim 1 : vector<64x256xf32>, i32 -> vector<64x256xf32>
    %318 = arith.truncf %317 : vector<64x256xf32> to vector<64x256xbf16>
    %c2_220 = arith.constant 2 : index
    %c0_221 = arith.constant 0 : index
    %c0_222 = arith.constant 0 : index
    %319 = vector.load %arg2[%c2_220, %c0_221, %c0_222] : memref<9x1x256xbf16, #tpu.memory_space<vmem>>, vector<1x1x256xbf16>
    %320 = vector.shape_cast %319 : vector<1x1x256xbf16> to vector<1x256xbf16>
    %321 = vector.broadcast %320 : vector<1x256xbf16> to vector<64x256xbf16>
    %322 = arith.mulf %318, %321 : vector<64x256xbf16>
    %c2_223 = arith.constant 2 : index
    %c0_224 = arith.constant 0 : index
    %c0_225 = arith.constant 0 : index
    %323 = vector.load %arg13[%c2_223, %c0_224, %c0_225] : memref<9x32x64xbf16, #tpu.memory_space<vmem>>, vector<1x32x64xbf16>
    %324 = vector.shape_cast %323 : vector<1x32x64xbf16> to vector<32x64xbf16>
    %cst_226 = arith.constant dense<0.000000e+00> : vector<32x256xf32>
    %325 = tpu.matmul %324, %322, %cst_226 {dimension_numbers = #tpu.dot_dimension_numbers<[1], [0], [0], [1], [0, 0, 1, 1], [], []>} : vector<32x64xbf16>, vector<64x256xbf16>, vector<32x256xf32> -> vector<32x256xf32>
    %326 = arith.addf %316, %325 : vector<32x256xf32>
    %c1_i32_227 = arith.constant 1 : i32
    %327 = tpu.dynamic_rotate %295 by %c1_i32_227 dim 1 : vector<64x256xf32>, i32 -> vector<64x256xf32>
    %328 = arith.truncf %327 : vector<64x256xf32> to vector<64x256xbf16>
    %c3_228 = arith.constant 3 : index
    %c0_229 = arith.constant 0 : index
    %c0_230 = arith.constant 0 : index
    %329 = vector.load %arg2[%c3_228, %c0_229, %c0_230] : memref<9x1x256xbf16, #tpu.memory_space<vmem>>, vector<1x1x256xbf16>
    %330 = vector.shape_cast %329 : vector<1x1x256xbf16> to vector<1x256xbf16>
    %331 = vector.broadcast %330 : vector<1x256xbf16> to vector<64x256xbf16>
    %332 = arith.mulf %328, %331 : vector<64x256xbf16>
    %c3_231 = arith.constant 3 : index
    %c0_232 = arith.constant 0 : index
    %c0_233 = arith.constant 0 : index
    %333 = vector.load %arg13[%c3_231, %c0_232, %c0_233] : memref<9x32x64xbf16, #tpu.memory_space<vmem>>, vector<1x32x64xbf16>
    %334 = vector.shape_cast %333 : vector<1x32x64xbf16> to vector<32x64xbf16>
    %cst_234 = arith.constant dense<0.000000e+00> : vector<32x256xf32>
    %335 = tpu.matmul %334, %332, %cst_234 {dimension_numbers = #tpu.dot_dimension_numbers<[1], [0], [0], [1], [0, 0, 1, 1], [], []>} : vector<32x64xbf16>, vector<64x256xbf16>, vector<32x256xf32> -> vector<32x256xf32>
    %336 = arith.addf %326, %335 : vector<32x256xf32>
    %337 = arith.truncf %295 : vector<64x256xf32> to vector<64x256xbf16>
    %c4_235 = arith.constant 4 : index
    %c0_236 = arith.constant 0 : index
    %c0_237 = arith.constant 0 : index
    %338 = vector.load %arg13[%c4_235, %c0_236, %c0_237] : memref<9x32x64xbf16, #tpu.memory_space<vmem>>, vector<1x32x64xbf16>
    %339 = vector.shape_cast %338 : vector<1x32x64xbf16> to vector<32x64xbf16>
    %cst_238 = arith.constant dense<0.000000e+00> : vector<32x256xf32>
    %340 = tpu.matmul %339, %337, %cst_238 {dimension_numbers = #tpu.dot_dimension_numbers<[1], [0], [0], [1], [0, 0, 1, 1], [], []>} : vector<32x64xbf16>, vector<64x256xbf16>, vector<32x256xf32> -> vector<32x256xf32>
    %341 = arith.addf %336, %340 : vector<32x256xf32>
    %c255_i32_239 = arith.constant 255 : i32
    %342 = tpu.dynamic_rotate %295 by %c255_i32_239 dim 1 : vector<64x256xf32>, i32 -> vector<64x256xf32>
    %343 = arith.truncf %342 : vector<64x256xf32> to vector<64x256xbf16>
    %c5_240 = arith.constant 5 : index
    %c0_241 = arith.constant 0 : index
    %c0_242 = arith.constant 0 : index
    %344 = vector.load %arg2[%c5_240, %c0_241, %c0_242] : memref<9x1x256xbf16, #tpu.memory_space<vmem>>, vector<1x1x256xbf16>
    %345 = vector.shape_cast %344 : vector<1x1x256xbf16> to vector<1x256xbf16>
    %346 = vector.broadcast %345 : vector<1x256xbf16> to vector<64x256xbf16>
    %347 = arith.mulf %343, %346 : vector<64x256xbf16>
    %c5_243 = arith.constant 5 : index
    %c0_244 = arith.constant 0 : index
    %c0_245 = arith.constant 0 : index
    %348 = vector.load %arg13[%c5_243, %c0_244, %c0_245] : memref<9x32x64xbf16, #tpu.memory_space<vmem>>, vector<1x32x64xbf16>
    %349 = vector.shape_cast %348 : vector<1x32x64xbf16> to vector<32x64xbf16>
    %cst_246 = arith.constant dense<0.000000e+00> : vector<32x256xf32>
    %350 = tpu.matmul %349, %347, %cst_246 {dimension_numbers = #tpu.dot_dimension_numbers<[1], [0], [0], [1], [0, 0, 1, 1], [], []>} : vector<32x64xbf16>, vector<64x256xbf16>, vector<32x256xf32> -> vector<32x256xf32>
    %351 = arith.addf %341, %350 : vector<32x256xf32>
    %c241_i32_247 = arith.constant 241 : i32
    %352 = tpu.dynamic_rotate %295 by %c241_i32_247 dim 1 : vector<64x256xf32>, i32 -> vector<64x256xf32>
    %353 = arith.truncf %352 : vector<64x256xf32> to vector<64x256xbf16>
    %c6_248 = arith.constant 6 : index
    %c0_249 = arith.constant 0 : index
    %c0_250 = arith.constant 0 : index
    %354 = vector.load %arg2[%c6_248, %c0_249, %c0_250] : memref<9x1x256xbf16, #tpu.memory_space<vmem>>, vector<1x1x256xbf16>
    %355 = vector.shape_cast %354 : vector<1x1x256xbf16> to vector<1x256xbf16>
    %356 = vector.broadcast %355 : vector<1x256xbf16> to vector<64x256xbf16>
    %357 = arith.mulf %353, %356 : vector<64x256xbf16>
    %c6_251 = arith.constant 6 : index
    %c0_252 = arith.constant 0 : index
    %c0_253 = arith.constant 0 : index
    %358 = vector.load %arg13[%c6_251, %c0_252, %c0_253] : memref<9x32x64xbf16, #tpu.memory_space<vmem>>, vector<1x32x64xbf16>
    %359 = vector.shape_cast %358 : vector<1x32x64xbf16> to vector<32x64xbf16>
    %cst_254 = arith.constant dense<0.000000e+00> : vector<32x256xf32>
    %360 = tpu.matmul %359, %357, %cst_254 {dimension_numbers = #tpu.dot_dimension_numbers<[1], [0], [0], [1], [0, 0, 1, 1], [], []>} : vector<32x64xbf16>, vector<64x256xbf16>, vector<32x256xf32> -> vector<32x256xf32>
    %361 = arith.addf %351, %360 : vector<32x256xf32>
    %c240_i32_255 = arith.constant 240 : i32
    %362 = tpu.dynamic_rotate %295 by %c240_i32_255 dim 1 : vector<64x256xf32>, i32 -> vector<64x256xf32>
    %363 = arith.truncf %362 : vector<64x256xf32> to vector<64x256xbf16>
    %c7_256 = arith.constant 7 : index
    %c0_257 = arith.constant 0 : index
    %c0_258 = arith.constant 0 : index
    %364 = vector.load %arg2[%c7_256, %c0_257, %c0_258] : memref<9x1x256xbf16, #tpu.memory_space<vmem>>, vector<1x1x256xbf16>
    %365 = vector.shape_cast %364 : vector<1x1x256xbf16> to vector<1x256xbf16>
    %366 = vector.broadcast %365 : vector<1x256xbf16> to vector<64x256xbf16>
    %367 = arith.mulf %363, %366 : vector<64x256xbf16>
    %c7_259 = arith.constant 7 : index
    %c0_260 = arith.constant 0 : index
    %c0_261 = arith.constant 0 : index
    %368 = vector.load %arg13[%c7_259, %c0_260, %c0_261] : memref<9x32x64xbf16, #tpu.memory_space<vmem>>, vector<1x32x64xbf16>
    %369 = vector.shape_cast %368 : vector<1x32x64xbf16> to vector<32x64xbf16>
    %cst_262 = arith.constant dense<0.000000e+00> : vector<32x256xf32>
    %370 = tpu.matmul %369, %367, %cst_262 {dimension_numbers = #tpu.dot_dimension_numbers<[1], [0], [0], [1], [0, 0, 1, 1], [], []>} : vector<32x64xbf16>, vector<64x256xbf16>, vector<32x256xf32> -> vector<32x256xf32>
    %371 = arith.addf %361, %370 : vector<32x256xf32>
    %c239_i32_263 = arith.constant 239 : i32
    %372 = tpu.dynamic_rotate %295 by %c239_i32_263 dim 1 : vector<64x256xf32>, i32 -> vector<64x256xf32>
    %373 = arith.truncf %372 : vector<64x256xf32> to vector<64x256xbf16>
    %c8_264 = arith.constant 8 : index
    %c0_265 = arith.constant 0 : index
    %c0_266 = arith.constant 0 : index
    %374 = vector.load %arg2[%c8_264, %c0_265, %c0_266] : memref<9x1x256xbf16, #tpu.memory_space<vmem>>, vector<1x1x256xbf16>
    %375 = vector.shape_cast %374 : vector<1x1x256xbf16> to vector<1x256xbf16>
    %376 = vector.broadcast %375 : vector<1x256xbf16> to vector<64x256xbf16>
    %377 = arith.mulf %373, %376 : vector<64x256xbf16>
    %c8_267 = arith.constant 8 : index
    %c0_268 = arith.constant 0 : index
    %c0_269 = arith.constant 0 : index
    %378 = vector.load %arg13[%c8_267, %c0_268, %c0_269] : memref<9x32x64xbf16, #tpu.memory_space<vmem>>, vector<1x32x64xbf16>
    %379 = vector.shape_cast %378 : vector<1x32x64xbf16> to vector<32x64xbf16>
    %cst_270 = arith.constant dense<0.000000e+00> : vector<32x256xf32>
    %380 = tpu.matmul %379, %377, %cst_270 {dimension_numbers = #tpu.dot_dimension_numbers<[1], [0], [0], [1], [0, 0, 1, 1], [], []>} : vector<32x64xbf16>, vector<64x256xbf16>, vector<32x256xf32> -> vector<32x256xf32>
    %381 = arith.addf %371, %380 : vector<32x256xf32>
    %c0_271 = arith.constant 0 : index
    %c0_272 = arith.constant 0 : index
    %382 = vector.load %arg14[%c0_271, %c0_272] : memref<32x1xf32, #tpu.memory_space<vmem>>, vector<32x1xf32>
    %383 = vector.broadcast %382 : vector<32x1xf32> to vector<32x256xf32>
    %384 = arith.addf %381, %383 : vector<32x256xf32>
    %cst_273 = arith.constant 0.000000e+00 : f32
    %385 = vector.broadcast %cst_273 : f32 to vector<32x256xf32>
    %386 = arith.maximumf %384, %385 : vector<32x256xf32>
    %cst_274 = arith.constant 0.000000e+00 : f32
    %387 = vector.broadcast %cst_274 : f32 to vector<2x256xf32>
    %c17_i32_275 = arith.constant 17 : i32
    %388 = tpu.dynamic_rotate %386 by %c17_i32_275 dim 1 : vector<32x256xf32>, i32 -> vector<32x256xf32>
    %389 = arith.truncf %388 : vector<32x256xf32> to vector<32x256xbf16>
    %c0_276 = arith.constant 0 : index
    %c0_277 = arith.constant 0 : index
    %c0_278 = arith.constant 0 : index
    %390 = vector.load %arg2[%c0_276, %c0_277, %c0_278] : memref<9x1x256xbf16, #tpu.memory_space<vmem>>, vector<1x1x256xbf16>
    %391 = vector.shape_cast %390 : vector<1x1x256xbf16> to vector<1x256xbf16>
    %392 = vector.broadcast %391 : vector<1x256xbf16> to vector<32x256xbf16>
    %393 = arith.mulf %389, %392 : vector<32x256xbf16>
    %c0_279 = arith.constant 0 : index
    %c0_280 = arith.constant 0 : index
    %c0_281 = arith.constant 0 : index
    %394 = vector.load %arg15[%c0_279, %c0_280, %c0_281] : memref<9x2x32xbf16, #tpu.memory_space<vmem>>, vector<1x2x32xbf16>
    %395 = vector.shape_cast %394 : vector<1x2x32xbf16> to vector<2x32xbf16>
    %cst_282 = arith.constant dense<0.000000e+00> : vector<2x256xf32>
    %396 = tpu.matmul %395, %393, %cst_282 {dimension_numbers = #tpu.dot_dimension_numbers<[1], [0], [0], [1], [0, 0, 1, 1], [], []>} : vector<2x32xbf16>, vector<32x256xbf16>, vector<2x256xf32> -> vector<2x256xf32>
    %397 = arith.addf %387, %396 : vector<2x256xf32>
    %c16_i32_283 = arith.constant 16 : i32
    %398 = tpu.dynamic_rotate %386 by %c16_i32_283 dim 1 : vector<32x256xf32>, i32 -> vector<32x256xf32>
    %399 = arith.truncf %398 : vector<32x256xf32> to vector<32x256xbf16>
    %c1_284 = arith.constant 1 : index
    %c0_285 = arith.constant 0 : index
    %c0_286 = arith.constant 0 : index
    %400 = vector.load %arg2[%c1_284, %c0_285, %c0_286] : memref<9x1x256xbf16, #tpu.memory_space<vmem>>, vector<1x1x256xbf16>
    %401 = vector.shape_cast %400 : vector<1x1x256xbf16> to vector<1x256xbf16>
    %402 = vector.broadcast %401 : vector<1x256xbf16> to vector<32x256xbf16>
    %403 = arith.mulf %399, %402 : vector<32x256xbf16>
    %c1_287 = arith.constant 1 : index
    %c0_288 = arith.constant 0 : index
    %c0_289 = arith.constant 0 : index
    %404 = vector.load %arg15[%c1_287, %c0_288, %c0_289] : memref<9x2x32xbf16, #tpu.memory_space<vmem>>, vector<1x2x32xbf16>
    %405 = vector.shape_cast %404 : vector<1x2x32xbf16> to vector<2x32xbf16>
    %cst_290 = arith.constant dense<0.000000e+00> : vector<2x256xf32>
    %406 = tpu.matmul %405, %403, %cst_290 {dimension_numbers = #tpu.dot_dimension_numbers<[1], [0], [0], [1], [0, 0, 1, 1], [], []>} : vector<2x32xbf16>, vector<32x256xbf16>, vector<2x256xf32> -> vector<2x256xf32>
    %407 = arith.addf %397, %406 : vector<2x256xf32>
    %c15_i32_291 = arith.constant 15 : i32
    %408 = tpu.dynamic_rotate %386 by %c15_i32_291 dim 1 : vector<32x256xf32>, i32 -> vector<32x256xf32>
    %409 = arith.truncf %408 : vector<32x256xf32> to vector<32x256xbf16>
    %c2_292 = arith.constant 2 : index
    %c0_293 = arith.constant 0 : index
    %c0_294 = arith.constant 0 : index
    %410 = vector.load %arg2[%c2_292, %c0_293, %c0_294] : memref<9x1x256xbf16, #tpu.memory_space<vmem>>, vector<1x1x256xbf16>
    %411 = vector.shape_cast %410 : vector<1x1x256xbf16> to vector<1x256xbf16>
    %412 = vector.broadcast %411 : vector<1x256xbf16> to vector<32x256xbf16>
    %413 = arith.mulf %409, %412 : vector<32x256xbf16>
    %c2_295 = arith.constant 2 : index
    %c0_296 = arith.constant 0 : index
    %c0_297 = arith.constant 0 : index
    %414 = vector.load %arg15[%c2_295, %c0_296, %c0_297] : memref<9x2x32xbf16, #tpu.memory_space<vmem>>, vector<1x2x32xbf16>
    %415 = vector.shape_cast %414 : vector<1x2x32xbf16> to vector<2x32xbf16>
    %cst_298 = arith.constant dense<0.000000e+00> : vector<2x256xf32>
    %416 = tpu.matmul %415, %413, %cst_298 {dimension_numbers = #tpu.dot_dimension_numbers<[1], [0], [0], [1], [0, 0, 1, 1], [], []>} : vector<2x32xbf16>, vector<32x256xbf16>, vector<2x256xf32> -> vector<2x256xf32>
    %417 = arith.addf %407, %416 : vector<2x256xf32>
    %c1_i32_299 = arith.constant 1 : i32
    %418 = tpu.dynamic_rotate %386 by %c1_i32_299 dim 1 : vector<32x256xf32>, i32 -> vector<32x256xf32>
    %419 = arith.truncf %418 : vector<32x256xf32> to vector<32x256xbf16>
    %c3_300 = arith.constant 3 : index
    %c0_301 = arith.constant 0 : index
    %c0_302 = arith.constant 0 : index
    %420 = vector.load %arg2[%c3_300, %c0_301, %c0_302] : memref<9x1x256xbf16, #tpu.memory_space<vmem>>, vector<1x1x256xbf16>
    %421 = vector.shape_cast %420 : vector<1x1x256xbf16> to vector<1x256xbf16>
    %422 = vector.broadcast %421 : vector<1x256xbf16> to vector<32x256xbf16>
    %423 = arith.mulf %419, %422 : vector<32x256xbf16>
    %c3_303 = arith.constant 3 : index
    %c0_304 = arith.constant 0 : index
    %c0_305 = arith.constant 0 : index
    %424 = vector.load %arg15[%c3_303, %c0_304, %c0_305] : memref<9x2x32xbf16, #tpu.memory_space<vmem>>, vector<1x2x32xbf16>
    %425 = vector.shape_cast %424 : vector<1x2x32xbf16> to vector<2x32xbf16>
    %cst_306 = arith.constant dense<0.000000e+00> : vector<2x256xf32>
    %426 = tpu.matmul %425, %423, %cst_306 {dimension_numbers = #tpu.dot_dimension_numbers<[1], [0], [0], [1], [0, 0, 1, 1], [], []>} : vector<2x32xbf16>, vector<32x256xbf16>, vector<2x256xf32> -> vector<2x256xf32>
    %427 = arith.addf %417, %426 : vector<2x256xf32>
    %428 = arith.truncf %386 : vector<32x256xf32> to vector<32x256xbf16>
    %c4_307 = arith.constant 4 : index
    %c0_308 = arith.constant 0 : index
    %c0_309 = arith.constant 0 : index
    %429 = vector.load %arg15[%c4_307, %c0_308, %c0_309] : memref<9x2x32xbf16, #tpu.memory_space<vmem>>, vector<1x2x32xbf16>
    %430 = vector.shape_cast %429 : vector<1x2x32xbf16> to vector<2x32xbf16>
    %cst_310 = arith.constant dense<0.000000e+00> : vector<2x256xf32>
    %431 = tpu.matmul %430, %428, %cst_310 {dimension_numbers = #tpu.dot_dimension_numbers<[1], [0], [0], [1], [0, 0, 1, 1], [], []>} : vector<2x32xbf16>, vector<32x256xbf16>, vector<2x256xf32> -> vector<2x256xf32>
    %432 = arith.addf %427, %431 : vector<2x256xf32>
    %c255_i32_311 = arith.constant 255 : i32
    %433 = tpu.dynamic_rotate %386 by %c255_i32_311 dim 1 : vector<32x256xf32>, i32 -> vector<32x256xf32>
    %434 = arith.truncf %433 : vector<32x256xf32> to vector<32x256xbf16>
    %c5_312 = arith.constant 5 : index
    %c0_313 = arith.constant 0 : index
    %c0_314 = arith.constant 0 : index
    %435 = vector.load %arg2[%c5_312, %c0_313, %c0_314] : memref<9x1x256xbf16, #tpu.memory_space<vmem>>, vector<1x1x256xbf16>
    %436 = vector.shape_cast %435 : vector<1x1x256xbf16> to vector<1x256xbf16>
    %437 = vector.broadcast %436 : vector<1x256xbf16> to vector<32x256xbf16>
    %438 = arith.mulf %434, %437 : vector<32x256xbf16>
    %c5_315 = arith.constant 5 : index
    %c0_316 = arith.constant 0 : index
    %c0_317 = arith.constant 0 : index
    %439 = vector.load %arg15[%c5_315, %c0_316, %c0_317] : memref<9x2x32xbf16, #tpu.memory_space<vmem>>, vector<1x2x32xbf16>
    %440 = vector.shape_cast %439 : vector<1x2x32xbf16> to vector<2x32xbf16>
    %cst_318 = arith.constant dense<0.000000e+00> : vector<2x256xf32>
    %441 = tpu.matmul %440, %438, %cst_318 {dimension_numbers = #tpu.dot_dimension_numbers<[1], [0], [0], [1], [0, 0, 1, 1], [], []>} : vector<2x32xbf16>, vector<32x256xbf16>, vector<2x256xf32> -> vector<2x256xf32>
    %442 = arith.addf %432, %441 : vector<2x256xf32>
    %c241_i32_319 = arith.constant 241 : i32
    %443 = tpu.dynamic_rotate %386 by %c241_i32_319 dim 1 : vector<32x256xf32>, i32 -> vector<32x256xf32>
    %444 = arith.truncf %443 : vector<32x256xf32> to vector<32x256xbf16>
    %c6_320 = arith.constant 6 : index
    %c0_321 = arith.constant 0 : index
    %c0_322 = arith.constant 0 : index
    %445 = vector.load %arg2[%c6_320, %c0_321, %c0_322] : memref<9x1x256xbf16, #tpu.memory_space<vmem>>, vector<1x1x256xbf16>
    %446 = vector.shape_cast %445 : vector<1x1x256xbf16> to vector<1x256xbf16>
    %447 = vector.broadcast %446 : vector<1x256xbf16> to vector<32x256xbf16>
    %448 = arith.mulf %444, %447 : vector<32x256xbf16>
    %c6_323 = arith.constant 6 : index
    %c0_324 = arith.constant 0 : index
    %c0_325 = arith.constant 0 : index
    %449 = vector.load %arg15[%c6_323, %c0_324, %c0_325] : memref<9x2x32xbf16, #tpu.memory_space<vmem>>, vector<1x2x32xbf16>
    %450 = vector.shape_cast %449 : vector<1x2x32xbf16> to vector<2x32xbf16>
    %cst_326 = arith.constant dense<0.000000e+00> : vector<2x256xf32>
    %451 = tpu.matmul %450, %448, %cst_326 {dimension_numbers = #tpu.dot_dimension_numbers<[1], [0], [0], [1], [0, 0, 1, 1], [], []>} : vector<2x32xbf16>, vector<32x256xbf16>, vector<2x256xf32> -> vector<2x256xf32>
    %452 = arith.addf %442, %451 : vector<2x256xf32>
    %c240_i32_327 = arith.constant 240 : i32
    %453 = tpu.dynamic_rotate %386 by %c240_i32_327 dim 1 : vector<32x256xf32>, i32 -> vector<32x256xf32>
    %454 = arith.truncf %453 : vector<32x256xf32> to vector<32x256xbf16>
    %c7_328 = arith.constant 7 : index
    %c0_329 = arith.constant 0 : index
    %c0_330 = arith.constant 0 : index
    %455 = vector.load %arg2[%c7_328, %c0_329, %c0_330] : memref<9x1x256xbf16, #tpu.memory_space<vmem>>, vector<1x1x256xbf16>
    %456 = vector.shape_cast %455 : vector<1x1x256xbf16> to vector<1x256xbf16>
    %457 = vector.broadcast %456 : vector<1x256xbf16> to vector<32x256xbf16>
    %458 = arith.mulf %454, %457 : vector<32x256xbf16>
    %c7_331 = arith.constant 7 : index
    %c0_332 = arith.constant 0 : index
    %c0_333 = arith.constant 0 : index
    %459 = vector.load %arg15[%c7_331, %c0_332, %c0_333] : memref<9x2x32xbf16, #tpu.memory_space<vmem>>, vector<1x2x32xbf16>
    %460 = vector.shape_cast %459 : vector<1x2x32xbf16> to vector<2x32xbf16>
    %cst_334 = arith.constant dense<0.000000e+00> : vector<2x256xf32>
    %461 = tpu.matmul %460, %458, %cst_334 {dimension_numbers = #tpu.dot_dimension_numbers<[1], [0], [0], [1], [0, 0, 1, 1], [], []>} : vector<2x32xbf16>, vector<32x256xbf16>, vector<2x256xf32> -> vector<2x256xf32>
    %462 = arith.addf %452, %461 : vector<2x256xf32>
    %c239_i32_335 = arith.constant 239 : i32
    %463 = tpu.dynamic_rotate %386 by %c239_i32_335 dim 1 : vector<32x256xf32>, i32 -> vector<32x256xf32>
    %464 = arith.truncf %463 : vector<32x256xf32> to vector<32x256xbf16>
    %c8_336 = arith.constant 8 : index
    %c0_337 = arith.constant 0 : index
    %c0_338 = arith.constant 0 : index
    %465 = vector.load %arg2[%c8_336, %c0_337, %c0_338] : memref<9x1x256xbf16, #tpu.memory_space<vmem>>, vector<1x1x256xbf16>
    %466 = vector.shape_cast %465 : vector<1x1x256xbf16> to vector<1x256xbf16>
    %467 = vector.broadcast %466 : vector<1x256xbf16> to vector<32x256xbf16>
    %468 = arith.mulf %464, %467 : vector<32x256xbf16>
    %c8_339 = arith.constant 8 : index
    %c0_340 = arith.constant 0 : index
    %c0_341 = arith.constant 0 : index
    %469 = vector.load %arg15[%c8_339, %c0_340, %c0_341] : memref<9x2x32xbf16, #tpu.memory_space<vmem>>, vector<1x2x32xbf16>
    %470 = vector.shape_cast %469 : vector<1x2x32xbf16> to vector<2x32xbf16>
    %cst_342 = arith.constant dense<0.000000e+00> : vector<2x256xf32>
    %471 = tpu.matmul %470, %468, %cst_342 {dimension_numbers = #tpu.dot_dimension_numbers<[1], [0], [0], [1], [0, 0, 1, 1], [], []>} : vector<2x32xbf16>, vector<32x256xbf16>, vector<2x256xf32> -> vector<2x256xf32>
    %472 = arith.addf %462, %471 : vector<2x256xf32>
    %c0_343 = arith.constant 0 : index
    %c0_344 = arith.constant 0 : index
    %473 = vector.load %arg16[%c0_343, %c0_344] : memref<2x1xf32, #tpu.memory_space<vmem>>, vector<2x1xf32>
    %474 = vector.broadcast %473 : vector<2x1xf32> to vector<2x256xf32>
    %475 = arith.addf %472, %474 : vector<2x256xf32>
    %c0_345 = arith.constant 0 : index
    %c0_346 = arith.constant 0 : index
    %c0_347 = arith.constant 0 : index
    %476 = vector.load %arg17[%c0_345, %c0_346, %c0_347] : memref<1x2x256xf32, #tpu.memory_space<vmem>>, vector<1x2x256xf32>
    %477 = vector.shape_cast %476 : vector<1x2x256xf32> to vector<2x256xf32>
    %478 = vector.shape_cast %475 : vector<2x256xf32> to vector<1x2x256xf32>
    tpu.vector_store %arg17[%c0_345, %c0_346, %c0_347], %478 {strides = array<i32>} : memref<1x2x256xf32, #tpu.memory_space<vmem>>, vector<1x2x256xf32>,
    return
  }
  func.func @transform_0(%arg0: i32) -> (i32, i32, i32) {
    %c0_i32 = arith.constant 0 : i32
    %c0_i32_0 = arith.constant 0 : i32
    %c0_i32_1 = arith.constant 0 : i32
    return %arg0, %c0_i32, %c0_i32_0 : i32, i32, i32
  }
  func.func @transform_1(%arg0: i32) -> (i32, i32, i32) {
    %c0_i32 = arith.constant 0 : i32
    %c0_i32_0 = arith.constant 0 : i32
    %c0_i32_1 = arith.constant 0 : i32
    %c0_i32_2 = arith.constant 0 : i32
    return %c0_i32, %c0_i32_0, %c0_i32_1 : i32, i32, i32
  }
  func.func @transform_2(%arg0: i32) -> (i32, i32, i32) {
    %c0_i32 = arith.constant 0 : i32
    %c0_i32_0 = arith.constant 0 : i32
    %c0_i32_1 = arith.constant 0 : i32
    %c0_i32_2 = arith.constant 0 : i32
    return %c0_i32, %c0_i32_0, %c0_i32_1 : i32, i32, i32
  }
  func.func @transform_3(%arg0: i32) -> (i32, i32) {
    %c0_i32 = arith.constant 0 : i32
    %c0_i32_0 = arith.constant 0 : i32
    %c0_i32_1 = arith.constant 0 : i32
    return %c0_i32, %c0_i32_0 : i32, i32
  }
  func.func @transform_4(%arg0: i32) -> (i32, i32) {
    %c0_i32 = arith.constant 0 : i32
    %c0_i32_0 = arith.constant 0 : i32
    %c0_i32_1 = arith.constant 0 : i32
    return %c0_i32, %c0_i32_0 : i32, i32
  }
  func.func @transform_5(%arg0: i32) -> (i32, i32) {
    %c0_i32 = arith.constant 0 : i32
    %c0_i32_0 = arith.constant 0 : i32
    %c0_i32_1 = arith.constant 0 : i32
    return %c0_i32, %c0_i32_0 : i32, i32
  }
  func.func @transform_6(%arg0: i32) -> (i32, i32, i32) {
    %c0_i32 = arith.constant 0 : i32
    %c0_i32_0 = arith.constant 0 : i32
    %c0_i32_1 = arith.constant 0 : i32
    %c0_i32_2 = arith.constant 0 : i32
    return %c0_i32, %c0_i32_0, %c0_i32_1 : i32, i32, i32
  }
  func.func @transform_7(%arg0: i32) -> (i32, i32) {
    %c0_i32 = arith.constant 0 : i32
    %c0_i32_0 = arith.constant 0 : i32
    %c0_i32_1 = arith.constant 0 : i32
    return %c0_i32, %c0_i32_0 : i32, i32
  }
  func.func @transform_8(%arg0: i32) -> (i32, i32, i32) {
    %c0_i32 = arith.constant 0 : i32
    %c0_i32_0 = arith.constant 0 : i32
    %c0_i32_1 = arith.constant 0 : i32
    %c0_i32_2 = arith.constant 0 : i32
    return %c0_i32, %c0_i32_0, %c0_i32_1 : i32, i32, i32
  }
  func.func @transform_9(%arg0: i32) -> (i32, i32) {
    %c0_i32 = arith.constant 0 : i32
    %c0_i32_0 = arith.constant 0 : i32
    %c0_i32_1 = arith.constant 0 : i32
    return %c0_i32, %c0_i32_0 : i32, i32
  }
  func.func @transform_10(%arg0: i32) -> (i32, i32) {
    %c0_i32 = arith.constant 0 : i32
    %c0_i32_0 = arith.constant 0 : i32
    %c0_i32_1 = arith.constant 0 : i32
    return %c0_i32, %c0_i32_0 : i32, i32
  }
  func.func @transform_11(%arg0: i32) -> (i32, i32) {
    %c0_i32 = arith.constant 0 : i32
    %c0_i32_0 = arith.constant 0 : i32
    %c0_i32_1 = arith.constant 0 : i32
    return %c0_i32, %c0_i32_0 : i32, i32
  }
  func.func @transform_12(%arg0: i32) -> (i32, i32, i32) {
    %c0_i32 = arith.constant 0 : i32
    %c0_i32_0 = arith.constant 0 : i32
    %c0_i32_1 = arith.constant 0 : i32
    %c0_i32_2 = arith.constant 0 : i32
    return %c0_i32, %c0_i32_0, %c0_i32_1 : i32, i32, i32
  }
  func.func @transform_13(%arg0: i32) -> (i32, i32) {
    %c0_i32 = arith.constant 0 : i32
    %c0_i32_0 = arith.constant 0 : i32
    %c0_i32_1 = arith.constant 0 : i32
    return %c0_i32, %c0_i32_0 : i32, i32
  }
  func.func @transform_14(%arg0: i32) -> (i32, i32, i32) {
    %c0_i32 = arith.constant 0 : i32
    %c0_i32_0 = arith.constant 0 : i32
    %c0_i32_1 = arith.constant 0 : i32
    %c0_i32_2 = arith.constant 0 : i32
    return %c0_i32, %c0_i32_0, %c0_i32_1 : i32, i32, i32
  }
  func.func @transform_15(%arg0: i32) -> (i32, i32) {
    %c0_i32 = arith.constant 0 : i32
    %c0_i32_0 = arith.constant 0 : i32
    %c0_i32_1 = arith.constant 0 : i32
    return %c0_i32, %c0_i32_0 : i32, i32
  }
  func.func @transform_16(%arg0: i32) -> (i32, i32, i32) {
    %c0_i32 = arith.constant 0 : i32
    %c0_i32_0 = arith.constant 0 : i32
    %c0_i32_1 = arith.constant 0 : i32
    return %arg0, %c0_i32, %c0_i32_0 : i32, i32, i32
  }
}

</mosaic_0001>

<llo_original>
// kernel: basemodel_forward.1
$region0: #{basemodel_forward.1}
  #allocation0 [shape = 'u32[]', space=smem, size = 0x4, offset = 0x4, fixed_abs, tag = 'smem constant byte address 0x4 - core index']
  #allocation1 [shape = 'u32[144,128]{1,0:T(1,128)}', space=vmem, size = 0x12000, scoped, tag = 'internal scratch']
  %s0 = inlined_call_operand.vmem [shape: f32[2,1,256], index: 0, kind: input, shape index: {}]
  %s1 = inlined_call_operand.vmem [shape: bf16[9,1,256], index: 1, kind: input, shape index: {}]
  %s2 = inlined_call_operand.vmem [shape: f32[9,64,1], index: 2, kind: input, shape index: {}]
  %s3 = inlined_call_operand.vmem [shape: f32[64,1], index: 3, kind: input, shape index: {}]
  %s4 = inlined_call_operand.vmem [shape: bf16[64,64], index: 4, kind: input, shape index: {}]
  %s5 = inlined_call_operand.vmem [shape: f32[64,1], index: 5, kind: input, shape index: {}]
  %s6 = inlined_call_operand.vmem [shape: bf16[9,64,64], index: 6, kind: input, shape index: {}]
  %s7 = inlined_call_operand.vmem [shape: f32[64,1], index: 7, kind: input, shape index: {}]
  %s8 = inlined_call_operand.vmem [shape: bf16[9,32,64], index: 8, kind: input, shape index: {}]
  %s9 = inlined_call_operand.vmem [shape: f32[32,1], index: 9, kind: input, shape index: {}]
  %s10 = inlined_call_operand.vmem [shape: bf16[64,32], index: 10, kind: input, shape index: {}]
  %s11 = inlined_call_operand.vmem [shape: f32[64,1], index: 11, kind: input, shape index: {}]
  %s12 = inlined_call_operand.vmem [shape: bf16[9,32,64], index: 12, kind: input, shape index: {}]
  %s13 = inlined_call_operand.vmem [shape: f32[32,1], index: 13, kind: input, shape index: {}]
  %s14 = inlined_call_operand.vmem [shape: bf16[9,2,32], index: 14, kind: input, shape index: {}]
  %s15 = inlined_call_operand.vmem [shape: f32[2,1], index: 15, kind: input, shape index: {}]
  %s16 = inlined_call_operand.vmem [shape: f32[2,2,256], index: 16, kind: output, shape index: {}]
  %s17 = sld [smem:[#allocation0]]
  $region97: #{basemodel_forward.1} parent=0
    _
  %s19 = ssub.s32 1, %s17
  %s20 = scalar_select 0, %s19, %s17
  loop: start=0, step=1, limit=4
  $region2: #{basemodel_forward.1} parent=0 // loop_pre_header
    _
  $region3: #{basemodel_forward.1} parent=0 // loop_header
    %s22 = sphi 0, %s26
    %p23 = scmp.ge.s32.totalorder %s22, 4
    %s32 = sphi 0, %s34
    %s35 = sphi 0, %s32
    %s36 = sphi 0, %s35
    %s52 = sphi 0, %s36
    %s56 = sphi 0, %s56
    %s58 = sphi 0, %s56
    %s59 = sphi 0, %s58
    %s73 = sphi 0, %s59
    %s77 = sphi 0, %s77
    %s79 = sphi 0, %s77
    %s80 = sphi 0, %s79
    %s94 = sphi 0, %s80
    %s98 = sphi 0, %s98
    %s100 = sphi 0, %s98
    %s101 = sphi 0, %s100
    %s115 = sphi 0, %s101
    %s119 = sphi 0, %s119
    %s121 = sphi 0, %s119
    %s122 = sphi 0, %s121
    %s136 = sphi 0, %s122
    %s140 = sphi 0, %s140
    %s142 = sphi 0, %s140
    %s143 = sphi 0, %s142
    %s157 = sphi 0, %s143
    %s161 = sphi 0, %s161
    %s163 = sphi 0, %s161
    %s164 = sphi 0, %s163
    %s178 = sphi 0, %s164
    %s182 = sphi 0, %s182
    %s184 = sphi 0, %s182
    %s185 = sphi 0, %s184
    %s199 = sphi 0, %s185
    %s203 = sphi 0, %s203
    %s205 = sphi 0, %s203
    %s206 = sphi 0, %s205
    %s220 = sphi 0, %s206
    %s224 = sphi 0, %s224
    %s226 = sphi 0, %s224
    %s227 = sphi 0, %s226
    %s241 = sphi 0, %s227
    %s245 = sphi 0, %s245
    %s247 = sphi 0, %s245
    %s248 = sphi 0, %s247
    %s262 = sphi 0, %s248
    %s266 = sphi 0, %s266
    %s268 = sphi 0, %s266
    %s269 = sphi 0, %s268
    %s283 = sphi 0, %s269
    %s287 = sphi 0, %s287
    %s289 = sphi 0, %s287
    %s290 = sphi 0, %s289
    %s304 = sphi 0, %s290
    %s308 = sphi 0, %s308
    %s310 = sphi 0, %s308
    %s311 = sphi 0, %s310
    %s325 = sphi 0, %s311
    %s329 = sphi 0, %s329
    %s331 = sphi 0, %s329
    %s332 = sphi 0, %s331
    %s346 = sphi 0, %s332
    %s350 = sphi 0, %s350
    %s352 = sphi 0, %s350
    %s353 = sphi 0, %s352
    %s367 = sphi 0, %s353
    %s373 = sphi 0, %s375
    %s376 = sphi 0, %s373
    %s377 = sphi 0, %s376
    %s393 = sphi 0, %s377
  $region4: #{basemodel_forward.1} parent=0 // loop_header_branch
    %25 = sbr.rel (%p23) target = $region8
  $region5: #{basemodel_forward.1} parent=0 // loop_body
    %s27 = ssub.s32 %s22, 1
    %s28 = ssub.s32 %s22, 2
    %s29 = sadd.s32 %s22, 1
    %s30 = ssub.s32 %s22, %s29
    %p31 = scmp.eq.s32.totalorder %s30, 0
    %s33 = sadd.s32 %s32, 1
    %s34 = scalar_select %p31, %s32, %s33
    %p37 = pneg %p31
    %p38 = scmp.eq.s32.totalorder %s22, 1
    %p39 = por %p37, %p38
    %p40 = scmp.ne.s32.totalorder %s32, %s35
    %p41 = scmp.eq.s32.totalorder %s22, 0
    %p42 = por %p40, %p41
    %p43 = scmp.ne.s32.totalorder %s32, %s35
    %p44 = scmp.eq.s32.totalorder %s27, 1
    %p45 = por %p43, %p44
    %p46 = scmp.ne.s32.totalorder %s35, %s36
    %p47 = scmp.eq.s32.totalorder %s27, 0
    %p48 = por %p46, %p47
    %p49 = scmp.ne.s32.totalorder %s35, %s36
    %p50 = scmp.eq.s32.totalorder %s28, 1
    %p51 = por %p49, %p50
    %p53 = scmp.ne.s32.totalorder %s36, %s52
    %p54 = scmp.eq.s32.totalorder %s28, 0
    %p55 = por %p53, %p54
    %s57 = sadd.s32 %s56, 1
    %p60 = scmp.eq.s32.totalorder %s22, 1
    %p61 = scmp.ne.s32.totalorder %s56, %s58
    %p62 = scmp.eq.s32.totalorder %s22, 0
    %p63 = por %p61, %p62
    %p64 = scmp.ne.s32.totalorder %s56, %s58
    %p65 = scmp.eq.s32.totalorder %s27, 1
    %p66 = por %p64, %p65
    %p67 = scmp.ne.s32.totalorder %s58, %s59
    %p68 = scmp.eq.s32.totalorder %s27, 0
    %p69 = por %p67, %p68
    %p70 = scmp.ne.s32.totalorder %s58, %s59
    %p71 = scmp.eq.s32.totalorder %s28, 1
    %p72 = por %p70, %p71
    %p74 = scmp.ne.s32.totalorder %s59, %s73
    %p75 = scmp.eq.s32.totalorder %s28, 0
    %p76 = por %p74, %p75
    %s78 = sadd.s32 %s77, 1
    %p81 = scmp.eq.s32.totalorder %s22, 1
    %p82 = scmp.ne.s32.totalorder %s77, %s79
    %p83 = scmp.eq.s32.totalorder %s22, 0
    %p84 = por %p82, %p83
    %p85 = scmp.ne.s32.totalorder %s77, %s79
    %p86 = scmp.eq.s32.totalorder %s27, 1
    %p87 = por %p85, %p86
    %p88 = scmp.ne.s32.totalorder %s79, %s80
    %p89 = scmp.eq.s32.totalorder %s27, 0
    %p90 = por %p88, %p89
    %p91 = scmp.ne.s32.totalorder %s79, %s80
    %p92 = scmp.eq.s32.totalorder %s28, 1
    %p93 = por %p91, %p92
    %p95 = scmp.ne.s32.totalorder %s80, %s94
    %p96 = scmp.eq.s32.totalorder %s28, 0
    %p97 = por %p95, %p96
    %s99 = sadd.s32 %s98, 1
    %p102 = scmp.eq.s32.totalorder %s22, 1
    %p103 = scmp.ne.s32.totalorder %s98, %s100
    %p104 = scmp.eq.s32.totalorder %s22, 0
    %p105 = por %p103, %p104
    %p106 = scmp.ne.s32.totalorder %s98, %s100
    %p107 = scmp.eq.s32.totalorder %s27, 1
    %p108 = por %p106, %p107
    %p109 = scmp.ne.s32.totalorder %s100, %s101
    %p110 = scmp.eq.s32.totalorder %s27, 0
    %p111 = por %p109, %p110
    %p112 = scmp.ne.s32.totalorder %s100, %s101
    %p113 = scmp.eq.s32.totalorder %s28, 1
    %p114 = por %p112, %p113
    %p116 = scmp.ne.s32.totalorder %s101, %s115
    %p117 = scmp.eq.s32.totalorder %s28, 0
    %p118 = por %p116, %p117
    %s120 = sadd.s32 %s119, 1
    %p123 = scmp.eq.s32.totalorder %s22, 1
    %p124 = scmp.ne.s32.totalorder %s119, %s121
    %p125 = scmp.eq.s32.totalorder %s22, 0
    %p126 = por %p124, %p125
    %p127 = scmp.ne.s32.totalorder %s119, %s121
    %p128 = scmp.eq.s32.totalorder %s27, 1
    %p129 = por %p127, %p128
    %p130 = scmp.ne.s32.totalorder %s121, %s122
    %p131 = scmp.eq.s32.totalorder %s27, 0
    %p132 = por %p130, %p131
    %p133 = scmp.ne.s32.totalorder %s121, %s122
    %p134 = scmp.eq.s32.totalorder %s28, 1
    %p135 = por %p133, %p134
    %p137 = scmp.ne.s32.totalorder %s122, %s136
    %p138 = scmp.eq.s32.totalorder %s28, 0
    %p139 = por %p137, %p138
    %s141 = sadd.s32 %s140, 1
    %p144 = scmp.eq.s32.totalorder %s22, 1
    %p145 = scmp.ne.s32.totalorder %s140, %s142
    %p146 = scmp.eq.s32.totalorder %s22, 0
    %p147 = por %p145, %p146
    %p148 = scmp.ne.s32.totalorder %s140, %s142
    %p149 = scmp.eq.s32.totalorder %s27, 1
    %p150 = por %p148, %p149
    %p151 = scmp.ne.s32.totalorder %s142, %s143
    %p152 = scmp.eq.s32.totalorder %s27, 0
    %p153 = por %p151, %p152
    %p154 = scmp.ne.s32.totalorder %s142, %s143
    %p155 = scmp.eq.s32.totalorder %s28, 1
    %p156 = por %p154, %p155
    %p158 = scmp.ne.s32.totalorder %s143, %s157
    %p159 = scmp.eq.s32.totalorder %s28, 0
    %p160 = por %p158, %p159
    %s162 = sadd.s32 %s161, 1
    %p165 = scmp.eq.s32.totalorder %s22, 1
    %p166 = scmp.ne.s32.totalorder %s161, %s163
    %p167 = scmp.eq.s32.totalorder %s22, 0
    %p168 = por %p166, %p167
    %p169 = scmp.ne.s32.totalorder %s161, %s163
    %p170 = scmp.eq.s32.totalorder %s27, 1
    %p171 = por %p169, %p170
    %p172 = scmp.ne.s32.totalorder %s163, %s164
    %p173 = scmp.eq.s32.totalorder %s27, 0
    %p174 = por %p172, %p173
    %p175 = scmp.ne.s32.totalorder %s163, %s164
    %p176 = scmp.eq.s32.totalorder %s28, 1
    %p177 = por %p175, %p176
    %p179 = scmp.ne.s32.totalorder %s164, %s178
    %p180 = scmp.eq.s32.totalorder %s28, 0
    %p181 = por %p179, %p180
    %s183 = sadd.s32 %s182, 1
    %p186 = scmp.eq.s32.totalorder %s22, 1
    %p187 = scmp.ne.s32.totalorder %s182, %s184
    %p188 = scmp.eq.s32.totalorder %s22, 0
    %p189 = por %p187, %p188
    %p190 = scmp.ne.s32.totalorder %s182, %s184
    %p191 = scmp.eq.s32.totalorder %s27, 1
    %p192 = por %p190, %p191
    %p193 = scmp.ne.s32.totalorder %s184, %s185
    %p194 = scmp.eq.s32.totalorder %s27, 0
    %p195 = por %p193, %p194
    %p196 = scmp.ne.s32.totalorder %s184, %s185
    %p197 = scmp.eq.s32.totalorder %s28, 1
    %p198 = por %p196, %p197
    %p200 = scmp.ne.s32.totalorder %s185, %s199
    %p201 = scmp.eq.s32.totalorder %s28, 0
    %p202 = por %p200, %p201
    %s204 = sadd.s32 %s203, 1
    %p207 = scmp.eq.s32.totalorder %s22, 1
    %p208 = scmp.ne.s32.totalorder %s203, %s205
    %p209 = scmp.eq.s32.totalorder %s22, 0
    %p210 = por %p208, %p209
    %p211 = scmp.ne.s32.totalorder %s203, %s205
    %p212 = scmp.eq.s32.totalorder %s27, 1
    %p213 = por %p211, %p212
    %p214 = scmp.ne.s32.totalorder %s205, %s206
    %p215 = scmp.eq.s32.totalorder %s27, 0
    %p216 = por %p214, %p215
    %p217 = scmp.ne.s32.totalorder %s205, %s206
    %p218 = scmp.eq.s32.totalorder %s28, 1
    %p219 = por %p217, %p218
    %p221 = scmp.ne.s32.totalorder %s206, %s220
    %p222 = scmp.eq.s32.totalorder %s28, 0
    %p223 = por %p221, %p222
    %s225 = sadd.s32 %s224, 1
    %p228 = scmp.eq.s32.totalorder %s22, 1
    %p229 = scmp.ne.s32.totalorder %s224, %s226
    %p230 = scmp.eq.s32.totalorder %s22, 0
    %p231 = por %p229, %p230
    %p232 = scmp.ne.s32.totalorder %s224, %s226
    %p233 = scmp.eq.s32.totalorder %s27, 1
    %p234 = por %p232, %p233
    %p235 = scmp.ne.s32.totalorder %s226, %s227
    %p236 = scmp.eq.s32.totalorder %s27, 0
    %p237 = por %p235, %p236
    %p238 = scmp.ne.s32.totalorder %s226, %s227
    %p239 = scmp.eq.s32.totalorder %s28, 1
    %p240 = por %p238, %p239
    %p242 = scmp.ne.s32.totalorder %s227, %s241
    %p243 = scmp.eq.s32.totalorder %s28, 0
    %p244 = por %p242, %p243
    %s246 = sadd.s32 %s245, 1
    %p249 = scmp.eq.s32.totalorder %s22, 1
    %p250 = scmp.ne.s32.totalorder %s245, %s247
    %p251 = scmp.eq.s32.totalorder %s22, 0
    %p252 = por %p250, %p251
    %p253 = scmp.ne.s32.totalorder %s245, %s247
    %p254 = scmp.eq.s32.totalorder %s27, 1
    %p255 = por %p253, %p254
    %p256 = scmp.ne.s32.totalorder %s247, %s248
    %p257 = scmp.eq.s32.totalorder %s27, 0
    %p258 = por %p256, %p257
    %p259 = scmp.ne.s32.totalorder %s247, %s248
    %p260 = scmp.eq.s32.totalorder %s28, 1
    %p261 = por %p259, %p260
    %p263 = scmp.ne.s32.totalorder %s248, %s262
    %p264 = scmp.eq.s32.totalorder %s28, 0
    %p265 = por %p263, %p264
    %s267 = sadd.s32 %s266, 1
    %p270 = scmp.eq.s32.totalorder %s22, 1
    %p271 = scmp.ne.s32.totalorder %s266, %s268
    %p272 = scmp.eq.s32.totalorder %s22, 0
    %p273 = por %p271, %p272
    %p274 = scmp.ne.s32.totalorder %s266, %s268
    %p275 = scmp.eq.s32.totalorder %s27, 1
    %p276 = por %p274, %p275
    %p277 = scmp.ne.s32.totalorder %s268, %s269
    %p278 = scmp.eq.s32.totalorder %s27, 0
    %p279 = por %p277, %p278
    %p280 = scmp.ne.s32.totalorder %s268, %s269
    %p281 = scmp.eq.s32.totalorder %s28, 1
    %p282 = por %p280, %p281
    %p284 = scmp.ne.s32.totalorder %s269, %s283
    %p285 = scmp.eq.s32.totalorder %s28, 0
    %p286 = por %p284, %p285
    %s288 = sadd.s32 %s287, 1
    %p291 = scmp.eq.s32.totalorder %s22, 1
    %p292 = scmp.ne.s32.totalorder %s287, %s289
    %p293 = scmp.eq.s32.totalorder %s22, 0
    %p294 = por %p292, %p293
    %p295 = scmp.ne.s32.totalorder %s287, %s289
    %p296 = scmp.eq.s32.totalorder %s27, 1
    %p297 = por %p295, %p296
    %p298 = scmp.ne.s32.totalorder %s289, %s290
    %p299 = scmp.eq.s32.totalorder %s27, 0
    %p300 = por %p298, %p299
    %p301 = scmp.ne.s32.totalorder %s289, %s290
    %p302 = scmp.eq.s32.totalorder %s28, 1
    %p303 = por %p301, %p302
    %p305 = scmp.ne.s32.totalorder %s290, %s304
    %p306 = scmp.eq.s32.totalorder %s28, 0
    %p307 = por %p305, %p306
    %s309 = sadd.s32 %s308, 1
    %p312 = scmp.eq.s32.totalorder %s22, 1
    %p313 = scmp.ne.s32.totalorder %s308, %s310
    %p314 = scmp.eq.s32.totalorder %s22, 0
    %p315 = por %p313, %p314
    %p316 = scmp.ne.s32.totalorder %s308, %s310
    %p317 = scmp.eq.s32.totalorder %s27, 1
    %p318 = por %p316, %p317
    %p319 = scmp.ne.s32.totalorder %s310, %s311
    %p320 = scmp.eq.s32.totalorder %s27, 0
    %p321 = por %p319, %p320
    %p322 = scmp.ne.s32.totalorder %s310, %s311
    %p323 = scmp.eq.s32.totalorder %s28, 1
    %p324 = por %p322, %p323
    %p326 = scmp.ne.s32.totalorder %s311, %s325
    %p327 = scmp.eq.s32.totalorder %s28, 0
    %p328 = por %p326, %p327
    %s330 = sadd.s32 %s329, 1
    %p333 = scmp.eq.s32.totalorder %s22, 1
    %p334 = scmp.ne.s32.totalorder %s329, %s331
    %p335 = scmp.eq.s32.totalorder %s22, 0
    %p336 = por %p334, %p335
    %p337 = scmp.ne.s32.totalorder %s329, %s331
    %p338 = scmp.eq.s32.totalorder %s27, 1
    %p339 = por %p337, %p338
    %p340 = scmp.ne.s32.totalorder %s331, %s332
    %p341 = scmp.eq.s32.totalorder %s27, 0
    %p342 = por %p340, %p341
    %p343 = scmp.ne.s32.totalorder %s331, %s332
    %p344 = scmp.eq.s32.totalorder %s28, 1
    %p345 = por %p343, %p344
    %p347 = scmp.ne.s32.totalorder %s332, %s346
    %p348 = scmp.eq.s32.totalorder %s28, 0
    %p349 = por %p347, %p348
    %s351 = sadd.s32 %s350, 1
    %p354 = scmp.eq.s32.totalorder %s22, 1
    %p355 = scmp.ne.s32.totalorder %s350, %s352
    %p356 = scmp.eq.s32.totalorder %s22, 0
    %p357 = por %p355, %p356
    %p358 = scmp.ne.s32.totalorder %s350, %s352
    %p359 = scmp.eq.s32.totalorder %s27, 1
    %p360 = por %p358, %p359
    %p361 = scmp.ne.s32.totalorder %s352, %s353
    %p362 = scmp.eq.s32.totalorder %s27, 0
    %p363 = por %p361, %p362
    %p364 = scmp.ne.s32.totalorder %s352, %s353
    %p365 = scmp.eq.s32.totalorder %s28, 1
    %p366 = por %p364, %p365
    %p368 = scmp.ne.s32.totalorder %s353, %s367
    %p369 = scmp.eq.s32.totalorder %s28, 0
    %p370 = por %p368, %p369
    %s371 = ssub.s32 %s22, %s29
    %p372 = scmp.eq.s32.totalorder %s371, 0
    %s374 = sadd.s32 %s373, 1
    %s375 = scalar_select %p372, %s373, %s374
    %p378 = pneg %p372
    %p379 = scmp.eq.s32.totalorder %s22, 1
    %p380 = por %p378, %p379
    %p381 = scmp.ne.s32.totalorder %s373, %s376
    %p382 = scmp.eq.s32.totalorder %s22, 0
    %p383 = por %p381, %p382
    %p384 = scmp.ne.s32.totalorder %s373, %s376
    %p385 = scmp.eq.s32.totalorder %s27, 1
    %p386 = por %p384, %p385
    %p387 = scmp.ne.s32.totalorder %s376, %s377
    %p388 = scmp.eq.s32.totalorder %s27, 0
    %p389 = por %p387, %p388
    %p390 = scmp.ne.s32.totalorder %s376, %s377
    %p391 = scmp.eq.s32.totalorder %s28, 1
    %p392 = por %p390, %p391
    %p394 = scmp.ne.s32.totalorder %s377, %s393
    %p395 = scmp.eq.s32.totalorder %s28, 0
    %p396 = por %p394, %p395
    %p397 = scmp.le.s32.totalorder 1, %s22
    %p398 = scmp.lt.s32.totalorder %s22, 3
    %p399 = pnand %p397, %p398
    %p400 = pneg %p399
    // Predicated region
    $region9: #{basemodel_forward.1} parent=5 // pred_check
      _
    $region10: #{basemodel_forward.1} parent=5 // pred_check_branch
      %402 = sbr.rel (%p399) target = $region12
    $region11: #{basemodel_forward.1} parent=5 // pred_region
      %s403 = ssub.s32 %s22, 1
      // Predicated region
      $region13: #{basemodel_forward.1} parent=11 // pred_check
        %p404 = pneg %p69
      $region14: #{basemodel_forward.1} parent=11 // pred_check_branch
        %406 = sbr.rel (%p404) target = $region16
      $region15: #{basemodel_forward.1} parent=11 // pred_region
        _
      $region16: #{basemodel_forward.1} parent=11 // pred_fallthru
        _
      // Predicated region
      $region17: #{basemodel_forward.1} parent=11 // pred_check
        %p407 = pneg %p90
      $region18: #{basemodel_forward.1} parent=11 // pred_check_branch
        %409 = sbr.rel (%p407) target = $region20
      $region19: #{basemodel_forward.1} parent=11 // pred_region
        _
      $region20: #{basemodel_forward.1} parent=11 // pred_fallthru
        _
      // Predicated region
      $region21: #{basemodel_forward.1} parent=11 // pred_check
        %p410 = pneg %p111
      $region22: #{basemodel_forward.1} parent=11 // pred_check_branch
        %412 = sbr.rel (%p410) target = $region24
      $region23: #{basemodel_forward.1} parent=11 // pred_region
        _
      $region24: #{basemodel_forward.1} parent=11 // pred_fallthru
        _
      // Predicated region
      $region25: #{basemodel_forward.1} parent=11 // pred_check
        %p413 = pneg %p132
      $region26: #{basemodel_forward.1} parent=11 // pred_check_branch
        %415 = sbr.rel (%p413) target = $region28
      $region27: #{basemodel_forward.1} parent=11 // pred_region
        _
      $region28: #{basemodel_forward.1} parent=11 // pred_fallthru
        _
      // Predicated region
      $region29: #{basemodel_forward.1} parent=11 // pred_check
        %p416 = pneg %p153
      $region30: #{basemodel_forward.1} parent=11 // pred_check_branch
        %418 = sbr.rel (%p416) target = $region32
      $region31: #{basemodel_forward.1} parent=11 // pred_region
        _
      $region32: #{basemodel_forward.1} parent=11 // pred_fallthru
        _
      // Predicated region
      $region33: #{basemodel_forward.1} parent=11 // pred_check
        %p419 = pneg %p174
      $region34: #{basemodel_forward.1} parent=11 // pred_check_branch
        %421 = sbr.rel (%p419) target = $region36
      $region35: #{basemodel_forward.1} parent=11 // pred_region
        _
      $region36: #{basemodel_forward.1} parent=11 // pred_fallthru
        _
      // Predicated region
      $region37: #{basemodel_forward.1} parent=11 // pred_check
        %p422 = pneg %p195
      $region38: #{basemodel_forward.1} parent=11 // pred_check_branch
        %424 = sbr.rel (%p422) target = $region40
      $region39: #{basemodel_forward.1} parent=11 // pred_region
        _
      $region40: #{basemodel_forward.1} parent=11 // pred_fallthru
        _
      // Predicated region
      $region41: #{basemodel_forward.1} parent=11 // pred_check
        %p425 = pneg %p216
      $region42: #{basemodel_forward.1} parent=11 // pred_check_branch
        %427 = sbr.rel (%p425) target = $region44
      $region43: #{basemodel_forward.1} parent=11 // pred_region
        _
      $region44: #{basemodel_forward.1} parent=11 // pred_fallthru
        _
      // Predicated region
      $region45: #{basemodel_forward.1} parent=11 // pred_check
        %p428 = pneg %p237
      $region46: #{basemodel_forward.1} parent=11 // pred_check_branch
        %430 = sbr.rel (%p428) target = $region48
      $region47: #{basemodel_forward.1} parent=11 // pred_region
        _
      $region48: #{basemodel_forward.1} parent=11 // pred_fallthru
        _
      // Predicated region
      $region49: #{basemodel_forward.1} parent=11 // pred_check
        %p431 = pneg %p258
      $region50: #{basemodel_forward.1} parent=11 // pred_check_branch
        %433 = sbr.rel (%p431) target = $region52
      $region51: #{basemodel_forward.1} parent=11 // pred_region
        _
      $region52: #{basemodel_forward.1} parent=11 // pred_fallthru
        _
      // Predicated region
      $region53: #{basemodel_forward.1} parent=11 // pred_check
        %p434 = pneg %p279
      $region54: #{basemodel_forward.1} parent=11 // pred_check_branch
        %436 = sbr.rel (%p434) target = $region56
      $region55: #{basemodel_forward.1} parent=11 // pred_region
        _
      $region56: #{basemodel_forward.1} parent=11 // pred_fallthru
        _
      // Predicated region
      $region57: #{basemodel_forward.1} parent=11 // pred_check
        %p437 = pneg %p300
      $region58: #{basemodel_forward.1} parent=11 // pred_check_branch
        %439 = sbr.rel (%p437) target = $region60
      $region59: #{basemodel_forward.1} parent=11 // pred_region
        _
      $region60: #{basemodel_forward.1} parent=11 // pred_fallthru
        _
      // Predicated region
      $region61: #{basemodel_forward.1} parent=11 // pred_check
        %p440 = pneg %p321
      $region62: #{basemodel_forward.1} parent=11 // pred_check_branch
        %442 = sbr.rel (%p440) target = $region64
      $region63: #{basemodel_forward.1} parent=11 // pred_region
        _
      $region64: #{basemodel_forward.1} parent=11 // pred_fallthru
        _
      // Predicated region
      $region65: #{basemodel_forward.1} parent=11 // pred_check
        %p443 = pneg %p342
      $region66: #{basemodel_forward.1} parent=11 // pred_check_branch
        %445 = sbr.rel (%p443) target = $region68
      $region67: #{basemodel_forward.1} parent=11 // pred_region
        _
      $region68: #{basemodel_forward.1} parent=11 // pred_fallthru
        _
      // Predicated region
      $region69: #{basemodel_forward.1} parent=11 // pred_check
        %p446 = pneg %p363
      $region70: #{basemodel_forward.1} parent=11 // pred_check_branch
        %448 = sbr.rel (%p446) target = $region72
      $region71: #{basemodel_forward.1} parent=11 // pred_region
        _
      $region72: #{basemodel_forward.1} parent=11 // pred_fallthru
        _
    $region12: #{basemodel_forward.1} parent=5 // pred_fallthru
      _
    %p449 = scmp.lt.s32.totalorder %s22, 2
    // Predicated region
    $region73: #{basemodel_forward.1} parent=5 // pred_check
      %p450 = pneg %p449
    $region74: #{basemodel_forward.1} parent=5 // pred_check_branch
      %452 = sbr.rel (%p450) target = $region76
    $region75: #{basemodel_forward.1} parent=5 // pred_region
      // Predicated region
      $region77: #{basemodel_forward.1} parent=75 // pred_check
        %p453 = pneg %p42
      $region78: #{basemodel_forward.1} parent=75 // pred_check_branch
        %455 = sbr.rel (%p453) target = $region80
      $region79: #{basemodel_forward.1} parent=75 // pred_region
        %p456 = scmp.lt.s32.totalorder %s22, 1
        %s457 = scalar_select %p456, %s22, 1
        %s458 = smul.addr %s457, 2
        %s459 = scalar_lea.vmem %s0, %s458
      $region80: #{basemodel_forward.1} parent=75 // pred_fallthru
        _
    $region76: #{basemodel_forward.1} parent=5 // pred_fallthru
      _
    %p460 = scmp.le.s32.totalorder 1, %s22
    %p461 = scmp.lt.s32.totalorder %s22, 3
    %p462 = pnand %p460, %p461
    %p463 = pneg %p462
    // Predicated region
    $region81: #{basemodel_forward.1} parent=5 // pred_check
      _
    $region82: #{basemodel_forward.1} parent=5 // pred_check_branch
      %465 = sbr.rel (%p462) target = $region84
    $region83: #{basemodel_forward.1} parent=5 // pred_region
      %s466 = ssub.s32 %s22, 1
      %p467 = scmp.lt.s32.totalorder %s27, 1
      %s468 = scalar_select %p467, %s27, 1
      %s469 = smul.addr %s468, 2
      %s470 = scalar_lea.vmem %s0, %s469
      %p471 = pneg %p48
      %p472 = pneg %p45
      %p473 = pneg %p69
      %p474 = pneg %p66
      %p475 = pneg %p90
      %p476 = pneg %p87
      %p477 = pneg %p111
      %p478 = pneg %p108
      %p479 = pneg %p132
      %p480 = pneg %p129
      %p481 = pneg %p153
      %p482 = pneg %p150
      %p483 = pneg %p174
      %p484 = pneg %p171
      %p485 = pneg %p195
      %p486 = pneg %p192
      %p487 = pneg %p216
      %p488 = pneg %p213
      %p489 = pneg %p237
      %p490 = pneg %p234
      %p491 = pneg %p258
      %p492 = pneg %p255
      %p493 = pneg %p279
      %p494 = pneg %p276
      %p495 = pneg %p300
      %p496 = pneg %p297
      %p497 = pneg %p321
      %p498 = pneg %p318
      %p499 = pneg %p342
      %p500 = pneg %p339
      %p501 = pneg %p363
      %p502 = pneg %p360
      %p503 = pneg %p389
      %p504 = pneg %p386
      %p505 = scmp.lt.s32.totalorder %s27, 1
      %s506 = scalar_select %p505, %s27, 1
      %s507 = smul.addr %s506, 2
      %s508 = smul.addr %s507, 2
      %s509 = scalar_lea.vmem %s16, %s508
      %p510 = scmp.lt.s32.totalorder %s27, 1
      %s511 = scalar_select %p510, %s27, 1
      %s512 = smul.addr %s511, 2
      %s513 = scalar_lea.vmem %s0, %s512
      %p514 = scmp.lt.s32.totalorder %s27, 1
      %s515 = scalar_select %p514, %s27, 1
      %s516 = smul.addr %s515, 2
      %s517 = smul.addr %s516, 2
      %s518 = scalar_lea.vmem %s16, %s517
      %v520 = vld [vmem:[%s513] sm:$0x3]
      %v522 = vlaneseq
      %v523 = vshrl.u32 %v522, 7
      %v524 = vsub.s32 0, %v523
      %v525 = vrot.slane %v520, %v524
      %v526 = vlaneseq
      %v527 = vshrl.u32 %v526, 7
      %v528 = vsub.s32 1, %v527
      %v529 = vrot.slane %v520, %v528
      %532 = vrot.lane.b32.xlu0 %v525, 17
      %v533 = vpop.permute.xlu0 %532
      %534 = vrot.lane.b32.xlu0 %v529, 17
      %v535 = vpop.permute.xlu0 %534
      %v536 = vlaneseq
      %v537 = vand.u32 %v536, 127
      %vm538 = vcmp.lt.s32.totalorder %v537, 17
      %v539 = vsel %vm538, %v533, %v535
      %v540 = vsel %vm538, %v535, %v533
      %v541 = vld [vmem:[%s1] sm:$0x3]
      %v542 = vunpack.c.l.bf16 %v541
      %v544 = vlaneseq
      %v545 = vshrl.u32 %v544, 7
      %v546 = vsub.s32 0, %v545
      %v547 = vrot.slane %v542, %v546
      %v548 = vlaneseq
      %v549 = vshrl.u32 %v548, 7
      %v550 = vsub.s32 2, %v549
      %v551 = vrot.slane %v542, %v550
      %v554 = vmul.f32 %v540, %v547
      %v555 = vmul.f32 %v539, %v551
      %v556 = vld [vmem:[%s2] sm:$0xff]
      %v557 = vld [vmem:[%s2 + $0x8] sm:$0xff]
      %v558 = vld [vmem:[%s2 + $0x10] sm:$0xff]
      %v559 = vld [vmem:[%s2 + $0x18] sm:$0xff]
      %v560 = vld [vmem:[%s2 + $0x20] sm:$0xff]
      %v561 = vld [vmem:[%s2 + $0x28] sm:$0xff]
      %v562 = vld [vmem:[%s2 + $0x30] sm:$0xff]
      %v563 = vld [vmem:[%s2 + $0x38] sm:$0xff]
      %565 = vset.pattern.permute.xlu0 0
      %566 = vperm.xlu0 %565, %v556
      %v567 = vpop.permute.xlu0 %566
      %570 = vset.pattern.permute.xlu0 0
      %571 = vperm.xlu0 %570, %v557
      %v572 = vpop.permute.xlu0 %571
      %575 = vset.pattern.permute.xlu0 0
      %576 = vperm.xlu0 %575, %v558
      %v577 = vpop.permute.xlu0 %576
      %580 = vset.pattern.permute.xlu0 0
      %581 = vperm.xlu0 %580, %v559
      %v582 = vpop.permute.xlu0 %581
      %585 = vset.pattern.permute.xlu0 0
      %586 = vperm.xlu0 %585, %v560
      %v587 = vpop.permute.xlu0 %586
      %590 = vset.pattern.permute.xlu0 0
      %591 = vperm.xlu0 %590, %v561
      %v592 = vpop.permute.xlu0 %591
      %595 = vset.pattern.permute.xlu0 0
      %596 = vperm.xlu0 %595, %v562
      %v597 = vpop.permute.xlu0 %596
      %600 = vset.pattern.permute.xlu0 0
      %601 = vperm.xlu0 %600, %v563
      %v602 = vpop.permute.xlu0 %601
      %v604 = vlaneseq
      %v605 = vshrl.u32 %v604, 7
      %v606 = vsub.s32 0, %v605
      %v607 = vrot.slane %v554, %v606
      %v608 = vlaneseq
      %v609 = vshrl.u32 %v608, 7
      %v610 = vsub.s32 0, %v609
      %v611 = vrot.slane %v555, %v610
      %v612 = vmul.f32 %v567, %v607
      %v613 = vmul.f32 %v567, %v611
      %v614 = vmul.f32 %v572, %v607
      %v615 = vmul.f32 %v572, %v611
      %v616 = vmul.f32 %v577, %v607
      %v617 = vmul.f32 %v577, %v611
      %v618 = vmul.f32 %v582, %v607
      %v619 = vmul.f32 %v582, %v611
      %v620 = vmul.f32 %v587, %v607
      %v621 = vmul.f32 %v587, %v611
      %v622 = vmul.f32 %v592, %v607
      %v623 = vmul.f32 %v592, %v611
      %v624 = vmul.f32 %v597, %v607
      %v625 = vmul.f32 %v597, %v611
      %v626 = vmul.f32 %v602, %v607
      %v627 = vmul.f32 %v602, %v611
      %v628 = vadd.f32 %v612, 0.0
      %v629 = vadd.f32 %v613, 0.0
      %v630 = vadd.f32 %v614, 0.0
      %v631 = vadd.f32 %v615, 0.0
      %v632 = vadd.f32 %v616, 0.0
      %v633 = vadd.f32 %v617, 0.0
      %v634 = vadd.f32 %v618, 0.0
      %v635 = vadd.f32 %v619, 0.0
      %v636 = vadd.f32 %v620, 0.0
      %v637 = vadd.f32 %v621, 0.0
      %v638 = vadd.f32 %v622, 0.0
      %v639 = vadd.f32 %v623, 0.0
      %v640 = vadd.f32 %v624, 0.0
      %v641 = vadd.f32 %v625, 0.0
      %v642 = vadd.f32 %v626, 0.0
      %v643 = vadd.f32 %v627, 0.0
      %644 = vrot.lane.b32.xlu0 %v525, 16
      %v645 = vpop.permute.xlu0 %644
      %646 = vrot.lane.b32.xlu0 %v529, 16
      %v647 = vpop.permute.xlu0 %646
      %vm648 = vcmp.lt.s32.totalorder %v537, 16
      %v649 = vsel %vm648, %v645, %v647
      %v650 = vsel %vm648, %v647, %v645
      %s651 = scalar_lea.vmem %s1, 2
      %v652 = vld [vmem:[%s651] sm:$0x3]
      %v653 = vunpack.c.l.bf16 %v652
      %v655 = vlaneseq
      %v656 = vshrl.u32 %v655, 7
      %v657 = vsub.s32 0, %v656
      %v658 = vrot.slane %v653, %v657
      %v659 = vlaneseq
      %v660 = vshrl.u32 %v659, 7
      %v661 = vsub.s32 2, %v660
      %v662 = vrot.slane %v653, %v661
      %v665 = vmul.f32 %v650, %v658
      %v666 = vmul.f32 %v649, %v662
      %s667 = scalar_lea.vmem %s2, 64
      %v668 = vld [vmem:[%s667] sm:$0xff]
      %v669 = vld [vmem:[%s667 + $0x8] sm:$0xff]
      %v670 = vld [vmem:[%s667 + $0x10] sm:$0xff]
      %v671 = vld [vmem:[%s667 + $0x18] sm:$0xff]
      %v672 = vld [vmem:[%s667 + $0x20] sm:$0xff]
      %v673 = vld [vmem:[%s667 + $0x28] sm:$0xff]
      %v674 = vld [vmem:[%s667 + $0x30] sm:$0xff]
      %v675 = vld [vmem:[%s667 + $0x38] sm:$0xff]
      %677 = vset.pattern.permute.xlu0 0
      %678 = vperm.xlu0 %677, %v668
      %v679 = vpop.permute.xlu0 %678
      %682 = vset.pattern.permute.xlu0 0
      %683 = vperm.xlu0 %682, %v669
      %v684 = vpop.permute.xlu0 %683
      %687 = vset.pattern.permute.xlu0 0
      %688 = vperm.xlu0 %687, %v670
      %v689 = vpop.permute.xlu0 %688
      %692 = vset.pattern.permute.xlu0 0
      %693 = vperm.xlu0 %692, %v671
      %v694 = vpop.permute.xlu0 %693
      %697 = vset.pattern.permute.xlu0 0
      %698 = vperm.xlu0 %697, %v672
      %v699 = vpop.permute.xlu0 %698
      %702 = vset.pattern.permute.xlu0 0
      %703 = vperm.xlu0 %702, %v673
      %v704 = vpop.permute.xlu0 %703
      %707 = vset.pattern.permute.xlu0 0
      %708 = vperm.xlu0 %707, %v674
      %v709 = vpop.permute.xlu0 %708
      %712 = vset.pattern.permute.xlu0 0
      %713 = vperm.xlu0 %712, %v675
      %v714 = vpop.permute.xlu0 %713
      %v716 = vlaneseq
      %v717 = vshrl.u32 %v716, 7
      %v718 = vsub.s32 0, %v717
      %v719 = vrot.slane %v665, %v718
      %v720 = vlaneseq
      %v721 = vshrl.u32 %v720, 7
      %v722 = vsub.s32 0, %v721
      %v723 = vrot.slane %v666, %v722
      %v724 = vmul.f32 %v679, %v719
      %v725 = vmul.f32 %v679, %v723
      %v726 = vmul.f32 %v684, %v719
      %v727 = vmul.f32 %v684, %v723
      %v728 = vmul.f32 %v689, %v719
      %v729 = vmul.f32 %v689, %v723
      %v730 = vmul.f32 %v694, %v719
      %v731 = vmul.f32 %v694, %v723
      %v732 = vmul.f32 %v699, %v719
      %v733 = vmul.f32 %v699, %v723
      %v734 = vmul.f32 %v704, %v719
      %v735 = vmul.f32 %v704, %v723
      %v736 = vmul.f32 %v709, %v719
      %v737 = vmul.f32 %v709, %v723
      %v738 = vmul.f32 %v714, %v719
      %v739 = vmul.f32 %v714, %v723
      %v740 = vadd.f32 %v628, %v724
      %v741 = vadd.f32 %v629, %v725
      %v742 = vadd.f32 %v630, %v726
      %v743 = vadd.f32 %v631, %v727
      %v744 = vadd.f32 %v632, %v728
      %v745 = vadd.f32 %v633, %v729
      %v746 = vadd.f32 %v634, %v730
      %v747 = vadd.f32 %v635, %v731
      %v748 = vadd.f32 %v636, %v732
      %v749 = vadd.f32 %v637, %v733
      %v750 = vadd.f32 %v638, %v734
      %v751 = vadd.f32 %v639, %v735
      %v752 = vadd.f32 %v640, %v736
      %v753 = vadd.f32 %v641, %v737
      %v754 = vadd.f32 %v642, %v738
      %v755 = vadd.f32 %v643, %v739
      %756 = vrot.lane.b32.xlu0 %v525, 15
      %v757 = vpop.permute.xlu0 %756
      %758 = vrot.lane.b32.xlu0 %v529, 15
      %v759 = vpop.permute.xlu0 %758
      %vm760 = vcmp.lt.s32.totalorder %v537, 15
      %v761 = vsel %vm760, %v757, %v759
      %v762 = vsel %vm760, %v759, %v757
      %s763 = scalar_lea.vmem %s1, 4
      %v764 = vld [vmem:[%s763] sm:$0x3]
      %v765 = vunpack.c.l.bf16 %v764
      %v767 = vlaneseq
      %v768 = vshrl.u32 %v767, 7
      %v769 = vsub.s32 0, %v768
      %v770 = vrot.slane %v765, %v769
      %v771 = vlaneseq
      %v772 = vshrl.u32 %v771, 7
      %v773 = vsub.s32 2, %v772
      %v774 = vrot.slane %v765, %v773
      %v777 = vmul.f32 %v762, %v770
      %v778 = vmul.f32 %v761, %v774
      %s779 = scalar_lea.vmem %s2, 128
      %v780 = vld [vmem:[%s779] sm:$0xff]
      %v781 = vld [vmem:[%s779 + $0x8] sm:$0xff]
      %v782 = vld [vmem:[%s779 + $0x10] sm:$0xff]
      %v783 = vld [vmem:[%s779 + $0x18] sm:$0xff]
      %v784 = vld [vmem:[%s779 + $0x20] sm:$0xff]
      %v785 = vld [vmem:[%s779 + $0x28] sm:$0xff]
      %v786 = vld [vmem:[%s779 + $0x30] sm:$0xff]
      %v787 = vld [vmem:[%s779 + $0x38] sm:$0xff]
      %789 = vset.pattern.permute.xlu0 0
      %790 = vperm.xlu0 %789, %v780
      %v791 = vpop.permute.xlu0 %790
      %794 = vset.pattern.permute.xlu0 0
      %795 = vperm.xlu0 %794, %v781
      %v796 = vpop.permute.xlu0 %795
      %799 = vset.pattern.permute.xlu0 0
      %800 = vperm.xlu0 %799, %v782
      %v801 = vpop.permute.xlu0 %800
      %804 = vset.pattern.permute.xlu0 0
      %805 = vperm.xlu0 %804, %v783
      %v806 = vpop.permute.xlu0 %805
      %809 = vset.pattern.permute.xlu0 0
      %810 = vperm.xlu0 %809, %v784
      %v811 = vpop.permute.xlu0 %810
      %814 = vset.pattern.permute.xlu0 0
      %815 = vperm.xlu0 %814, %v785
      %v816 = vpop.permute.xlu0 %815
      %819 = vset.pattern.permute.xlu0 0
      %820 = vperm.xlu0 %819, %v786
      %v821 = vpop.permute.xlu0 %820
      %824 = vset.pattern.permute.xlu0 0
      %825 = vperm.xlu0 %824, %v787
      %v826 = vpop.permute.xlu0 %825
      %v828 = vlaneseq
      %v829 = vshrl.u32 %v828, 7
      %v830 = vsub.s32 0, %v829
      %v831 = vrot.slane %v777, %v830
      %v832 = vlaneseq
      %v833 = vshrl.u32 %v832, 7
      %v834 = vsub.s32 0, %v833
      %v835 = vrot.slane %v778, %v834
      %v836 = vmul.f32 %v791, %v831
      %v837 = vmul.f32 %v791, %v835
      %v838 = vmul.f32 %v796, %v831
      %v839 = vmul.f32 %v796, %v835
      %v840 = vmul.f32 %v801, %v831
      %v841 = vmul.f32 %v801, %v835
      %v842 = vmul.f32 %v806, %v831
      %v843 = vmul.f32 %v806, %v835
      %v844 = vmul.f32 %v811, %v831
      %v845 = vmul.f32 %v811, %v835
      %v846 = vmul.f32 %v816, %v831
      %v847 = vmul.f32 %v816, %v835
      %v848 = vmul.f32 %v821, %v831
      %v849 = vmul.f32 %v821, %v835
      %v850 = vmul.f32 %v826, %v831
      %v851 = vmul.f32 %v826, %v835
      %v852 = vadd.f32 %v740, %v836
      %v853 = vadd.f32 %v741, %v837
      %v854 = vadd.f32 %v742, %v838
      %v855 = vadd.f32 %v743, %v839
      %v856 = vadd.f32 %v744, %v840
      %v857 = vadd.f32 %v745, %v841
      %v858 = vadd.f32 %v746, %v842
      %v859 = vadd.f32 %v747, %v843
      %v860 = vadd.f32 %v748, %v844
      %v861 = vadd.f32 %v749, %v845
      %v862 = vadd.f32 %v750, %v846
      %v863 = vadd.f32 %v751, %v847
      %v864 = vadd.f32 %v752, %v848
      %v865 = vadd.f32 %v753, %v849
      %v866 = vadd.f32 %v754, %v850
      %v867 = vadd.f32 %v755, %v851
      %868 = vrot.lane.b32.xlu0 %v525, 1
      %v869 = vpop.permute.xlu0 %868
      %870 = vrot.lane.b32.xlu0 %v529, 1
      %v871 = vpop.permute.xlu0 %870
      %vm872 = vcmp.lt.s32.totalorder %v537, 1
      %v873 = vsel %vm872, %v869, %v871
      %v874 = vsel %vm872, %v871, %v869
      %s875 = scalar_lea.vmem %s1, 6
      %v876 = vld [vmem:[%s875] sm:$0x3]
      %v877 = vunpack.c.l.bf16 %v876
      %v879 = vlaneseq
      %v880 = vshrl.u32 %v879, 7
      %v881 = vsub.s32 0, %v880
      %v882 = vrot.slane %v877, %v881
      %v883 = vlaneseq
      %v884 = vshrl.u32 %v883, 7
      %v885 = vsub.s32 2, %v884
      %v886 = vrot.slane %v877, %v885
      %v889 = vmul.f32 %v874, %v882
      %v890 = vmul.f32 %v873, %v886
      %s891 = scalar_lea.vmem %s2, 192
      %v892 = vld [vmem:[%s891] sm:$0xff]
      %v893 = vld [vmem:[%s891 + $0x8] sm:$0xff]
      %v894 = vld [vmem:[%s891 + $0x10] sm:$0xff]
      %v895 = vld [vmem:[%s891 + $0x18] sm:$0xff]
      %v896 = vld [vmem:[%s891 + $0x20] sm:$0xff]
      %v897 = vld [vmem:[%s891 + $0x28] sm:$0xff]
      %v898 = vld [vmem:[%s891 + $0x30] sm:$0xff]
      %v899 = vld [vmem:[%s891 + $0x38] sm:$0xff]
      %901 = vset.pattern.permute.xlu0 0
      %902 = vperm.xlu0 %901, %v892
      %v903 = vpop.permute.xlu0 %902
      %906 = vset.pattern.permute.xlu0 0
      %907 = vperm.xlu0 %906, %v893
      %v908 = vpop.permute.xlu0 %907
      %911 = vset.pattern.permute.xlu0 0
      %912 = vperm.xlu0 %911, %v894
      %v913 = vpop.permute.xlu0 %912
      %916 = vset.pattern.permute.xlu0 0
      %917 = vperm.xlu0 %916, %v895
      %v918 = vpop.permute.xlu0 %917
      %921 = vset.pattern.permute.xlu0 0
      %922 = vperm.xlu0 %921, %v896
      %v923 = vpop.permute.xlu0 %922
      %926 = vset.pattern.permute.xlu0 0
      %927 = vperm.xlu0 %926, %v897
      %v928 = vpop.permute.xlu0 %927
      %931 = vset.pattern.permute.xlu0 0
      %932 = vperm.xlu0 %931, %v898
      %v933 = vpop.permute.xlu0 %932
      %936 = vset.pattern.permute.xlu0 0
      %937 = vperm.xlu0 %936, %v899
      %v938 = vpop.permute.xlu0 %937
      %v940 = vlaneseq
      %v941 = vshrl.u32 %v940, 7
      %v942 = vsub.s32 0, %v941
      %v943 = vrot.slane %v889, %v942
      %v944 = vlaneseq
      %v945 = vshrl.u32 %v944, 7
      %v946 = vsub.s32 0, %v945
      %v947 = vrot.slane %v890, %v946
      %v948 = vmul.f32 %v903, %v943
      %v949 = vmul.f32 %v903, %v947
      %v950 = vmul.f32 %v908, %v943
      %v951 = vmul.f32 %v908, %v947
      %v952 = vmul.f32 %v913, %v943
      %v953 = vmul.f32 %v913, %v947
      %v954 = vmul.f32 %v918, %v943
      %v955 = vmul.f32 %v918, %v947
      %v956 = vmul.f32 %v923, %v943
      %v957 = vmul.f32 %v923, %v947
      %v958 = vmul.f32 %v928, %v943
      %v959 = vmul.f32 %v928, %v947
      %v960 = vmul.f32 %v933, %v943
      %v961 = vmul.f32 %v933, %v947
      %v962 = vmul.f32 %v938, %v943
      %v963 = vmul.f32 %v938, %v947
      %v964 = vadd.f32 %v852, %v948
      %v965 = vadd.f32 %v853, %v949
      %v966 = vadd.f32 %v854, %v950
      %v967 = vadd.f32 %v855, %v951
      %v968 = vadd.f32 %v856, %v952
      %v969 = vadd.f32 %v857, %v953
      %v970 = vadd.f32 %v858, %v954
      %v971 = vadd.f32 %v859, %v955
      %v972 = vadd.f32 %v860, %v956
      %v973 = vadd.f32 %v861, %v957
      %v974 = vadd.f32 %v862, %v958
      %v975 = vadd.f32 %v863, %v959
      %v976 = vadd.f32 %v864, %v960
      %v977 = vadd.f32 %v865, %v961
      %v978 = vadd.f32 %v866, %v962
      %v979 = vadd.f32 %v867, %v963
      %s980 = scalar_lea.vmem %s2, 256
      %v981 = vld [vmem:[%s980] sm:$0xff]
      %v982 = vld [vmem:[%s980 + $0x8] sm:$0xff]
      %v983 = vld [vmem:[%s980 + $0x10] sm:$0xff]
      %v984 = vld [vmem:[%s980 + $0x18] sm:$0xff]
      %v985 = vld [vmem:[%s980 + $0x20] sm:$0xff]
      %v986 = vld [vmem:[%s980 + $0x28] sm:$0xff]
      %v987 = vld [vmem:[%s980 + $0x30] sm:$0xff]
      %v988 = vld [vmem:[%s980 + $0x38] sm:$0xff]
      %990 = vset.pattern.permute.xlu0 0
      %991 = vperm.xlu0 %990, %v981
      %v992 = vpop.permute.xlu0 %991
      %995 = vset.pattern.permute.xlu0 0
      %996 = vperm.xlu0 %995, %v982
      %v997 = vpop.permute.xlu0 %996
      %1000 = vset.pattern.permute.xlu0 0
      %1001 = vperm.xlu0 %1000, %v983
      %v1002 = vpop.permute.xlu0 %1001
      %1005 = vset.pattern.permute.xlu0 0
      %1006 = vperm.xlu0 %1005, %v984
      %v1007 = vpop.permute.xlu0 %1006
      %1010 = vset.pattern.permute.xlu0 0
      %1011 = vperm.xlu0 %1010, %v985
      %v1012 = vpop.permute.xlu0 %1011
      %1015 = vset.pattern.permute.xlu0 0
      %1016 = vperm.xlu0 %1015, %v986
      %v1017 = vpop.permute.xlu0 %1016
      %1020 = vset.pattern.permute.xlu0 0
      %1021 = vperm.xlu0 %1020, %v987
      %v1022 = vpop.permute.xlu0 %1021
      %1025 = vset.pattern.permute.xlu0 0
      %1026 = vperm.xlu0 %1025, %v988
      %v1027 = vpop.permute.xlu0 %1026
      %v1029 = vmul.f32 %v992, %v525
      %v1030 = vmul.f32 %v992, %v529
      %v1031 = vmul.f32 %v997, %v525
      %v1032 = vmul.f32 %v997, %v529
      %v1033 = vmul.f32 %v1002, %v525
      %v1034 = vmul.f32 %v1002, %v529
      %v1035 = vmul.f32 %v1007, %v525
      %v1036 = vmul.f32 %v1007, %v529
      %v1037 = vmul.f32 %v1012, %v525
      %v1038 = vmul.f32 %v1012, %v529
      %v1039 = vmul.f32 %v1017, %v525
      %v1040 = vmul.f32 %v1017, %v529
      %v1041 = vmul.f32 %v1022, %v525
      %v1042 = vmul.f32 %v1022, %v529
      %v1043 = vmul.f32 %v1027, %v525
      %v1044 = vmul.f32 %v1027, %v529
      %v1045 = vadd.f32 %v964, %v1029
      %v1046 = vadd.f32 %v965, %v1030
      %v1047 = vadd.f32 %v966, %v1031
      %v1048 = vadd.f32 %v967, %v1032
      %v1049 = vadd.f32 %v968, %v1033
      %v1050 = vadd.f32 %v969, %v1034
      %v1051 = vadd.f32 %v970, %v1035
      %v1052 = vadd.f32 %v971, %v1036
      %v1053 = vadd.f32 %v972, %v1037
      %v1054 = vadd.f32 %v973, %v1038
      %v1055 = vadd.f32 %v974, %v1039
      %v1056 = vadd.f32 %v975, %v1040
      %v1057 = vadd.f32 %v976, %v1041
      %v1058 = vadd.f32 %v977, %v1042
      %v1059 = vadd.f32 %v978, %v1043
      %v1060 = vadd.f32 %v979, %v1044
      %1061 = vrot.lane.b32.xlu0 %v525, 127
      %v1062 = vpop.permute.xlu0 %1061
      %1063 = vrot.lane.b32.xlu0 %v529, 127
      %v1064 = vpop.permute.xlu0 %1063
      %vm1065 = vcmp.lt.s32.totalorder %v537, 127
      %v1066 = vsel %vm1065, %v1062, %v1064
      %v1067 = vsel %vm1065, %v1064, %v1062
      %s1068 = scalar_lea.vmem %s1, 10
      %v1069 = vld [vmem:[%s1068] sm:$0x3]
      %v1070 = vunpack.c.l.bf16 %v1069
      %v1072 = vlaneseq
      %v1073 = vshrl.u32 %v1072, 7
      %v1074 = vsub.s32 0, %v1073
      %v1075 = vrot.slane %v1070, %v1074
      %v1076 = vlaneseq
      %v1077 = vshrl.u32 %v1076, 7
      %v1078 = vsub.s32 2, %v1077
      %v1079 = vrot.slane %v1070, %v1078
      %v1082 = vmul.f32 %v1066, %v1075
      %v1083 = vmul.f32 %v1067, %v1079
      %s1084 = scalar_lea.vmem %s2, 320
      %v1085 = vld [vmem:[%s1084] sm:$0xff]
      %v1086 = vld [vmem:[%s1084 + $0x8] sm:$0xff]
      %v1087 = vld [vmem:[%s1084 + $0x10] sm:$0xff]
      %v1088 = vld [vmem:[%s1084 + $0x18] sm:$0xff]
      %v1089 = vld [vmem:[%s1084 + $0x20] sm:$0xff]
      %v1090 = vld [vmem:[%s1084 + $0x28] sm:$0xff]
      %v1091 = vld [vmem:[%s1084 + $0x30] sm:$0xff]
      %v1092 = vld [vmem:[%s1084 + $0x38] sm:$0xff]
      %1094 = vset.pattern.permute.xlu0 0
      %1095 = vperm.xlu0 %1094, %v1085
      %v1096 = vpop.permute.xlu0 %1095
      %1099 = vset.pattern.permute.xlu0 0
      %1100 = vperm.xlu0 %1099, %v1086
      %v1101 = vpop.permute.xlu0 %1100
      %1104 = vset.pattern.permute.xlu0 0
      %1105 = vperm.xlu0 %1104, %v1087
      %v1106 = vpop.permute.xlu0 %1105
      %1109 = vset.pattern.permute.xlu0 0
      %1110 = vperm.xlu0 %1109, %v1088
      %v1111 = vpop.permute.xlu0 %1110
      %1114 = vset.pattern.permute.xlu0 0
      %1115 = vperm.xlu0 %1114, %v1089
      %v1116 = vpop.permute.xlu0 %1115
      %1119 = vset.pattern.permute.xlu0 0
      %1120 = vperm.xlu0 %1119, %v1090
      %v1121 = vpop.permute.xlu0 %1120
      %1124 = vset.pattern.permute.xlu0 0
      %1125 = vperm.xlu0 %1124, %v1091
      %v1126 = vpop.permute.xlu0 %1125
      %1129 = vset.pattern.permute.xlu0 0
      %1130 = vperm.xlu0 %1129, %v1092
      %v1131 = vpop.permute.xlu0 %1130
      %v1133 = vlaneseq
      %v1134 = vshrl.u32 %v1133, 7
      %v1135 = vsub.s32 0, %v1134
      %v1136 = vrot.slane %v1082, %v1135
      %v1137 = vlaneseq
      %v1138 = vshrl.u32 %v1137, 7
      %v1139 = vsub.s32 0, %v1138
      %v1140 = vrot.slane %v1083, %v1139
      %v1141 = vmul.f32 %v1096, %v1136
      %v1142 = vmul.f32 %v1096, %v1140
      %v1143 = vmul.f32 %v1101, %v1136
      %v1144 = vmul.f32 %v1101, %v1140
      %v1145 = vmul.f32 %v1106, %v1136
      %v1146 = vmul.f32 %v1106, %v1140
      %v1147 = vmul.f32 %v1111, %v1136
      %v1148 = vmul.f32 %v1111, %v1140
      %v1149 = vmul.f32 %v1116, %v1136
      %v1150 = vmul.f32 %v1116, %v1140
      %v1151 = vmul.f32 %v1121, %v1136
      %v1152 = vmul.f32 %v1121, %v1140
      %v1153 = vmul.f32 %v1126, %v1136
      %v1154 = vmul.f32 %v1126, %v1140
      %v1155 = vmul.f32 %v1131, %v1136
      %v1156 = vmul.f32 %v1131, %v1140
      %v1157 = vadd.f32 %v1045, %v1141
      %v1158 = vadd.f32 %v1046, %v1142
      %v1159 = vadd.f32 %v1047, %v1143
      %v1160 = vadd.f32 %v1048, %v1144
      %v1161 = vadd.f32 %v1049, %v1145
      %v1162 = vadd.f32 %v1050, %v1146
      %v1163 = vadd.f32 %v1051, %v1147
      %v1164 = vadd.f32 %v1052, %v1148
      %v1165 = vadd.f32 %v1053, %v1149
      %v1166 = vadd.f32 %v1054, %v1150
      %v1167 = vadd.f32 %v1055, %v1151
      %v1168 = vadd.f32 %v1056, %v1152
      %v1169 = vadd.f32 %v1057, %v1153
      %v1170 = vadd.f32 %v1058, %v1154
      %v1171 = vadd.f32 %v1059, %v1155
      %v1172 = vadd.f32 %v1060, %v1156
      %1173 = vrot.lane.b32.xlu0 %v525, 113
      %v1174 = vpop.permute.xlu0 %1173
      %1175 = vrot.lane.b32.xlu0 %v529, 113
      %v1176 = vpop.permute.xlu0 %1175
      %vm1177 = vcmp.lt.s32.totalorder %v537, 113
      %v1178 = vsel %vm1177, %v1174, %v1176
      %v1179 = vsel %vm1177, %v1176, %v1174
      %s1180 = scalar_lea.vmem %s1, 12
      %v1181 = vld [vmem:[%s1180] sm:$0x3]
      %v1182 = vunpack.c.l.bf16 %v1181
      %v1184 = vlaneseq
      %v1185 = vshrl.u32 %v1184, 7
      %v1186 = vsub.s32 0, %v1185
      %v1187 = vrot.slane %v1182, %v1186
      %v1188 = vlaneseq
      %v1189 = vshrl.u32 %v1188, 7
      %v1190 = vsub.s32 2, %v1189
      %v1191 = vrot.slane %v1182, %v1190
      %v1194 = vmul.f32 %v1178, %v1187
      %v1195 = vmul.f32 %v1179, %v1191
      %s1196 = scalar_lea.vmem %s2, 384
      %v1197 = vld [vmem:[%s1196] sm:$0xff]
      %v1198 = vld [vmem:[%s1196 + $0x8] sm:$0xff]
      %v1199 = vld [vmem:[%s1196 + $0x10] sm:$0xff]
      %v1200 = vld [vmem:[%s1196 + $0x18] sm:$0xff]
      %v1201 = vld [vmem:[%s1196 + $0x20] sm:$0xff]
      %v1202 = vld [vmem:[%s1196 + $0x28] sm:$0xff]
      %v1203 = vld [vmem:[%s1196 + $0x30] sm:$0xff]
      %v1204 = vld [vmem:[%s1196 + $0x38] sm:$0xff]
      %1206 = vset.pattern.permute.xlu0 0
      %1207 = vperm.xlu0 %1206, %v1197
      %v1208 = vpop.permute.xlu0 %1207
      %1211 = vset.pattern.permute.xlu0 0
      %1212 = vperm.xlu0 %1211, %v1198
      %v1213 = vpop.permute.xlu0 %1212
      %1216 = vset.pattern.permute.xlu0 0
      %1217 = vperm.xlu0 %1216, %v1199
      %v1218 = vpop.permute.xlu0 %1217
      %1221 = vset.pattern.permute.xlu0 0
      %1222 = vperm.xlu0 %1221, %v1200
      %v1223 = vpop.permute.xlu0 %1222
      %1226 = vset.pattern.permute.xlu0 0
      %1227 = vperm.xlu0 %1226, %v1201
      %v1228 = vpop.permute.xlu0 %1227
      %1231 = vset.pattern.permute.xlu0 0
      %1232 = vperm.xlu0 %1231, %v1202
      %v1233 = vpop.permute.xlu0 %1232
      %1236 = vset.pattern.permute.xlu0 0
      %1237 = vperm.xlu0 %1236, %v1203
      %v1238 = vpop.permute.xlu0 %1237
      %1241 = vset.pattern.permute.xlu0 0
      %1242 = vperm.xlu0 %1241, %v1204
      %v1243 = vpop.permute.xlu0 %1242
      %v1245 = vlaneseq
      %v1246 = vshrl.u32 %v1245, 7
      %v1247 = vsub.s32 0, %v1246
      %v1248 = vrot.slane %v1194, %v1247
      %v1249 = vlaneseq
      %v1250 = vshrl.u32 %v1249, 7
      %v1251 = vsub.s32 0, %v1250
      %v1252 = vrot.slane %v1195, %v1251
      %v1253 = vmul.f32 %v1208, %v1248
      %v1254 = vmul.f32 %v1208, %v1252
      %v1255 = vmul.f32 %v1213, %v1248
      %v1256 = vmul.f32 %v1213, %v1252
      %v1257 = vmul.f32 %v1218, %v1248
      %v1258 = vmul.f32 %v1218, %v1252
      %v1259 = vmul.f32 %v1223, %v1248
      %v1260 = vmul.f32 %v1223, %v1252
      %v1261 = vmul.f32 %v1228, %v1248
      %v1262 = vmul.f32 %v1228, %v1252
      %v1263 = vmul.f32 %v1233, %v1248
      %v1264 = vmul.f32 %v1233, %v1252
      %v1265 = vmul.f32 %v1238, %v1248
      %v1266 = vmul.f32 %v1238, %v1252
      %v1267 = vmul.f32 %v1243, %v1248
      %v1268 = vmul.f32 %v1243, %v1252
      %v1269 = vadd.f32 %v1157, %v1253
      %v1270 = vadd.f32 %v1158, %v1254
      %v1271 = vadd.f32 %v1159, %v1255
      %v1272 = vadd.f32 %v1160, %v1256
      %v1273 = vadd.f32 %v1161, %v1257
      %v1274 = vadd.f32 %v1162, %v1258
      %v1275 = vadd.f32 %v1163, %v1259
      %v1276 = vadd.f32 %v1164, %v1260
      %v1277 = vadd.f32 %v1165, %v1261
      %v1278 = vadd.f32 %v1166, %v1262
      %v1279 = vadd.f32 %v1167, %v1263
      %v1280 = vadd.f32 %v1168, %v1264
      %v1281 = vadd.f32 %v1169, %v1265
      %v1282 = vadd.f32 %v1170, %v1266
      %v1283 = vadd.f32 %v1171, %v1267
      %v1284 = vadd.f32 %v1172, %v1268
      %1285 = vrot.lane.b32.xlu0 %v525, 112
      %v1286 = vpop.permute.xlu0 %1285
      %1287 = vrot.lane.b32.xlu0 %v529, 112
      %v1288 = vpop.permute.xlu0 %1287
      %vm1289 = vcmp.lt.s32.totalorder %v537, 112
      %v1290 = vsel %vm1289, %v1286, %v1288
      %v1291 = vsel %vm1289, %v1288, %v1286
      %s1292 = scalar_lea.vmem %s1, 14
      %v1293 = vld [vmem:[%s1292] sm:$0x3]
      %v1294 = vunpack.c.l.bf16 %v1293
      %v1296 = vlaneseq
      %v1297 = vshrl.u32 %v1296, 7
      %v1298 = vsub.s32 0, %v1297
      %v1299 = vrot.slane %v1294, %v1298
      %v1300 = vlaneseq
      %v1301 = vshrl.u32 %v1300, 7
      %v1302 = vsub.s32 2, %v1301
      %v1303 = vrot.slane %v1294, %v1302
      %v1306 = vmul.f32 %v1290, %v1299
      %v1307 = vmul.f32 %v1291, %v1303
      %s1308 = scalar_lea.vmem %s2, 448
      %v1309 = vld [vmem:[%s1308] sm:$0xff]
      %v1310 = vld [vmem:[%s1308 + $0x8] sm:$0xff]
      %v1311 = vld [vmem:[%s1308 + $0x10] sm:$0xff]
      %v1312 = vld [vmem:[%s1308 + $0x18] sm:$0xff]
      %v1313 = vld [vmem:[%s1308 + $0x20] sm:$0xff]
      %v1314 = vld [vmem:[%s1308 + $0x28] sm:$0xff]
      %v1315 = vld [vmem:[%s1308 + $0x30] sm:$0xff]
      %v1316 = vld [vmem:[%s1308 + $0x38] sm:$0xff]
      %1318 = vset.pattern.permute.xlu0 0
      %1319 = vperm.xlu0 %1318, %v1309
      %v1320 = vpop.permute.xlu0 %1319
      %1323 = vset.pattern.permute.xlu0 0
      %1324 = vperm.xlu0 %1323, %v1310
      %v1325 = vpop.permute.xlu0 %1324
      %1328 = vset.pattern.permute.xlu0 0
      %1329 = vperm.xlu0 %1328, %v1311
      %v1330 = vpop.permute.xlu0 %1329
      %1333 = vset.pattern.permute.xlu0 0
      %1334 = vperm.xlu0 %1333, %v1312
      %v1335 = vpop.permute.xlu0 %1334
      %1338 = vset.pattern.permute.xlu0 0
      %1339 = vperm.xlu0 %1338, %v1313
      %v1340 = vpop.permute.xlu0 %1339
      %1343 = vset.pattern.permute.xlu0 0
      %1344 = vperm.xlu0 %1343, %v1314
      %v1345 = vpop.permute.xlu0 %1344
      %1348 = vset.pattern.permute.xlu0 0
      %1349 = vperm.xlu0 %1348, %v1315
      %v1350 = vpop.permute.xlu0 %1349
      %1353 = vset.pattern.permute.xlu0 0
      %1354 = vperm.xlu0 %1353, %v1316
      %v1355 = vpop.permute.xlu0 %1354
      %v1357 = vlaneseq
      %v1358 = vshrl.u32 %v1357, 7
      %v1359 = vsub.s32 0, %v1358
      %v1360 = vrot.slane %v1306, %v1359
      %v1361 = vlaneseq
      %v1362 = vshrl.u32 %v1361, 7
      %v1363 = vsub.s32 0, %v1362
      %v1364 = vrot.slane %v1307, %v1363
      %v1365 = vmul.f32 %v1320, %v1360
      %v1366 = vmul.f32 %v1320, %v1364
      %v1367 = vmul.f32 %v1325, %v1360
      %v1368 = vmul.f32 %v1325, %v1364
      %v1369 = vmul.f32 %v1330, %v1360
      %v1370 = vmul.f32 %v1330, %v1364
      %v1371 = vmul.f32 %v1335, %v1360
      %v1372 = vmul.f32 %v1335, %v1364
      %v1373 = vmul.f32 %v1340, %v1360
      %v1374 = vmul.f32 %v1340, %v1364
      %v1375 = vmul.f32 %v1345, %v1360
      %v1376 = vmul.f32 %v1345, %v1364
      %v1377 = vmul.f32 %v1350, %v1360
      %v1378 = vmul.f32 %v1350, %v1364
      %v1379 = vmul.f32 %v1355, %v1360
      %v1380 = vmul.f32 %v1355, %v1364
      %v1381 = vadd.f32 %v1269, %v1365
      %v1382 = vadd.f32 %v1270, %v1366
      %v1383 = vadd.f32 %v1271, %v1367
      %v1384 = vadd.f32 %v1272, %v1368
      %v1385 = vadd.f32 %v1273, %v1369
      %v1386 = vadd.f32 %v1274, %v1370
      %v1387 = vadd.f32 %v1275, %v1371
      %v1388 = vadd.f32 %v1276, %v1372
      %v1389 = vadd.f32 %v1277, %v1373
      %v1390 = vadd.f32 %v1278, %v1374
      %v1391 = vadd.f32 %v1279, %v1375
      %v1392 = vadd.f32 %v1280, %v1376
      %v1393 = vadd.f32 %v1281, %v1377
      %v1394 = vadd.f32 %v1282, %v1378
      %v1395 = vadd.f32 %v1283, %v1379
      %v1396 = vadd.f32 %v1284, %v1380
      %1397 = vrot.lane.b32.xlu0 %v525, 111
      %v1398 = vpop.permute.xlu0 %1397
      %1399 = vrot.lane.b32.xlu0 %v529, 111
      %v1400 = vpop.permute.xlu0 %1399
      %vm1401 = vcmp.lt.s32.totalorder %v537, 111
      %v1402 = vsel %vm1401, %v1398, %v1400
      %v1403 = vsel %vm1401, %v1400, %v1398
      %s1404 = scalar_lea.vmem %s1, 16
      %v1405 = vld [vmem:[%s1404] sm:$0x3]
      %v1406 = vunpack.c.l.bf16 %v1405
      %v1408 = vlaneseq
      %v1409 = vshrl.u32 %v1408, 7
      %v1410 = vsub.s32 0, %v1409
      %v1411 = vrot.slane %v1406, %v1410
      %v1412 = vlaneseq
      %v1413 = vshrl.u32 %v1412, 7
      %v1414 = vsub.s32 2, %v1413
      %v1415 = vrot.slane %v1406, %v1414
      %v1418 = vmul.f32 %v1402, %v1411
      %v1419 = vmul.f32 %v1403, %v1415
      %s1420 = scalar_lea.vmem %s2, 512
      %v1421 = vld [vmem:[%s1420] sm:$0xff]
      %v1422 = vld [vmem:[%s1420 + $0x8] sm:$0xff]
      %v1423 = vld [vmem:[%s1420 + $0x10] sm:$0xff]
      %v1424 = vld [vmem:[%s1420 + $0x18] sm:$0xff]
      %v1425 = vld [vmem:[%s1420 + $0x20] sm:$0xff]
      %v1426 = vld [vmem:[%s1420 + $0x28] sm:$0xff]
      %v1427 = vld [vmem:[%s1420 + $0x30] sm:$0xff]
      %v1428 = vld [vmem:[%s1420 + $0x38] sm:$0xff]
      %1430 = vset.pattern.permute.xlu0 0
      %1431 = vperm.xlu0 %1430, %v1421
      %v1432 = vpop.permute.xlu0 %1431
      %1435 = vset.pattern.permute.xlu0 0
      %1436 = vperm.xlu0 %1435, %v1422
      %v1437 = vpop.permute.xlu0 %1436
      %1440 = vset.pattern.permute.xlu0 0
      %1441 = vperm.xlu0 %1440, %v1423
      %v1442 = vpop.permute.xlu0 %1441
      %1445 = vset.pattern.permute.xlu0 0
      %1446 = vperm.xlu0 %1445, %v1424
      %v1447 = vpop.permute.xlu0 %1446
      %1450 = vset.pattern.permute.xlu0 0
      %1451 = vperm.xlu0 %1450, %v1425
      %v1452 = vpop.permute.xlu0 %1451
      %1455 = vset.pattern.permute.xlu0 0
      %1456 = vperm.xlu0 %1455, %v1426
      %v1457 = vpop.permute.xlu0 %1456
      %1460 = vset.pattern.permute.xlu0 0
      %1461 = vperm.xlu0 %1460, %v1427
      %v1462 = vpop.permute.xlu0 %1461
      %1465 = vset.pattern.permute.xlu0 0
      %1466 = vperm.xlu0 %1465, %v1428
      %v1467 = vpop.permute.xlu0 %1466
      %v1469 = vlaneseq
      %v1470 = vshrl.u32 %v1469, 7
      %v1471 = vsub.s32 0, %v1470
      %v1472 = vrot.slane %v1418, %v1471
      %v1473 = vlaneseq
      %v1474 = vshrl.u32 %v1473, 7
      %v1475 = vsub.s32 0, %v1474
      %v1476 = vrot.slane %v1419, %v1475
      %v1477 = vmul.f32 %v1432, %v1472
      %v1478 = vmul.f32 %v1432, %v1476
      %v1479 = vmul.f32 %v1437, %v1472
      %v1480 = vmul.f32 %v1437, %v1476
      %v1481 = vmul.f32 %v1442, %v1472
      %v1482 = vmul.f32 %v1442, %v1476
      %v1483 = vmul.f32 %v1447, %v1472
      %v1484 = vmul.f32 %v1447, %v1476
      %v1485 = vmul.f32 %v1452, %v1472
      %v1486 = vmul.f32 %v1452, %v1476
      %v1487 = vmul.f32 %v1457, %v1472
      %v1488 = vmul.f32 %v1457, %v1476
      %v1489 = vmul.f32 %v1462, %v1472
      %v1490 = vmul.f32 %v1462, %v1476
      %v1491 = vmul.f32 %v1467, %v1472
      %v1492 = vmul.f32 %v1467, %v1476
      %v1493 = vadd.f32 %v1381, %v1477
      %v1494 = vadd.f32 %v1382, %v1478
      %v1495 = vadd.f32 %v1383, %v1479
      %v1496 = vadd.f32 %v1384, %v1480
      %v1497 = vadd.f32 %v1385, %v1481
      %v1498 = vadd.f32 %v1386, %v1482
      %v1499 = vadd.f32 %v1387, %v1483
      %v1500 = vadd.f32 %v1388, %v1484
      %v1501 = vadd.f32 %v1389, %v1485
      %v1502 = vadd.f32 %v1390, %v1486
      %v1503 = vadd.f32 %v1391, %v1487
      %v1504 = vadd.f32 %v1392, %v1488
      %v1505 = vadd.f32 %v1393, %v1489
      %v1506 = vadd.f32 %v1394, %v1490
      %v1507 = vadd.f32 %v1395, %v1491
      %v1508 = vadd.f32 %v1396, %v1492
      %v1509 = vld [vmem:[%s3] sm:$0xff]
      %v1510 = vld [vmem:[%s3 + $0x8] sm:$0xff]
      %v1511 = vld [vmem:[%s3 + $0x10] sm:$0xff]
      %v1512 = vld [vmem:[%s3 + $0x18] sm:$0xff]
      %v1513 = vld [vmem:[%s3 + $0x20] sm:$0xff]
      %v1514 = vld [vmem:[%s3 + $0x28] sm:$0xff]
      %v1515 = vld [vmem:[%s3 + $0x30] sm:$0xff]
      %v1516 = vld [vmem:[%s3 + $0x38] sm:$0xff]
      %1518 = vset.pattern.permute.xlu0 0
      %1519 = vperm.xlu0 %1518, %v1509
      %v1520 = vpop.permute.xlu0 %1519
      %1523 = vset.pattern.permute.xlu0 0
      %1524 = vperm.xlu0 %1523, %v1510
      %v1525 = vpop.permute.xlu0 %1524
      %1528 = vset.pattern.permute.xlu0 0
      %1529 = vperm.xlu0 %1528, %v1511
      %v1530 = vpop.permute.xlu0 %1529
      %1533 = vset.pattern.permute.xlu0 0
      %1534 = vperm.xlu0 %1533, %v1512
      %v1535 = vpop.permute.xlu0 %1534
      %1538 = vset.pattern.permute.xlu0 0
      %1539 = vperm.xlu0 %1538, %v1513
      %v1540 = vpop.permute.xlu0 %1539
      %1543 = vset.pattern.permute.xlu0 0
      %1544 = vperm.xlu0 %1543, %v1514
      %v1545 = vpop.permute.xlu0 %1544
      %1548 = vset.pattern.permute.xlu0 0
      %1549 = vperm.xlu0 %1548, %v1515
      %v1550 = vpop.permute.xlu0 %1549
      %1553 = vset.pattern.permute.xlu0 0
      %1554 = vperm.xlu0 %1553, %v1516
      %v1555 = vpop.permute.xlu0 %1554
      %v1557 = vadd.f32 %v1493, %v1520
      %v1558 = vadd.f32 %v1494, %v1520
      %v1559 = vadd.f32 %v1495, %v1525
      %v1560 = vadd.f32 %v1496, %v1525
      %v1561 = vadd.f32 %v1497, %v1530
      %v1562 = vadd.f32 %v1498, %v1530
      %v1563 = vadd.f32 %v1499, %v1535
      %v1564 = vadd.f32 %v1500, %v1535
      %v1565 = vadd.f32 %v1501, %v1540
      %v1566 = vadd.f32 %v1502, %v1540
      %v1567 = vadd.f32 %v1503, %v1545
      %v1568 = vadd.f32 %v1504, %v1545
      %v1569 = vadd.f32 %v1505, %v1550
      %v1570 = vadd.f32 %v1506, %v1550
      %v1571 = vadd.f32 %v1507, %v1555
      %v1572 = vadd.f32 %v1508, %v1555
      %v1573 = vmax.f32 %v1557, 0.0
      %v1574 = vmax.f32 %v1558, 0.0
      %v1575 = vmax.f32 %v1559, 0.0
      %v1576 = vmax.f32 %v1560, 0.0
      %v1577 = vmax.f32 %v1561, 0.0
      %v1578 = vmax.f32 %v1562, 0.0
      %v1579 = vmax.f32 %v1563, 0.0
      %v1580 = vmax.f32 %v1564, 0.0
      %v1581 = vmax.f32 %v1565, 0.0
      %v1582 = vmax.f32 %v1566, 0.0
      %v1583 = vmax.f32 %v1567, 0.0
      %v1584 = vmax.f32 %v1568, 0.0
      %v1585 = vmax.f32 %v1569, 0.0
      %v1586 = vmax.f32 %v1570, 0.0
      %v1587 = vmax.f32 %v1571, 0.0
      %v1588 = vmax.f32 %v1572, 0.0
      %v1589 = vld [vmem:[%s4] sm:$0xf]
      %v1590 = vld [vmem:[%s4 + $0x4] sm:$0xf]
      %v1591 = vld [vmem:[%s4 + $0x8] sm:$0xf]
      %v1592 = vld [vmem:[%s4 + $0xc] sm:$0xf]
      %v1593 = vld [vmem:[%s4 + $0x10] sm:$0xf]
      %v1594 = vld [vmem:[%s4 + $0x14] sm:$0xf]
      %v1595 = vld [vmem:[%s4 + $0x18] sm:$0xf]
      %v1596 = vld [vmem:[%s4 + $0x1c] sm:$0xf]
      %v1597 = vpack.c.bf16 %v1575, %v1573
      %v1598 = vpack.c.bf16 %v1576, %v1574
      %v1599 = vpack.c.bf16 %v1579, %v1577
      %v1600 = vpack.c.bf16 %v1580, %v1578
      %v1601 = vpack.c.bf16 %v1583, %v1581
      %v1602 = vpack.c.bf16 %v1584, %v1582
      %v1603 = vpack.c.bf16 %v1587, %v1585
      %v1604 = vpack.c.bf16 %v1588, %v1586
      %v1605 = vld [vmem:[%s5] sm:$0xff]
      %v1606 = vld [vmem:[%s5 + $0x8] sm:$0xff]
      %v1607 = vld [vmem:[%s5 + $0x10] sm:$0xff]
      %v1608 = vld [vmem:[%s5 + $0x18] sm:$0xff]
      %v1609 = vld [vmem:[%s5 + $0x20] sm:$0xff]
      %v1610 = vld [vmem:[%s5 + $0x28] sm:$0xff]
      %v1611 = vld [vmem:[%s5 + $0x30] sm:$0xff]
      %v1612 = vld [vmem:[%s5 + $0x38] sm:$0xff]
      %1614 = vset.pattern.permute.xlu0 0
      %1615 = vperm.xlu0 %1614, %v1605
      %v1616 = vpop.permute.xlu0 %1615
      %1619 = vset.pattern.permute.xlu0 0
      %1620 = vperm.xlu0 %1619, %v1606
      %v1621 = vpop.permute.xlu0 %1620
      %1624 = vset.pattern.permute.xlu0 0
      %1625 = vperm.xlu0 %1624, %v1607
      %v1626 = vpop.permute.xlu0 %1625
      %1629 = vset.pattern.permute.xlu0 0
      %1630 = vperm.xlu0 %1629, %v1608
      %v1631 = vpop.permute.xlu0 %1630
      %1634 = vset.pattern.permute.xlu0 0
      %1635 = vperm.xlu0 %1634, %v1609
      %v1636 = vpop.permute.xlu0 %1635
      %1639 = vset.pattern.permute.xlu0 0
      %1640 = vperm.xlu0 %1639, %v1610
      %v1641 = vpop.permute.xlu0 %1640
      %1644 = vset.pattern.permute.xlu0 0
      %1645 = vperm.xlu0 %1644, %v1611
      %v1646 = vpop.permute.xlu0 %1645
      %1649 = vset.pattern.permute.xlu0 0
      %1650 = vperm.xlu0 %1649, %v1612
      %v1651 = vpop.permute.xlu0 %1650
      %v1661 = vunpack.c.l.b16 %v1589
      %v1662 = vunpack.c.l.b16 %v1590
      %v1663 = vunpack.c.l.b16 %v1591
      %v1664 = vunpack.c.l.b16 %v1592
      %v1665 = vunpack.c.l.b16 %v1593
      %v1666 = vunpack.c.l.b16 %v1594
      %v1667 = vunpack.c.l.b16 %v1595
      %v1668 = vunpack.c.l.b16 %v1596
      %v1669 = vpack.c.b16 %v1662, %v1661
      %v1670 = vpack.c.b16 %v1664, %v1663
      %v1671 = vpack.c.b16 %v1666, %v1665
      %v1672 = vpack.c.b16 %v1668, %v1667
      %vm1673 = vcmask 523264
      %v1675 = vsel %vm1673, %v1669, 0
      %v1678 = vsel %vm1673, %v1670, 0
      %v1681 = vsel %vm1673, %v1671, 0
      %v1684 = vsel %vm1673, %v1672, 0
      %1686 = vmatprep.subr.bf16.mxu0 0
      %1687 = vmatpush1.bf16.msra.mxu0 0
      %1688 = vmatprep.subr.bf16.mxu0 0
      %1689 = vmatpush1.bf16.msra.mxu0 0
      %1690 = vmatprep.subr.bf16.mxu0 0
      %1691 = vmatpush1.bf16.msra.mxu0 0
      %1692 = vmatprep.subr.bf16.mxu0 0
      %1693 = vmatpush1.bf16.msra.mxu0 0
      %1694 = vmatprep.subr.bf16.mxu0 %v1604
      %1695 = vmatpush1.bf16.msra.mxu0 %v1603
      %1696 = vmatprep.subr.bf16.mxu0 %v1602
      %1697 = vmatpush1.bf16.msra.mxu0 %v1601
      %1698 = vmatprep.subr.bf16.mxu0 %v1600
      %1699 = vmatpush1.bf16.msra.mxu0 %v1599
      %1700 = vmatprep.subr.bf16.mxu0 %v1598
      %1701 = vmatpush1.bf16.msra.mxu0 %v1597
      %1702 = vmatprep.subr.bf16.mxu0 0
      %1703 = vmatpush2.bf16.msra.mxu0 0
      %1704 = vmatprep.subr.bf16.mxu0 0
      %1705 = vmatpush2.bf16.msra.mxu0 0
      %1706 = vmatprep.subr.bf16.mxu0 0
      %1707 = vmatpush2.bf16.msra.mxu0 0
      %1708 = vmatprep.subr.bf16.mxu0 0
      %1709 = vmatpush2.bf16.msra.mxu0 0
      %1710 = vmatprep.subr.bf16.mxu0 0
      %1711 = vmatpush2.bf16.msra.mxu0 0
      %1712 = vmatprep.subr.bf16.mxu0 0
      %1713 = vmatpush2.bf16.msra.mxu0 0
      %1714 = vmatprep.subr.bf16.mxu0 0
      %1715 = vmatpush2.bf16.msra.mxu0 0
      %1716 = vmatprep.subr.bf16.mxu0 0
      %1717 = vmatpush2.bf16.msra.mxu0 0
      %1718 = vmatprep.mubr.bf16.mxu0 0
      %1719 = vmatmul.mubr.bf16.gmra.mxu0 %v1675
      %v1720 = vpop.f32.mrf.mxu0
      %v1721 = vadd.f32 %v1616, %v1720
      %v1722 = vpop.f32.mrf.mxu0
      %v1723 = vadd.f32 %v1616, %v1722
      %v1724 = vpop.f32.mrf.mxu0
      %v1725 = vadd.f32 %v1621, %v1724
      %v1726 = vpop.f32.mrf.mxu0
      %v1727 = vadd.f32 %v1621, %v1726
      %1728 = vmatprep.mubr.bf16.mxu0 0
      %1729 = vmatmul.mubr.bf16.gmra.mxu0 %v1678
      %v1730 = vpop.f32.mrf.mxu0
      %v1731 = vadd.f32 %v1626, %v1730
      %v1732 = vpop.f32.mrf.mxu0
      %v1733 = vadd.f32 %v1626, %v1732
      %v1734 = vpop.f32.mrf.mxu0
      %v1735 = vadd.f32 %v1631, %v1734
      %v1736 = vpop.f32.mrf.mxu0
      %v1737 = vadd.f32 %v1631, %v1736
      %1738 = vmatprep.mubr.bf16.mxu0 0
      %1739 = vmatmul.mubr.bf16.gmra.mxu0 %v1681
      %v1740 = vpop.f32.mrf.mxu0
      %v1741 = vadd.f32 %v1636, %v1740
      %v1742 = vpop.f32.mrf.mxu0
      %v1743 = vadd.f32 %v1636, %v1742
      %v1744 = vpop.f32.mrf.mxu0
      %v1745 = vadd.f32 %v1641, %v1744
      %v1746 = vpop.f32.mrf.mxu0
      %v1747 = vadd.f32 %v1641, %v1746
      %1748 = vmatprep.mubr.bf16.mxu0 0
      %1749 = vmatmul.mubr.bf16.gmra.mxu0 %v1684
      %v1750 = vpop.f32.mrf.mxu0
      %v1751 = vadd.f32 %v1646, %v1750
      %v1752 = vpop.f32.mrf.mxu0
      %v1753 = vadd.f32 %v1646, %v1752
      %v1754 = vpop.f32.mrf.mxu0
      %v1755 = vadd.f32 %v1651, %v1754
      %v1756 = vpop.f32.mrf.mxu0
      %v1757 = vadd.f32 %v1651, %v1756
      %1758 = vdwg.mxu0
      %1759 = vrot.lane.b32.xlu0 %v1721, 17
      %v1760 = vpop.permute.xlu0 %1759
      %1761 = vrot.lane.b32.xlu0 %v1725, 17
      %v1762 = vpop.permute.xlu0 %1761
      %1763 = vrot.lane.b32.xlu0 %v1731, 17
      %v1764 = vpop.permute.xlu0 %1763
      %1765 = vrot.lane.b32.xlu0 %v1735, 17
      %v1766 = vpop.permute.xlu0 %1765
      %1767 = vrot.lane.b32.xlu0 %v1741, 17
      %v1768 = vpop.permute.xlu0 %1767
      %1769 = vrot.lane.b32.xlu0 %v1745, 17
      %v1770 = vpop.permute.xlu0 %1769
      %1771 = vrot.lane.b32.xlu0 %v1751, 17
      %v1772 = vpop.permute.xlu0 %1771
      %1773 = vrot.lane.b32.xlu0 %v1755, 17
      %v1774 = vpop.permute.xlu0 %1773
      %1775 = vrot.lane.b32.xlu0 %v1723, 17
      %v1776 = vpop.permute.xlu0 %1775
      %1777 = vrot.lane.b32.xlu0 %v1727, 17
      %v1778 = vpop.permute.xlu0 %1777
      %1779 = vrot.lane.b32.xlu0 %v1733, 17
      %v1780 = vpop.permute.xlu0 %1779
      %1781 = vrot.lane.b32.xlu0 %v1737, 17
      %v1782 = vpop.permute.xlu0 %1781
      %1783 = vrot.lane.b32.xlu0 %v1743, 17
      %v1784 = vpop.permute.xlu0 %1783
      %1785 = vrot.lane.b32.xlu0 %v1747, 17
      %v1786 = vpop.permute.xlu0 %1785
      %1787 = vrot.lane.b32.xlu0 %v1753, 17
      %v1788 = vpop.permute.xlu0 %1787
      %1789 = vrot.lane.b32.xlu0 %v1757, 17
      %v1790 = vpop.permute.xlu0 %1789
      %v1791 = vsel %vm538, %v1760, %v1776
      %v1792 = vsel %vm538, %v1762, %v1778
      %v1793 = vsel %vm538, %v1764, %v1780
      %v1794 = vsel %vm538, %v1766, %v1782
      %v1795 = vsel %vm538, %v1768, %v1784
      %v1796 = vsel %vm538, %v1770, %v1786
      %v1797 = vsel %vm538, %v1772, %v1788
      %v1798 = vsel %vm538, %v1774, %v1790
      %v1799 = vsel %vm538, %v1776, %v1760
      %v1800 = vsel %vm538, %v1778, %v1762
      %v1801 = vsel %vm538, %v1780, %v1764
      %v1802 = vsel %vm538, %v1782, %v1766
      %v1803 = vsel %vm538, %v1784, %v1768
      %v1804 = vsel %vm538, %v1786, %v1770
      %v1805 = vsel %vm538, %v1788, %v1772
      %v1806 = vsel %vm538, %v1790, %v1774
      %v1807 = vpack.c.bf16 %v1800, %v1799
      %v1808 = vpack.c.bf16 %v1792, %v1791
      %v1809 = vpack.c.bf16 %v1802, %v1801
      %v1810 = vpack.c.bf16 %v1794, %v1793
      %v1811 = vpack.c.bf16 %v1804, %v1803
      %v1812 = vpack.c.bf16 %v1796, %v1795
      %v1813 = vpack.c.bf16 %v1806, %v1805
      %v1814 = vpack.c.bf16 %v1798, %v1797
      %v1817 = vunpack.c.l.s4 1966171168
      %v1818 = vunpack.c.0.s8 %v1817
      %v1819 = vlaneseq
      %v1820 = vshrl.u32 %v1819, 7
      %v1821 = vsub.s32 %v1818, %v1820
      %v1822 = vrot.slane %v541, %v1821
      %v1823 = vcombine.high %v1822, %v1822
      %v1825 = vunpack.c.l.s4 1966171168
      %v1826 = vunpack.c.0.s8 %v1825
      %v1827 = vlaneseq
      %v1828 = vshrl.u32 %v1827, 7
      %v1829 = vsub.s32 %v1826, %v1828
      %v1830 = vrot.slane %v1822, %v1829
      %v1832 = vunpack.c.l.s4 1966171168
      %v1833 = vunpack.c.0.s8 %v1832
      %v1834 = vlaneseq
      %v1835 = vshrl.u32 %v1834, 7
      %v1836 = vsub.s32 %v1833, %v1835
      %v1837 = vrot.slane %v1823, %v1836
      %v1839 = vpack.i.b16 %v1830, %v1830
      %v1841 = vlaneseq
      %v1842 = vshrl.u32 %v1841, 7
      %v1843 = vsub.s32 0, %v1842
      %v1844 = vrot.slane %v1839, %v1843
      %v1846 = vpack.i.b16 %v1837, %v1837
      %v1848 = vlaneseq
      %v1849 = vshrl.u32 %v1848, 7
      %v1850 = vsub.s32 0, %v1849
      %v1851 = vrot.slane %v1846, %v1850
      %v1852 = vmul.bf16 %v1807, %v1844
      %v1853 = vmul.bf16 %v1808, %v1851
      %v1854 = vmul.bf16 %v1809, %v1844
      %v1855 = vmul.bf16 %v1810, %v1851
      %v1856 = vmul.bf16 %v1811, %v1844
      %v1857 = vmul.bf16 %v1812, %v1851
      %v1858 = vmul.bf16 %v1813, %v1844
      %v1859 = vmul.bf16 %v1814, %v1851
      %v1860 = vld [vmem:[%s6] sm:$0xf]
      %v1861 = vld [vmem:[%s6 + $0x4] sm:$0xf]
      %v1862 = vld [vmem:[%s6 + $0x8] sm:$0xf]
      %v1863 = vld [vmem:[%s6 + $0xc] sm:$0xf]
      %v1864 = vld [vmem:[%s6 + $0x10] sm:$0xf]
      %v1865 = vld [vmem:[%s6 + $0x14] sm:$0xf]
      %v1866 = vld [vmem:[%s6 + $0x18] sm:$0xf]
      %v1867 = vld [vmem:[%s6 + $0x1c] sm:$0xf]
      %1868 = vrot.lane.b32.xlu0 %v1721, 16
      %v1869 = vpop.permute.xlu0 %1868
      %1870 = vrot.lane.b32.xlu0 %v1725, 16
      %v1871 = vpop.permute.xlu0 %1870
      %1872 = vrot.lane.b32.xlu0 %v1731, 16
      %v1873 = vpop.permute.xlu0 %1872
      %1874 = vrot.lane.b32.xlu0 %v1735, 16
      %v1875 = vpop.permute.xlu0 %1874
      %1876 = vrot.lane.b32.xlu0 %v1741, 16
      %v1877 = vpop.permute.xlu0 %1876
      %1878 = vrot.lane.b32.xlu0 %v1745, 16
      %v1879 = vpop.permute.xlu0 %1878
      %1880 = vrot.lane.b32.xlu0 %v1751, 16
      %v1881 = vpop.permute.xlu0 %1880
      %1882 = vrot.lane.b32.xlu0 %v1755, 16
      %v1883 = vpop.permute.xlu0 %1882
      %1884 = vrot.lane.b32.xlu0 %v1723, 16
      %v1885 = vpop.permute.xlu0 %1884
      %1886 = vrot.lane.b32.xlu0 %v1727, 16
      %v1887 = vpop.permute.xlu0 %1886
      %1888 = vrot.lane.b32.xlu0 %v1733, 16
      %v1889 = vpop.permute.xlu0 %1888
      %1890 = vrot.lane.b32.xlu0 %v1737, 16
      %v1891 = vpop.permute.xlu0 %1890
      %1892 = vrot.lane.b32.xlu0 %v1743, 16
      %v1893 = vpop.permute.xlu0 %1892
      %1894 = vrot.lane.b32.xlu0 %v1747, 16
      %v1895 = vpop.permute.xlu0 %1894
      %1896 = vrot.lane.b32.xlu0 %v1753, 16
      %v1897 = vpop.permute.xlu0 %1896
      %1898 = vrot.lane.b32.xlu0 %v1757, 16
      %v1899 = vpop.permute.xlu0 %1898
      %v1900 = vsel %vm648, %v1869, %v1885
      %v1901 = vsel %vm648, %v1871, %v1887
      %v1902 = vsel %vm648, %v1873, %v1889
      %v1903 = vsel %vm648, %v1875, %v1891
      %v1904 = vsel %vm648, %v1877, %v1893
      %v1905 = vsel %vm648, %v1879, %v1895
      %v1906 = vsel %vm648, %v1881, %v1897
      %v1907 = vsel %vm648, %v1883, %v1899
      %v1908 = vsel %vm648, %v1885, %v1869
      %v1909 = vsel %vm648, %v1887, %v1871
      %v1910 = vsel %vm648, %v1889, %v1873
      %v1911 = vsel %vm648, %v1891, %v1875
      %v1912 = vsel %vm648, %v1893, %v1877
      %v1913 = vsel %vm648, %v1895, %v1879
      %v1914 = vsel %vm648, %v1897, %v1881
      %v1915 = vsel %vm648, %v1899, %v1883
      %v1916 = vpack.c.bf16 %v1909, %v1908
      %v1917 = vpack.c.bf16 %v1901, %v1900
      %v1918 = vpack.c.bf16 %v1911, %v1910
      %v1919 = vpack.c.bf16 %v1903, %v1902
      %v1920 = vpack.c.bf16 %v1913, %v1912
      %v1921 = vpack.c.bf16 %v1905, %v1904
      %v1922 = vpack.c.bf16 %v1915, %v1914
      %v1923 = vpack.c.bf16 %v1907, %v1906
      %v1926 = vunpack.c.l.s4 1966171168
      %v1927 = vunpack.c.0.s8 %v1926
      %v1928 = vlaneseq
      %v1929 = vshrl.u32 %v1928, 7
      %v1930 = vsub.s32 %v1927, %v1929
      %v1931 = vrot.slane %v652, %v1930
      %v1932 = vcombine.high %v1931, %v1931
      %v1934 = vunpack.c.l.s4 1966171168
      %v1935 = vunpack.c.0.s8 %v1934
      %v1936 = vlaneseq
      %v1937 = vshrl.u32 %v1936, 7
      %v1938 = vsub.s32 %v1935, %v1937
      %v1939 = vrot.slane %v1931, %v1938
      %v1941 = vunpack.c.l.s4 1966171168
      %v1942 = vunpack.c.0.s8 %v1941
      %v1943 = vlaneseq
      %v1944 = vshrl.u32 %v1943, 7
      %v1945 = vsub.s32 %v1942, %v1944
      %v1946 = vrot.slane %v1932, %v1945
      %v1948 = vpack.i.b16 %v1939, %v1939
      %v1950 = vlaneseq
      %v1951 = vshrl.u32 %v1950, 7
      %v1952 = vsub.s32 0, %v1951
      %v1953 = vrot.slane %v1948, %v1952
      %v1955 = vpack.i.b16 %v1946, %v1946
      %v1957 = vlaneseq
      %v1958 = vshrl.u32 %v1957, 7
      %v1959 = vsub.s32 0, %v1958
      %v1960 = vrot.slane %v1955, %v1959
      %v1961 = vmul.bf16 %v1916, %v1953
      %v1962 = vmul.bf16 %v1917, %v1960
      %v1963 = vmul.bf16 %v1918, %v1953
      %v1964 = vmul.bf16 %v1919, %v1960
      %v1965 = vmul.bf16 %v1920, %v1953
      %v1966 = vmul.bf16 %v1921, %v1960
      %v1967 = vmul.bf16 %v1922, %v1953
      %v1968 = vmul.bf16 %v1923, %v1960
      %s1969 = scalar_lea.vmem %s6, 32
      %v1970 = vld [vmem:[%s1969] sm:$0xf]
      %v1971 = vld [vmem:[%s1969 + $0x4] sm:$0xf]
      %v1972 = vld [vmem:[%s1969 + $0x8] sm:$0xf]
      %v1973 = vld [vmem:[%s1969 + $0xc] sm:$0xf]
      %v1974 = vld [vmem:[%s1969 + $0x10] sm:$0xf]
      %v1975 = vld [vmem:[%s1969 + $0x14] sm:$0xf]
      %v1976 = vld [vmem:[%s1969 + $0x18] sm:$0xf]
      %v1977 = vld [vmem:[%s1969 + $0x1c] sm:$0xf]
      %v1986 = vunpack.c.l.b16 %v1970
      %v1987 = vunpack.c.l.b16 %v1971
      %v1988 = vunpack.c.l.b16 %v1972
      %v1989 = vunpack.c.l.b16 %v1973
      %v1990 = vunpack.c.l.b16 %v1974
      %v1991 = vunpack.c.l.b16 %v1975
      %v1992 = vunpack.c.l.b16 %v1976
      %v1993 = vunpack.c.l.b16 %v1977
      %v1994 = vpack.c.b16 %v1987, %v1986
      %v1995 = vpack.c.b16 %v1989, %v1988
      %v1996 = vpack.c.b16 %v1991, %v1990
      %v1997 = vpack.c.b16 %v1993, %v1992
      %v1999 = vsel %vm1673, %v1994, 0
      %v2002 = vsel %vm1673, %v1995, 0
      %v2005 = vsel %vm1673, %v1996, 0
      %v2008 = vsel %vm1673, %v1997, 0
      %2010 = vmatprep.subr.bf16.mxu0 0
      %2011 = vmatpush1.bf16.msra.mxu0 0
      %2012 = vmatprep.subr.bf16.mxu0 0
      %2013 = vmatpush1.bf16.msra.mxu0 0
      %2014 = vmatprep.subr.bf16.mxu0 0
      %2015 = vmatpush1.bf16.msra.mxu0 0
      %2016 = vmatprep.subr.bf16.mxu0 0
      %2017 = vmatpush1.bf16.msra.mxu0 0
      %2018 = vmatprep.subr.bf16.mxu0 %v1968
      %2019 = vmatpush1.bf16.msra.mxu0 %v1967
      %2020 = vmatprep.subr.bf16.mxu0 %v1966
      %2021 = vmatpush1.bf16.msra.mxu0 %v1965
      %2022 = vmatprep.subr.bf16.mxu0 %v1964
      %2023 = vmatpush1.bf16.msra.mxu0 %v1963
      %2024 = vmatprep.subr.bf16.mxu0 %v1962
      %2025 = vmatpush1.bf16.msra.mxu0 %v1961
      %2026 = vmatprep.subr.bf16.mxu0 0
      %2027 = vmatpush2.bf16.msra.mxu0 0
      %2028 = vmatprep.subr.bf16.mxu0 0
      %2029 = vmatpush2.bf16.msra.mxu0 0
      %2030 = vmatprep.subr.bf16.mxu0 0
      %2031 = vmatpush2.bf16.msra.mxu0 0
      %2032 = vmatprep.subr.bf16.mxu0 0
      %2033 = vmatpush2.bf16.msra.mxu0 0
      %2034 = vmatprep.subr.bf16.mxu0 0
      %2035 = vmatpush2.bf16.msra.mxu0 0
      %2036 = vmatprep.subr.bf16.mxu0 0
      %2037 = vmatpush2.bf16.msra.mxu0 0
      %2038 = vmatprep.subr.bf16.mxu0 0
      %2039 = vmatpush2.bf16.msra.mxu0 0
      %2040 = vmatprep.subr.bf16.mxu0 0
      %2041 = vmatpush2.bf16.msra.mxu0 0
      %2042 = vmatprep.mubr.bf16.mxu0 0
      %2043 = vmatmul.mubr.bf16.gmra.mxu0 %v1999
      %v2044 = vpop.f32.mrf.mxu0
      %v2045 = vadd.f32 0.0, %v2044
      %v2046 = vpop.f32.mrf.mxu0
      %v2047 = vadd.f32 0.0, %v2046
      %v2048 = vpop.f32.mrf.mxu0
      %v2049 = vadd.f32 0.0, %v2048
      %v2050 = vpop.f32.mrf.mxu0
      %v2051 = vadd.f32 0.0, %v2050
      %2052 = vmatprep.mubr.bf16.mxu0 0
      %2053 = vmatmul.mubr.bf16.gmra.mxu0 %v2002
      %v2054 = vpop.f32.mrf.mxu0
      %v2055 = vadd.f32 0.0, %v2054
      %v2056 = vpop.f32.mrf.mxu0
      %v2057 = vadd.f32 0.0, %v2056
      %v2058 = vpop.f32.mrf.mxu0
      %v2059 = vadd.f32 0.0, %v2058
      %v2060 = vpop.f32.mrf.mxu0
      %v2061 = vadd.f32 0.0, %v2060
      %2062 = vmatprep.mubr.bf16.mxu0 0
      %2063 = vmatmul.mubr.bf16.gmra.mxu0 %v2005
      %v2064 = vpop.f32.mrf.mxu0
      %v2065 = vadd.f32 0.0, %v2064
      %v2066 = vpop.f32.mrf.mxu0
      %v2067 = vadd.f32 0.0, %v2066
      %v2068 = vpop.f32.mrf.mxu0
      %v2069 = vadd.f32 0.0, %v2068
      %v2070 = vpop.f32.mrf.mxu0
      %v2071 = vadd.f32 0.0, %v2070
      %2072 = vmatprep.mubr.bf16.mxu0 0
      %2073 = vmatmul.mubr.bf16.gmra.mxu0 %v2008
      %v2074 = vpop.f32.mrf.mxu0
      %v2075 = vadd.f32 0.0, %v2074
      %v2076 = vpop.f32.mrf.mxu0
      %v2077 = vadd.f32 0.0, %v2076
      %v2078 = vpop.f32.mrf.mxu0
      %v2079 = vadd.f32 0.0, %v2078
      %v2080 = vpop.f32.mrf.mxu0
      %v2081 = vadd.f32 0.0, %v2080
      %2082 = vdwg.mxu0
      %v2091 = vunpack.c.l.b16 %v1860
      %v2092 = vunpack.c.l.b16 %v1861
      %v2093 = vunpack.c.l.b16 %v1862
      %v2094 = vunpack.c.l.b16 %v1863
      %v2095 = vunpack.c.l.b16 %v1864
      %v2096 = vunpack.c.l.b16 %v1865
      %v2097 = vunpack.c.l.b16 %v1866
      %v2098 = vunpack.c.l.b16 %v1867
      %v2099 = vpack.c.b16 %v2092, %v2091
      %v2100 = vpack.c.b16 %v2094, %v2093
      %v2101 = vpack.c.b16 %v2096, %v2095
      %v2102 = vpack.c.b16 %v2098, %v2097
      %v2104 = vsel %vm1673, %v2099, 0
      %v2107 = vsel %vm1673, %v2100, 0
      %v2110 = vsel %vm1673, %v2101, 0
      %v2113 = vsel %vm1673, %v2102, 0
      %2115 = vmatprep.subr.bf16.mxu0 0
      %2116 = vmatpush1.bf16.msra.mxu0 0
      %2117 = vmatprep.subr.bf16.mxu0 0
      %2118 = vmatpush1.bf16.msra.mxu0 0
      %2119 = vmatprep.subr.bf16.mxu0 0
      %2120 = vmatpush1.bf16.msra.mxu0 0
      %2121 = vmatprep.subr.bf16.mxu0 0
      %2122 = vmatpush1.bf16.msra.mxu0 0
      %2123 = vmatprep.subr.bf16.mxu0 %v1859
      %2124 = vmatpush1.bf16.msra.mxu0 %v1858
      %2125 = vmatprep.subr.bf16.mxu0 %v1857
      %2126 = vmatpush1.bf16.msra.mxu0 %v1856
      %2127 = vmatprep.subr.bf16.mxu0 %v1855
      %2128 = vmatpush1.bf16.msra.mxu0 %v1854
      %2129 = vmatprep.subr.bf16.mxu0 %v1853
      %2130 = vmatpush1.bf16.msra.mxu0 %v1852
      %2131 = vmatprep.subr.bf16.mxu0 0
      %2132 = vmatpush2.bf16.msra.mxu0 0
      %2133 = vmatprep.subr.bf16.mxu0 0
      %2134 = vmatpush2.bf16.msra.mxu0 0
      %2135 = vmatprep.subr.bf16.mxu0 0
      %2136 = vmatpush2.bf16.msra.mxu0 0
      %2137 = vmatprep.subr.bf16.mxu0 0
      %2138 = vmatpush2.bf16.msra.mxu0 0
      %2139 = vmatprep.subr.bf16.mxu0 0
      %2140 = vmatpush2.bf16.msra.mxu0 0
      %2141 = vmatprep.subr.bf16.mxu0 0
      %2142 = vmatpush2.bf16.msra.mxu0 0
      %2143 = vmatprep.subr.bf16.mxu0 0
      %2144 = vmatpush2.bf16.msra.mxu0 0
      %2145 = vmatprep.subr.bf16.mxu0 0
      %2146 = vmatpush2.bf16.msra.mxu0 0
      %2147 = vmatprep.mubr.bf16.mxu0 0
      %2148 = vmatmul.mubr.bf16.gmra.mxu0 %v2104
      %v2149 = vpop.f32.mrf.mxu0
      %v2150 = vadd.f32 %v2045, %v2149
      %v2151 = vpop.f32.mrf.mxu0
      %v2152 = vadd.f32 %v2047, %v2151
      %v2153 = vpop.f32.mrf.mxu0
      %v2154 = vadd.f32 %v2049, %v2153
      %v2155 = vpop.f32.mrf.mxu0
      %v2156 = vadd.f32 %v2051, %v2155
      %2157 = vmatprep.mubr.bf16.mxu0 0
      %2158 = vmatmul.mubr.bf16.gmra.mxu0 %v2107
      %v2159 = vpop.f32.mrf.mxu0
      %v2160 = vadd.f32 %v2055, %v2159
      %v2161 = vpop.f32.mrf.mxu0
      %v2162 = vadd.f32 %v2057, %v2161
      %v2163 = vpop.f32.mrf.mxu0
      %v2164 = vadd.f32 %v2059, %v2163
      %v2165 = vpop.f32.mrf.mxu0
      %v2166 = vadd.f32 %v2061, %v2165
      %2167 = vmatprep.mubr.bf16.mxu0 0
      %2168 = vmatmul.mubr.bf16.gmra.mxu0 %v2110
      %v2169 = vpop.f32.mrf.mxu0
      %v2170 = vadd.f32 %v2065, %v2169
      %v2171 = vpop.f32.mrf.mxu0
      %v2172 = vadd.f32 %v2067, %v2171
      %v2173 = vpop.f32.mrf.mxu0
      %v2174 = vadd.f32 %v2069, %v2173
      %v2175 = vpop.f32.mrf.mxu0
      %v2176 = vadd.f32 %v2071, %v2175
      %2177 = vmatprep.mubr.bf16.mxu0 0
      %2178 = vmatmul.mubr.bf16.gmra.mxu0 %v2113
      %v2179 = vpop.f32.mrf.mxu0
      %v2180 = vadd.f32 %v2075, %v2179
      %v2181 = vpop.f32.mrf.mxu0
      %v2182 = vadd.f32 %v2077, %v2181
      %v2183 = vpop.f32.mrf.mxu0
      %v2184 = vadd.f32 %v2079, %v2183
      %v2185 = vpop.f32.mrf.mxu0
      %v2186 = vadd.f32 %v2081, %v2185
      %2187 = vdwg.mxu0
      %2188 = vrot.lane.b32.xlu0 %v1721, 15
      %v2189 = vpop.permute.xlu0 %2188
      %2190 = vrot.lane.b32.xlu0 %v1725, 15
      %v2191 = vpop.permute.xlu0 %2190
      %2192 = vrot.lane.b32.xlu0 %v1731, 15
      %v2193 = vpop.permute.xlu0 %2192
      %2194 = vrot.lane.b32.xlu0 %v1735, 15
      %v2195 = vpop.permute.xlu0 %2194
      %2196 = vrot.lane.b32.xlu0 %v1741, 15
      %v2197 = vpop.permute.xlu0 %2196
      %2198 = vrot.lane.b32.xlu0 %v1745, 15
      %v2199 = vpop.permute.xlu0 %2198
      %2200 = vrot.lane.b32.xlu0 %v1751, 15
      %v2201 = vpop.permute.xlu0 %2200
      %2202 = vrot.lane.b32.xlu0 %v1755, 15
      %v2203 = vpop.permute.xlu0 %2202
      %2204 = vrot.lane.b32.xlu0 %v1723, 15
      %v2205 = vpop.permute.xlu0 %2204
      %2206 = vrot.lane.b32.xlu0 %v1727, 15
      %v2207 = vpop.permute.xlu0 %2206
      %2208 = vrot.lane.b32.xlu0 %v1733, 15
      %v2209 = vpop.permute.xlu0 %2208
      %2210 = vrot.lane.b32.xlu0 %v1737, 15
      %v2211 = vpop.permute.xlu0 %2210
      %2212 = vrot.lane.b32.xlu0 %v1743, 15
      %v2213 = vpop.permute.xlu0 %2212
      %2214 = vrot.lane.b32.xlu0 %v1747, 15
      %v2215 = vpop.permute.xlu0 %2214
      %2216 = vrot.lane.b32.xlu0 %v1753, 15
      %v2217 = vpop.permute.xlu0 %2216
      %2218 = vrot.lane.b32.xlu0 %v1757, 15
      %v2219 = vpop.permute.xlu0 %2218
      %v2220 = vsel %vm760, %v2189, %v2205
      %v2221 = vsel %vm760, %v2191, %v2207
      %v2222 = vsel %vm760, %v2193, %v2209
      %v2223 = vsel %vm760, %v2195, %v2211
      %v2224 = vsel %vm760, %v2197, %v2213
      %v2225 = vsel %vm760, %v2199, %v2215
      %v2226 = vsel %vm760, %v2201, %v2217
      %v2227 = vsel %vm760, %v2203, %v2219
      %v2228 = vsel %vm760, %v2205, %v2189
      %v2229 = vsel %vm760, %v2207, %v2191
      %v2230 = vsel %vm760, %v2209, %v2193
      %v2231 = vsel %vm760, %v2211, %v2195
      %v2232 = vsel %vm760, %v2213, %v2197
      %v2233 = vsel %vm760, %v2215, %v2199
      %v2234 = vsel %vm760, %v2217, %v2201
      %v2235 = vsel %vm760, %v2219, %v2203
      %v2236 = vpack.c.bf16 %v2229, %v2228
      %v2237 = vpack.c.bf16 %v2221, %v2220
      %v2238 = vpack.c.bf16 %v2231, %v2230
      %v2239 = vpack.c.bf16 %v2223, %v2222
      %v2240 = vpack.c.bf16 %v2233, %v2232
      %v2241 = vpack.c.bf16 %v2225, %v2224
      %v2242 = vpack.c.bf16 %v2235, %v2234
      %v2243 = vpack.c.bf16 %v2227, %v2226
      %v2246 = vunpack.c.l.s4 1966171168
      %v2247 = vunpack.c.0.s8 %v2246
      %v2248 = vlaneseq
      %v2249 = vshrl.u32 %v2248, 7
      %v2250 = vsub.s32 %v2247, %v2249
      %v2251 = vrot.slane %v764, %v2250
      %v2252 = vcombine.high %v2251, %v2251
      %v2254 = vunpack.c.l.s4 1966171168
      %v2255 = vunpack.c.0.s8 %v2254
      %v2256 = vlaneseq
      %v2257 = vshrl.u32 %v2256, 7
      %v2258 = vsub.s32 %v2255, %v2257
      %v2259 = vrot.slane %v2251, %v2258
      %v2261 = vunpack.c.l.s4 1966171168
      %v2262 = vunpack.c.0.s8 %v2261
      %v2263 = vlaneseq
      %v2264 = vshrl.u32 %v2263, 7
      %v2265 = vsub.s32 %v2262, %v2264
      %v2266 = vrot.slane %v2252, %v2265
      %v2268 = vpack.i.b16 %v2259, %v2259
      %v2270 = vlaneseq
      %v2271 = vshrl.u32 %v2270, 7
      %v2272 = vsub.s32 0, %v2271
      %v2273 = vrot.slane %v2268, %v2272
      %v2275 = vpack.i.b16 %v2266, %v2266
      %v2277 = vlaneseq
      %v2278 = vshrl.u32 %v2277, 7
      %v2279 = vsub.s32 0, %v2278
      %v2280 = vrot.slane %v2275, %v2279
      %v2281 = vmul.bf16 %v2236, %v2273
      %v2282 = vmul.bf16 %v2237, %v2280
      %v2283 = vmul.bf16 %v2238, %v2273
      %v2284 = vmul.bf16 %v2239, %v2280
      %v2285 = vmul.bf16 %v2240, %v2273
      %v2286 = vmul.bf16 %v2241, %v2280
      %v2287 = vmul.bf16 %v2242, %v2273
      %v2288 = vmul.bf16 %v2243, %v2280
      %s2289 = scalar_lea.vmem %s6, 64
      %v2290 = vld [vmem:[%s2289] sm:$0xf]
      %v2291 = vld [vmem:[%s2289 + $0x4] sm:$0xf]
      %v2292 = vld [vmem:[%s2289 + $0x8] sm:$0xf]
      %v2293 = vld [vmem:[%s2289 + $0xc] sm:$0xf]
      %v2294 = vld [vmem:[%s2289 + $0x10] sm:$0xf]
      %v2295 = vld [vmem:[%s2289 + $0x14] sm:$0xf]
      %v2296 = vld [vmem:[%s2289 + $0x18] sm:$0xf]
      %v2297 = vld [vmem:[%s2289 + $0x1c] sm:$0xf]
      %v2306 = vunpack.c.l.b16 %v2290
      %v2307 = vunpack.c.l.b16 %v2291
      %v2308 = vunpack.c.l.b16 %v2292
      %v2309 = vunpack.c.l.b16 %v2293
      %v2310 = vunpack.c.l.b16 %v2294
      %v2311 = vunpack.c.l.b16 %v2295
      %v2312 = vunpack.c.l.b16 %v2296
      %v2313 = vunpack.c.l.b16 %v2297
      %v2314 = vpack.c.b16 %v2307, %v2306
      %v2315 = vpack.c.b16 %v2309, %v2308
      %v2316 = vpack.c.b16 %v2311, %v2310
      %v2317 = vpack.c.b16 %v2313, %v2312
      %v2319 = vsel %vm1673, %v2314, 0
      %v2322 = vsel %vm1673, %v2315, 0
      %v2325 = vsel %vm1673, %v2316, 0
      %v2328 = vsel %vm1673, %v2317, 0
      %2330 = vmatprep.subr.bf16.mxu0 0
      %2331 = vmatpush1.bf16.msra.mxu0 0
      %2332 = vmatprep.subr.bf16.mxu0 0
      %2333 = vmatpush1.bf16.msra.mxu0 0
      %2334 = vmatprep.subr.bf16.mxu0 0
      %2335 = vmatpush1.bf16.msra.mxu0 0
      %2336 = vmatprep.subr.bf16.mxu0 0
      %2337 = vmatpush1.bf16.msra.mxu0 0
      %2338 = vmatprep.subr.bf16.mxu0 %v2288
      %2339 = vmatpush1.bf16.msra.mxu0 %v2287
      %2340 = vmatprep.subr.bf16.mxu0 %v2286
      %2341 = vmatpush1.bf16.msra.mxu0 %v2285
      %2342 = vmatprep.subr.bf16.mxu0 %v2284
      %2343 = vmatpush1.bf16.msra.mxu0 %v2283
      %2344 = vmatprep.subr.bf16.mxu0 %v2282
      %2345 = vmatpush1.bf16.msra.mxu0 %v2281
      %2346 = vmatprep.subr.bf16.mxu0 0
      %2347 = vmatpush2.bf16.msra.mxu0 0
      %2348 = vmatprep.subr.bf16.mxu0 0
      %2349 = vmatpush2.bf16.msra.mxu0 0
      %2350 = vmatprep.subr.bf16.mxu0 0
      %2351 = vmatpush2.bf16.msra.mxu0 0
      %2352 = vmatprep.subr.bf16.mxu0 0
      %2353 = vmatpush2.bf16.msra.mxu0 0
      %2354 = vmatprep.subr.bf16.mxu0 0
      %2355 = vmatpush2.bf16.msra.mxu0 0
      %2356 = vmatprep.subr.bf16.mxu0 0
      %2357 = vmatpush2.bf16.msra.mxu0 0
      %2358 = vmatprep.subr.bf16.mxu0 0
      %2359 = vmatpush2.bf16.msra.mxu0 0
      %2360 = vmatprep.subr.bf16.mxu0 0
      %2361 = vmatpush2.bf16.msra.mxu0 0
      %2362 = vmatprep.mubr.bf16.mxu0 0
      %2363 = vmatmul.mubr.bf16.gmra.mxu0 %v2319
      %v2364 = vpop.f32.mrf.mxu0
      %v2365 = vadd.f32 0.0, %v2364
      %v2366 = vpop.f32.mrf.mxu0
      %v2367 = vadd.f32 0.0, %v2366
      %v2368 = vpop.f32.mrf.mxu0
      %v2369 = vadd.f32 0.0, %v2368
      %v2370 = vpop.f32.mrf.mxu0
      %v2371 = vadd.f32 0.0, %v2370
      %2372 = vmatprep.mubr.bf16.mxu0 0
      %2373 = vmatmul.mubr.bf16.gmra.mxu0 %v2322
      %v2374 = vpop.f32.mrf.mxu0
      %v2375 = vadd.f32 0.0, %v2374
      %v2376 = vpop.f32.mrf.mxu0
      %v2377 = vadd.f32 0.0, %v2376
      %v2378 = vpop.f32.mrf.mxu0
      %v2379 = vadd.f32 0.0, %v2378
      %v2380 = vpop.f32.mrf.mxu0
      %v2381 = vadd.f32 0.0, %v2380
      %2382 = vmatprep.mubr.bf16.mxu0 0
      %2383 = vmatmul.mubr.bf16.gmra.mxu0 %v2325
      %v2384 = vpop.f32.mrf.mxu0
      %v2385 = vadd.f32 0.0, %v2384
      %v2386 = vpop.f32.mrf.mxu0
      %v2387 = vadd.f32 0.0, %v2386
      %v2388 = vpop.f32.mrf.mxu0
      %v2389 = vadd.f32 0.0, %v2388
      %v2390 = vpop.f32.mrf.mxu0
      %v2391 = vadd.f32 0.0, %v2390
      %2392 = vmatprep.mubr.bf16.mxu0 0
      %2393 = vmatmul.mubr.bf16.gmra.mxu0 %v2328
      %v2394 = vpop.f32.mrf.mxu0
      %v2395 = vadd.f32 0.0, %v2394
      %v2396 = vpop.f32.mrf.mxu0
      %v2397 = vadd.f32 0.0, %v2396
      %v2398 = vpop.f32.mrf.mxu0
      %v2399 = vadd.f32 0.0, %v2398
      %v2400 = vpop.f32.mrf.mxu0
      %v2401 = vadd.f32 0.0, %v2400
      %2402 = vdwg.mxu0
      %v2403 = vadd.f32 %v2150, %v2365
      %v2404 = vadd.f32 %v2152, %v2367
      %v2405 = vadd.f32 %v2154, %v2369
      %v2406 = vadd.f32 %v2156, %v2371
      %v2407 = vadd.f32 %v2160, %v2375
      %v2408 = vadd.f32 %v2162, %v2377
      %v2409 = vadd.f32 %v2164, %v2379
      %v2410 = vadd.f32 %v2166, %v2381
      %v2411 = vadd.f32 %v2170, %v2385
      %v2412 = vadd.f32 %v2172, %v2387
      %v2413 = vadd.f32 %v2174, %v2389
      %v2414 = vadd.f32 %v2176, %v2391
      %v2415 = vadd.f32 %v2180, %v2395
      %v2416 = vadd.f32 %v2182, %v2397
      %v2417 = vadd.f32 %v2184, %v2399
      %v2418 = vadd.f32 %v2186, %v2401
      %2419 = vrot.lane.b32.xlu0 %v1721, 1
      %v2420 = vpop.permute.xlu0 %2419
      %2421 = vrot.lane.b32.xlu0 %v1725, 1
      %v2422 = vpop.permute.xlu0 %2421
      %2423 = vrot.lane.b32.xlu0 %v1731, 1
      %v2424 = vpop.permute.xlu0 %2423
      %2425 = vrot.lane.b32.xlu0 %v1735, 1
      %v2426 = vpop.permute.xlu0 %2425
      %2427 = vrot.lane.b32.xlu0 %v1741, 1
      %v2428 = vpop.permute.xlu0 %2427
      %2429 = vrot.lane.b32.xlu0 %v1745, 1
      %v2430 = vpop.permute.xlu0 %2429
      %2431 = vrot.lane.b32.xlu0 %v1751, 1
      %v2432 = vpop.permute.xlu0 %2431
      %2433 = vrot.lane.b32.xlu0 %v1755, 1
      %v2434 = vpop.permute.xlu0 %2433
      %2435 = vrot.lane.b32.xlu0 %v1723, 1
      %v2436 = vpop.permute.xlu0 %2435
      %2437 = vrot.lane.b32.xlu0 %v1727, 1
      %v2438 = vpop.permute.xlu0 %2437
      %2439 = vrot.lane.b32.xlu0 %v1733, 1
      %v2440 = vpop.permute.xlu0 %2439
      %2441 = vrot.lane.b32.xlu0 %v1737, 1
      %v2442 = vpop.permute.xlu0 %2441
      %2443 = vrot.lane.b32.xlu0 %v1743, 1
      %v2444 = vpop.permute.xlu0 %2443
      %2445 = vrot.lane.b32.xlu0 %v1747, 1
      %v2446 = vpop.permute.xlu0 %2445
      %2447 = vrot.lane.b32.xlu0 %v1753, 1
      %v2448 = vpop.permute.xlu0 %2447
      %2449 = vrot.lane.b32.xlu0 %v1757, 1
      %v2450 = vpop.permute.xlu0 %2449
      %v2451 = vsel %vm872, %v2420, %v2436
      %v2452 = vsel %vm872, %v2422, %v2438
      %v2453 = vsel %vm872, %v2424, %v2440
      %v2454 = vsel %vm872, %v2426, %v2442
      %v2455 = vsel %vm872, %v2428, %v2444
      %v2456 = vsel %vm872, %v2430, %v2446
      %v2457 = vsel %vm872, %v2432, %v2448
      %v2458 = vsel %vm872, %v2434, %v2450
      %v2459 = vsel %vm872, %v2436, %v2420
      %v2460 = vsel %vm872, %v2438, %v2422
      %v2461 = vsel %vm872, %v2440, %v2424
      %v2462 = vsel %vm872, %v2442, %v2426
      %v2463 = vsel %vm872, %v2444, %v2428
      %v2464 = vsel %vm872, %v2446, %v2430
      %v2465 = vsel %vm872, %v2448, %v2432
      %v2466 = vsel %vm872, %v2450, %v2434
      %v2467 = vpack.c.bf16 %v2460, %v2459
      %v2468 = vpack.c.bf16 %v2452, %v2451
      %v2469 = vpack.c.bf16 %v2462, %v2461
      %v2470 = vpack.c.bf16 %v2454, %v2453
      %v2471 = vpack.c.bf16 %v2464, %v2463
      %v2472 = vpack.c.bf16 %v2456, %v2455
      %v2473 = vpack.c.bf16 %v2466, %v2465
      %v2474 = vpack.c.bf16 %v2458, %v2457
      %v2477 = vunpack.c.l.s4 1966171168
      %v2478 = vunpack.c.0.s8 %v2477
      %v2479 = vlaneseq
      %v2480 = vshrl.u32 %v2479, 7
      %v2481 = vsub.s32 %v2478, %v2480
      %v2482 = vrot.slane %v876, %v2481
      %v2483 = vcombine.high %v2482, %v2482
      %v2485 = vunpack.c.l.s4 1966171168
      %v2486 = vunpack.c.0.s8 %v2485
      %v2487 = vlaneseq
      %v2488 = vshrl.u32 %v2487, 7
      %v2489 = vsub.s32 %v2486, %v2488
      %v2490 = vrot.slane %v2482, %v2489
      %v2492 = vunpack.c.l.s4 1966171168
      %v2493 = vunpack.c.0.s8 %v2492
      %v2494 = vlaneseq
      %v2495 = vshrl.u32 %v2494, 7
      %v2496 = vsub.s32 %v2493, %v2495
      %v2497 = vrot.slane %v2483, %v2496
      %v2499 = vpack.i.b16 %v2490, %v2490
      %v2501 = vlaneseq
      %v2502 = vshrl.u32 %v2501, 7
      %v2503 = vsub.s32 0, %v2502
      %v2504 = vrot.slane %v2499, %v2503
      %v2506 = vpack.i.b16 %v2497, %v2497
      %v2508 = vlaneseq
      %v2509 = vshrl.u32 %v2508, 7
      %v2510 = vsub.s32 0, %v2509
      %v2511 = vrot.slane %v2506, %v2510
      %v2512 = vmul.bf16 %v2467, %v2504
      %v2513 = vmul.bf16 %v2468, %v2511
      %v2514 = vmul.bf16 %v2469, %v2504
      %v2515 = vmul.bf16 %v2470, %v2511
      %v2516 = vmul.bf16 %v2471, %v2504
      %v2517 = vmul.bf16 %v2472, %v2511
      %v2518 = vmul.bf16 %v2473, %v2504
      %v2519 = vmul.bf16 %v2474, %v2511
      %s2520 = scalar_lea.vmem %s6, 96
      %v2521 = vld [vmem:[%s2520] sm:$0xf]
      %v2522 = vld [vmem:[%s2520 + $0x4] sm:$0xf]
      %v2523 = vld [vmem:[%s2520 + $0x8] sm:$0xf]
      %v2524 = vld [vmem:[%s2520 + $0xc] sm:$0xf]
      %v2525 = vld [vmem:[%s2520 + $0x10] sm:$0xf]
      %v2526 = vld [vmem:[%s2520 + $0x14] sm:$0xf]
      %v2527 = vld [vmem:[%s2520 + $0x18] sm:$0xf]
      %v2528 = vld [vmem:[%s2520 + $0x1c] sm:$0xf]
      %v2537 = vunpack.c.l.b16 %v2521
      %v2538 = vunpack.c.l.b16 %v2522
      %v2539 = vunpack.c.l.b16 %v2523
      %v2540 = vunpack.c.l.b16 %v2524
      %v2541 = vunpack.c.l.b16 %v2525
      %v2542 = vunpack.c.l.b16 %v2526
      %v2543 = vunpack.c.l.b16 %v2527
      %v2544 = vunpack.c.l.b16 %v2528
      %v2545 = vpack.c.b16 %v2538, %v2537
      %v2546 = vpack.c.b16 %v2540, %v2539
      %v2547 = vpack.c.b16 %v2542, %v2541
      %v2548 = vpack.c.b16 %v2544, %v2543
      %v2550 = vsel %vm1673, %v2545, 0
      %v2553 = vsel %vm1673, %v2546, 0
      %v2556 = vsel %vm1673, %v2547, 0
      %v2559 = vsel %vm1673, %v2548, 0
      %2561 = vmatprep.subr.bf16.mxu0 0
      %2562 = vmatpush1.bf16.msra.mxu0 0
      %2563 = vmatprep.subr.bf16.mxu0 0
      %2564 = vmatpush1.bf16.msra.mxu0 0
      %2565 = vmatprep.subr.bf16.mxu0 0
      %2566 = vmatpush1.bf16.msra.mxu0 0
      %2567 = vmatprep.subr.bf16.mxu0 0
      %2568 = vmatpush1.bf16.msra.mxu0 0
      %2569 = vmatprep.subr.bf16.mxu0 %v2519
      %2570 = vmatpush1.bf16.msra.mxu0 %v2518
      %2571 = vmatprep.subr.bf16.mxu0 %v2517
      %2572 = vmatpush1.bf16.msra.mxu0 %v2516
      %2573 = vmatprep.subr.bf16.mxu0 %v2515
      %2574 = vmatpush1.bf16.msra.mxu0 %v2514
      %2575 = vmatprep.subr.bf16.mxu0 %v2513
      %2576 = vmatpush1.bf16.msra.mxu0 %v2512
      %2577 = vmatprep.subr.bf16.mxu0 0
      %2578 = vmatpush2.bf16.msra.mxu0 0
      %2579 = vmatprep.subr.bf16.mxu0 0
      %2580 = vmatpush2.bf16.msra.mxu0 0
      %2581 = vmatprep.subr.bf16.mxu0 0
      %2582 = vmatpush2.bf16.msra.mxu0 0
      %2583 = vmatprep.subr.bf16.mxu0 0
      %2584 = vmatpush2.bf16.msra.mxu0 0
      %2585 = vmatprep.subr.bf16.mxu0 0
      %2586 = vmatpush2.bf16.msra.mxu0 0
      %2587 = vmatprep.subr.bf16.mxu0 0
      %2588 = vmatpush2.bf16.msra.mxu0 0
      %2589 = vmatprep.subr.bf16.mxu0 0
      %2590 = vmatpush2.bf16.msra.mxu0 0
      %2591 = vmatprep.subr.bf16.mxu0 0
      %2592 = vmatpush2.bf16.msra.mxu0 0
      %2593 = vmatprep.mubr.bf16.mxu0 0
      %2594 = vmatmul.mubr.bf16.gmra.mxu0 %v2550
      %v2595 = vpop.f32.mrf.mxu0
      %v2596 = vadd.f32 0.0, %v2595
      %v2597 = vpop.f32.mrf.mxu0
      %v2598 = vadd.f32 0.0, %v2597
      %v2599 = vpop.f32.mrf.mxu0
      %v2600 = vadd.f32 0.0, %v2599
      %v2601 = vpop.f32.mrf.mxu0
      %v2602 = vadd.f32 0.0, %v2601
      %2603 = vmatprep.mubr.bf16.mxu0 0
      %2604 = vmatmul.mubr.bf16.gmra.mxu0 %v2553
      %v2605 = vpop.f32.mrf.mxu0
      %v2606 = vadd.f32 0.0, %v2605
      %v2607 = vpop.f32.mrf.mxu0
      %v2608 = vadd.f32 0.0, %v2607
      %v2609 = vpop.f32.mrf.mxu0
      %v2610 = vadd.f32 0.0, %v2609
      %v2611 = vpop.f32.mrf.mxu0
      %v2612 = vadd.f32 0.0, %v2611
      %2613 = vmatprep.mubr.bf16.mxu0 0
      %2614 = vmatmul.mubr.bf16.gmra.mxu0 %v2556
      %v2615 = vpop.f32.mrf.mxu0
      %v2616 = vadd.f32 0.0, %v2615
      %v2617 = vpop.f32.mrf.mxu0
      %v2618 = vadd.f32 0.0, %v2617
      %v2619 = vpop.f32.mrf.mxu0
      %v2620 = vadd.f32 0.0, %v2619
      %v2621 = vpop.f32.mrf.mxu0
      %v2622 = vadd.f32 0.0, %v2621
      %2623 = vmatprep.mubr.bf16.mxu0 0
      %2624 = vmatmul.mubr.bf16.gmra.mxu0 %v2559
      %v2625 = vpop.f32.mrf.mxu0
      %v2626 = vadd.f32 0.0, %v2625
      %v2627 = vpop.f32.mrf.mxu0
      %v2628 = vadd.f32 0.0, %v2627
      %v2629 = vpop.f32.mrf.mxu0
      %v2630 = vadd.f32 0.0, %v2629
      %v2631 = vpop.f32.mrf.mxu0
      %v2632 = vadd.f32 0.0, %v2631
      %2633 = vdwg.mxu0
      %v2634 = vadd.f32 %v2403, %v2596
      %v2635 = vadd.f32 %v2404, %v2598
      %v2636 = vadd.f32 %v2405, %v2600
      %v2637 = vadd.f32 %v2406, %v2602
      %v2638 = vadd.f32 %v2407, %v2606
      %v2639 = vadd.f32 %v2408, %v2608
      %v2640 = vadd.f32 %v2409, %v2610
      %v2641 = vadd.f32 %v2410, %v2612
      %v2642 = vadd.f32 %v2411, %v2616
      %v2643 = vadd.f32 %v2412, %v2618
      %v2644 = vadd.f32 %v2413, %v2620
      %v2645 = vadd.f32 %v2414, %v2622
      %v2646 = vadd.f32 %v2415, %v2626
      %v2647 = vadd.f32 %v2416, %v2628
      %v2648 = vadd.f32 %v2417, %v2630
      %v2649 = vadd.f32 %v2418, %v2632
      %v2650 = vpack.c.bf16 %v1725, %v1721
      %v2651 = vpack.c.bf16 %v1727, %v1723
      %v2652 = vpack.c.bf16 %v1735, %v1731
      %v2653 = vpack.c.bf16 %v1737, %v1733
      %v2654 = vpack.c.bf16 %v1745, %v1741
      %v2655 = vpack.c.bf16 %v1747, %v1743
      %v2656 = vpack.c.bf16 %v1755, %v1751
      %v2657 = vpack.c.bf16 %v1757, %v1753
      %s2658 = scalar_lea.vmem %s6, 128
      %v2659 = vld [vmem:[%s2658] sm:$0xf]
      %v2660 = vld [vmem:[%s2658 + $0x4] sm:$0xf]
      %v2661 = vld [vmem:[%s2658 + $0x8] sm:$0xf]
      %v2662 = vld [vmem:[%s2658 + $0xc] sm:$0xf]
      %v2663 = vld [vmem:[%s2658 + $0x10] sm:$0xf]
      %v2664 = vld [vmem:[%s2658 + $0x14] sm:$0xf]
      %v2665 = vld [vmem:[%s2658 + $0x18] sm:$0xf]
      %v2666 = vld [vmem:[%s2658 + $0x1c] sm:$0xf]
      %v2675 = vunpack.c.l.b16 %v2659
      %v2676 = vunpack.c.l.b16 %v2660
      %v2677 = vunpack.c.l.b16 %v2661
      %v2678 = vunpack.c.l.b16 %v2662
      %v2679 = vunpack.c.l.b16 %v2663
      %v2680 = vunpack.c.l.b16 %v2664
      %v2681 = vunpack.c.l.b16 %v2665
      %v2682 = vunpack.c.l.b16 %v2666
      %v2683 = vpack.c.b16 %v2676, %v2675
      %v2684 = vpack.c.b16 %v2678, %v2677
      %v2685 = vpack.c.b16 %v2680, %v2679
      %v2686 = vpack.c.b16 %v2682, %v2681
      %v2688 = vsel %vm1673, %v2683, 0
      %v2691 = vsel %vm1673, %v2684, 0
      %v2694 = vsel %vm1673, %v2685, 0
      %v2697 = vsel %vm1673, %v2686, 0
      %2699 = vmatprep.subr.bf16.mxu0 0
      %2700 = vmatpush1.bf16.msra.mxu0 0
      %2701 = vmatprep.subr.bf16.mxu0 0
      %2702 = vmatpush1.bf16.msra.mxu0 0
      %2703 = vmatprep.subr.bf16.mxu0 0
      %2704 = vmatpush1.bf16.msra.mxu0 0
      %2705 = vmatprep.subr.bf16.mxu0 0
      %2706 = vmatpush1.bf16.msra.mxu0 0
      %2707 = vmatprep.subr.bf16.mxu0 %v2657
      %2708 = vmatpush1.bf16.msra.mxu0 %v2656
      %2709 = vmatprep.subr.bf16.mxu0 %v2655
      %2710 = vmatpush1.bf16.msra.mxu0 %v2654
      %2711 = vmatprep.subr.bf16.mxu0 %v2653
      %2712 = vmatpush1.bf16.msra.mxu0 %v2652
      %2713 = vmatprep.subr.bf16.mxu0 %v2651
      %2714 = vmatpush1.bf16.msra.mxu0 %v2650
      %2715 = vmatprep.subr.bf16.mxu0 0
      %2716 = vmatpush2.bf16.msra.mxu0 0
      %2717 = vmatprep.subr.bf16.mxu0 0
      %2718 = vmatpush2.bf16.msra.mxu0 0
      %2719 = vmatprep.subr.bf16.mxu0 0
      %2720 = vmatpush2.bf16.msra.mxu0 0
      %2721 = vmatprep.subr.bf16.mxu0 0
      %2722 = vmatpush2.bf16.msra.mxu0 0
      %2723 = vmatprep.subr.bf16.mxu0 0
      %2724 = vmatpush2.bf16.msra.mxu0 0
      %2725 = vmatprep.subr.bf16.mxu0 0
      %2726 = vmatpush2.bf16.msra.mxu0 0
      %2727 = vmatprep.subr.bf16.mxu0 0
      %2728 = vmatpush2.bf16.msra.mxu0 0
      %2729 = vmatprep.subr.bf16.mxu0 0
      %2730 = vmatpush2.bf16.msra.mxu0 0
      %2731 = vmatprep.mubr.bf16.mxu0 0
      %2732 = vmatmul.mubr.bf16.gmra.mxu0 %v2688
      %v2733 = vpop.f32.mrf.mxu0
      %v2734 = vadd.f32 0.0, %v2733
      %v2735 = vpop.f32.mrf.mxu0
      %v2736 = vadd.f32 0.0, %v2735
      %v2737 = vpop.f32.mrf.mxu0
      %v2738 = vadd.f32 0.0, %v2737
      %v2739 = vpop.f32.mrf.mxu0
      %v2740 = vadd.f32 0.0, %v2739
      %2741 = vmatprep.mubr.bf16.mxu0 0
      %2742 = vmatmul.mubr.bf16.gmra.mxu0 %v2691
      %v2743 = vpop.f32.mrf.mxu0
      %v2744 = vadd.f32 0.0, %v2743
      %v2745 = vpop.f32.mrf.mxu0
      %v2746 = vadd.f32 0.0, %v2745
      %v2747 = vpop.f32.mrf.mxu0
      %v2748 = vadd.f32 0.0, %v2747
      %v2749 = vpop.f32.mrf.mxu0
      %v2750 = vadd.f32 0.0, %v2749
      %2751 = vmatprep.mubr.bf16.mxu0 0
      %2752 = vmatmul.mubr.bf16.gmra.mxu0 %v2694
      %v2753 = vpop.f32.mrf.mxu0
      %v2754 = vadd.f32 0.0, %v2753
      %v2755 = vpop.f32.mrf.mxu0
      %v2756 = vadd.f32 0.0, %v2755
      %v2757 = vpop.f32.mrf.mxu0
      %v2758 = vadd.f32 0.0, %v2757
      %v2759 = vpop.f32.mrf.mxu0
      %v2760 = vadd.f32 0.0, %v2759
      %2761 = vmatprep.mubr.bf16.mxu0 0
      %2762 = vmatmul.mubr.bf16.gmra.mxu0 %v2697
      %v2763 = vpop.f32.mrf.mxu0
      %v2764 = vadd.f32 0.0, %v2763
      %v2765 = vpop.f32.mrf.mxu0
      %v2766 = vadd.f32 0.0, %v2765
      %v2767 = vpop.f32.mrf.mxu0
      %v2768 = vadd.f32 0.0, %v2767
      %v2769 = vpop.f32.mrf.mxu0
      %v2770 = vadd.f32 0.0, %v2769
      %2771 = vdwg.mxu0
      %v2772 = vadd.f32 %v2634, %v2734
      %v2773 = vadd.f32 %v2635, %v2736
      %v2774 = vadd.f32 %v2636, %v2738
      %v2775 = vadd.f32 %v2637, %v2740
      %v2776 = vadd.f32 %v2638, %v2744
      %v2777 = vadd.f32 %v2639, %v2746
      %v2778 = vadd.f32 %v2640, %v2748
      %v2779 = vadd.f32 %v2641, %v2750
      %v2780 = vadd.f32 %v2642, %v2754
      %v2781 = vadd.f32 %v2643, %v2756
      %v2782 = vadd.f32 %v2644, %v2758
      %v2783 = vadd.f32 %v2645, %v2760
      %v2784 = vadd.f32 %v2646, %v2764
      %v2785 = vadd.f32 %v2647, %v2766
      %v2786 = vadd.f32 %v2648, %v2768
      %v2787 = vadd.f32 %v2649, %v2770
      %2788 = vrot.lane.b32.xlu0 %v1721, 127
      %v2789 = vpop.permute.xlu0 %2788
      %2790 = vrot.lane.b32.xlu0 %v1725, 127
      %v2791 = vpop.permute.xlu0 %2790
      %2792 = vrot.lane.b32.xlu0 %v1731, 127
      %v2793 = vpop.permute.xlu0 %2792
      %2794 = vrot.lane.b32.xlu0 %v1735, 127
      %v2795 = vpop.permute.xlu0 %2794
      %2796 = vrot.lane.b32.xlu0 %v1741, 127
      %v2797 = vpop.permute.xlu0 %2796
      %2798 = vrot.lane.b32.xlu0 %v1745, 127
      %v2799 = vpop.permute.xlu0 %2798
      %2800 = vrot.lane.b32.xlu0 %v1751, 127
      %v2801 = vpop.permute.xlu0 %2800
      %2802 = vrot.lane.b32.xlu0 %v1755, 127
      %v2803 = vpop.permute.xlu0 %2802
      %2804 = vrot.lane.b32.xlu0 %v1723, 127
      %v2805 = vpop.permute.xlu0 %2804
      %2806 = vrot.lane.b32.xlu0 %v1727, 127
      %v2807 = vpop.permute.xlu0 %2806
      %2808 = vrot.lane.b32.xlu0 %v1733, 127
      %v2809 = vpop.permute.xlu0 %2808
      %2810 = vrot.lane.b32.xlu0 %v1737, 127
      %v2811 = vpop.permute.xlu0 %2810
      %2812 = vrot.lane.b32.xlu0 %v1743, 127
      %v2813 = vpop.permute.xlu0 %2812
      %2814 = vrot.lane.b32.xlu0 %v1747, 127
      %v2815 = vpop.permute.xlu0 %2814
      %2816 = vrot.lane.b32.xlu0 %v1753, 127
      %v2817 = vpop.permute.xlu0 %2816
      %2818 = vrot.lane.b32.xlu0 %v1757, 127
      %v2819 = vpop.permute.xlu0 %2818
      %v2820 = vsel %vm1065, %v2789, %v2805
      %v2821 = vsel %vm1065, %v2791, %v2807
      %v2822 = vsel %vm1065, %v2793, %v2809
      %v2823 = vsel %vm1065, %v2795, %v2811
      %v2824 = vsel %vm1065, %v2797, %v2813
      %v2825 = vsel %vm1065, %v2799, %v2815
      %v2826 = vsel %vm1065, %v2801, %v2817
      %v2827 = vsel %vm1065, %v2803, %v2819
      %v2828 = vsel %vm1065, %v2805, %v2789
      %v2829 = vsel %vm1065, %v2807, %v2791
      %v2830 = vsel %vm1065, %v2809, %v2793
      %v2831 = vsel %vm1065, %v2811, %v2795
      %v2832 = vsel %vm1065, %v2813, %v2797
      %v2833 = vsel %vm1065, %v2815, %v2799
      %v2834 = vsel %vm1065, %v2817, %v2801
      %v2835 = vsel %vm1065, %v2819, %v2803
      %v2836 = vpack.c.bf16 %v2821, %v2820
      %v2837 = vpack.c.bf16 %v2829, %v2828
      %v2838 = vpack.c.bf16 %v2823, %v2822
      %v2839 = vpack.c.bf16 %v2831, %v2830
      %v2840 = vpack.c.bf16 %v2825, %v2824
      %v2841 = vpack.c.bf16 %v2833, %v2832
      %v2842 = vpack.c.bf16 %v2827, %v2826
      %v2843 = vpack.c.bf16 %v2835, %v2834
      %v2846 = vunpack.c.l.s4 1966171168
      %v2847 = vunpack.c.0.s8 %v2846
      %v2848 = vlaneseq
      %v2849 = vshrl.u32 %v2848, 7
      %v2850 = vsub.s32 %v2847, %v2849
      %v2851 = vrot.slane %v1069, %v2850
      %v2852 = vcombine.high %v2851, %v2851
      %v2854 = vunpack.c.l.s4 1966171168
      %v2855 = vunpack.c.0.s8 %v2854
      %v2856 = vlaneseq
      %v2857 = vshrl.u32 %v2856, 7
      %v2858 = vsub.s32 %v2855, %v2857
      %v2859 = vrot.slane %v2851, %v2858
      %v2861 = vunpack.c.l.s4 1966171168
      %v2862 = vunpack.c.0.s8 %v2861
      %v2863 = vlaneseq
      %v2864 = vshrl.u32 %v2863, 7
      %v2865 = vsub.s32 %v2862, %v2864
      %v2866 = vrot.slane %v2852, %v2865
      %v2868 = vpack.i.b16 %v2859, %v2859
      %v2870 = vlaneseq
      %v2871 = vshrl.u32 %v2870, 7
      %v2872 = vsub.s32 0, %v2871
      %v2873 = vrot.slane %v2868, %v2872
      %v2875 = vpack.i.b16 %v2866, %v2866
      %v2877 = vlaneseq
      %v2878 = vshrl.u32 %v2877, 7
      %v2879 = vsub.s32 0, %v2878
      %v2880 = vrot.slane %v2875, %v2879
      %v2881 = vmul.bf16 %v2836, %v2873
      %v2882 = vmul.bf16 %v2837, %v2880
      %v2883 = vmul.bf16 %v2838, %v2873
      %v2884 = vmul.bf16 %v2839, %v2880
      %v2885 = vmul.bf16 %v2840, %v2873
      %v2886 = vmul.bf16 %v2841, %v2880
      %v2887 = vmul.bf16 %v2842, %v2873
      %v2888 = vmul.bf16 %v2843, %v2880
      %s2889 = scalar_lea.vmem %s6, 160
      %v2890 = vld [vmem:[%s2889] sm:$0xf]
      %v2891 = vld [vmem:[%s2889 + $0x4] sm:$0xf]
      %v2892 = vld [vmem:[%s2889 + $0x8] sm:$0xf]
      %v2893 = vld [vmem:[%s2889 + $0xc] sm:$0xf]
      %v2894 = vld [vmem:[%s2889 + $0x10] sm:$0xf]
      %v2895 = vld [vmem:[%s2889 + $0x14] sm:$0xf]
      %v2896 = vld [vmem:[%s2889 + $0x18] sm:$0xf]
      %v2897 = vld [vmem:[%s2889 + $0x1c] sm:$0xf]
      %v2906 = vunpack.c.l.b16 %v2890
      %v2907 = vunpack.c.l.b16 %v2891
      %v2908 = vunpack.c.l.b16 %v2892
      %v2909 = vunpack.c.l.b16 %v2893
      %v2910 = vunpack.c.l.b16 %v2894
      %v2911 = vunpack.c.l.b16 %v2895
      %v2912 = vunpack.c.l.b16 %v2896
      %v2913 = vunpack.c.l.b16 %v2897
      %v2914 = vpack.c.b16 %v2907, %v2906
      %v2915 = vpack.c.b16 %v2909, %v2908
      %v2916 = vpack.c.b16 %v2911, %v2910
      %v2917 = vpack.c.b16 %v2913, %v2912
      %v2919 = vsel %vm1673, %v2914, 0
      %v2922 = vsel %vm1673, %v2915, 0
      %v2925 = vsel %vm1673, %v2916, 0
      %v2928 = vsel %vm1673, %v2917, 0
      %2930 = vmatprep.subr.bf16.mxu0 0
      %2931 = vmatpush1.bf16.msra.mxu0 0
      %2932 = vmatprep.subr.bf16.mxu0 0
      %2933 = vmatpush1.bf16.msra.mxu0 0
      %2934 = vmatprep.subr.bf16.mxu0 0
      %2935 = vmatpush1.bf16.msra.mxu0 0
      %2936 = vmatprep.subr.bf16.mxu0 0
      %2937 = vmatpush1.bf16.msra.mxu0 0
      %2938 = vmatprep.subr.bf16.mxu0 %v2888
      %2939 = vmatpush1.bf16.msra.mxu0 %v2887
      %2940 = vmatprep.subr.bf16.mxu0 %v2886
      %2941 = vmatpush1.bf16.msra.mxu0 %v2885
      %2942 = vmatprep.subr.bf16.mxu0 %v2884
      %2943 = vmatpush1.bf16.msra.mxu0 %v2883
      %2944 = vmatprep.subr.bf16.mxu0 %v2882
      %2945 = vmatpush1.bf16.msra.mxu0 %v2881
      %2946 = vmatprep.subr.bf16.mxu0 0
      %2947 = vmatpush2.bf16.msra.mxu0 0
      %2948 = vmatprep.subr.bf16.mxu0 0
      %2949 = vmatpush2.bf16.msra.mxu0 0
      %2950 = vmatprep.subr.bf16.mxu0 0
      %2951 = vmatpush2.bf16.msra.mxu0 0
      %2952 = vmatprep.subr.bf16.mxu0 0
      %2953 = vmatpush2.bf16.msra.mxu0 0
      %2954 = vmatprep.subr.bf16.mxu0 0
      %2955 = vmatpush2.bf16.msra.mxu0 0
      %2956 = vmatprep.subr.bf16.mxu0 0
      %2957 = vmatpush2.bf16.msra.mxu0 0
      %2958 = vmatprep.subr.bf16.mxu0 0
      %2959 = vmatpush2.bf16.msra.mxu0 0
      %2960 = vmatprep.subr.bf16.mxu0 0
      %2961 = vmatpush2.bf16.msra.mxu0 0
      %2962 = vmatprep.mubr.bf16.mxu0 0
      %2963 = vmatmul.mubr.bf16.gmra.mxu0 %v2919
      %v2964 = vpop.f32.mrf.mxu0
      %v2965 = vadd.f32 0.0, %v2964
      %v2966 = vpop.f32.mrf.mxu0
      %v2967 = vadd.f32 0.0, %v2966
      %v2968 = vpop.f32.mrf.mxu0
      %v2969 = vadd.f32 0.0, %v2968
      %v2970 = vpop.f32.mrf.mxu0
      %v2971 = vadd.f32 0.0, %v2970
      %2972 = vmatprep.mubr.bf16.mxu0 0
      %2973 = vmatmul.mubr.bf16.gmra.mxu0 %v2922
      %v2974 = vpop.f32.mrf.mxu0
      %v2975 = vadd.f32 0.0, %v2974
      %v2976 = vpop.f32.mrf.mxu0
      %v2977 = vadd.f32 0.0, %v2976
      %v2978 = vpop.f32.mrf.mxu0
      %v2979 = vadd.f32 0.0, %v2978
      %v2980 = vpop.f32.mrf.mxu0
      %v2981 = vadd.f32 0.0, %v2980
      %2982 = vmatprep.mubr.bf16.mxu0 0
      %2983 = vmatmul.mubr.bf16.gmra.mxu0 %v2925
      %v2984 = vpop.f32.mrf.mxu0
      %v2985 = vadd.f32 0.0, %v2984
      %v2986 = vpop.f32.mrf.mxu0
      %v2987 = vadd.f32 0.0, %v2986
      %v2988 = vpop.f32.mrf.mxu0
      %v2989 = vadd.f32 0.0, %v2988
      %v2990 = vpop.f32.mrf.mxu0
      %v2991 = vadd.f32 0.0, %v2990
      %2992 = vmatprep.mubr.bf16.mxu0 0
      %2993 = vmatmul.mubr.bf16.gmra.mxu0 %v2928
      %v2994 = vpop.f32.mrf.mxu0
      %v2995 = vadd.f32 0.0, %v2994
      %v2996 = vpop.f32.mrf.mxu0
      %v2997 = vadd.f32 0.0, %v2996
      %v2998 = vpop.f32.mrf.mxu0
      %v2999 = vadd.f32 0.0, %v2998
      %v3000 = vpop.f32.mrf.mxu0
      %v3001 = vadd.f32 0.0, %v3000
      %3002 = vdwg.mxu0
      %v3003 = vadd.f32 %v2772, %v2965
      %v3004 = vadd.f32 %v2773, %v2967
      %v3005 = vadd.f32 %v2774, %v2969
      %v3006 = vadd.f32 %v2775, %v2971
      %v3007 = vadd.f32 %v2776, %v2975
      %v3008 = vadd.f32 %v2777, %v2977
      %v3009 = vadd.f32 %v2778, %v2979
      %v3010 = vadd.f32 %v2779, %v2981
      %v3011 = vadd.f32 %v2780, %v2985
      %v3012 = vadd.f32 %v2781, %v2987
      %v3013 = vadd.f32 %v2782, %v2989
      %v3014 = vadd.f32 %v2783, %v2991
      %v3015 = vadd.f32 %v2784, %v2995
      %v3016 = vadd.f32 %v2785, %v2997
      %v3017 = vadd.f32 %v2786, %v2999
      %v3018 = vadd.f32 %v2787, %v3001
      %3019 = vrot.lane.b32.xlu0 %v1721, 113
      %v3020 = vpop.permute.xlu0 %3019
      %3021 = vrot.lane.b32.xlu0 %v1725, 113
      %v3022 = vpop.permute.xlu0 %3021
      %3023 = vrot.lane.b32.xlu0 %v1731, 113
      %v3024 = vpop.permute.xlu0 %3023
      %3025 = vrot.lane.b32.xlu0 %v1735, 113
      %v3026 = vpop.permute.xlu0 %3025
      %3027 = vrot.lane.b32.xlu0 %v1741, 113
      %v3028 = vpop.permute.xlu0 %3027
      %3029 = vrot.lane.b32.xlu0 %v1745, 113
      %v3030 = vpop.permute.xlu0 %3029
      %3031 = vrot.lane.b32.xlu0 %v1751, 113
      %v3032 = vpop.permute.xlu0 %3031
      %3033 = vrot.lane.b32.xlu0 %v1755, 113
      %v3034 = vpop.permute.xlu0 %3033
      %3035 = vrot.lane.b32.xlu0 %v1723, 113
      %v3036 = vpop.permute.xlu0 %3035
      %3037 = vrot.lane.b32.xlu0 %v1727, 113
      %v3038 = vpop.permute.xlu0 %3037
      %3039 = vrot.lane.b32.xlu0 %v1733, 113
      %v3040 = vpop.permute.xlu0 %3039
      %3041 = vrot.lane.b32.xlu0 %v1737, 113
      %v3042 = vpop.permute.xlu0 %3041
      %3043 = vrot.lane.b32.xlu0 %v1743, 113
      %v3044 = vpop.permute.xlu0 %3043
      %3045 = vrot.lane.b32.xlu0 %v1747, 113
      %v3046 = vpop.permute.xlu0 %3045
      %3047 = vrot.lane.b32.xlu0 %v1753, 113
      %v3048 = vpop.permute.xlu0 %3047
      %3049 = vrot.lane.b32.xlu0 %v1757, 113
      %v3050 = vpop.permute.xlu0 %3049
      %v3051 = vsel %vm1177, %v3020, %v3036
      %v3052 = vsel %vm1177, %v3022, %v3038
      %v3053 = vsel %vm1177, %v3024, %v3040
      %v3054 = vsel %vm1177, %v3026, %v3042
      %v3055 = vsel %vm1177, %v3028, %v3044
      %v3056 = vsel %vm1177, %v3030, %v3046
      %v3057 = vsel %vm1177, %v3032, %v3048
      %v3058 = vsel %vm1177, %v3034, %v3050
      %v3059 = vsel %vm1177, %v3036, %v3020
      %v3060 = vsel %vm1177, %v3038, %v3022
      %v3061 = vsel %vm1177, %v3040, %v3024
      %v3062 = vsel %vm1177, %v3042, %v3026
      %v3063 = vsel %vm1177, %v3044, %v3028
      %v3064 = vsel %vm1177, %v3046, %v3030
      %v3065 = vsel %vm1177, %v3048, %v3032
      %v3066 = vsel %vm1177, %v3050, %v3034
      %v3067 = vpack.c.bf16 %v3052, %v3051
      %v3068 = vpack.c.bf16 %v3060, %v3059
      %v3069 = vpack.c.bf16 %v3054, %v3053
      %v3070 = vpack.c.bf16 %v3062, %v3061
      %v3071 = vpack.c.bf16 %v3056, %v3055
      %v3072 = vpack.c.bf16 %v3064, %v3063
      %v3073 = vpack.c.bf16 %v3058, %v3057
      %v3074 = vpack.c.bf16 %v3066, %v3065
      %v3077 = vunpack.c.l.s4 1966171168
      %v3078 = vunpack.c.0.s8 %v3077
      %v3079 = vlaneseq
      %v3080 = vshrl.u32 %v3079, 7
      %v3081 = vsub.s32 %v3078, %v3080
      %v3082 = vrot.slane %v1181, %v3081
      %v3083 = vcombine.high %v3082, %v3082
      %v3085 = vunpack.c.l.s4 1966171168
      %v3086 = vunpack.c.0.s8 %v3085
      %v3087 = vlaneseq
      %v3088 = vshrl.u32 %v3087, 7
      %v3089 = vsub.s32 %v3086, %v3088
      %v3090 = vrot.slane %v3082, %v3089
      %v3092 = vunpack.c.l.s4 1966171168
      %v3093 = vunpack.c.0.s8 %v3092
      %v3094 = vlaneseq
      %v3095 = vshrl.u32 %v3094, 7
      %v3096 = vsub.s32 %v3093, %v3095
      %v3097 = vrot.slane %v3083, %v3096
      %v3099 = vpack.i.b16 %v3090, %v3090
      %v3101 = vlaneseq
      %v3102 = vshrl.u32 %v3101, 7
      %v3103 = vsub.s32 0, %v3102
      %v3104 = vrot.slane %v3099, %v3103
      %v3106 = vpack.i.b16 %v3097, %v3097
      %v3108 = vlaneseq
      %v3109 = vshrl.u32 %v3108, 7
      %v3110 = vsub.s32 0, %v3109
      %v3111 = vrot.slane %v3106, %v3110
      %v3112 = vmul.bf16 %v3067, %v3104
      %v3113 = vmul.bf16 %v3068, %v3111
      %v3114 = vmul.bf16 %v3069, %v3104
      %v3115 = vmul.bf16 %v3070, %v3111
      %v3116 = vmul.bf16 %v3071, %v3104
      %v3117 = vmul.bf16 %v3072, %v3111
      %v3118 = vmul.bf16 %v3073, %v3104
      %v3119 = vmul.bf16 %v3074, %v3111
      %s3120 = scalar_lea.vmem %s6, 192
      %v3121 = vld [vmem:[%s3120] sm:$0xf]
      %v3122 = vld [vmem:[%s3120 + $0x4] sm:$0xf]
      %v3123 = vld [vmem:[%s3120 + $0x8] sm:$0xf]
      %v3124 = vld [vmem:[%s3120 + $0xc] sm:$0xf]
      %v3125 = vld [vmem:[%s3120 + $0x10] sm:$0xf]
      %v3126 = vld [vmem:[%s3120 + $0x14] sm:$0xf]
      %v3127 = vld [vmem:[%s3120 + $0x18] sm:$0xf]
      %v3128 = vld [vmem:[%s3120 + $0x1c] sm:$0xf]
      %v3137 = vunpack.c.l.b16 %v3121
      %v3138 = vunpack.c.l.b16 %v3122
      %v3139 = vunpack.c.l.b16 %v3123
      %v3140 = vunpack.c.l.b16 %v3124
      %v3141 = vunpack.c.l.b16 %v3125
      %v3142 = vunpack.c.l.b16 %v3126
      %v3143 = vunpack.c.l.b16 %v3127
      %v3144 = vunpack.c.l.b16 %v3128
      %v3145 = vpack.c.b16 %v3138, %v3137
      %v3146 = vpack.c.b16 %v3140, %v3139
      %v3147 = vpack.c.b16 %v3142, %v3141
      %v3148 = vpack.c.b16 %v3144, %v3143
      %v3150 = vsel %vm1673, %v3145, 0
      %v3153 = vsel %vm1673, %v3146, 0
      %v3156 = vsel %vm1673, %v3147, 0
      %v3159 = vsel %vm1673, %v3148, 0
      %3161 = vmatprep.subr.bf16.mxu0 0
      %3162 = vmatpush1.bf16.msra.mxu0 0
      %3163 = vmatprep.subr.bf16.mxu0 0
      %3164 = vmatpush1.bf16.msra.mxu0 0
      %3165 = vmatprep.subr.bf16.mxu0 0
      %3166 = vmatpush1.bf16.msra.mxu0 0
      %3167 = vmatprep.subr.bf16.mxu0 0
      %3168 = vmatpush1.bf16.msra.mxu0 0
      %3169 = vmatprep.subr.bf16.mxu0 %v3119
      %3170 = vmatpush1.bf16.msra.mxu0 %v3118
      %3171 = vmatprep.subr.bf16.mxu0 %v3117
      %3172 = vmatpush1.bf16.msra.mxu0 %v3116
      %3173 = vmatprep.subr.bf16.mxu0 %v3115
      %3174 = vmatpush1.bf16.msra.mxu0 %v3114
      %3175 = vmatprep.subr.bf16.mxu0 %v3113
      %3176 = vmatpush1.bf16.msra.mxu0 %v3112
      %3177 = vmatprep.subr.bf16.mxu0 0
      %3178 = vmatpush2.bf16.msra.mxu0 0
      %3179 = vmatprep.subr.bf16.mxu0 0
      %3180 = vmatpush2.bf16.msra.mxu0 0
      %3181 = vmatprep.subr.bf16.mxu0 0
      %3182 = vmatpush2.bf16.msra.mxu0 0
      %3183 = vmatprep.subr.bf16.mxu0 0
      %3184 = vmatpush2.bf16.msra.mxu0 0
      %3185 = vmatprep.subr.bf16.mxu0 0
      %3186 = vmatpush2.bf16.msra.mxu0 0
      %3187 = vmatprep.subr.bf16.mxu0 0
      %3188 = vmatpush2.bf16.msra.mxu0 0
      %3189 = vmatprep.subr.bf16.mxu0 0
      %3190 = vmatpush2.bf16.msra.mxu0 0
      %3191 = vmatprep.subr.bf16.mxu0 0
      %3192 = vmatpush2.bf16.msra.mxu0 0
      %3193 = vmatprep.mubr.bf16.mxu0 0
      %3194 = vmatmul.mubr.bf16.gmra.mxu0 %v3150
      %v3195 = vpop.f32.mrf.mxu0
      %v3196 = vadd.f32 0.0, %v3195
      %v3197 = vpop.f32.mrf.mxu0
      %v3198 = vadd.f32 0.0, %v3197
      %v3199 = vpop.f32.mrf.mxu0
      %v3200 = vadd.f32 0.0, %v3199
      %v3201 = vpop.f32.mrf.mxu0
      %v3202 = vadd.f32 0.0, %v3201
      %3203 = vmatprep.mubr.bf16.mxu0 0
      %3204 = vmatmul.mubr.bf16.gmra.mxu0 %v3153
      %v3205 = vpop.f32.mrf.mxu0
      %v3206 = vadd.f32 0.0, %v3205
      %v3207 = vpop.f32.mrf.mxu0
      %v3208 = vadd.f32 0.0, %v3207
      %v3209 = vpop.f32.mrf.mxu0
      %v3210 = vadd.f32 0.0, %v3209
      %v3211 = vpop.f32.mrf.mxu0
      %v3212 = vadd.f32 0.0, %v3211
      %3213 = vmatprep.mubr.bf16.mxu0 0
      %3214 = vmatmul.mubr.bf16.gmra.mxu0 %v3156
      %v3215 = vpop.f32.mrf.mxu0
      %v3216 = vadd.f32 0.0, %v3215
      %v3217 = vpop.f32.mrf.mxu0
      %v3218 = vadd.f32 0.0, %v3217
      %v3219 = vpop.f32.mrf.mxu0
      %v3220 = vadd.f32 0.0, %v3219
      %v3221 = vpop.f32.mrf.mxu0
      %v3222 = vadd.f32 0.0, %v3221
      %3223 = vmatprep.mubr.bf16.mxu0 0
      %3224 = vmatmul.mubr.bf16.gmra.mxu0 %v3159
      %v3225 = vpop.f32.mrf.mxu0
      %v3226 = vadd.f32 0.0, %v3225
      %v3227 = vpop.f32.mrf.mxu0
      %v3228 = vadd.f32 0.0, %v3227
      %v3229 = vpop.f32.mrf.mxu0
      %v3230 = vadd.f32 0.0, %v3229
      %v3231 = vpop.f32.mrf.mxu0
      %v3232 = vadd.f32 0.0, %v3231
      %3233 = vdwg.mxu0
      %v3234 = vadd.f32 %v3003, %v3196
      %v3235 = vadd.f32 %v3004, %v3198
      %v3236 = vadd.f32 %v3005, %v3200
      %v3237 = vadd.f32 %v3006, %v3202
      %v3238 = vadd.f32 %v3007, %v3206
      %v3239 = vadd.f32 %v3008, %v3208
      %v3240 = vadd.f32 %v3009, %v3210
      %v3241 = vadd.f32 %v3010, %v3212
      %v3242 = vadd.f32 %v3011, %v3216
      %v3243 = vadd.f32 %v3012, %v3218
      %v3244 = vadd.f32 %v3013, %v3220
      %v3245 = vadd.f32 %v3014, %v3222
      %v3246 = vadd.f32 %v3015, %v3226
      %v3247 = vadd.f32 %v3016, %v3228
      %v3248 = vadd.f32 %v3017, %v3230
      %v3249 = vadd.f32 %v3018, %v3232
      %3250 = vrot.lane.b32.xlu0 %v1721, 112
      %v3251 = vpop.permute.xlu0 %3250
      %3252 = vrot.lane.b32.xlu0 %v1725, 112
      %v3253 = vpop.permute.xlu0 %3252
      %3254 = vrot.lane.b32.xlu0 %v1731, 112
      %v3255 = vpop.permute.xlu0 %3254
      %3256 = vrot.lane.b32.xlu0 %v1735, 112
      %v3257 = vpop.permute.xlu0 %3256
      %3258 = vrot.lane.b32.xlu0 %v1741, 112
      %v3259 = vpop.permute.xlu0 %3258
      %3260 = vrot.lane.b32.xlu0 %v1745, 112
      %v3261 = vpop.permute.xlu0 %3260
      %3262 = vrot.lane.b32.xlu0 %v1751, 112
      %v3263 = vpop.permute.xlu0 %3262
      %3264 = vrot.lane.b32.xlu0 %v1755, 112
      %v3265 = vpop.permute.xlu0 %3264
      %3266 = vrot.lane.b32.xlu0 %v1723, 112
      %v3267 = vpop.permute.xlu0 %3266
      %3268 = vrot.lane.b32.xlu0 %v1727, 112
      %v3269 = vpop.permute.xlu0 %3268
      %3270 = vrot.lane.b32.xlu0 %v1733, 112
      %v3271 = vpop.permute.xlu0 %3270
      %3272 = vrot.lane.b32.xlu0 %v1737, 112
      %v3273 = vpop.permute.xlu0 %3272
      %3274 = vrot.lane.b32.xlu0 %v1743, 112
      %v3275 = vpop.permute.xlu0 %3274
      %3276 = vrot.lane.b32.xlu0 %v1747, 112
      %v3277 = vpop.permute.xlu0 %3276
      %3278 = vrot.lane.b32.xlu0 %v1753, 112
      %v3279 = vpop.permute.xlu0 %3278
      %3280 = vrot.lane.b32.xlu0 %v1757, 112
      %v3281 = vpop.permute.xlu0 %3280
      %v3282 = vsel %vm1289, %v3251, %v3267
      %v3283 = vsel %vm1289, %v3253, %v3269
      %v3284 = vsel %vm1289, %v3255, %v3271
      %v3285 = vsel %vm1289, %v3257, %v3273
      %v3286 = vsel %vm1289, %v3259, %v3275
      %v3287 = vsel %vm1289, %v3261, %v3277
      %v3288 = vsel %vm1289, %v3263, %v3279
      %v3289 = vsel %vm1289, %v3265, %v3281
      %v3290 = vsel %vm1289, %v3267, %v3251
      %v3291 = vsel %vm1289, %v3269, %v3253
      %v3292 = vsel %vm1289, %v3271, %v3255
      %v3293 = vsel %vm1289, %v3273, %v3257
      %v3294 = vsel %vm1289, %v3275, %v3259
      %v3295 = vsel %vm1289, %v3277, %v3261
      %v3296 = vsel %vm1289, %v3279, %v3263
      %v3297 = vsel %vm1289, %v3281, %v3265
      %v3298 = vpack.c.bf16 %v3283, %v3282
      %v3299 = vpack.c.bf16 %v3291, %v3290
      %v3300 = vpack.c.bf16 %v3285, %v3284
      %v3301 = vpack.c.bf16 %v3293, %v3292
      %v3302 = vpack.c.bf16 %v3287, %v3286
      %v3303 = vpack.c.bf16 %v3295, %v3294
      %v3304 = vpack.c.bf16 %v3289, %v3288
      %v3305 = vpack.c.bf16 %v3297, %v3296
      %v3308 = vunpack.c.l.s4 1966171168
      %v3309 = vunpack.c.0.s8 %v3308
      %v3310 = vlaneseq
      %v3311 = vshrl.u32 %v3310, 7
      %v3312 = vsub.s32 %v3309, %v3311
      %v3313 = vrot.slane %v1293, %v3312
      %v3314 = vcombine.high %v3313, %v3313
      %v3316 = vunpack.c.l.s4 1966171168
      %v3317 = vunpack.c.0.s8 %v3316
      %v3318 = vlaneseq
      %v3319 = vshrl.u32 %v3318, 7
      %v3320 = vsub.s32 %v3317, %v3319
      %v3321 = vrot.slane %v3313, %v3320
      %v3323 = vunpack.c.l.s4 1966171168
      %v3324 = vunpack.c.0.s8 %v3323
      %v3325 = vlaneseq
      %v3326 = vshrl.u32 %v3325, 7
      %v3327 = vsub.s32 %v3324, %v3326
      %v3328 = vrot.slane %v3314, %v3327
      %v3330 = vpack.i.b16 %v3321, %v3321
      %v3332 = vlaneseq
      %v3333 = vshrl.u32 %v3332, 7
      %v3334 = vsub.s32 0, %v3333
      %v3335 = vrot.slane %v3330, %v3334
      %v3337 = vpack.i.b16 %v3328, %v3328
      %v3339 = vlaneseq
      %v3340 = vshrl.u32 %v3339, 7
      %v3341 = vsub.s32 0, %v3340
      %v3342 = vrot.slane %v3337, %v3341
      %v3343 = vmul.bf16 %v3298, %v3335
      %v3344 = vmul.bf16 %v3299, %v3342
      %v3345 = vmul.bf16 %v3300, %v3335
      %v3346 = vmul.bf16 %v3301, %v3342
      %v3347 = vmul.bf16 %v3302, %v3335
      %v3348 = vmul.bf16 %v3303, %v3342
      %v3349 = vmul.bf16 %v3304, %v3335
      %v3350 = vmul.bf16 %v3305, %v3342
      %s3351 = scalar_lea.vmem %s6, 224
      %v3352 = vld [vmem:[%s3351] sm:$0xf]
      %v3353 = vld [vmem:[%s3351 + $0x4] sm:$0xf]
      %v3354 = vld [vmem:[%s3351 + $0x8] sm:$0xf]
      %v3355 = vld [vmem:[%s3351 + $0xc] sm:$0xf]
      %v3356 = vld [vmem:[%s3351 + $0x10] sm:$0xf]
      %v3357 = vld [vmem:[%s3351 + $0x14] sm:$0xf]
      %v3358 = vld [vmem:[%s3351 + $0x18] sm:$0xf]
      %v3359 = vld [vmem:[%s3351 + $0x1c] sm:$0xf]
      %v3368 = vunpack.c.l.b16 %v3352
      %v3369 = vunpack.c.l.b16 %v3353
      %v3370 = vunpack.c.l.b16 %v3354
      %v3371 = vunpack.c.l.b16 %v3355
      %v3372 = vunpack.c.l.b16 %v3356
      %v3373 = vunpack.c.l.b16 %v3357
      %v3374 = vunpack.c.l.b16 %v3358
      %v3375 = vunpack.c.l.b16 %v3359
      %v3376 = vpack.c.b16 %v3369, %v3368
      %v3377 = vpack.c.b16 %v3371, %v3370
      %v3378 = vpack.c.b16 %v3373, %v3372
      %v3379 = vpack.c.b16 %v3375, %v3374
      %v3381 = vsel %vm1673, %v3376, 0
      %v3384 = vsel %vm1673, %v3377, 0
      %v3387 = vsel %vm1673, %v3378, 0
      %v3390 = vsel %vm1673, %v3379, 0
      %3392 = vmatprep.subr.bf16.mxu0 0
      %3393 = vmatpush1.bf16.msra.mxu0 0
      %3394 = vmatprep.subr.bf16.mxu0 0
      %3395 = vmatpush1.bf16.msra.mxu0 0
      %3396 = vmatprep.subr.bf16.mxu0 0
      %3397 = vmatpush1.bf16.msra.mxu0 0
      %3398 = vmatprep.subr.bf16.mxu0 0
      %3399 = vmatpush1.bf16.msra.mxu0 0
      %3400 = vmatprep.subr.bf16.mxu0 %v3350
      %3401 = vmatpush1.bf16.msra.mxu0 %v3349
      %3402 = vmatprep.subr.bf16.mxu0 %v3348
      %3403 = vmatpush1.bf16.msra.mxu0 %v3347
      %3404 = vmatprep.subr.bf16.mxu0 %v3346
      %3405 = vmatpush1.bf16.msra.mxu0 %v3345
      %3406 = vmatprep.subr.bf16.mxu0 %v3344
      %3407 = vmatpush1.bf16.msra.mxu0 %v3343
      %3408 = vmatprep.subr.bf16.mxu0 0
      %3409 = vmatpush2.bf16.msra.mxu0 0
      %3410 = vmatprep.subr.bf16.mxu0 0
      %3411 = vmatpush2.bf16.msra.mxu0 0
      %3412 = vmatprep.subr.bf16.mxu0 0
      %3413 = vmatpush2.bf16.msra.mxu0 0
      %3414 = vmatprep.subr.bf16.mxu0 0
      %3415 = vmatpush2.bf16.msra.mxu0 0
      %3416 = vmatprep.subr.bf16.mxu0 0
      %3417 = vmatpush2.bf16.msra.mxu0 0
      %3418 = vmatprep.subr.bf16.mxu0 0
      %3419 = vmatpush2.bf16.msra.mxu0 0
      %3420 = vmatprep.subr.bf16.mxu0 0
      %3421 = vmatpush2.bf16.msra.mxu0 0
      %3422 = vmatprep.subr.bf16.mxu0 0
      %3423 = vmatpush2.bf16.msra.mxu0 0
      %3424 = vmatprep.mubr.bf16.mxu0 0
      %3425 = vmatmul.mubr.bf16.gmra.mxu0 %v3381
      %v3426 = vpop.f32.mrf.mxu0
      %v3427 = vadd.f32 0.0, %v3426
      %v3428 = vpop.f32.mrf.mxu0
      %v3429 = vadd.f32 0.0, %v3428
      %v3430 = vpop.f32.mrf.mxu0
      %v3431 = vadd.f32 0.0, %v3430
      %v3432 = vpop.f32.mrf.mxu0
      %v3433 = vadd.f32 0.0, %v3432
      %3434 = vmatprep.mubr.bf16.mxu0 0
      %3435 = vmatmul.mubr.bf16.gmra.mxu0 %v3384
      %v3436 = vpop.f32.mrf.mxu0
      %v3437 = vadd.f32 0.0, %v3436
      %v3438 = vpop.f32.mrf.mxu0
      %v3439 = vadd.f32 0.0, %v3438
      %v3440 = vpop.f32.mrf.mxu0
      %v3441 = vadd.f32 0.0, %v3440
      %v3442 = vpop.f32.mrf.mxu0
      %v3443 = vadd.f32 0.0, %v3442
      %3444 = vmatprep.mubr.bf16.mxu0 0
      %3445 = vmatmul.mubr.bf16.gmra.mxu0 %v3387
      %v3446 = vpop.f32.mrf.mxu0
      %v3447 = vadd.f32 0.0, %v3446
      %v3448 = vpop.f32.mrf.mxu0
      %v3449 = vadd.f32 0.0, %v3448
      %v3450 = vpop.f32.mrf.mxu0
      %v3451 = vadd.f32 0.0, %v3450
      %v3452 = vpop.f32.mrf.mxu0
      %v3453 = vadd.f32 0.0, %v3452
      %3454 = vmatprep.mubr.bf16.mxu0 0
      %3455 = vmatmul.mubr.bf16.gmra.mxu0 %v3390
      %v3456 = vpop.f32.mrf.mxu0
      %v3457 = vadd.f32 0.0, %v3456
      %v3458 = vpop.f32.mrf.mxu0
      %v3459 = vadd.f32 0.0, %v3458
      %v3460 = vpop.f32.mrf.mxu0
      %v3461 = vadd.f32 0.0, %v3460
      %v3462 = vpop.f32.mrf.mxu0
      %v3463 = vadd.f32 0.0, %v3462
      %3464 = vdwg.mxu0
      %v3465 = vadd.f32 %v3234, %v3427
      %v3466 = vadd.f32 %v3235, %v3429
      %v3467 = vadd.f32 %v3236, %v3431
      %v3468 = vadd.f32 %v3237, %v3433
      %v3469 = vadd.f32 %v3238, %v3437
      %v3470 = vadd.f32 %v3239, %v3439
      %v3471 = vadd.f32 %v3240, %v3441
      %v3472 = vadd.f32 %v3241, %v3443
      %v3473 = vadd.f32 %v3242, %v3447
      %v3474 = vadd.f32 %v3243, %v3449
      %v3475 = vadd.f32 %v3244, %v3451
      %v3476 = vadd.f32 %v3245, %v3453
      %v3477 = vadd.f32 %v3246, %v3457
      %v3478 = vadd.f32 %v3247, %v3459
      %v3479 = vadd.f32 %v3248, %v3461
      %v3480 = vadd.f32 %v3249, %v3463
      %3481 = vrot.lane.b32.xlu0 %v1721, 111
      %v3482 = vpop.permute.xlu0 %3481
      %3483 = vrot.lane.b32.xlu0 %v1725, 111
      %v3484 = vpop.permute.xlu0 %3483
      %3485 = vrot.lane.b32.xlu0 %v1731, 111
      %v3486 = vpop.permute.xlu0 %3485
      %3487 = vrot.lane.b32.xlu0 %v1735, 111
      %v3488 = vpop.permute.xlu0 %3487
      %3489 = vrot.lane.b32.xlu0 %v1741, 111
      %v3490 = vpop.permute.xlu0 %3489
      %3491 = vrot.lane.b32.xlu0 %v1745, 111
      %v3492 = vpop.permute.xlu0 %3491
      %3493 = vrot.lane.b32.xlu0 %v1751, 111
      %v3494 = vpop.permute.xlu0 %3493
      %3495 = vrot.lane.b32.xlu0 %v1755, 111
      %v3496 = vpop.permute.xlu0 %3495
      %3497 = vrot.lane.b32.xlu0 %v1723, 111
      %v3498 = vpop.permute.xlu0 %3497
      %3499 = vrot.lane.b32.xlu0 %v1727, 111
      %v3500 = vpop.permute.xlu0 %3499
      %3501 = vrot.lane.b32.xlu0 %v1733, 111
      %v3502 = vpop.permute.xlu0 %3501
      %3503 = vrot.lane.b32.xlu0 %v1737, 111
      %v3504 = vpop.permute.xlu0 %3503
      %3505 = vrot.lane.b32.xlu0 %v1743, 111
      %v3506 = vpop.permute.xlu0 %3505
      %3507 = vrot.lane.b32.xlu0 %v1747, 111
      %v3508 = vpop.permute.xlu0 %3507
      %3509 = vrot.lane.b32.xlu0 %v1753, 111
      %v3510 = vpop.permute.xlu0 %3509
      %3511 = vrot.lane.b32.xlu0 %v1757, 111
      %v3512 = vpop.permute.xlu0 %3511
      %v3513 = vsel %vm1401, %v3482, %v3498
      %v3514 = vsel %vm1401, %v3484, %v3500
      %v3515 = vsel %vm1401, %v3486, %v3502
      %v3516 = vsel %vm1401, %v3488, %v3504
      %v3517 = vsel %vm1401, %v3490, %v3506
      %v3518 = vsel %vm1401, %v3492, %v3508
      %v3519 = vsel %vm1401, %v3494, %v3510
      %v3520 = vsel %vm1401, %v3496, %v3512
      %v3521 = vsel %vm1401, %v3498, %v3482
      %v3522 = vsel %vm1401, %v3500, %v3484
      %v3523 = vsel %vm1401, %v3502, %v3486
      %v3524 = vsel %vm1401, %v3504, %v3488
      %v3525 = vsel %vm1401, %v3506, %v3490
      %v3526 = vsel %vm1401, %v3508, %v3492
      %v3527 = vsel %vm1401, %v3510, %v3494
      %v3528 = vsel %vm1401, %v3512, %v3496
      %v3529 = vpack.c.bf16 %v3514, %v3513
      %v3530 = vpack.c.bf16 %v3522, %v3521
      %v3531 = vpack.c.bf16 %v3516, %v3515
      %v3532 = vpack.c.bf16 %v3524, %v3523
      %v3533 = vpack.c.bf16 %v3518, %v3517
      %v3534 = vpack.c.bf16 %v3526, %v3525
      %v3535 = vpack.c.bf16 %v3520, %v3519
      %v3536 = vpack.c.bf16 %v3528, %v3527
      %v3539 = vunpack.c.l.s4 1966171168
      %v3540 = vunpack.c.0.s8 %v3539
      %v3541 = vlaneseq
      %v3542 = vshrl.u32 %v3541, 7
      %v3543 = vsub.s32 %v3540, %v3542
      %v3544 = vrot.slane %v1405, %v3543
      %v3545 = vcombine.high %v3544, %v3544
      %v3547 = vunpack.c.l.s4 1966171168
      %v3548 = vunpack.c.0.s8 %v3547
      %v3549 = vlaneseq
      %v3550 = vshrl.u32 %v3549, 7
      %v3551 = vsub.s32 %v3548, %v3550
      %v3552 = vrot.slane %v3544, %v3551
      %v3554 = vunpack.c.l.s4 1966171168
      %v3555 = vunpack.c.0.s8 %v3554
      %v3556 = vlaneseq
      %v3557 = vshrl.u32 %v3556, 7
      %v3558 = vsub.s32 %v3555, %v3557
      %v3559 = vrot.slane %v3545, %v3558
      %v3561 = vpack.i.b16 %v3552, %v3552
      %v3563 = vlaneseq
      %v3564 = vshrl.u32 %v3563, 7
      %v3565 = vsub.s32 0, %v3564
      %v3566 = vrot.slane %v3561, %v3565
      %v3568 = vpack.i.b16 %v3559, %v3559
      %v3570 = vlaneseq
      %v3571 = vshrl.u32 %v3570, 7
      %v3572 = vsub.s32 0, %v3571
      %v3573 = vrot.slane %v3568, %v3572
      %v3574 = vmul.bf16 %v3529, %v3566
      %v3575 = vmul.bf16 %v3530, %v3573
      %v3576 = vmul.bf16 %v3531, %v3566
      %v3577 = vmul.bf16 %v3532, %v3573
      %v3578 = vmul.bf16 %v3533, %v3566
      %v3579 = vmul.bf16 %v3534, %v3573
      %v3580 = vmul.bf16 %v3535, %v3566
      %v3581 = vmul.bf16 %v3536, %v3573
      %s3582 = scalar_lea.vmem %s6, 256
      %v3583 = vld [vmem:[%s3582] sm:$0xf]
      %v3584 = vld [vmem:[%s3582 + $0x4] sm:$0xf]
      %v3585 = vld [vmem:[%s3582 + $0x8] sm:$0xf]
      %v3586 = vld [vmem:[%s3582 + $0xc] sm:$0xf]
      %v3587 = vld [vmem:[%s3582 + $0x10] sm:$0xf]
      %v3588 = vld [vmem:[%s3582 + $0x14] sm:$0xf]
      %v3589 = vld [vmem:[%s3582 + $0x18] sm:$0xf]
      %v3590 = vld [vmem:[%s3582 + $0x1c] sm:$0xf]
      %v3599 = vunpack.c.l.b16 %v3583
      %v3600 = vunpack.c.l.b16 %v3584
      %v3601 = vunpack.c.l.b16 %v3585
      %v3602 = vunpack.c.l.b16 %v3586
      %v3603 = vunpack.c.l.b16 %v3587
      %v3604 = vunpack.c.l.b16 %v3588
      %v3605 = vunpack.c.l.b16 %v3589
      %v3606 = vunpack.c.l.b16 %v3590
      %v3607 = vpack.c.b16 %v3600, %v3599
      %v3608 = vpack.c.b16 %v3602, %v3601
      %v3609 = vpack.c.b16 %v3604, %v3603
      %v3610 = vpack.c.b16 %v3606, %v3605
      %v3612 = vsel %vm1673, %v3607, 0
      %v3615 = vsel %vm1673, %v3608, 0
      %v3618 = vsel %vm1673, %v3609, 0
      %v3621 = vsel %vm1673, %v3610, 0
      %3623 = vmatprep.subr.bf16.mxu0 0
      %3624 = vmatpush1.bf16.msra.mxu0 0
      %3625 = vmatprep.subr.bf16.mxu0 0
      %3626 = vmatpush1.bf16.msra.mxu0 0
      %3627 = vmatprep.subr.bf16.mxu0 0
      %3628 = vmatpush1.bf16.msra.mxu0 0
      %3629 = vmatprep.subr.bf16.mxu0 0
      %3630 = vmatpush1.bf16.msra.mxu0 0
      %3631 = vmatprep.subr.bf16.mxu0 %v3581
      %3632 = vmatpush1.bf16.msra.mxu0 %v3580
      %3633 = vmatprep.subr.bf16.mxu0 %v3579
      %3634 = vmatpush1.bf16.msra.mxu0 %v3578
      %3635 = vmatprep.subr.bf16.mxu0 %v3577
      %3636 = vmatpush1.bf16.msra.mxu0 %v3576
      %3637 = vmatprep.subr.bf16.mxu0 %v3575
      %3638 = vmatpush1.bf16.msra.mxu0 %v3574
      %3639 = vmatprep.subr.bf16.mxu0 0
      %3640 = vmatpush2.bf16.msra.mxu0 0
      %3641 = vmatprep.subr.bf16.mxu0 0
      %3642 = vmatpush2.bf16.msra.mxu0 0
      %3643 = vmatprep.subr.bf16.mxu0 0
      %3644 = vmatpush2.bf16.msra.mxu0 0
      %3645 = vmatprep.subr.bf16.mxu0 0
      %3646 = vmatpush2.bf16.msra.mxu0 0
      %3647 = vmatprep.subr.bf16.mxu0 0
      %3648 = vmatpush2.bf16.msra.mxu0 0
      %3649 = vmatprep.subr.bf16.mxu0 0
      %3650 = vmatpush2.bf16.msra.mxu0 0
      %3651 = vmatprep.subr.bf16.mxu0 0
      %3652 = vmatpush2.bf16.msra.mxu0 0
      %3653 = vmatprep.subr.bf16.mxu0 0
      %3654 = vmatpush2.bf16.msra.mxu0 0
      %3655 = vmatprep.mubr.bf16.mxu0 0
      %3656 = vmatmul.mubr.bf16.gmra.mxu0 %v3612
      %v3657 = vpop.f32.mrf.mxu0
      %v3658 = vadd.f32 0.0, %v3657
      %v3659 = vpop.f32.mrf.mxu0
      %v3660 = vadd.f32 0.0, %v3659
      %v3661 = vpop.f32.mrf.mxu0
      %v3662 = vadd.f32 0.0, %v3661
      %v3663 = vpop.f32.mrf.mxu0
      %v3664 = vadd.f32 0.0, %v3663
      %3665 = vmatprep.mubr.bf16.mxu0 0
      %3666 = vmatmul.mubr.bf16.gmra.mxu0 %v3615
      %v3667 = vpop.f32.mrf.mxu0
      %v3668 = vadd.f32 0.0, %v3667
      %v3669 = vpop.f32.mrf.mxu0
      %v3670 = vadd.f32 0.0, %v3669
      %v3671 = vpop.f32.mrf.mxu0
      %v3672 = vadd.f32 0.0, %v3671
      %v3673 = vpop.f32.mrf.mxu0
      %v3674 = vadd.f32 0.0, %v3673
      %3675 = vmatprep.mubr.bf16.mxu0 0
      %3676 = vmatmul.mubr.bf16.gmra.mxu0 %v3618
      %v3677 = vpop.f32.mrf.mxu0
      %v3678 = vadd.f32 0.0, %v3677
      %v3679 = vpop.f32.mrf.mxu0
      %v3680 = vadd.f32 0.0, %v3679
      %v3681 = vpop.f32.mrf.mxu0
      %v3682 = vadd.f32 0.0, %v3681
      %v3683 = vpop.f32.mrf.mxu0
      %v3684 = vadd.f32 0.0, %v3683
      %3685 = vmatprep.mubr.bf16.mxu0 0
      %3686 = vmatmul.mubr.bf16.gmra.mxu0 %v3621
      %v3687 = vpop.f32.mrf.mxu0
      %v3688 = vadd.f32 0.0, %v3687
      %v3689 = vpop.f32.mrf.mxu0
      %v3690 = vadd.f32 0.0, %v3689
      %v3691 = vpop.f32.mrf.mxu0
      %v3692 = vadd.f32 0.0, %v3691
      %v3693 = vpop.f32.mrf.mxu0
      %v3694 = vadd.f32 0.0, %v3693
      %3695 = vdwg.mxu0
      %v3696 = vadd.f32 %v3465, %v3658
      %v3697 = vadd.f32 %v3466, %v3660
      %v3698 = vadd.f32 %v3467, %v3662
      %v3699 = vadd.f32 %v3468, %v3664
      %v3700 = vadd.f32 %v3469, %v3668
      %v3701 = vadd.f32 %v3470, %v3670
      %v3702 = vadd.f32 %v3471, %v3672
      %v3703 = vadd.f32 %v3472, %v3674
      %v3704 = vadd.f32 %v3473, %v3678
      %v3705 = vadd.f32 %v3474, %v3680
      %v3706 = vadd.f32 %v3475, %v3682
      %v3707 = vadd.f32 %v3476, %v3684
      %v3708 = vadd.f32 %v3477, %v3688
      %v3709 = vadd.f32 %v3478, %v3690
      %v3710 = vadd.f32 %v3479, %v3692
      %v3711 = vadd.f32 %v3480, %v3694
      %v3712 = vld [vmem:[%s7] sm:$0xff]
      %v3713 = vld [vmem:[%s7 + $0x8] sm:$0xff]
      %v3714 = vld [vmem:[%s7 + $0x10] sm:$0xff]
      %v3715 = vld [vmem:[%s7 + $0x18] sm:$0xff]
      %v3716 = vld [vmem:[%s7 + $0x20] sm:$0xff]
      %v3717 = vld [vmem:[%s7 + $0x28] sm:$0xff]
      %v3718 = vld [vmem:[%s7 + $0x30] sm:$0xff]
      %v3719 = vld [vmem:[%s7 + $0x38] sm:$0xff]
      %3721 = vset.pattern.permute.xlu0 0
      %3722 = vperm.xlu0 %3721, %v3712
      %v3723 = vpop.permute.xlu0 %3722
      %3726 = vset.pattern.permute.xlu0 0
      %3727 = vperm.xlu0 %3726, %v3713
      %v3728 = vpop.permute.xlu0 %3727
      %3731 = vset.pattern.permute.xlu0 0
      %3732 = vperm.xlu0 %3731, %v3714
      %v3733 = vpop.permute.xlu0 %3732
      %3736 = vset.pattern.permute.xlu0 0
      %3737 = vperm.xlu0 %3736, %v3715
      %v3738 = vpop.permute.xlu0 %3737
      %3741 = vset.pattern.permute.xlu0 0
      %3742 = vperm.xlu0 %3741, %v3716
      %v3743 = vpop.permute.xlu0 %3742
      %3746 = vset.pattern.permute.xlu0 0
      %3747 = vperm.xlu0 %3746, %v3717
      %v3748 = vpop.permute.xlu0 %3747
      %3751 = vset.pattern.permute.xlu0 0
      %3752 = vperm.xlu0 %3751, %v3718
      %v3753 = vpop.permute.xlu0 %3752
      %3756 = vset.pattern.permute.xlu0 0
      %3757 = vperm.xlu0 %3756, %v3719
      %v3758 = vpop.permute.xlu0 %3757
      %v3760 = vadd.f32 %v3696, %v3723
      %v3761 = vadd.f32 %v3697, %v3723
      %v3762 = vadd.f32 %v3698, %v3728
      %v3763 = vadd.f32 %v3699, %v3728
      %v3764 = vadd.f32 %v3700, %v3733
      %v3765 = vadd.f32 %v3701, %v3733
      %v3766 = vadd.f32 %v3702, %v3738
      %v3767 = vadd.f32 %v3703, %v3738
      %v3768 = vadd.f32 %v3704, %v3743
      %v3769 = vadd.f32 %v3705, %v3743
      %v3770 = vadd.f32 %v3706, %v3748
      %v3771 = vadd.f32 %v3707, %v3748
      %v3772 = vadd.f32 %v3708, %v3753
      %v3773 = vadd.f32 %v3709, %v3753
      %v3774 = vadd.f32 %v3710, %v3758
      %v3775 = vadd.f32 %v3711, %v3758
      %v3776 = vmax.f32 %v3760, 0.0
      %v3777 = vmax.f32 %v3761, 0.0
      %v3778 = vmax.f32 %v3762, 0.0
      %v3779 = vmax.f32 %v3763, 0.0
      %v3780 = vmax.f32 %v3764, 0.0
      %v3781 = vmax.f32 %v3765, 0.0
      %v3782 = vmax.f32 %v3766, 0.0
      %v3783 = vmax.f32 %v3767, 0.0
      %v3784 = vmax.f32 %v3768, 0.0
      %v3785 = vmax.f32 %v3769, 0.0
      %v3786 = vmax.f32 %v3770, 0.0
      %v3787 = vmax.f32 %v3771, 0.0
      %v3788 = vmax.f32 %v3772, 0.0
      %v3789 = vmax.f32 %v3773, 0.0
      %v3790 = vmax.f32 %v3774, 0.0
      %v3791 = vmax.f32 %v3775, 0.0
      %3792 = vrot.lane.b32.xlu0 %v3776, 17
      %v3793 = vpop.permute.xlu0 %3792
      %3794 = vrot.lane.b32.xlu0 %v3778, 17
      %v3795 = vpop.permute.xlu0 %3794
      %3796 = vrot.lane.b32.xlu0 %v3780, 17
      %v3797 = vpop.permute.xlu0 %3796
      %3798 = vrot.lane.b32.xlu0 %v3782, 17
      %v3799 = vpop.permute.xlu0 %3798
      %3800 = vrot.lane.b32.xlu0 %v3784, 17
      %v3801 = vpop.permute.xlu0 %3800
      %3802 = vrot.lane.b32.xlu0 %v3786, 17
      %v3803 = vpop.permute.xlu0 %3802
      %3804 = vrot.lane.b32.xlu0 %v3788, 17
      %v3805 = vpop.permute.xlu0 %3804
      %3806 = vrot.lane.b32.xlu0 %v3790, 17
      %v3807 = vpop.permute.xlu0 %3806
      %3808 = vrot.lane.b32.xlu0 %v3777, 17
      %v3809 = vpop.permute.xlu0 %3808
      %3810 = vrot.lane.b32.xlu0 %v3779, 17
      %v3811 = vpop.permute.xlu0 %3810
      %3812 = vrot.lane.b32.xlu0 %v3781, 17
      %v3813 = vpop.permute.xlu0 %3812
      %3814 = vrot.lane.b32.xlu0 %v3783, 17
      %v3815 = vpop.permute.xlu0 %3814
      %3816 = vrot.lane.b32.xlu0 %v3785, 17
      %v3817 = vpop.permute.xlu0 %3816
      %3818 = vrot.lane.b32.xlu0 %v3787, 17
      %v3819 = vpop.permute.xlu0 %3818
      %3820 = vrot.lane.b32.xlu0 %v3789, 17
      %v3821 = vpop.permute.xlu0 %3820
      %3822 = vrot.lane.b32.xlu0 %v3791, 17
      %v3823 = vpop.permute.xlu0 %3822
      %v3824 = vsel %vm538, %v3793, %v3809
      %v3825 = vsel %vm538, %v3795, %v3811
      %v3826 = vsel %vm538, %v3797, %v3813
      %v3827 = vsel %vm538, %v3799, %v3815
      %v3828 = vsel %vm538, %v3801, %v3817
      %v3829 = vsel %vm538, %v3803, %v3819
      %v3830 = vsel %vm538, %v3805, %v3821
      %v3831 = vsel %vm538, %v3807, %v3823
      %v3832 = vsel %vm538, %v3809, %v3793
      %v3833 = vsel %vm538, %v3811, %v3795
      %v3834 = vsel %vm538, %v3813, %v3797
      %v3835 = vsel %vm538, %v3815, %v3799
      %v3836 = vsel %vm538, %v3817, %v3801
      %v3837 = vsel %vm538, %v3819, %v3803
      %v3838 = vsel %vm538, %v3821, %v3805
      %v3839 = vsel %vm538, %v3823, %v3807
      %v3840 = vpack.c.bf16 %v3833, %v3832
      %v3841 = vpack.c.bf16 %v3825, %v3824
      %v3842 = vpack.c.bf16 %v3835, %v3834
      %v3843 = vpack.c.bf16 %v3827, %v3826
      %v3844 = vpack.c.bf16 %v3837, %v3836
      %v3845 = vpack.c.bf16 %v3829, %v3828
      %v3846 = vpack.c.bf16 %v3839, %v3838
      %v3847 = vpack.c.bf16 %v3831, %v3830
      %v3848 = vmul.bf16 %v3840, %v1844
      %v3849 = vmul.bf16 %v3841, %v1851
      %v3850 = vmul.bf16 %v3842, %v1844
      %v3851 = vmul.bf16 %v3843, %v1851
      %v3852 = vmul.bf16 %v3844, %v1844
      %v3853 = vmul.bf16 %v3845, %v1851
      %v3854 = vmul.bf16 %v3846, %v1844
      %v3855 = vmul.bf16 %v3847, %v1851
      %v3856 = vld [vmem:[%s8] sm:$0xf]
      %v3857 = vld [vmem:[%s8 + $0x4] sm:$0xf]
      %v3858 = vld [vmem:[%s8 + $0x8] sm:$0xf]
      %v3859 = vld [vmem:[%s8 + $0xc] sm:$0xf]
      %3860 = vrot.lane.b32.xlu0 %v3776, 16
      %v3861 = vpop.permute.xlu0 %3860
      %3862 = vrot.lane.b32.xlu0 %v3778, 16
      %v3863 = vpop.permute.xlu0 %3862
      %3864 = vrot.lane.b32.xlu0 %v3780, 16
      %v3865 = vpop.permute.xlu0 %3864
      %3866 = vrot.lane.b32.xlu0 %v3782, 16
      %v3867 = vpop.permute.xlu0 %3866
      %3868 = vrot.lane.b32.xlu0 %v3784, 16
      %v3869 = vpop.permute.xlu0 %3868
      %3870 = vrot.lane.b32.xlu0 %v3786, 16
      %v3871 = vpop.permute.xlu0 %3870
      %3872 = vrot.lane.b32.xlu0 %v3788, 16
      %v3873 = vpop.permute.xlu0 %3872
      %3874 = vrot.lane.b32.xlu0 %v3790, 16
      %v3875 = vpop.permute.xlu0 %3874
      %3876 = vrot.lane.b32.xlu0 %v3777, 16
      %v3877 = vpop.permute.xlu0 %3876
      %3878 = vrot.lane.b32.xlu0 %v3779, 16
      %v3879 = vpop.permute.xlu0 %3878
      %3880 = vrot.lane.b32.xlu0 %v3781, 16
      %v3881 = vpop.permute.xlu0 %3880
      %3882 = vrot.lane.b32.xlu0 %v3783, 16
      %v3883 = vpop.permute.xlu0 %3882
      %3884 = vrot.lane.b32.xlu0 %v3785, 16
      %v3885 = vpop.permute.xlu0 %3884
      %3886 = vrot.lane.b32.xlu0 %v3787, 16
      %v3887 = vpop.permute.xlu0 %3886
      %3888 = vrot.lane.b32.xlu0 %v3789, 16
      %v3889 = vpop.permute.xlu0 %3888
      %3890 = vrot.lane.b32.xlu0 %v3791, 16
      %v3891 = vpop.permute.xlu0 %3890
      %v3892 = vsel %vm648, %v3861, %v3877
      %v3893 = vsel %vm648, %v3863, %v3879
      %v3894 = vsel %vm648, %v3865, %v3881
      %v3895 = vsel %vm648, %v3867, %v3883
      %v3896 = vsel %vm648, %v3869, %v3885
      %v3897 = vsel %vm648, %v3871, %v3887
      %v3898 = vsel %vm648, %v3873, %v3889
      %v3899 = vsel %vm648, %v3875, %v3891
      %v3900 = vsel %vm648, %v3877, %v3861
      %v3901 = vsel %vm648, %v3879, %v3863
      %v3902 = vsel %vm648, %v3881, %v3865
      %v3903 = vsel %vm648, %v3883, %v3867
      %v3904 = vsel %vm648, %v3885, %v3869
      %v3905 = vsel %vm648, %v3887, %v3871
      %v3906 = vsel %vm648, %v3889, %v3873
      %v3907 = vsel %vm648, %v3891, %v3875
      %v3908 = vpack.c.bf16 %v3901, %v3900
      %v3909 = vpack.c.bf16 %v3893, %v3892
      %v3910 = vpack.c.bf16 %v3903, %v3902
      %v3911 = vpack.c.bf16 %v3895, %v3894
      %v3912 = vpack.c.bf16 %v3905, %v3904
      %v3913 = vpack.c.bf16 %v3897, %v3896
      %v3914 = vpack.c.bf16 %v3907, %v3906
      %v3915 = vpack.c.bf16 %v3899, %v3898
      %v3916 = vmul.bf16 %v3908, %v1953
      %v3917 = vmul.bf16 %v3909, %v1960
      %v3918 = vmul.bf16 %v3910, %v1953
      %v3919 = vmul.bf16 %v3911, %v1960
      %v3920 = vmul.bf16 %v3912, %v1953
      %v3921 = vmul.bf16 %v3913, %v1960
      %v3922 = vmul.bf16 %v3914, %v1953
      %v3923 = vmul.bf16 %v3915, %v1960
      %s3924 = scalar_lea.vmem %s8, 16
      %v3925 = vld [vmem:[%s3924] sm:$0xf]
      %v3926 = vld [vmem:[%s3924 + $0x4] sm:$0xf]
      %v3927 = vld [vmem:[%s3924 + $0x8] sm:$0xf]
      %v3928 = vld [vmem:[%s3924 + $0xc] sm:$0xf]
      %v3933 = vunpack.c.l.b16 %v3925
      %v3934 = vunpack.c.l.b16 %v3926
      %v3935 = vunpack.c.l.b16 %v3927
      %v3936 = vunpack.c.l.b16 %v3928
      %v3937 = vpack.c.b16 %v3934, %v3933
      %v3938 = vpack.c.b16 %v3936, %v3935
      %v3940 = vsel %vm1673, %v3937, 0
      %v3943 = vsel %vm1673, %v3938, 0
      %3945 = vmatprep.subr.bf16.mxu0 0
      %3946 = vmatpush1.bf16.msra.mxu0 0
      %3947 = vmatprep.subr.bf16.mxu0 0
      %3948 = vmatpush1.bf16.msra.mxu0 0
      %3949 = vmatprep.subr.bf16.mxu0 0
      %3950 = vmatpush1.bf16.msra.mxu0 0
      %3951 = vmatprep.subr.bf16.mxu0 0
      %3952 = vmatpush1.bf16.msra.mxu0 0
      %3953 = vmatprep.subr.bf16.mxu0 %v3923
      %3954 = vmatpush1.bf16.msra.mxu0 %v3922
      %3955 = vmatprep.subr.bf16.mxu0 %v3921
      %3956 = vmatpush1.bf16.msra.mxu0 %v3920
      %3957 = vmatprep.subr.bf16.mxu0 %v3919
      %3958 = vmatpush1.bf16.msra.mxu0 %v3918
      %3959 = vmatprep.subr.bf16.mxu0 %v3917
      %3960 = vmatpush1.bf16.msra.mxu0 %v3916
      %3961 = vmatprep.subr.bf16.mxu0 0
      %3962 = vmatpush2.bf16.msra.mxu0 0
      %3963 = vmatprep.subr.bf16.mxu0 0
      %3964 = vmatpush2.bf16.msra.mxu0 0
      %3965 = vmatprep.subr.bf16.mxu0 0
      %3966 = vmatpush2.bf16.msra.mxu0 0
      %3967 = vmatprep.subr.bf16.mxu0 0
      %3968 = vmatpush2.bf16.msra.mxu0 0
      %3969 = vmatprep.subr.bf16.mxu0 0
      %3970 = vmatpush2.bf16.msra.mxu0 0
      %3971 = vmatprep.subr.bf16.mxu0 0
      %3972 = vmatpush2.bf16.msra.mxu0 0
      %3973 = vmatprep.subr.bf16.mxu0 0
      %3974 = vmatpush2.bf16.msra.mxu0 0
      %3975 = vmatprep.subr.bf16.mxu0 0
      %3976 = vmatpush2.bf16.msra.mxu0 0
      %3977 = vmatprep.mubr.bf16.mxu0 0
      %3978 = vmatmul.mubr.bf16.gmra.mxu0 %v3940
      %v3979 = vpop.f32.mrf.mxu0
      %v3980 = vadd.f32 0.0, %v3979
      %v3981 = vpop.f32.mrf.mxu0
      %v3982 = vadd.f32 0.0, %v3981
      %v3983 = vpop.f32.mrf.mxu0
      %v3984 = vadd.f32 0.0, %v3983
      %v3985 = vpop.f32.mrf.mxu0
      %v3986 = vadd.f32 0.0, %v3985
      %3987 = vmatprep.mubr.bf16.mxu0 0
      %3988 = vmatmul.mubr.bf16.gmra.mxu0 %v3943
      %v3989 = vpop.f32.mrf.mxu0
      %v3990 = vadd.f32 0.0, %v3989
      %v3991 = vpop.f32.mrf.mxu0
      %v3992 = vadd.f32 0.0, %v3991
      %v3993 = vpop.f32.mrf.mxu0
      %v3994 = vadd.f32 0.0, %v3993
      %v3995 = vpop.f32.mrf.mxu0
      %v3996 = vadd.f32 0.0, %v3995
      %3997 = vdwg.mxu0
      %v4002 = vunpack.c.l.b16 %v3856
      %v4003 = vunpack.c.l.b16 %v3857
      %v4004 = vunpack.c.l.b16 %v3858
      %v4005 = vunpack.c.l.b16 %v3859
      %v4006 = vpack.c.b16 %v4003, %v4002
      %v4007 = vpack.c.b16 %v4005, %v4004
      %v4009 = vsel %vm1673, %v4006, 0
      %v4012 = vsel %vm1673, %v4007, 0
      %4014 = vmatprep.subr.bf16.mxu0 0
      %4015 = vmatpush1.bf16.msra.mxu0 0
      %4016 = vmatprep.subr.bf16.mxu0 0
      %4017 = vmatpush1.bf16.msra.mxu0 0
      %4018 = vmatprep.subr.bf16.mxu0 0
      %4019 = vmatpush1.bf16.msra.mxu0 0
      %4020 = vmatprep.subr.bf16.mxu0 0
      %4021 = vmatpush1.bf16.msra.mxu0 0
      %4022 = vmatprep.subr.bf16.mxu0 %v3855
      %4023 = vmatpush1.bf16.msra.mxu0 %v3854
      %4024 = vmatprep.subr.bf16.mxu0 %v3853
      %4025 = vmatpush1.bf16.msra.mxu0 %v3852
      %4026 = vmatprep.subr.bf16.mxu0 %v3851
      %4027 = vmatpush1.bf16.msra.mxu0 %v3850
      %4028 = vmatprep.subr.bf16.mxu0 %v3849
      %4029 = vmatpush1.bf16.msra.mxu0 %v3848
      %4030 = vmatprep.subr.bf16.mxu0 0
      %4031 = vmatpush2.bf16.msra.mxu0 0
      %4032 = vmatprep.subr.bf16.mxu0 0
      %4033 = vmatpush2.bf16.msra.mxu0 0
      %4034 = vmatprep.subr.bf16.mxu0 0
      %4035 = vmatpush2.bf16.msra.mxu0 0
      %4036 = vmatprep.subr.bf16.mxu0 0
      %4037 = vmatpush2.bf16.msra.mxu0 0
      %4038 = vmatprep.subr.bf16.mxu0 0
      %4039 = vmatpush2.bf16.msra.mxu0 0
      %4040 = vmatprep.subr.bf16.mxu0 0
      %4041 = vmatpush2.bf16.msra.mxu0 0
      %4042 = vmatprep.subr.bf16.mxu0 0
      %4043 = vmatpush2.bf16.msra.mxu0 0
      %4044 = vmatprep.subr.bf16.mxu0 0
      %4045 = vmatpush2.bf16.msra.mxu0 0
      %4046 = vmatprep.mubr.bf16.mxu0 0
      %4047 = vmatmul.mubr.bf16.gmra.mxu0 %v4009
      %v4048 = vpop.f32.mrf.mxu0
      %v4049 = vadd.f32 %v3980, %v4048
      %v4050 = vpop.f32.mrf.mxu0
      %v4051 = vadd.f32 %v3982, %v4050
      %v4052 = vpop.f32.mrf.mxu0
      %v4053 = vadd.f32 %v3984, %v4052
      %v4054 = vpop.f32.mrf.mxu0
      %v4055 = vadd.f32 %v3986, %v4054
      %4056 = vmatprep.mubr.bf16.mxu0 0
      %4057 = vmatmul.mubr.bf16.gmra.mxu0 %v4012
      %v4058 = vpop.f32.mrf.mxu0
      %v4059 = vadd.f32 %v3990, %v4058
      %v4060 = vpop.f32.mrf.mxu0
      %v4061 = vadd.f32 %v3992, %v4060
      %v4062 = vpop.f32.mrf.mxu0
      %v4063 = vadd.f32 %v3994, %v4062
      %v4064 = vpop.f32.mrf.mxu0
      %v4065 = vadd.f32 %v3996, %v4064
      %4066 = vdwg.mxu0
      %4067 = vrot.lane.b32.xlu0 %v3776, 15
      %v4068 = vpop.permute.xlu0 %4067
      %4069 = vrot.lane.b32.xlu0 %v3778, 15
      %v4070 = vpop.permute.xlu0 %4069
      %4071 = vrot.lane.b32.xlu0 %v3780, 15
      %v4072 = vpop.permute.xlu0 %4071
      %4073 = vrot.lane.b32.xlu0 %v3782, 15
      %v4074 = vpop.permute.xlu0 %4073
      %4075 = vrot.lane.b32.xlu0 %v3784, 15
      %v4076 = vpop.permute.xlu0 %4075
      %4077 = vrot.lane.b32.xlu0 %v3786, 15
      %v4078 = vpop.permute.xlu0 %4077
      %4079 = vrot.lane.b32.xlu0 %v3788, 15
      %v4080 = vpop.permute.xlu0 %4079
      %4081 = vrot.lane.b32.xlu0 %v3790, 15
      %v4082 = vpop.permute.xlu0 %4081
      %4083 = vrot.lane.b32.xlu0 %v3777, 15
      %v4084 = vpop.permute.xlu0 %4083
      %4085 = vrot.lane.b32.xlu0 %v3779, 15
      %v4086 = vpop.permute.xlu0 %4085
      %4087 = vrot.lane.b32.xlu0 %v3781, 15
      %v4088 = vpop.permute.xlu0 %4087
      %4089 = vrot.lane.b32.xlu0 %v3783, 15
      %v4090 = vpop.permute.xlu0 %4089
      %4091 = vrot.lane.b32.xlu0 %v3785, 15
      %v4092 = vpop.permute.xlu0 %4091
      %4093 = vrot.lane.b32.xlu0 %v3787, 15
      %v4094 = vpop.permute.xlu0 %4093
      %4095 = vrot.lane.b32.xlu0 %v3789, 15
      %v4096 = vpop.permute.xlu0 %4095
      %4097 = vrot.lane.b32.xlu0 %v3791, 15
      %v4098 = vpop.permute.xlu0 %4097
      %v4099 = vsel %vm760, %v4068, %v4084
      %v4100 = vsel %vm760, %v4070, %v4086
      %v4101 = vsel %vm760, %v4072, %v4088
      %v4102 = vsel %vm760, %v4074, %v4090
      %v4103 = vsel %vm760, %v4076, %v4092
      %v4104 = vsel %vm760, %v4078, %v4094
      %v4105 = vsel %vm760, %v4080, %v4096
      %v4106 = vsel %vm760, %v4082, %v4098
      %v4107 = vsel %vm760, %v4084, %v4068
      %v4108 = vsel %vm760, %v4086, %v4070
      %v4109 = vsel %vm760, %v4088, %v4072
      %v4110 = vsel %vm760, %v4090, %v4074
      %v4111 = vsel %vm760, %v4092, %v4076
      %v4112 = vsel %vm760, %v4094, %v4078
      %v4113 = vsel %vm760, %v4096, %v4080
      %v4114 = vsel %vm760, %v4098, %v4082
      %v4115 = vpack.c.bf16 %v4108, %v4107
      %v4116 = vpack.c.bf16 %v4100, %v4099
      %v4117 = vpack.c.bf16 %v4110, %v4109
      %v4118 = vpack.c.bf16 %v4102, %v4101
      %v4119 = vpack.c.bf16 %v4112, %v4111
      %v4120 = vpack.c.bf16 %v4104, %v4103
      %v4121 = vpack.c.bf16 %v4114, %v4113
      %v4122 = vpack.c.bf16 %v4106, %v4105
      %v4123 = vmul.bf16 %v4115, %v2273
      %v4124 = vmul.bf16 %v4116, %v2280
      %v4125 = vmul.bf16 %v4117, %v2273
      %v4126 = vmul.bf16 %v4118, %v2280
      %v4127 = vmul.bf16 %v4119, %v2273
      %v4128 = vmul.bf16 %v4120, %v2280
      %v4129 = vmul.bf16 %v4121, %v2273
      %v4130 = vmul.bf16 %v4122, %v2280
      %s4131 = scalar_lea.vmem %s8, 32
      %v4132 = vld [vmem:[%s4131] sm:$0xf]
      %v4133 = vld [vmem:[%s4131 + $0x4] sm:$0xf]
      %v4134 = vld [vmem:[%s4131 + $0x8] sm:$0xf]
      %v4135 = vld [vmem:[%s4131 + $0xc] sm:$0xf]
      %v4140 = vunpack.c.l.b16 %v4132
      %v4141 = vunpack.c.l.b16 %v4133
      %v4142 = vunpack.c.l.b16 %v4134
      %v4143 = vunpack.c.l.b16 %v4135
      %v4144 = vpack.c.b16 %v4141, %v4140
      %v4145 = vpack.c.b16 %v4143, %v4142
      %v4147 = vsel %vm1673, %v4144, 0
      %v4150 = vsel %vm1673, %v4145, 0
      %4152 = vmatprep.subr.bf16.mxu0 0
      %4153 = vmatpush1.bf16.msra.mxu0 0
      %4154 = vmatprep.subr.bf16.mxu0 0
      %4155 = vmatpush1.bf16.msra.mxu0 0
      %4156 = vmatprep.subr.bf16.mxu0 0
      %4157 = vmatpush1.bf16.msra.mxu0 0
      %4158 = vmatprep.subr.bf16.mxu0 0
      %4159 = vmatpush1.bf16.msra.mxu0 0
      %4160 = vmatprep.subr.bf16.mxu0 %v4130
      %4161 = vmatpush1.bf16.msra.mxu0 %v4129
      %4162 = vmatprep.subr.bf16.mxu0 %v4128
      %4163 = vmatpush1.bf16.msra.mxu0 %v4127
      %4164 = vmatprep.subr.bf16.mxu0 %v4126
      %4165 = vmatpush1.bf16.msra.mxu0 %v4125
      %4166 = vmatprep.subr.bf16.mxu0 %v4124
      %4167 = vmatpush1.bf16.msra.mxu0 %v4123
      %4168 = vmatprep.subr.bf16.mxu0 0
      %4169 = vmatpush2.bf16.msra.mxu0 0
      %4170 = vmatprep.subr.bf16.mxu0 0
      %4171 = vmatpush2.bf16.msra.mxu0 0
      %4172 = vmatprep.subr.bf16.mxu0 0
      %4173 = vmatpush2.bf16.msra.mxu0 0
      %4174 = vmatprep.subr.bf16.mxu0 0
      %4175 = vmatpush2.bf16.msra.mxu0 0
      %4176 = vmatprep.subr.bf16.mxu0 0
      %4177 = vmatpush2.bf16.msra.mxu0 0
      %4178 = vmatprep.subr.bf16.mxu0 0
      %4179 = vmatpush2.bf16.msra.mxu0 0
      %4180 = vmatprep.subr.bf16.mxu0 0
      %4181 = vmatpush2.bf16.msra.mxu0 0
      %4182 = vmatprep.subr.bf16.mxu0 0
      %4183 = vmatpush2.bf16.msra.mxu0 0
      %4184 = vmatprep.mubr.bf16.mxu0 0
      %4185 = vmatmul.mubr.bf16.gmra.mxu0 %v4147
      %v4186 = vpop.f32.mrf.mxu0
      %v4187 = vadd.f32 0.0, %v4186
      %v4188 = vpop.f32.mrf.mxu0
      %v4189 = vadd.f32 0.0, %v4188
      %v4190 = vpop.f32.mrf.mxu0
      %v4191 = vadd.f32 0.0, %v4190
      %v4192 = vpop.f32.mrf.mxu0
      %v4193 = vadd.f32 0.0, %v4192
      %4194 = vmatprep.mubr.bf16.mxu0 0
      %4195 = vmatmul.mubr.bf16.gmra.mxu0 %v4150
      %v4196 = vpop.f32.mrf.mxu0
      %v4197 = vadd.f32 0.0, %v4196
      %v4198 = vpop.f32.mrf.mxu0
      %v4199 = vadd.f32 0.0, %v4198
      %v4200 = vpop.f32.mrf.mxu0
      %v4201 = vadd.f32 0.0, %v4200
      %v4202 = vpop.f32.mrf.mxu0
      %v4203 = vadd.f32 0.0, %v4202
      %4204 = vdwg.mxu0
      %v4205 = vadd.f32 %v4049, %v4187
      %v4206 = vadd.f32 %v4051, %v4189
      %v4207 = vadd.f32 %v4053, %v4191
      %v4208 = vadd.f32 %v4055, %v4193
      %v4209 = vadd.f32 %v4059, %v4197
      %v4210 = vadd.f32 %v4061, %v4199
      %v4211 = vadd.f32 %v4063, %v4201
      %v4212 = vadd.f32 %v4065, %v4203
      %4213 = vrot.lane.b32.xlu0 %v3776, 1
      %v4214 = vpop.permute.xlu0 %4213
      %4215 = vrot.lane.b32.xlu0 %v3778, 1
      %v4216 = vpop.permute.xlu0 %4215
      %4217 = vrot.lane.b32.xlu0 %v3780, 1
      %v4218 = vpop.permute.xlu0 %4217
      %4219 = vrot.lane.b32.xlu0 %v3782, 1
      %v4220 = vpop.permute.xlu0 %4219
      %4221 = vrot.lane.b32.xlu0 %v3784, 1
      %v4222 = vpop.permute.xlu0 %4221
      %4223 = vrot.lane.b32.xlu0 %v3786, 1
      %v4224 = vpop.permute.xlu0 %4223
      %4225 = vrot.lane.b32.xlu0 %v3788, 1
      %v4226 = vpop.permute.xlu0 %4225
      %4227 = vrot.lane.b32.xlu0 %v3790, 1
      %v4228 = vpop.permute.xlu0 %4227
      %4229 = vrot.lane.b32.xlu0 %v3777, 1
      %v4230 = vpop.permute.xlu0 %4229
      %4231 = vrot.lane.b32.xlu0 %v3779, 1
      %v4232 = vpop.permute.xlu0 %4231
      %4233 = vrot.lane.b32.xlu0 %v3781, 1
      %v4234 = vpop.permute.xlu0 %4233
      %4235 = vrot.lane.b32.xlu0 %v3783, 1
      %v4236 = vpop.permute.xlu0 %4235
      %4237 = vrot.lane.b32.xlu0 %v3785, 1
      %v4238 = vpop.permute.xlu0 %4237
      %4239 = vrot.lane.b32.xlu0 %v3787, 1
      %v4240 = vpop.permute.xlu0 %4239
      %4241 = vrot.lane.b32.xlu0 %v3789, 1
      %v4242 = vpop.permute.xlu0 %4241
      %4243 = vrot.lane.b32.xlu0 %v3791, 1
      %v4244 = vpop.permute.xlu0 %4243
      %v4245 = vsel %vm872, %v4214, %v4230
      %v4246 = vsel %vm872, %v4216, %v4232
      %v4247 = vsel %vm872, %v4218, %v4234
      %v4248 = vsel %vm872, %v4220, %v4236
      %v4249 = vsel %vm872, %v4222, %v4238
      %v4250 = vsel %vm872, %v4224, %v4240
      %v4251 = vsel %vm872, %v4226, %v4242
      %v4252 = vsel %vm872, %v4228, %v4244
      %v4253 = vsel %vm872, %v4230, %v4214
      %v4254 = vsel %vm872, %v4232, %v4216
      %v4255 = vsel %vm872, %v4234, %v4218
      %v4256 = vsel %vm872, %v4236, %v4220
      %v4257 = vsel %vm872, %v4238, %v4222
      %v4258 = vsel %vm872, %v4240, %v4224
      %v4259 = vsel %vm872, %v4242, %v4226
      %v4260 = vsel %vm872, %v4244, %v4228
      %v4261 = vpack.c.bf16 %v4254, %v4253
      %v4262 = vpack.c.bf16 %v4246, %v4245
      %v4263 = vpack.c.bf16 %v4256, %v4255
      %v4264 = vpack.c.bf16 %v4248, %v4247
      %v4265 = vpack.c.bf16 %v4258, %v4257
      %v4266 = vpack.c.bf16 %v4250, %v4249
      %v4267 = vpack.c.bf16 %v4260, %v4259
      %v4268 = vpack.c.bf16 %v4252, %v4251
      %v4269 = vmul.bf16 %v4261, %v2504
      %v4270 = vmul.bf16 %v4262, %v2511
      %v4271 = vmul.bf16 %v4263, %v2504
      %v4272 = vmul.bf16 %v4264, %v2511
      %v4273 = vmul.bf16 %v4265, %v2504
      %v4274 = vmul.bf16 %v4266, %v2511
      %v4275 = vmul.bf16 %v4267, %v2504
      %v4276 = vmul.bf16 %v4268, %v2511
      %s4277 = scalar_lea.vmem %s8, 48
      %v4278 = vld [vmem:[%s4277] sm:$0xf]
      %v4279 = vld [vmem:[%s4277 + $0x4] sm:$0xf]
      %v4280 = vld [vmem:[%s4277 + $0x8] sm:$0xf]
      %v4281 = vld [vmem:[%s4277 + $0xc] sm:$0xf]
      %v4286 = vunpack.c.l.b16 %v4278
      %v4287 = vunpack.c.l.b16 %v4279
      %v4288 = vunpack.c.l.b16 %v4280
      %v4289 = vunpack.c.l.b16 %v4281
      %v4290 = vpack.c.b16 %v4287, %v4286
      %v4291 = vpack.c.b16 %v4289, %v4288
      %v4293 = vsel %vm1673, %v4290, 0
      %v4296 = vsel %vm1673, %v4291, 0
      %4298 = vmatprep.subr.bf16.mxu0 0
      %4299 = vmatpush1.bf16.msra.mxu0 0
      %4300 = vmatprep.subr.bf16.mxu0 0
      %4301 = vmatpush1.bf16.msra.mxu0 0
      %4302 = vmatprep.subr.bf16.mxu0 0
      %4303 = vmatpush1.bf16.msra.mxu0 0
      %4304 = vmatprep.subr.bf16.mxu0 0
      %4305 = vmatpush1.bf16.msra.mxu0 0
      %4306 = vmatprep.subr.bf16.mxu0 %v4276
      %4307 = vmatpush1.bf16.msra.mxu0 %v4275
      %4308 = vmatprep.subr.bf16.mxu0 %v4274
      %4309 = vmatpush1.bf16.msra.mxu0 %v4273
      %4310 = vmatprep.subr.bf16.mxu0 %v4272
      %4311 = vmatpush1.bf16.msra.mxu0 %v4271
      %4312 = vmatprep.subr.bf16.mxu0 %v4270
      %4313 = vmatpush1.bf16.msra.mxu0 %v4269
      %4314 = vmatprep.subr.bf16.mxu0 0
      %4315 = vmatpush2.bf16.msra.mxu0 0
      %4316 = vmatprep.subr.bf16.mxu0 0
      %4317 = vmatpush2.bf16.msra.mxu0 0
      %4318 = vmatprep.subr.bf16.mxu0 0
      %4319 = vmatpush2.bf16.msra.mxu0 0
      %4320 = vmatprep.subr.bf16.mxu0 0
      %4321 = vmatpush2.bf16.msra.mxu0 0
      %4322 = vmatprep.subr.bf16.mxu0 0
      %4323 = vmatpush2.bf16.msra.mxu0 0
      %4324 = vmatprep.subr.bf16.mxu0 0
      %4325 = vmatpush2.bf16.msra.mxu0 0
      %4326 = vmatprep.subr.bf16.mxu0 0
      %4327 = vmatpush2.bf16.msra.mxu0 0
      %4328 = vmatprep.subr.bf16.mxu0 0
      %4329 = vmatpush2.bf16.msra.mxu0 0
      %4330 = vmatprep.mubr.bf16.mxu0 0
      %4331 = vmatmul.mubr.bf16.gmra.mxu0 %v4293
      %v4332 = vpop.f32.mrf.mxu0
      %v4333 = vadd.f32 0.0, %v4332
      %v4334 = vpop.f32.mrf.mxu0
      %v4335 = vadd.f32 0.0, %v4334
      %v4336 = vpop.f32.mrf.mxu0
      %v4337 = vadd.f32 0.0, %v4336
      %v4338 = vpop.f32.mrf.mxu0
      %v4339 = vadd.f32 0.0, %v4338
      %4340 = vmatprep.mubr.bf16.mxu0 0
      %4341 = vmatmul.mubr.bf16.gmra.mxu0 %v4296
      %v4342 = vpop.f32.mrf.mxu0
      %v4343 = vadd.f32 0.0, %v4342
      %v4344 = vpop.f32.mrf.mxu0
      %v4345 = vadd.f32 0.0, %v4344
      %v4346 = vpop.f32.mrf.mxu0
      %v4347 = vadd.f32 0.0, %v4346
      %v4348 = vpop.f32.mrf.mxu0
      %v4349 = vadd.f32 0.0, %v4348
      %4350 = vdwg.mxu0
      %v4351 = vadd.f32 %v4205, %v4333
      %v4352 = vadd.f32 %v4206, %v4335
      %v4353 = vadd.f32 %v4207, %v4337
      %v4354 = vadd.f32 %v4208, %v4339
      %v4355 = vadd.f32 %v4209, %v4343
      %v4356 = vadd.f32 %v4210, %v4345
      %v4357 = vadd.f32 %v4211, %v4347
      %v4358 = vadd.f32 %v4212, %v4349
      %v4359 = vpack.c.bf16 %v3778, %v3776
      %v4360 = vpack.c.bf16 %v3779, %v3777
      %v4361 = vpack.c.bf16 %v3782, %v3780
      %v4362 = vpack.c.bf16 %v3783, %v3781
      %v4363 = vpack.c.bf16 %v3786, %v3784
      %v4364 = vpack.c.bf16 %v3787, %v3785
      %v4365 = vpack.c.bf16 %v3790, %v3788
      %v4366 = vpack.c.bf16 %v3791, %v3789
      %s4367 = scalar_lea.vmem %s8, 64
      %v4368 = vld [vmem:[%s4367] sm:$0xf]
      %v4369 = vld [vmem:[%s4367 + $0x4] sm:$0xf]
      %v4370 = vld [vmem:[%s4367 + $0x8] sm:$0xf]
      %v4371 = vld [vmem:[%s4367 + $0xc] sm:$0xf]
      %v4376 = vunpack.c.l.b16 %v4368
      %v4377 = vunpack.c.l.b16 %v4369
      %v4378 = vunpack.c.l.b16 %v4370
      %v4379 = vunpack.c.l.b16 %v4371
      %v4380 = vpack.c.b16 %v4377, %v4376
      %v4381 = vpack.c.b16 %v4379, %v4378
      %v4383 = vsel %vm1673, %v4380, 0
      %v4386 = vsel %vm1673, %v4381, 0
      %4388 = vmatprep.subr.bf16.mxu0 0
      %4389 = vmatpush1.bf16.msra.mxu0 0
      %4390 = vmatprep.subr.bf16.mxu0 0
      %4391 = vmatpush1.bf16.msra.mxu0 0
      %4392 = vmatprep.subr.bf16.mxu0 0
      %4393 = vmatpush1.bf16.msra.mxu0 0
      %4394 = vmatprep.subr.bf16.mxu0 0
      %4395 = vmatpush1.bf16.msra.mxu0 0
      %4396 = vmatprep.subr.bf16.mxu0 %v4366
      %4397 = vmatpush1.bf16.msra.mxu0 %v4365
      %4398 = vmatprep.subr.bf16.mxu0 %v4364
      %4399 = vmatpush1.bf16.msra.mxu0 %v4363
      %4400 = vmatprep.subr.bf16.mxu0 %v4362
      %4401 = vmatpush1.bf16.msra.mxu0 %v4361
      %4402 = vmatprep.subr.bf16.mxu0 %v4360
      %4403 = vmatpush1.bf16.msra.mxu0 %v4359
      %4404 = vmatprep.subr.bf16.mxu0 0
      %4405 = vmatpush2.bf16.msra.mxu0 0
      %4406 = vmatprep.subr.bf16.mxu0 0
      %4407 = vmatpush2.bf16.msra.mxu0 0
      %4408 = vmatprep.subr.bf16.mxu0 0
      %4409 = vmatpush2.bf16.msra.mxu0 0
      %4410 = vmatprep.subr.bf16.mxu0 0
      %4411 = vmatpush2.bf16.msra.mxu0 0
      %4412 = vmatprep.subr.bf16.mxu0 0
      %4413 = vmatpush2.bf16.msra.mxu0 0
      %4414 = vmatprep.subr.bf16.mxu0 0
      %4415 = vmatpush2.bf16.msra.mxu0 0
      %4416 = vmatprep.subr.bf16.mxu0 0
      %4417 = vmatpush2.bf16.msra.mxu0 0
      %4418 = vmatprep.subr.bf16.mxu0 0
      %4419 = vmatpush2.bf16.msra.mxu0 0
      %4420 = vmatprep.mubr.bf16.mxu0 0
      %4421 = vmatmul.mubr.bf16.gmra.mxu0 %v4383
      %v4422 = vpop.f32.mrf.mxu0
      %v4423 = vadd.f32 0.0, %v4422
      %v4424 = vpop.f32.mrf.mxu0
      %v4425 = vadd.f32 0.0, %v4424
      %v4426 = vpop.f32.mrf.mxu0
      %v4427 = vadd.f32 0.0, %v4426
      %v4428 = vpop.f32.mrf.mxu0
      %v4429 = vadd.f32 0.0, %v4428
      %4430 = vmatprep.mubr.bf16.mxu0 0
      %4431 = vmatmul.mubr.bf16.gmra.mxu0 %v4386
      %v4432 = vpop.f32.mrf.mxu0
      %v4433 = vadd.f32 0.0, %v4432
      %v4434 = vpop.f32.mrf.mxu0
      %v4435 = vadd.f32 0.0, %v4434
      %v4436 = vpop.f32.mrf.mxu0
      %v4437 = vadd.f32 0.0, %v4436
      %v4438 = vpop.f32.mrf.mxu0
      %v4439 = vadd.f32 0.0, %v4438
      %4440 = vdwg.mxu0
      %v4441 = vadd.f32 %v4351, %v4423
      %v4442 = vadd.f32 %v4352, %v4425
      %v4443 = vadd.f32 %v4353, %v4427
      %v4444 = vadd.f32 %v4354, %v4429
      %v4445 = vadd.f32 %v4355, %v4433
      %v4446 = vadd.f32 %v4356, %v4435
      %v4447 = vadd.f32 %v4357, %v4437
      %v4448 = vadd.f32 %v4358, %v4439
      %4449 = vrot.lane.b32.xlu0 %v3776, 127
      %v4450 = vpop.permute.xlu0 %4449
      %4451 = vrot.lane.b32.xlu0 %v3778, 127
      %v4452 = vpop.permute.xlu0 %4451
      %4453 = vrot.lane.b32.xlu0 %v3780, 127
      %v4454 = vpop.permute.xlu0 %4453
      %4455 = vrot.lane.b32.xlu0 %v3782, 127
      %v4456 = vpop.permute.xlu0 %4455
      %4457 = vrot.lane.b32.xlu0 %v3784, 127
      %v4458 = vpop.permute.xlu0 %4457
      %4459 = vrot.lane.b32.xlu0 %v3786, 127
      %v4460 = vpop.permute.xlu0 %4459
      %4461 = vrot.lane.b32.xlu0 %v3788, 127
      %v4462 = vpop.permute.xlu0 %4461
      %4463 = vrot.lane.b32.xlu0 %v3790, 127
      %v4464 = vpop.permute.xlu0 %4463
      %4465 = vrot.lane.b32.xlu0 %v3777, 127
      %v4466 = vpop.permute.xlu0 %4465
      %4467 = vrot.lane.b32.xlu0 %v3779, 127
      %v4468 = vpop.permute.xlu0 %4467
      %4469 = vrot.lane.b32.xlu0 %v3781, 127
      %v4470 = vpop.permute.xlu0 %4469
      %4471 = vrot.lane.b32.xlu0 %v3783, 127
      %v4472 = vpop.permute.xlu0 %4471
      %4473 = vrot.lane.b32.xlu0 %v3785, 127
      %v4474 = vpop.permute.xlu0 %4473
      %4475 = vrot.lane.b32.xlu0 %v3787, 127
      %v4476 = vpop.permute.xlu0 %4475
      %4477 = vrot.lane.b32.xlu0 %v3789, 127
      %v4478 = vpop.permute.xlu0 %4477
      %4479 = vrot.lane.b32.xlu0 %v3791, 127
      %v4480 = vpop.permute.xlu0 %4479
      %v4481 = vsel %vm1065, %v4450, %v4466
      %v4482 = vsel %vm1065, %v4452, %v4468
      %v4483 = vsel %vm1065, %v4454, %v4470
      %v4484 = vsel %vm1065, %v4456, %v4472
      %v4485 = vsel %vm1065, %v4458, %v4474
      %v4486 = vsel %vm1065, %v4460, %v4476
      %v4487 = vsel %vm1065, %v4462, %v4478
      %v4488 = vsel %vm1065, %v4464, %v4480
      %v4489 = vsel %vm1065, %v4466, %v4450
      %v4490 = vsel %vm1065, %v4468, %v4452
      %v4491 = vsel %vm1065, %v4470, %v4454
      %v4492 = vsel %vm1065, %v4472, %v4456
      %v4493 = vsel %vm1065, %v4474, %v4458
      %v4494 = vsel %vm1065, %v4476, %v4460
      %v4495 = vsel %vm1065, %v4478, %v4462
      %v4496 = vsel %vm1065, %v4480, %v4464
      %v4497 = vpack.c.bf16 %v4482, %v4481
      %v4498 = vpack.c.bf16 %v4490, %v4489
      %v4499 = vpack.c.bf16 %v4484, %v4483
      %v4500 = vpack.c.bf16 %v4492, %v4491
      %v4501 = vpack.c.bf16 %v4486, %v4485
      %v4502 = vpack.c.bf16 %v4494, %v4493
      %v4503 = vpack.c.bf16 %v4488, %v4487
      %v4504 = vpack.c.bf16 %v4496, %v4495
      %v4505 = vmul.bf16 %v4497, %v2873
      %v4506 = vmul.bf16 %v4498, %v2880
      %v4507 = vmul.bf16 %v4499, %v2873
      %v4508 = vmul.bf16 %v4500, %v2880
      %v4509 = vmul.bf16 %v4501, %v2873
      %v4510 = vmul.bf16 %v4502, %v2880
      %v4511 = vmul.bf16 %v4503, %v2873
      %v4512 = vmul.bf16 %v4504, %v2880
      %s4513 = scalar_lea.vmem %s8, 80
      %v4514 = vld [vmem:[%s4513] sm:$0xf]
      %v4515 = vld [vmem:[%s4513 + $0x4] sm:$0xf]
      %v4516 = vld [vmem:[%s4513 + $0x8] sm:$0xf]
      %v4517 = vld [vmem:[%s4513 + $0xc] sm:$0xf]
      %v4522 = vunpack.c.l.b16 %v4514
      %v4523 = vunpack.c.l.b16 %v4515
      %v4524 = vunpack.c.l.b16 %v4516
      %v4525 = vunpack.c.l.b16 %v4517
      %v4526 = vpack.c.b16 %v4523, %v4522
      %v4527 = vpack.c.b16 %v4525, %v4524
      %v4529 = vsel %vm1673, %v4526, 0
      %v4532 = vsel %vm1673, %v4527, 0
      %4534 = vmatprep.subr.bf16.mxu0 0
      %4535 = vmatpush1.bf16.msra.mxu0 0
      %4536 = vmatprep.subr.bf16.mxu0 0
      %4537 = vmatpush1.bf16.msra.mxu0 0
      %4538 = vmatprep.subr.bf16.mxu0 0
      %4539 = vmatpush1.bf16.msra.mxu0 0
      %4540 = vmatprep.subr.bf16.mxu0 0
      %4541 = vmatpush1.bf16.msra.mxu0 0
      %4542 = vmatprep.subr.bf16.mxu0 %v4512
      %4543 = vmatpush1.bf16.msra.mxu0 %v4511
      %4544 = vmatprep.subr.bf16.mxu0 %v4510
      %4545 = vmatpush1.bf16.msra.mxu0 %v4509
      %4546 = vmatprep.subr.bf16.mxu0 %v4508
      %4547 = vmatpush1.bf16.msra.mxu0 %v4507
      %4548 = vmatprep.subr.bf16.mxu0 %v4506
      %4549 = vmatpush1.bf16.msra.mxu0 %v4505
      %4550 = vmatprep.subr.bf16.mxu0 0
      %4551 = vmatpush2.bf16.msra.mxu0 0
      %4552 = vmatprep.subr.bf16.mxu0 0
      %4553 = vmatpush2.bf16.msra.mxu0 0
      %4554 = vmatprep.subr.bf16.mxu0 0
      %4555 = vmatpush2.bf16.msra.mxu0 0
      %4556 = vmatprep.subr.bf16.mxu0 0
      %4557 = vmatpush2.bf16.msra.mxu0 0
      %4558 = vmatprep.subr.bf16.mxu0 0
      %4559 = vmatpush2.bf16.msra.mxu0 0
      %4560 = vmatprep.subr.bf16.mxu0 0
      %4561 = vmatpush2.bf16.msra.mxu0 0
      %4562 = vmatprep.subr.bf16.mxu0 0
      %4563 = vmatpush2.bf16.msra.mxu0 0
      %4564 = vmatprep.subr.bf16.mxu0 0
      %4565 = vmatpush2.bf16.msra.mxu0 0
      %4566 = vmatprep.mubr.bf16.mxu0 0
      %4567 = vmatmul.mubr.bf16.gmra.mxu0 %v4529
      %v4568 = vpop.f32.mrf.mxu0
      %v4569 = vadd.f32 0.0, %v4568
      %v4570 = vpop.f32.mrf.mxu0
      %v4571 = vadd.f32 0.0, %v4570
      %v4572 = vpop.f32.mrf.mxu0
      %v4573 = vadd.f32 0.0, %v4572
      %v4574 = vpop.f32.mrf.mxu0
      %v4575 = vadd.f32 0.0, %v4574
      %4576 = vmatprep.mubr.bf16.mxu0 0
      %4577 = vmatmul.mubr.bf16.gmra.mxu0 %v4532
      %v4578 = vpop.f32.mrf.mxu0
      %v4579 = vadd.f32 0.0, %v4578
      %v4580 = vpop.f32.mrf.mxu0
      %v4581 = vadd.f32 0.0, %v4580
      %v4582 = vpop.f32.mrf.mxu0
      %v4583 = vadd.f32 0.0, %v4582
      %v4584 = vpop.f32.mrf.mxu0
      %v4585 = vadd.f32 0.0, %v4584
      %4586 = vdwg.mxu0
      %v4587 = vadd.f32 %v4441, %v4569
      %v4588 = vadd.f32 %v4442, %v4571
      %v4589 = vadd.f32 %v4443, %v4573
      %v4590 = vadd.f32 %v4444, %v4575
      %v4591 = vadd.f32 %v4445, %v4579
      %v4592 = vadd.f32 %v4446, %v4581
      %v4593 = vadd.f32 %v4447, %v4583
      %v4594 = vadd.f32 %v4448, %v4585
      %4595 = vrot.lane.b32.xlu0 %v3776, 113
      %v4596 = vpop.permute.xlu0 %4595
      %4597 = vrot.lane.b32.xlu0 %v3778, 113
      %v4598 = vpop.permute.xlu0 %4597
      %4599 = vrot.lane.b32.xlu0 %v3780, 113
      %v4600 = vpop.permute.xlu0 %4599
      %4601 = vrot.lane.b32.xlu0 %v3782, 113
      %v4602 = vpop.permute.xlu0 %4601
      %4603 = vrot.lane.b32.xlu0 %v3784, 113
      %v4604 = vpop.permute.xlu0 %4603
      %4605 = vrot.lane.b32.xlu0 %v3786, 113
      %v4606 = vpop.permute.xlu0 %4605
      %4607 = vrot.lane.b32.xlu0 %v3788, 113
      %v4608 = vpop.permute.xlu0 %4607
      %4609 = vrot.lane.b32.xlu0 %v3790, 113
      %v4610 = vpop.permute.xlu0 %4609
      %4611 = vrot.lane.b32.xlu0 %v3777, 113
      %v4612 = vpop.permute.xlu0 %4611
      %4613 = vrot.lane.b32.xlu0 %v3779, 113
      %v4614 = vpop.permute.xlu0 %4613
      %4615 = vrot.lane.b32.xlu0 %v3781, 113
      %v4616 = vpop.permute.xlu0 %4615
      %4617 = vrot.lane.b32.xlu0 %v3783, 113
      %v4618 = vpop.permute.xlu0 %4617
      %4619 = vrot.lane.b32.xlu0 %v3785, 113
      %v4620 = vpop.permute.xlu0 %4619
      %4621 = vrot.lane.b32.xlu0 %v3787, 113
      %v4622 = vpop.permute.xlu0 %4621
      %4623 = vrot.lane.b32.xlu0 %v3789, 113
      %v4624 = vpop.permute.xlu0 %4623
      %4625 = vrot.lane.b32.xlu0 %v3791, 113
      %v4626 = vpop.permute.xlu0 %4625
      %v4627 = vsel %vm1177, %v4596, %v4612
      %v4628 = vsel %vm1177, %v4598, %v4614
      %v4629 = vsel %vm1177, %v4600, %v4616
      %v4630 = vsel %vm1177, %v4602, %v4618
      %v4631 = vsel %vm1177, %v4604, %v4620
      %v4632 = vsel %vm1177, %v4606, %v4622
      %v4633 = vsel %vm1177, %v4608, %v4624
      %v4634 = vsel %vm1177, %v4610, %v4626
      %v4635 = vsel %vm1177, %v4612, %v4596
      %v4636 = vsel %vm1177, %v4614, %v4598
      %v4637 = vsel %vm1177, %v4616, %v4600
      %v4638 = vsel %vm1177, %v4618, %v4602
      %v4639 = vsel %vm1177, %v4620, %v4604
      %v4640 = vsel %vm1177, %v4622, %v4606
      %v4641 = vsel %vm1177, %v4624, %v4608
      %v4642 = vsel %vm1177, %v4626, %v4610
      %v4643 = vpack.c.bf16 %v4628, %v4627
      %v4644 = vpack.c.bf16 %v4636, %v4635
      %v4645 = vpack.c.bf16 %v4630, %v4629
      %v4646 = vpack.c.bf16 %v4638, %v4637
      %v4647 = vpack.c.bf16 %v4632, %v4631
      %v4648 = vpack.c.bf16 %v4640, %v4639
      %v4649 = vpack.c.bf16 %v4634, %v4633
      %v4650 = vpack.c.bf16 %v4642, %v4641
      %v4651 = vmul.bf16 %v4643, %v3104
      %v4652 = vmul.bf16 %v4644, %v3111
      %v4653 = vmul.bf16 %v4645, %v3104
      %v4654 = vmul.bf16 %v4646, %v3111
      %v4655 = vmul.bf16 %v4647, %v3104
      %v4656 = vmul.bf16 %v4648, %v3111
      %v4657 = vmul.bf16 %v4649, %v3104
      %v4658 = vmul.bf16 %v4650, %v3111
      %s4659 = scalar_lea.vmem %s8, 96
      %v4660 = vld [vmem:[%s4659] sm:$0xf]
      %v4661 = vld [vmem:[%s4659 + $0x4] sm:$0xf]
      %v4662 = vld [vmem:[%s4659 + $0x8] sm:$0xf]
      %v4663 = vld [vmem:[%s4659 + $0xc] sm:$0xf]
      %v4668 = vunpack.c.l.b16 %v4660
      %v4669 = vunpack.c.l.b16 %v4661
      %v4670 = vunpack.c.l.b16 %v4662
      %v4671 = vunpack.c.l.b16 %v4663
      %v4672 = vpack.c.b16 %v4669, %v4668
      %v4673 = vpack.c.b16 %v4671, %v4670
      %v4675 = vsel %vm1673, %v4672, 0
      %v4678 = vsel %vm1673, %v4673, 0
      %4680 = vmatprep.subr.bf16.mxu0 0
      %4681 = vmatpush1.bf16.msra.mxu0 0
      %4682 = vmatprep.subr.bf16.mxu0 0
      %4683 = vmatpush1.bf16.msra.mxu0 0
      %4684 = vmatprep.subr.bf16.mxu0 0
      %4685 = vmatpush1.bf16.msra.mxu0 0
      %4686 = vmatprep.subr.bf16.mxu0 0
      %4687 = vmatpush1.bf16.msra.mxu0 0
      %4688 = vmatprep.subr.bf16.mxu0 %v4658
      %4689 = vmatpush1.bf16.msra.mxu0 %v4657
      %4690 = vmatprep.subr.bf16.mxu0 %v4656
      %4691 = vmatpush1.bf16.msra.mxu0 %v4655
      %4692 = vmatprep.subr.bf16.mxu0 %v4654
      %4693 = vmatpush1.bf16.msra.mxu0 %v4653
      %4694 = vmatprep.subr.bf16.mxu0 %v4652
      %4695 = vmatpush1.bf16.msra.mxu0 %v4651
      %4696 = vmatprep.subr.bf16.mxu0 0
      %4697 = vmatpush2.bf16.msra.mxu0 0
      %4698 = vmatprep.subr.bf16.mxu0 0
      %4699 = vmatpush2.bf16.msra.mxu0 0
      %4700 = vmatprep.subr.bf16.mxu0 0
      %4701 = vmatpush2.bf16.msra.mxu0 0
      %4702 = vmatprep.subr.bf16.mxu0 0
      %4703 = vmatpush2.bf16.msra.mxu0 0
      %4704 = vmatprep.subr.bf16.mxu0 0
      %4705 = vmatpush2.bf16.msra.mxu0 0
      %4706 = vmatprep.subr.bf16.mxu0 0
      %4707 = vmatpush2.bf16.msra.mxu0 0
      %4708 = vmatprep.subr.bf16.mxu0 0
      %4709 = vmatpush2.bf16.msra.mxu0 0
      %4710 = vmatprep.subr.bf16.mxu0 0
      %4711 = vmatpush2.bf16.msra.mxu0 0
      %4712 = vmatprep.mubr.bf16.mxu0 0
      %4713 = vmatmul.mubr.bf16.gmra.mxu0 %v4675
      %v4714 = vpop.f32.mrf.mxu0
      %v4715 = vadd.f32 0.0, %v4714
      %v4716 = vpop.f32.mrf.mxu0
      %v4717 = vadd.f32 0.0, %v4716
      %v4718 = vpop.f32.mrf.mxu0
      %v4719 = vadd.f32 0.0, %v4718
      %v4720 = vpop.f32.mrf.mxu0
      %v4721 = vadd.f32 0.0, %v4720
      %4722 = vmatprep.mubr.bf16.mxu0 0
      %4723 = vmatmul.mubr.bf16.gmra.mxu0 %v4678
      %v4724 = vpop.f32.mrf.mxu0
      %v4725 = vadd.f32 0.0, %v4724
      %v4726 = vpop.f32.mrf.mxu0
      %v4727 = vadd.f32 0.0, %v4726
      %v4728 = vpop.f32.mrf.mxu0
      %v4729 = vadd.f32 0.0, %v4728
      %v4730 = vpop.f32.mrf.mxu0
      %v4731 = vadd.f32 0.0, %v4730
      %4732 = vdwg.mxu0
      %v4733 = vadd.f32 %v4587, %v4715
      %v4734 = vadd.f32 %v4588, %v4717
      %v4735 = vadd.f32 %v4589, %v4719
      %v4736 = vadd.f32 %v4590, %v4721
      %v4737 = vadd.f32 %v4591, %v4725
      %v4738 = vadd.f32 %v4592, %v4727
      %v4739 = vadd.f32 %v4593, %v4729
      %v4740 = vadd.f32 %v4594, %v4731
      %4741 = vrot.lane.b32.xlu0 %v3776, 112
      %v4742 = vpop.permute.xlu0 %4741
      %4743 = vrot.lane.b32.xlu0 %v3778, 112
      %v4744 = vpop.permute.xlu0 %4743
      %4745 = vrot.lane.b32.xlu0 %v3780, 112
      %v4746 = vpop.permute.xlu0 %4745
      %4747 = vrot.lane.b32.xlu0 %v3782, 112
      %v4748 = vpop.permute.xlu0 %4747
      %4749 = vrot.lane.b32.xlu0 %v3784, 112
      %v4750 = vpop.permute.xlu0 %4749
      %4751 = vrot.lane.b32.xlu0 %v3786, 112
      %v4752 = vpop.permute.xlu0 %4751
      %4753 = vrot.lane.b32.xlu0 %v3788, 112
      %v4754 = vpop.permute.xlu0 %4753
      %4755 = vrot.lane.b32.xlu0 %v3790, 112
      %v4756 = vpop.permute.xlu0 %4755
      %4757 = vrot.lane.b32.xlu0 %v3777, 112
      %v4758 = vpop.permute.xlu0 %4757
      %4759 = vrot.lane.b32.xlu0 %v3779, 112
      %v4760 = vpop.permute.xlu0 %4759
      %4761 = vrot.lane.b32.xlu0 %v3781, 112
      %v4762 = vpop.permute.xlu0 %4761
      %4763 = vrot.lane.b32.xlu0 %v3783, 112
      %v4764 = vpop.permute.xlu0 %4763
      %4765 = vrot.lane.b32.xlu0 %v3785, 112
      %v4766 = vpop.permute.xlu0 %4765
      %4767 = vrot.lane.b32.xlu0 %v3787, 112
      %v4768 = vpop.permute.xlu0 %4767
      %4769 = vrot.lane.b32.xlu0 %v3789, 112
      %v4770 = vpop.permute.xlu0 %4769
      %4771 = vrot.lane.b32.xlu0 %v3791, 112
      %v4772 = vpop.permute.xlu0 %4771
      %v4773 = vsel %vm1289, %v4742, %v4758
      %v4774 = vsel %vm1289, %v4744, %v4760
      %v4775 = vsel %vm1289, %v4746, %v4762
      %v4776 = vsel %vm1289, %v4748, %v4764
      %v4777 = vsel %vm1289, %v4750, %v4766
      %v4778 = vsel %vm1289, %v4752, %v4768
      %v4779 = vsel %vm1289, %v4754, %v4770
      %v4780 = vsel %vm1289, %v4756, %v4772
      %v4781 = vsel %vm1289, %v4758, %v4742
      %v4782 = vsel %vm1289, %v4760, %v4744
      %v4783 = vsel %vm1289, %v4762, %v4746
      %v4784 = vsel %vm1289, %v4764, %v4748
      %v4785 = vsel %vm1289, %v4766, %v4750
      %v4786 = vsel %vm1289, %v4768, %v4752
      %v4787 = vsel %vm1289, %v4770, %v4754
      %v4788 = vsel %vm1289, %v4772, %v4756
      %v4789 = vpack.c.bf16 %v4774, %v4773
      %v4790 = vpack.c.bf16 %v4782, %v4781
      %v4791 = vpack.c.bf16 %v4776, %v4775
      %v4792 = vpack.c.bf16 %v4784, %v4783
      %v4793 = vpack.c.bf16 %v4778, %v4777
      %v4794 = vpack.c.bf16 %v4786, %v4785
      %v4795 = vpack.c.bf16 %v4780, %v4779
      %v4796 = vpack.c.bf16 %v4788, %v4787
      %v4797 = vmul.bf16 %v4789, %v3335
      %v4798 = vmul.bf16 %v4790, %v3342
      %v4799 = vmul.bf16 %v4791, %v3335
      %v4800 = vmul.bf16 %v4792, %v3342
      %v4801 = vmul.bf16 %v4793, %v3335
      %v4802 = vmul.bf16 %v4794, %v3342
      %v4803 = vmul.bf16 %v4795, %v3335
      %v4804 = vmul.bf16 %v4796, %v3342
      %s4805 = scalar_lea.vmem %s8, 112
      %v4806 = vld [vmem:[%s4805] sm:$0xf]
      %v4807 = vld [vmem:[%s4805 + $0x4] sm:$0xf]
      %v4808 = vld [vmem:[%s4805 + $0x8] sm:$0xf]
      %v4809 = vld [vmem:[%s4805 + $0xc] sm:$0xf]
      %v4814 = vunpack.c.l.b16 %v4806
      %v4815 = vunpack.c.l.b16 %v4807
      %v4816 = vunpack.c.l.b16 %v4808
      %v4817 = vunpack.c.l.b16 %v4809
      %v4818 = vpack.c.b16 %v4815, %v4814
      %v4819 = vpack.c.b16 %v4817, %v4816
      %v4821 = vsel %vm1673, %v4818, 0
      %v4824 = vsel %vm1673, %v4819, 0
      %4826 = vmatprep.subr.bf16.mxu0 0
      %4827 = vmatpush1.bf16.msra.mxu0 0
      %4828 = vmatprep.subr.bf16.mxu0 0
      %4829 = vmatpush1.bf16.msra.mxu0 0
      %4830 = vmatprep.subr.bf16.mxu0 0
      %4831 = vmatpush1.bf16.msra.mxu0 0
      %4832 = vmatprep.subr.bf16.mxu0 0
      %4833 = vmatpush1.bf16.msra.mxu0 0
      %4834 = vmatprep.subr.bf16.mxu0 %v4804
      %4835 = vmatpush1.bf16.msra.mxu0 %v4803
      %4836 = vmatprep.subr.bf16.mxu0 %v4802
      %4837 = vmatpush1.bf16.msra.mxu0 %v4801
      %4838 = vmatprep.subr.bf16.mxu0 %v4800
      %4839 = vmatpush1.bf16.msra.mxu0 %v4799
      %4840 = vmatprep.subr.bf16.mxu0 %v4798
      %4841 = vmatpush1.bf16.msra.mxu0 %v4797
      %4842 = vmatprep.subr.bf16.mxu0 0
      %4843 = vmatpush2.bf16.msra.mxu0 0
      %4844 = vmatprep.subr.bf16.mxu0 0
      %4845 = vmatpush2.bf16.msra.mxu0 0
      %4846 = vmatprep.subr.bf16.mxu0 0
      %4847 = vmatpush2.bf16.msra.mxu0 0
      %4848 = vmatprep.subr.bf16.mxu0 0
      %4849 = vmatpush2.bf16.msra.mxu0 0
      %4850 = vmatprep.subr.bf16.mxu0 0
      %4851 = vmatpush2.bf16.msra.mxu0 0
      %4852 = vmatprep.subr.bf16.mxu0 0
      %4853 = vmatpush2.bf16.msra.mxu0 0
      %4854 = vmatprep.subr.bf16.mxu0 0
      %4855 = vmatpush2.bf16.msra.mxu0 0
      %4856 = vmatprep.subr.bf16.mxu0 0
      %4857 = vmatpush2.bf16.msra.mxu0 0
      %4858 = vmatprep.mubr.bf16.mxu0 0
      %4859 = vmatmul.mubr.bf16.gmra.mxu0 %v4821
      %v4860 = vpop.f32.mrf.mxu0
      %v4861 = vadd.f32 0.0, %v4860
      %v4862 = vpop.f32.mrf.mxu0
      %v4863 = vadd.f32 0.0, %v4862
      %v4864 = vpop.f32.mrf.mxu0
      %v4865 = vadd.f32 0.0, %v4864
      %v4866 = vpop.f32.mrf.mxu0
      %v4867 = vadd.f32 0.0, %v4866
      %4868 = vmatprep.mubr.bf16.mxu0 0
      %4869 = vmatmul.mubr.bf16.gmra.mxu0 %v4824
      %v4870 = vpop.f32.mrf.mxu0
      %v4871 = vadd.f32 0.0, %v4870
      %v4872 = vpop.f32.mrf.mxu0
      %v4873 = vadd.f32 0.0, %v4872
      %v4874 = vpop.f32.mrf.mxu0
      %v4875 = vadd.f32 0.0, %v4874
      %v4876 = vpop.f32.mrf.mxu0
      %v4877 = vadd.f32 0.0, %v4876
      %4878 = vdwg.mxu0
      %v4879 = vadd.f32 %v4733, %v4861
      %v4880 = vadd.f32 %v4734, %v4863
      %v4881 = vadd.f32 %v4735, %v4865
      %v4882 = vadd.f32 %v4736, %v4867
      %v4883 = vadd.f32 %v4737, %v4871
      %v4884 = vadd.f32 %v4738, %v4873
      %v4885 = vadd.f32 %v4739, %v4875
      %v4886 = vadd.f32 %v4740, %v4877
      %4887 = vrot.lane.b32.xlu0 %v3776, 111
      %v4888 = vpop.permute.xlu0 %4887
      %4889 = vrot.lane.b32.xlu0 %v3778, 111
      %v4890 = vpop.permute.xlu0 %4889
      %4891 = vrot.lane.b32.xlu0 %v3780, 111
      %v4892 = vpop.permute.xlu0 %4891
      %4893 = vrot.lane.b32.xlu0 %v3782, 111
      %v4894 = vpop.permute.xlu0 %4893
      %4895 = vrot.lane.b32.xlu0 %v3784, 111
      %v4896 = vpop.permute.xlu0 %4895
      %4897 = vrot.lane.b32.xlu0 %v3786, 111
      %v4898 = vpop.permute.xlu0 %4897
      %4899 = vrot.lane.b32.xlu0 %v3788, 111
      %v4900 = vpop.permute.xlu0 %4899
      %4901 = vrot.lane.b32.xlu0 %v3790, 111
      %v4902 = vpop.permute.xlu0 %4901
      %4903 = vrot.lane.b32.xlu0 %v3777, 111
      %v4904 = vpop.permute.xlu0 %4903
      %4905 = vrot.lane.b32.xlu0 %v3779, 111
      %v4906 = vpop.permute.xlu0 %4905
      %4907 = vrot.lane.b32.xlu0 %v3781, 111
      %v4908 = vpop.permute.xlu0 %4907
      %4909 = vrot.lane.b32.xlu0 %v3783, 111
      %v4910 = vpop.permute.xlu0 %4909
      %4911 = vrot.lane.b32.xlu0 %v3785, 111
      %v4912 = vpop.permute.xlu0 %4911
      %4913 = vrot.lane.b32.xlu0 %v3787, 111
      %v4914 = vpop.permute.xlu0 %4913
      %4915 = vrot.lane.b32.xlu0 %v3789, 111
      %v4916 = vpop.permute.xlu0 %4915
      %4917 = vrot.lane.b32.xlu0 %v3791, 111
      %v4918 = vpop.permute.xlu0 %4917
      %v4919 = vsel %vm1401, %v4888, %v4904
      %v4920 = vsel %vm1401, %v4890, %v4906
      %v4921 = vsel %vm1401, %v4892, %v4908
      %v4922 = vsel %vm1401, %v4894, %v4910
      %v4923 = vsel %vm1401, %v4896, %v4912
      %v4924 = vsel %vm1401, %v4898, %v4914
      %v4925 = vsel %vm1401, %v4900, %v4916
      %v4926 = vsel %vm1401, %v4902, %v4918
      %v4927 = vsel %vm1401, %v4904, %v4888
      %v4928 = vsel %vm1401, %v4906, %v4890
      %v4929 = vsel %vm1401, %v4908, %v4892
      %v4930 = vsel %vm1401, %v4910, %v4894
      %v4931 = vsel %vm1401, %v4912, %v4896
      %v4932 = vsel %vm1401, %v4914, %v4898
      %v4933 = vsel %vm1401, %v4916, %v4900
      %v4934 = vsel %vm1401, %v4918, %v4902
      %v4935 = vpack.c.bf16 %v4920, %v4919
      %v4936 = vpack.c.bf16 %v4928, %v4927
      %v4937 = vpack.c.bf16 %v4922, %v4921
      %v4938 = vpack.c.bf16 %v4930, %v4929
      %v4939 = vpack.c.bf16 %v4924, %v4923
      %v4940 = vpack.c.bf16 %v4932, %v4931
      %v4941 = vpack.c.bf16 %v4926, %v4925
      %v4942 = vpack.c.bf16 %v4934, %v4933
      %v4943 = vmul.bf16 %v4935, %v3566
      %v4944 = vmul.bf16 %v4936, %v3573
      %v4945 = vmul.bf16 %v4937, %v3566
      %v4946 = vmul.bf16 %v4938, %v3573
      %v4947 = vmul.bf16 %v4939, %v3566
      %v4948 = vmul.bf16 %v4940, %v3573
      %v4949 = vmul.bf16 %v4941, %v3566
      %v4950 = vmul.bf16 %v4942, %v3573
      %s4951 = scalar_lea.vmem %s8, 128
      %v4952 = vld [vmem:[%s4951] sm:$0xf]
      %v4953 = vld [vmem:[%s4951 + $0x4] sm:$0xf]
      %v4954 = vld [vmem:[%s4951 + $0x8] sm:$0xf]
      %v4955 = vld [vmem:[%s4951 + $0xc] sm:$0xf]
      %v4960 = vunpack.c.l.b16 %v4952
      %v4961 = vunpack.c.l.b16 %v4953
      %v4962 = vunpack.c.l.b16 %v4954
      %v4963 = vunpack.c.l.b16 %v4955
      %v4964 = vpack.c.b16 %v4961, %v4960
      %v4965 = vpack.c.b16 %v4963, %v4962
      %v4967 = vsel %vm1673, %v4964, 0
      %v4970 = vsel %vm1673, %v4965, 0
      %4972 = vmatprep.subr.bf16.mxu0 0
      %4973 = vmatpush1.bf16.msra.mxu0 0
      %4974 = vmatprep.subr.bf16.mxu0 0
      %4975 = vmatpush1.bf16.msra.mxu0 0
      %4976 = vmatprep.subr.bf16.mxu0 0
      %4977 = vmatpush1.bf16.msra.mxu0 0
      %4978 = vmatprep.subr.bf16.mxu0 0
      %4979 = vmatpush1.bf16.msra.mxu0 0
      %4980 = vmatprep.subr.bf16.mxu0 %v4950
      %4981 = vmatpush1.bf16.msra.mxu0 %v4949
      %4982 = vmatprep.subr.bf16.mxu0 %v4948
      %4983 = vmatpush1.bf16.msra.mxu0 %v4947
      %4984 = vmatprep.subr.bf16.mxu0 %v4946
      %4985 = vmatpush1.bf16.msra.mxu0 %v4945
      %4986 = vmatprep.subr.bf16.mxu0 %v4944
      %4987 = vmatpush1.bf16.msra.mxu0 %v4943
      %4988 = vmatprep.subr.bf16.mxu0 0
      %4989 = vmatpush2.bf16.msra.mxu0 0
      %4990 = vmatprep.subr.bf16.mxu0 0
      %4991 = vmatpush2.bf16.msra.mxu0 0
      %4992 = vmatprep.subr.bf16.mxu0 0
      %4993 = vmatpush2.bf16.msra.mxu0 0
      %4994 = vmatprep.subr.bf16.mxu0 0
      %4995 = vmatpush2.bf16.msra.mxu0 0
      %4996 = vmatprep.subr.bf16.mxu0 0
      %4997 = vmatpush2.bf16.msra.mxu0 0
      %4998 = vmatprep.subr.bf16.mxu0 0
      %4999 = vmatpush2.bf16.msra.mxu0 0
      %5000 = vmatprep.subr.bf16.mxu0 0
      %5001 = vmatpush2.bf16.msra.mxu0 0
      %5002 = vmatprep.subr.bf16.mxu0 0
      %5003 = vmatpush2.bf16.msra.mxu0 0
      %5004 = vmatprep.mubr.bf16.mxu0 0
      %5005 = vmatmul.mubr.bf16.gmra.mxu0 %v4967
      %v5006 = vpop.f32.mrf.mxu0
      %v5007 = vadd.f32 0.0, %v5006
      %v5008 = vpop.f32.mrf.mxu0
      %v5009 = vadd.f32 0.0, %v5008
      %v5010 = vpop.f32.mrf.mxu0
      %v5011 = vadd.f32 0.0, %v5010
      %v5012 = vpop.f32.mrf.mxu0
      %v5013 = vadd.f32 0.0, %v5012
      %5014 = vmatprep.mubr.bf16.mxu0 0
      %5015 = vmatmul.mubr.bf16.gmra.mxu0 %v4970
      %v5016 = vpop.f32.mrf.mxu0
      %v5017 = vadd.f32 0.0, %v5016
      %v5018 = vpop.f32.mrf.mxu0
      %v5019 = vadd.f32 0.0, %v5018
      %v5020 = vpop.f32.mrf.mxu0
      %v5021 = vadd.f32 0.0, %v5020
      %v5022 = vpop.f32.mrf.mxu0
      %v5023 = vadd.f32 0.0, %v5022
      %5024 = vdwg.mxu0
      %v5025 = vadd.f32 %v4879, %v5007
      %v5026 = vadd.f32 %v4880, %v5009
      %v5027 = vadd.f32 %v4881, %v5011
      %v5028 = vadd.f32 %v4882, %v5013
      %v5029 = vadd.f32 %v4883, %v5017
      %v5030 = vadd.f32 %v4884, %v5019
      %v5031 = vadd.f32 %v4885, %v5021
      %v5032 = vadd.f32 %v4886, %v5023
      %v5033 = vld [vmem:[%s9] sm:$0xff]
      %v5034 = vld [vmem:[%s9 + $0x8] sm:$0xff]
      %v5035 = vld [vmem:[%s9 + $0x10] sm:$0xff]
      %v5036 = vld [vmem:[%s9 + $0x18] sm:$0xff]
      %5038 = vset.pattern.permute.xlu0 0
      %5039 = vperm.xlu0 %5038, %v5033
      %v5040 = vpop.permute.xlu0 %5039
      %5043 = vset.pattern.permute.xlu0 0
      %5044 = vperm.xlu0 %5043, %v5034
      %v5045 = vpop.permute.xlu0 %5044
      %5048 = vset.pattern.permute.xlu0 0
      %5049 = vperm.xlu0 %5048, %v5035
      %v5050 = vpop.permute.xlu0 %5049
      %5053 = vset.pattern.permute.xlu0 0
      %5054 = vperm.xlu0 %5053, %v5036
      %v5055 = vpop.permute.xlu0 %5054
      %v5057 = vadd.f32 %v5025, %v5040
      %v5058 = vadd.f32 %v5026, %v5040
      %v5059 = vadd.f32 %v5027, %v5045
      %v5060 = vadd.f32 %v5028, %v5045
      %v5061 = vadd.f32 %v5029, %v5050
      %v5062 = vadd.f32 %v5030, %v5050
      %v5063 = vadd.f32 %v5031, %v5055
      %v5064 = vadd.f32 %v5032, %v5055
      %v5065 = vmax.f32 %v5057, 0.0
      %v5066 = vmax.f32 %v5058, 0.0
      %v5067 = vmax.f32 %v5059, 0.0
      %v5068 = vmax.f32 %v5060, 0.0
      %v5069 = vmax.f32 %v5061, 0.0
      %v5070 = vmax.f32 %v5062, 0.0
      %v5071 = vmax.f32 %v5063, 0.0
      %v5072 = vmax.f32 %v5064, 0.0
      %v5073 = vld [vmem:[%s10] sm:$0xf]
      %v5074 = vld [vmem:[%s10 + $0x4] sm:$0xf]
      %v5075 = vld [vmem:[%s10 + $0x8] sm:$0xf]
      %v5076 = vld [vmem:[%s10 + $0xc] sm:$0xf]
      %v5077 = vld [vmem:[%s10 + $0x10] sm:$0xf]
      %v5078 = vld [vmem:[%s10 + $0x14] sm:$0xf]
      %v5079 = vld [vmem:[%s10 + $0x18] sm:$0xf]
      %v5080 = vld [vmem:[%s10 + $0x1c] sm:$0xf]
      %v5081 = vpack.c.bf16 %v5067, %v5065
      %v5082 = vpack.c.bf16 %v5068, %v5066
      %v5083 = vpack.c.bf16 %v5071, %v5069
      %v5084 = vpack.c.bf16 %v5072, %v5070
      %v5085 = vld [vmem:[%s11] sm:$0xff]
      %v5086 = vld [vmem:[%s11 + $0x8] sm:$0xff]
      %v5087 = vld [vmem:[%s11 + $0x10] sm:$0xff]
      %v5088 = vld [vmem:[%s11 + $0x18] sm:$0xff]
      %v5089 = vld [vmem:[%s11 + $0x20] sm:$0xff]
      %v5090 = vld [vmem:[%s11 + $0x28] sm:$0xff]
      %v5091 = vld [vmem:[%s11 + $0x30] sm:$0xff]
      %v5092 = vld [vmem:[%s11 + $0x38] sm:$0xff]
      %5094 = vset.pattern.permute.xlu0 0
      %5095 = vperm.xlu0 %5094, %v5085
      %v5096 = vpop.permute.xlu0 %5095
      %5099 = vset.pattern.permute.xlu0 0
      %5100 = vperm.xlu0 %5099, %v5086
      %v5101 = vpop.permute.xlu0 %5100
      %5104 = vset.pattern.permute.xlu0 0
      %5105 = vperm.xlu0 %5104, %v5087
      %v5106 = vpop.permute.xlu0 %5105
      %5109 = vset.pattern.permute.xlu0 0
      %5110 = vperm.xlu0 %5109, %v5088
      %v5111 = vpop.permute.xlu0 %5110
      %5114 = vset.pattern.permute.xlu0 0
      %5115 = vperm.xlu0 %5114, %v5089
      %v5116 = vpop.permute.xlu0 %5115
      %5119 = vset.pattern.permute.xlu0 0
      %5120 = vperm.xlu0 %5119, %v5090
      %v5121 = vpop.permute.xlu0 %5120
      %5124 = vset.pattern.permute.xlu0 0
      %5125 = vperm.xlu0 %5124, %v5091
      %v5126 = vpop.permute.xlu0 %5125
      %5129 = vset.pattern.permute.xlu0 0
      %5130 = vperm.xlu0 %5129, %v5092
      %v5131 = vpop.permute.xlu0 %5130
      %v5141 = vunpack.c.l.b16 %v5073
      %v5142 = vunpack.c.l.b16 %v5074
      %v5143 = vunpack.c.l.b16 %v5075
      %v5144 = vunpack.c.l.b16 %v5076
      %v5145 = vunpack.c.l.b16 %v5077
      %v5146 = vunpack.c.l.b16 %v5078
      %v5147 = vunpack.c.l.b16 %v5079
      %v5148 = vunpack.c.l.b16 %v5080
      %v5149 = vpack.c.b16 %v5142, %v5141
      %v5150 = vpack.c.b16 %v5144, %v5143
      %v5151 = vpack.c.b16 %v5146, %v5145
      %v5152 = vpack.c.b16 %v5148, %v5147
      %vm5153 = vcmask 261120
      %v5155 = vsel %vm5153, %v5149, 0
      %v5158 = vsel %vm5153, %v5150, 0
      %v5161 = vsel %vm5153, %v5151, 0
      %v5164 = vsel %vm5153, %v5152, 0
      %5166 = vmatprep.subr.bf16.mxu0 0
      %5167 = vmatpush1.bf16.msra.mxu0 0
      %5168 = vmatprep.subr.bf16.mxu0 0
      %5169 = vmatpush1.bf16.msra.mxu0 0
      %5170 = vmatprep.subr.bf16.mxu0 0
      %5171 = vmatpush1.bf16.msra.mxu0 0
      %5172 = vmatprep.subr.bf16.mxu0 0
      %5173 = vmatpush1.bf16.msra.mxu0 0
      %5174 = vmatprep.subr.bf16.mxu0 0
      %5175 = vmatpush1.bf16.msra.mxu0 0
      %5176 = vmatprep.subr.bf16.mxu0 0
      %5177 = vmatpush1.bf16.msra.mxu0 0
      %5178 = vmatprep.subr.bf16.mxu0 %v5084
      %5179 = vmatpush1.bf16.msra.mxu0 %v5083
      %5180 = vmatprep.subr.bf16.mxu0 %v5082
      %5181 = vmatpush1.bf16.msra.mxu0 %v5081
      %5182 = vmatprep.subr.bf16.mxu0 0
      %5183 = vmatpush2.bf16.msra.mxu0 0
      %5184 = vmatprep.subr.bf16.mxu0 0
      %5185 = vmatpush2.bf16.msra.mxu0 0
      %5186 = vmatprep.subr.bf16.mxu0 0
      %5187 = vmatpush2.bf16.msra.mxu0 0
      %5188 = vmatprep.subr.bf16.mxu0 0
      %5189 = vmatpush2.bf16.msra.mxu0 0
      %5190 = vmatprep.subr.bf16.mxu0 0
      %5191 = vmatpush2.bf16.msra.mxu0 0
      %5192 = vmatprep.subr.bf16.mxu0 0
      %5193 = vmatpush2.bf16.msra.mxu0 0
      %5194 = vmatprep.subr.bf16.mxu0 0
      %5195 = vmatpush2.bf16.msra.mxu0 0
      %5196 = vmatprep.subr.bf16.mxu0 0
      %5197 = vmatpush2.bf16.msra.mxu0 0
      %5198 = vmatprep.mubr.bf16.mxu0 0
      %5199 = vmatmul.mubr.bf16.gmra.mxu0 %v5155
      %v5200 = vpop.f32.mrf.mxu0
      %v5201 = vadd.f32 %v5096, %v5200
      %v5202 = vpop.f32.mrf.mxu0
      %v5203 = vadd.f32 %v5096, %v5202
      %v5204 = vpop.f32.mrf.mxu0
      %v5205 = vadd.f32 %v5101, %v5204
      %v5206 = vpop.f32.mrf.mxu0
      %v5207 = vadd.f32 %v5101, %v5206
      %5208 = vmatprep.mubr.bf16.mxu0 0
      %5209 = vmatmul.mubr.bf16.gmra.mxu0 %v5158
      %v5210 = vpop.f32.mrf.mxu0
      %v5211 = vadd.f32 %v5106, %v5210
      %v5212 = vpop.f32.mrf.mxu0
      %v5213 = vadd.f32 %v5106, %v5212
      %v5214 = vpop.f32.mrf.mxu0
      %v5215 = vadd.f32 %v5111, %v5214
      %v5216 = vpop.f32.mrf.mxu0
      %v5217 = vadd.f32 %v5111, %v5216
      %5218 = vmatprep.mubr.bf16.mxu0 0
      %5219 = vmatmul.mubr.bf16.gmra.mxu0 %v5161
      %v5220 = vpop.f32.mrf.mxu0
      %v5221 = vadd.f32 %v5116, %v5220
      %v5222 = vpop.f32.mrf.mxu0
      %v5223 = vadd.f32 %v5116, %v5222
      %v5224 = vpop.f32.mrf.mxu0
      %v5225 = vadd.f32 %v5121, %v5224
      %v5226 = vpop.f32.mrf.mxu0
      %v5227 = vadd.f32 %v5121, %v5226
      %5228 = vmatprep.mubr.bf16.mxu0 0
      %5229 = vmatmul.mubr.bf16.gmra.mxu0 %v5164
      %v5230 = vpop.f32.mrf.mxu0
      %v5231 = vadd.f32 %v5126, %v5230
      %v5232 = vpop.f32.mrf.mxu0
      %v5233 = vadd.f32 %v5126, %v5232
      %v5234 = vpop.f32.mrf.mxu0
      %v5235 = vadd.f32 %v5131, %v5234
      %v5236 = vpop.f32.mrf.mxu0
      %v5237 = vadd.f32 %v5131, %v5236
      %5238 = vdwg.mxu0
      %5239 = vrot.lane.b32.xlu0 %v5201, 17
      %v5240 = vpop.permute.xlu0 %5239
      %5241 = vrot.lane.b32.xlu0 %v5205, 17
      %v5242 = vpop.permute.xlu0 %5241
      %5243 = vrot.lane.b32.xlu0 %v5211, 17
      %v5244 = vpop.permute.xlu0 %5243
      %5245 = vrot.lane.b32.xlu0 %v5215, 17
      %v5246 = vpop.permute.xlu0 %5245
      %5247 = vrot.lane.b32.xlu0 %v5221, 17
      %v5248 = vpop.permute.xlu0 %5247
      %5249 = vrot.lane.b32.xlu0 %v5225, 17
      %v5250 = vpop.permute.xlu0 %5249
      %5251 = vrot.lane.b32.xlu0 %v5231, 17
      %v5252 = vpop.permute.xlu0 %5251
      %5253 = vrot.lane.b32.xlu0 %v5235, 17
      %v5254 = vpop.permute.xlu0 %5253
      %5255 = vrot.lane.b32.xlu0 %v5203, 17
      %v5256 = vpop.permute.xlu0 %5255
      %5257 = vrot.lane.b32.xlu0 %v5207, 17
      %v5258 = vpop.permute.xlu0 %5257
      %5259 = vrot.lane.b32.xlu0 %v5213, 17
      %v5260 = vpop.permute.xlu0 %5259
      %5261 = vrot.lane.b32.xlu0 %v5217, 17
      %v5262 = vpop.permute.xlu0 %5261
      %5263 = vrot.lane.b32.xlu0 %v5223, 17
      %v5264 = vpop.permute.xlu0 %5263
      %5265 = vrot.lane.b32.xlu0 %v5227, 17
      %v5266 = vpop.permute.xlu0 %5265
      %5267 = vrot.lane.b32.xlu0 %v5233, 17
      %v5268 = vpop.permute.xlu0 %5267
      %5269 = vrot.lane.b32.xlu0 %v5237, 17
      %v5270 = vpop.permute.xlu0 %5269
      %v5271 = vsel %vm538, %v5240, %v5256
      %v5272 = vsel %vm538, %v5242, %v5258
      %v5273 = vsel %vm538, %v5244, %v5260
      %v5274 = vsel %vm538, %v5246, %v5262
      %v5275 = vsel %vm538, %v5248, %v5264
      %v5276 = vsel %vm538, %v5250, %v5266
      %v5277 = vsel %vm538, %v5252, %v5268
      %v5278 = vsel %vm538, %v5254, %v5270
      %v5279 = vsel %vm538, %v5256, %v5240
      %v5280 = vsel %vm538, %v5258, %v5242
      %v5281 = vsel %vm538, %v5260, %v5244
      %v5282 = vsel %vm538, %v5262, %v5246
      %v5283 = vsel %vm538, %v5264, %v5248
      %v5284 = vsel %vm538, %v5266, %v5250
      %v5285 = vsel %vm538, %v5268, %v5252
      %v5286 = vsel %vm538, %v5270, %v5254
      %v5287 = vpack.c.bf16 %v5280, %v5279
      %v5288 = vpack.c.bf16 %v5272, %v5271
      %v5289 = vpack.c.bf16 %v5282, %v5281
      %v5290 = vpack.c.bf16 %v5274, %v5273
      %v5291 = vpack.c.bf16 %v5284, %v5283
      %v5292 = vpack.c.bf16 %v5276, %v5275
      %v5293 = vpack.c.bf16 %v5286, %v5285
      %v5294 = vpack.c.bf16 %v5278, %v5277
      %v5295 = vmul.bf16 %v5287, %v1844
      %v5296 = vmul.bf16 %v5288, %v1851
      %v5297 = vmul.bf16 %v5289, %v1844
      %v5298 = vmul.bf16 %v5290, %v1851
      %v5299 = vmul.bf16 %v5291, %v1844
      %v5300 = vmul.bf16 %v5292, %v1851
      %v5301 = vmul.bf16 %v5293, %v1844
      %v5302 = vmul.bf16 %v5294, %v1851
      %v5303 = vld [vmem:[%s12] sm:$0xf]
      %v5304 = vld [vmem:[%s12 + $0x4] sm:$0xf]
      %v5305 = vld [vmem:[%s12 + $0x8] sm:$0xf]
      %v5306 = vld [vmem:[%s12 + $0xc] sm:$0xf]
      %5307 = vrot.lane.b32.xlu0 %v5201, 16
      %v5308 = vpop.permute.xlu0 %5307
      %5309 = vrot.lane.b32.xlu0 %v5205, 16
      %v5310 = vpop.permute.xlu0 %5309
      %5311 = vrot.lane.b32.xlu0 %v5211, 16
      %v5312 = vpop.permute.xlu0 %5311
      %5313 = vrot.lane.b32.xlu0 %v5215, 16
      %v5314 = vpop.permute.xlu0 %5313
      %5315 = vrot.lane.b32.xlu0 %v5221, 16
      %v5316 = vpop.permute.xlu0 %5315
      %5317 = vrot.lane.b32.xlu0 %v5225, 16
      %v5318 = vpop.permute.xlu0 %5317
      %5319 = vrot.lane.b32.xlu0 %v5231, 16
      %v5320 = vpop.permute.xlu0 %5319
      %5321 = vrot.lane.b32.xlu0 %v5235, 16
      %v5322 = vpop.permute.xlu0 %5321
      %5323 = vrot.lane.b32.xlu0 %v5203, 16
      %v5324 = vpop.permute.xlu0 %5323
      %5325 = vrot.lane.b32.xlu0 %v5207, 16
      %v5326 = vpop.permute.xlu0 %5325
      %5327 = vrot.lane.b32.xlu0 %v5213, 16
      %v5328 = vpop.permute.xlu0 %5327
      %5329 = vrot.lane.b32.xlu0 %v5217, 16
      %v5330 = vpop.permute.xlu0 %5329
      %5331 = vrot.lane.b32.xlu0 %v5223, 16
      %v5332 = vpop.permute.xlu0 %5331
      %5333 = vrot.lane.b32.xlu0 %v5227, 16
      %v5334 = vpop.permute.xlu0 %5333
      %5335 = vrot.lane.b32.xlu0 %v5233, 16
      %v5336 = vpop.permute.xlu0 %5335
      %5337 = vrot.lane.b32.xlu0 %v5237, 16
      %v5338 = vpop.permute.xlu0 %5337
      %v5339 = vsel %vm648, %v5308, %v5324
      %v5340 = vsel %vm648, %v5310, %v5326
      %v5341 = vsel %vm648, %v5312, %v5328
      %v5342 = vsel %vm648, %v5314, %v5330
      %v5343 = vsel %vm648, %v5316, %v5332
      %v5344 = vsel %vm648, %v5318, %v5334
      %v5345 = vsel %vm648, %v5320, %v5336
      %v5346 = vsel %vm648, %v5322, %v5338
      %v5347 = vsel %vm648, %v5324, %v5308
      %v5348 = vsel %vm648, %v5326, %v5310
      %v5349 = vsel %vm648, %v5328, %v5312
      %v5350 = vsel %vm648, %v5330, %v5314
      %v5351 = vsel %vm648, %v5332, %v5316
      %v5352 = vsel %vm648, %v5334, %v5318
      %v5353 = vsel %vm648, %v5336, %v5320
      %v5354 = vsel %vm648, %v5338, %v5322
      %v5355 = vpack.c.bf16 %v5348, %v5347
      %v5356 = vpack.c.bf16 %v5340, %v5339
      %v5357 = vpack.c.bf16 %v5350, %v5349
      %v5358 = vpack.c.bf16 %v5342, %v5341
      %v5359 = vpack.c.bf16 %v5352, %v5351
      %v5360 = vpack.c.bf16 %v5344, %v5343
      %v5361 = vpack.c.bf16 %v5354, %v5353
      %v5362 = vpack.c.bf16 %v5346, %v5345
      %v5363 = vmul.bf16 %v5355, %v1953
      %v5364 = vmul.bf16 %v5356, %v1960
      %v5365 = vmul.bf16 %v5357, %v1953
      %v5366 = vmul.bf16 %v5358, %v1960
      %v5367 = vmul.bf16 %v5359, %v1953
      %v5368 = vmul.bf16 %v5360, %v1960
      %v5369 = vmul.bf16 %v5361, %v1953
      %v5370 = vmul.bf16 %v5362, %v1960
      %s5371 = scalar_lea.vmem %s12, 16
      %v5372 = vld [vmem:[%s5371] sm:$0xf]
      %v5373 = vld [vmem:[%s5371 + $0x4] sm:$0xf]
      %v5374 = vld [vmem:[%s5371 + $0x8] sm:$0xf]
      %v5375 = vld [vmem:[%s5371 + $0xc] sm:$0xf]
      %v5380 = vunpack.c.l.b16 %v5372
      %v5381 = vunpack.c.l.b16 %v5373
      %v5382 = vunpack.c.l.b16 %v5374
      %v5383 = vunpack.c.l.b16 %v5375
      %v5384 = vpack.c.b16 %v5381, %v5380
      %v5385 = vpack.c.b16 %v5383, %v5382
      %v5387 = vsel %vm1673, %v5384, 0
      %v5390 = vsel %vm1673, %v5385, 0
      %5392 = vmatprep.subr.bf16.mxu0 0
      %5393 = vmatpush1.bf16.msra.mxu0 0
      %5394 = vmatprep.subr.bf16.mxu0 0
      %5395 = vmatpush1.bf16.msra.mxu0 0
      %5396 = vmatprep.subr.bf16.mxu0 0
      %5397 = vmatpush1.bf16.msra.mxu0 0
      %5398 = vmatprep.subr.bf16.mxu0 0
      %5399 = vmatpush1.bf16.msra.mxu0 0
      %5400 = vmatprep.subr.bf16.mxu0 %v5370
      %5401 = vmatpush1.bf16.msra.mxu0 %v5369
      %5402 = vmatprep.subr.bf16.mxu0 %v5368
      %5403 = vmatpush1.bf16.msra.mxu0 %v5367
      %5404 = vmatprep.subr.bf16.mxu0 %v5366
      %5405 = vmatpush1.bf16.msra.mxu0 %v5365
      %5406 = vmatprep.subr.bf16.mxu0 %v5364
      %5407 = vmatpush1.bf16.msra.mxu0 %v5363
      %5408 = vmatprep.subr.bf16.mxu0 0
      %5409 = vmatpush2.bf16.msra.mxu0 0
      %5410 = vmatprep.subr.bf16.mxu0 0
      %5411 = vmatpush2.bf16.msra.mxu0 0
      %5412 = vmatprep.subr.bf16.mxu0 0
      %5413 = vmatpush2.bf16.msra.mxu0 0
      %5414 = vmatprep.subr.bf16.mxu0 0
      %5415 = vmatpush2.bf16.msra.mxu0 0
      %5416 = vmatprep.subr.bf16.mxu0 0
      %5417 = vmatpush2.bf16.msra.mxu0 0
      %5418 = vmatprep.subr.bf16.mxu0 0
      %5419 = vmatpush2.bf16.msra.mxu0 0
      %5420 = vmatprep.subr.bf16.mxu0 0
      %5421 = vmatpush2.bf16.msra.mxu0 0
      %5422 = vmatprep.subr.bf16.mxu0 0
      %5423 = vmatpush2.bf16.msra.mxu0 0
      %5424 = vmatprep.mubr.bf16.mxu0 0
      %5425 = vmatmul.mubr.bf16.gmra.mxu0 %v5387
      %v5426 = vpop.f32.mrf.mxu0
      %v5427 = vadd.f32 0.0, %v5426
      %v5428 = vpop.f32.mrf.mxu0
      %v5429 = vadd.f32 0.0, %v5428
      %v5430 = vpop.f32.mrf.mxu0
      %v5431 = vadd.f32 0.0, %v5430
      %v5432 = vpop.f32.mrf.mxu0
      %v5433 = vadd.f32 0.0, %v5432
      %5434 = vmatprep.mubr.bf16.mxu0 0
      %5435 = vmatmul.mubr.bf16.gmra.mxu0 %v5390
      %v5436 = vpop.f32.mrf.mxu0
      %v5437 = vadd.f32 0.0, %v5436
      %v5438 = vpop.f32.mrf.mxu0
      %v5439 = vadd.f32 0.0, %v5438
      %v5440 = vpop.f32.mrf.mxu0
      %v5441 = vadd.f32 0.0, %v5440
      %v5442 = vpop.f32.mrf.mxu0
      %v5443 = vadd.f32 0.0, %v5442
      %5444 = vdwg.mxu0
      %v5449 = vunpack.c.l.b16 %v5303
      %v5450 = vunpack.c.l.b16 %v5304
      %v5451 = vunpack.c.l.b16 %v5305
      %v5452 = vunpack.c.l.b16 %v5306
      %v5453 = vpack.c.b16 %v5450, %v5449
      %v5454 = vpack.c.b16 %v5452, %v5451
      %v5456 = vsel %vm1673, %v5453, 0
      %v5459 = vsel %vm1673, %v5454, 0
      %5461 = vmatprep.subr.bf16.mxu0 0
      %5462 = vmatpush1.bf16.msra.mxu0 0
      %5463 = vmatprep.subr.bf16.mxu0 0
      %5464 = vmatpush1.bf16.msra.mxu0 0
      %5465 = vmatprep.subr.bf16.mxu0 0
      %5466 = vmatpush1.bf16.msra.mxu0 0
      %5467 = vmatprep.subr.bf16.mxu0 0
      %5468 = vmatpush1.bf16.msra.mxu0 0
      %5469 = vmatprep.subr.bf16.mxu0 %v5302
      %5470 = vmatpush1.bf16.msra.mxu0 %v5301
      %5471 = vmatprep.subr.bf16.mxu0 %v5300
      %5472 = vmatpush1.bf16.msra.mxu0 %v5299
      %5473 = vmatprep.subr.bf16.mxu0 %v5298
      %5474 = vmatpush1.bf16.msra.mxu0 %v5297
      %5475 = vmatprep.subr.bf16.mxu0 %v5296
      %5476 = vmatpush1.bf16.msra.mxu0 %v5295
      %5477 = vmatprep.subr.bf16.mxu0 0
      %5478 = vmatpush2.bf16.msra.mxu0 0
      %5479 = vmatprep.subr.bf16.mxu0 0
      %5480 = vmatpush2.bf16.msra.mxu0 0
      %5481 = vmatprep.subr.bf16.mxu0 0
      %5482 = vmatpush2.bf16.msra.mxu0 0
      %5483 = vmatprep.subr.bf16.mxu0 0
      %5484 = vmatpush2.bf16.msra.mxu0 0
      %5485 = vmatprep.subr.bf16.mxu0 0
      %5486 = vmatpush2.bf16.msra.mxu0 0
      %5487 = vmatprep.subr.bf16.mxu0 0
      %5488 = vmatpush2.bf16.msra.mxu0 0
      %5489 = vmatprep.subr.bf16.mxu0 0
      %5490 = vmatpush2.bf16.msra.mxu0 0
      %5491 = vmatprep.subr.bf16.mxu0 0
      %5492 = vmatpush2.bf16.msra.mxu0 0
      %5493 = vmatprep.mubr.bf16.mxu0 0
      %5494 = vmatmul.mubr.bf16.gmra.mxu0 %v5456
      %v5495 = vpop.f32.mrf.mxu0
      %v5496 = vadd.f32 %v5427, %v5495
      %v5497 = vpop.f32.mrf.mxu0
      %v5498 = vadd.f32 %v5429, %v5497
      %v5499 = vpop.f32.mrf.mxu0
      %v5500 = vadd.f32 %v5431, %v5499
      %v5501 = vpop.f32.mrf.mxu0
      %v5502 = vadd.f32 %v5433, %v5501
      %5503 = vmatprep.mubr.bf16.mxu0 0
      %5504 = vmatmul.mubr.bf16.gmra.mxu0 %v5459
      %v5505 = vpop.f32.mrf.mxu0
      %v5506 = vadd.f32 %v5437, %v5505
      %v5507 = vpop.f32.mrf.mxu0
      %v5508 = vadd.f32 %v5439, %v5507
      %v5509 = vpop.f32.mrf.mxu0
      %v5510 = vadd.f32 %v5441, %v5509
      %v5511 = vpop.f32.mrf.mxu0
      %v5512 = vadd.f32 %v5443, %v5511
      %5513 = vdwg.mxu0
      %5514 = vrot.lane.b32.xlu0 %v5201, 15
      %v5515 = vpop.permute.xlu0 %5514
      %5516 = vrot.lane.b32.xlu0 %v5205, 15
      %v5517 = vpop.permute.xlu0 %5516
      %5518 = vrot.lane.b32.xlu0 %v5211, 15
      %v5519 = vpop.permute.xlu0 %5518
      %5520 = vrot.lane.b32.xlu0 %v5215, 15
      %v5521 = vpop.permute.xlu0 %5520
      %5522 = vrot.lane.b32.xlu0 %v5221, 15
      %v5523 = vpop.permute.xlu0 %5522
      %5524 = vrot.lane.b32.xlu0 %v5225, 15
      %v5525 = vpop.permute.xlu0 %5524
      %5526 = vrot.lane.b32.xlu0 %v5231, 15
      %v5527 = vpop.permute.xlu0 %5526
      %5528 = vrot.lane.b32.xlu0 %v5235, 15
      %v5529 = vpop.permute.xlu0 %5528
      %5530 = vrot.lane.b32.xlu0 %v5203, 15
      %v5531 = vpop.permute.xlu0 %5530
      %5532 = vrot.lane.b32.xlu0 %v5207, 15
      %v5533 = vpop.permute.xlu0 %5532
      %5534 = vrot.lane.b32.xlu0 %v5213, 15
      %v5535 = vpop.permute.xlu0 %5534
      %5536 = vrot.lane.b32.xlu0 %v5217, 15
      %v5537 = vpop.permute.xlu0 %5536
      %5538 = vrot.lane.b32.xlu0 %v5223, 15
      %v5539 = vpop.permute.xlu0 %5538
      %5540 = vrot.lane.b32.xlu0 %v5227, 15
      %v5541 = vpop.permute.xlu0 %5540
      %5542 = vrot.lane.b32.xlu0 %v5233, 15
      %v5543 = vpop.permute.xlu0 %5542
      %5544 = vrot.lane.b32.xlu0 %v5237, 15
      %v5545 = vpop.permute.xlu0 %5544
      %v5546 = vsel %vm760, %v5515, %v5531
      %v5547 = vsel %vm760, %v5517, %v5533
      %v5548 = vsel %vm760, %v5519, %v5535
      %v5549 = vsel %vm760, %v5521, %v5537
      %v5550 = vsel %vm760, %v5523, %v5539
      %v5551 = vsel %vm760, %v5525, %v5541
      %v5552 = vsel %vm760, %v5527, %v5543
      %v5553 = vsel %vm760, %v5529, %v5545
      %v5554 = vsel %vm760, %v5531, %v5515
      %v5555 = vsel %vm760, %v5533, %v5517
      %v5556 = vsel %vm760, %v5535, %v5519
      %v5557 = vsel %vm760, %v5537, %v5521
      %v5558 = vsel %vm760, %v5539, %v5523
      %v5559 = vsel %vm760, %v5541, %v5525
      %v5560 = vsel %vm760, %v5543, %v5527
      %v5561 = vsel %vm760, %v5545, %v5529
      %v5562 = vpack.c.bf16 %v5555, %v5554
      %v5563 = vpack.c.bf16 %v5547, %v5546
      %v5564 = vpack.c.bf16 %v5557, %v5556
      %v5565 = vpack.c.bf16 %v5549, %v5548
      %v5566 = vpack.c.bf16 %v5559, %v5558
      %v5567 = vpack.c.bf16 %v5551, %v5550
      %v5568 = vpack.c.bf16 %v5561, %v5560
      %v5569 = vpack.c.bf16 %v5553, %v5552
      %v5570 = vmul.bf16 %v5562, %v2273
      %v5571 = vmul.bf16 %v5563, %v2280
      %v5572 = vmul.bf16 %v5564, %v2273
      %v5573 = vmul.bf16 %v5565, %v2280
      %v5574 = vmul.bf16 %v5566, %v2273
      %v5575 = vmul.bf16 %v5567, %v2280
      %v5576 = vmul.bf16 %v5568, %v2273
      %v5577 = vmul.bf16 %v5569, %v2280
      %s5578 = scalar_lea.vmem %s12, 32
      %v5579 = vld [vmem:[%s5578] sm:$0xf]
      %v5580 = vld [vmem:[%s5578 + $0x4] sm:$0xf]
      %v5581 = vld [vmem:[%s5578 + $0x8] sm:$0xf]
      %v5582 = vld [vmem:[%s5578 + $0xc] sm:$0xf]
      %v5587 = vunpack.c.l.b16 %v5579
      %v5588 = vunpack.c.l.b16 %v5580
      %v5589 = vunpack.c.l.b16 %v5581
      %v5590 = vunpack.c.l.b16 %v5582
      %v5591 = vpack.c.b16 %v5588, %v5587
      %v5592 = vpack.c.b16 %v5590, %v5589
      %v5594 = vsel %vm1673, %v5591, 0
      %v5597 = vsel %vm1673, %v5592, 0
      %5599 = vmatprep.subr.bf16.mxu0 0
      %5600 = vmatpush1.bf16.msra.mxu0 0
      %5601 = vmatprep.subr.bf16.mxu0 0
      %5602 = vmatpush1.bf16.msra.mxu0 0
      %5603 = vmatprep.subr.bf16.mxu0 0
      %5604 = vmatpush1.bf16.msra.mxu0 0
      %5605 = vmatprep.subr.bf16.mxu0 0
      %5606 = vmatpush1.bf16.msra.mxu0 0
      %5607 = vmatprep.subr.bf16.mxu0 %v5577
      %5608 = vmatpush1.bf16.msra.mxu0 %v5576
      %5609 = vmatprep.subr.bf16.mxu0 %v5575
      %5610 = vmatpush1.bf16.msra.mxu0 %v5574
      %5611 = vmatprep.subr.bf16.mxu0 %v5573
      %5612 = vmatpush1.bf16.msra.mxu0 %v5572
      %5613 = vmatprep.subr.bf16.mxu0 %v5571
      %5614 = vmatpush1.bf16.msra.mxu0 %v5570
      %5615 = vmatprep.subr.bf16.mxu0 0
      %5616 = vmatpush2.bf16.msra.mxu0 0
      %5617 = vmatprep.subr.bf16.mxu0 0
      %5618 = vmatpush2.bf16.msra.mxu0 0
      %5619 = vmatprep.subr.bf16.mxu0 0
      %5620 = vmatpush2.bf16.msra.mxu0 0
      %5621 = vmatprep.subr.bf16.mxu0 0
      %5622 = vmatpush2.bf16.msra.mxu0 0
      %5623 = vmatprep.subr.bf16.mxu0 0
      %5624 = vmatpush2.bf16.msra.mxu0 0
      %5625 = vmatprep.subr.bf16.mxu0 0
      %5626 = vmatpush2.bf16.msra.mxu0 0
      %5627 = vmatprep.subr.bf16.mxu0 0
      %5628 = vmatpush2.bf16.msra.mxu0 0
      %5629 = vmatprep.subr.bf16.mxu0 0
      %5630 = vmatpush2.bf16.msra.mxu0 0
      %5631 = vmatprep.mubr.bf16.mxu0 0
      %5632 = vmatmul.mubr.bf16.gmra.mxu0 %v5594
      %v5633 = vpop.f32.mrf.mxu0
      %v5634 = vadd.f32 0.0, %v5633
      %v5635 = vpop.f32.mrf.mxu0
      %v5636 = vadd.f32 0.0, %v5635
      %v5637 = vpop.f32.mrf.mxu0
      %v5638 = vadd.f32 0.0, %v5637
      %v5639 = vpop.f32.mrf.mxu0
      %v5640 = vadd.f32 0.0, %v5639
      %5641 = vmatprep.mubr.bf16.mxu0 0
      %5642 = vmatmul.mubr.bf16.gmra.mxu0 %v5597
      %v5643 = vpop.f32.mrf.mxu0
      %v5644 = vadd.f32 0.0, %v5643
      %v5645 = vpop.f32.mrf.mxu0
      %v5646 = vadd.f32 0.0, %v5645
      %v5647 = vpop.f32.mrf.mxu0
      %v5648 = vadd.f32 0.0, %v5647
      %v5649 = vpop.f32.mrf.mxu0
      %v5650 = vadd.f32 0.0, %v5649
      %5651 = vdwg.mxu0
      %v5652 = vadd.f32 %v5496, %v5634
      %v5653 = vadd.f32 %v5498, %v5636
      %v5654 = vadd.f32 %v5500, %v5638
      %v5655 = vadd.f32 %v5502, %v5640
      %v5656 = vadd.f32 %v5506, %v5644
      %v5657 = vadd.f32 %v5508, %v5646
      %v5658 = vadd.f32 %v5510, %v5648
      %v5659 = vadd.f32 %v5512, %v5650
      %5660 = vrot.lane.b32.xlu0 %v5201, 1
      %v5661 = vpop.permute.xlu0 %5660
      %5662 = vrot.lane.b32.xlu0 %v5205, 1
      %v5663 = vpop.permute.xlu0 %5662
      %5664 = vrot.lane.b32.xlu0 %v5211, 1
      %v5665 = vpop.permute.xlu0 %5664
      %5666 = vrot.lane.b32.xlu0 %v5215, 1
      %v5667 = vpop.permute.xlu0 %5666
      %5668 = vrot.lane.b32.xlu0 %v5221, 1
      %v5669 = vpop.permute.xlu0 %5668
      %5670 = vrot.lane.b32.xlu0 %v5225, 1
      %v5671 = vpop.permute.xlu0 %5670
      %5672 = vrot.lane.b32.xlu0 %v5231, 1
      %v5673 = vpop.permute.xlu0 %5672
      %5674 = vrot.lane.b32.xlu0 %v5235, 1
      %v5675 = vpop.permute.xlu0 %5674
      %5676 = vrot.lane.b32.xlu0 %v5203, 1
      %v5677 = vpop.permute.xlu0 %5676
      %5678 = vrot.lane.b32.xlu0 %v5207, 1
      %v5679 = vpop.permute.xlu0 %5678
      %5680 = vrot.lane.b32.xlu0 %v5213, 1
      %v5681 = vpop.permute.xlu0 %5680
      %5682 = vrot.lane.b32.xlu0 %v5217, 1
      %v5683 = vpop.permute.xlu0 %5682
      %5684 = vrot.lane.b32.xlu0 %v5223, 1
      %v5685 = vpop.permute.xlu0 %5684
      %5686 = vrot.lane.b32.xlu0 %v5227, 1
      %v5687 = vpop.permute.xlu0 %5686
      %5688 = vrot.lane.b32.xlu0 %v5233, 1
      %v5689 = vpop.permute.xlu0 %5688
      %5690 = vrot.lane.b32.xlu0 %v5237, 1
      %v5691 = vpop.permute.xlu0 %5690
      %v5692 = vsel %vm872, %v5661, %v5677
      %v5693 = vsel %vm872, %v5663, %v5679
      %v5694 = vsel %vm872, %v5665, %v5681
      %v5695 = vsel %vm872, %v5667, %v5683
      %v5696 = vsel %vm872, %v5669, %v5685
      %v5697 = vsel %vm872, %v5671, %v5687
      %v5698 = vsel %vm872, %v5673, %v5689
      %v5699 = vsel %vm872, %v5675, %v5691
      %v5700 = vsel %vm872, %v5677, %v5661
      %v5701 = vsel %vm872, %v5679, %v5663
      %v5702 = vsel %vm872, %v5681, %v5665
      %v5703 = vsel %vm872, %v5683, %v5667
      %v5704 = vsel %vm872, %v5685, %v5669
      %v5705 = vsel %vm872, %v5687, %v5671
      %v5706 = vsel %vm872, %v5689, %v5673
      %v5707 = vsel %vm872, %v5691, %v5675
      %v5708 = vpack.c.bf16 %v5701, %v5700
      %v5709 = vpack.c.bf16 %v5693, %v5692
      %v5710 = vpack.c.bf16 %v5703, %v5702
      %v5711 = vpack.c.bf16 %v5695, %v5694
      %v5712 = vpack.c.bf16 %v5705, %v5704
      %v5713 = vpack.c.bf16 %v5697, %v5696
      %v5714 = vpack.c.bf16 %v5707, %v5706
      %v5715 = vpack.c.bf16 %v5699, %v5698
      %v5716 = vmul.bf16 %v5708, %v2504
      %v5717 = vmul.bf16 %v5709, %v2511
      %v5718 = vmul.bf16 %v5710, %v2504
      %v5719 = vmul.bf16 %v5711, %v2511
      %v5720 = vmul.bf16 %v5712, %v2504
      %v5721 = vmul.bf16 %v5713, %v2511
      %v5722 = vmul.bf16 %v5714, %v2504
      %v5723 = vmul.bf16 %v5715, %v2511
      %s5724 = scalar_lea.vmem %s12, 48
      %v5725 = vld [vmem:[%s5724] sm:$0xf]
      %v5726 = vld [vmem:[%s5724 + $0x4] sm:$0xf]
      %v5727 = vld [vmem:[%s5724 + $0x8] sm:$0xf]
      %v5728 = vld [vmem:[%s5724 + $0xc] sm:$0xf]
      %v5733 = vunpack.c.l.b16 %v5725
      %v5734 = vunpack.c.l.b16 %v5726
      %v5735 = vunpack.c.l.b16 %v5727
      %v5736 = vunpack.c.l.b16 %v5728
      %v5737 = vpack.c.b16 %v5734, %v5733
      %v5738 = vpack.c.b16 %v5736, %v5735
      %v5740 = vsel %vm1673, %v5737, 0
      %v5743 = vsel %vm1673, %v5738, 0
      %5745 = vmatprep.subr.bf16.mxu0 0
      %5746 = vmatpush1.bf16.msra.mxu0 0
      %5747 = vmatprep.subr.bf16.mxu0 0
      %5748 = vmatpush1.bf16.msra.mxu0 0
      %5749 = vmatprep.subr.bf16.mxu0 0
      %5750 = vmatpush1.bf16.msra.mxu0 0
      %5751 = vmatprep.subr.bf16.mxu0 0
      %5752 = vmatpush1.bf16.msra.mxu0 0
      %5753 = vmatprep.subr.bf16.mxu0 %v5723
      %5754 = vmatpush1.bf16.msra.mxu0 %v5722
      %5755 = vmatprep.subr.bf16.mxu0 %v5721
      %5756 = vmatpush1.bf16.msra.mxu0 %v5720
      %5757 = vmatprep.subr.bf16.mxu0 %v5719
      %5758 = vmatpush1.bf16.msra.mxu0 %v5718
      %5759 = vmatprep.subr.bf16.mxu0 %v5717
      %5760 = vmatpush1.bf16.msra.mxu0 %v5716
      %5761 = vmatprep.subr.bf16.mxu0 0
      %5762 = vmatpush2.bf16.msra.mxu0 0
      %5763 = vmatprep.subr.bf16.mxu0 0
      %5764 = vmatpush2.bf16.msra.mxu0 0
      %5765 = vmatprep.subr.bf16.mxu0 0
      %5766 = vmatpush2.bf16.msra.mxu0 0
      %5767 = vmatprep.subr.bf16.mxu0 0
      %5768 = vmatpush2.bf16.msra.mxu0 0
      %5769 = vmatprep.subr.bf16.mxu0 0
      %5770 = vmatpush2.bf16.msra.mxu0 0
      %5771 = vmatprep.subr.bf16.mxu0 0
      %5772 = vmatpush2.bf16.msra.mxu0 0
      %5773 = vmatprep.subr.bf16.mxu0 0
      %5774 = vmatpush2.bf16.msra.mxu0 0
      %5775 = vmatprep.subr.bf16.mxu0 0
      %5776 = vmatpush2.bf16.msra.mxu0 0
      %5777 = vmatprep.mubr.bf16.mxu0 0
      %5778 = vmatmul.mubr.bf16.gmra.mxu0 %v5740
      %v5779 = vpop.f32.mrf.mxu0
      %v5780 = vadd.f32 0.0, %v5779
      %v5781 = vpop.f32.mrf.mxu0
      %v5782 = vadd.f32 0.0, %v5781
      %v5783 = vpop.f32.mrf.mxu0
      %v5784 = vadd.f32 0.0, %v5783
      %v5785 = vpop.f32.mrf.mxu0
      %v5786 = vadd.f32 0.0, %v5785
      %5787 = vmatprep.mubr.bf16.mxu0 0
      %5788 = vmatmul.mubr.bf16.gmra.mxu0 %v5743
      %v5789 = vpop.f32.mrf.mxu0
      %v5790 = vadd.f32 0.0, %v5789
      %v5791 = vpop.f32.mrf.mxu0
      %v5792 = vadd.f32 0.0, %v5791
      %v5793 = vpop.f32.mrf.mxu0
      %v5794 = vadd.f32 0.0, %v5793
      %v5795 = vpop.f32.mrf.mxu0
      %v5796 = vadd.f32 0.0, %v5795
      %5797 = vdwg.mxu0
      %v5798 = vadd.f32 %v5652, %v5780
      %v5799 = vadd.f32 %v5653, %v5782
      %v5800 = vadd.f32 %v5654, %v5784
      %v5801 = vadd.f32 %v5655, %v5786
      %v5802 = vadd.f32 %v5656, %v5790
      %v5803 = vadd.f32 %v5657, %v5792
      %v5804 = vadd.f32 %v5658, %v5794
      %v5805 = vadd.f32 %v5659, %v5796
      %v5806 = vpack.c.bf16 %v5205, %v5201
      %v5807 = vpack.c.bf16 %v5207, %v5203
      %v5808 = vpack.c.bf16 %v5215, %v5211
      %v5809 = vpack.c.bf16 %v5217, %v5213
      %v5810 = vpack.c.bf16 %v5225, %v5221
      %v5811 = vpack.c.bf16 %v5227, %v5223
      %v5812 = vpack.c.bf16 %v5235, %v5231
      %v5813 = vpack.c.bf16 %v5237, %v5233
      %s5814 = scalar_lea.vmem %s12, 64
      %v5815 = vld [vmem:[%s5814] sm:$0xf]
      %v5816 = vld [vmem:[%s5814 + $0x4] sm:$0xf]
      %v5817 = vld [vmem:[%s5814 + $0x8] sm:$0xf]
      %v5818 = vld [vmem:[%s5814 + $0xc] sm:$0xf]
      %v5823 = vunpack.c.l.b16 %v5815
      %v5824 = vunpack.c.l.b16 %v5816
      %v5825 = vunpack.c.l.b16 %v5817
      %v5826 = vunpack.c.l.b16 %v5818
      %v5827 = vpack.c.b16 %v5824, %v5823
      %v5828 = vpack.c.b16 %v5826, %v5825
      %v5830 = vsel %vm1673, %v5827, 0
      %v5833 = vsel %vm1673, %v5828, 0
      %5835 = vmatprep.subr.bf16.mxu0 0
      %5836 = vmatpush1.bf16.msra.mxu0 0
      %5837 = vmatprep.subr.bf16.mxu0 0
      %5838 = vmatpush1.bf16.msra.mxu0 0
      %5839 = vmatprep.subr.bf16.mxu0 0
      %5840 = vmatpush1.bf16.msra.mxu0 0
      %5841 = vmatprep.subr.bf16.mxu0 0
      %5842 = vmatpush1.bf16.msra.mxu0 0
      %5843 = vmatprep.subr.bf16.mxu0 %v5813
      %5844 = vmatpush1.bf16.msra.mxu0 %v5812
      %5845 = vmatprep.subr.bf16.mxu0 %v5811
      %5846 = vmatpush1.bf16.msra.mxu0 %v5810
      %5847 = vmatprep.subr.bf16.mxu0 %v5809
      %5848 = vmatpush1.bf16.msra.mxu0 %v5808
      %5849 = vmatprep.subr.bf16.mxu0 %v5807
      %5850 = vmatpush1.bf16.msra.mxu0 %v5806
      %5851 = vmatprep.subr.bf16.mxu0 0
      %5852 = vmatpush2.bf16.msra.mxu0 0
      %5853 = vmatprep.subr.bf16.mxu0 0
      %5854 = vmatpush2.bf16.msra.mxu0 0
      %5855 = vmatprep.subr.bf16.mxu0 0
      %5856 = vmatpush2.bf16.msra.mxu0 0
      %5857 = vmatprep.subr.bf16.mxu0 0
      %5858 = vmatpush2.bf16.msra.mxu0 0
      %5859 = vmatprep.subr.bf16.mxu0 0
      %5860 = vmatpush2.bf16.msra.mxu0 0
      %5861 = vmatprep.subr.bf16.mxu0 0
      %5862 = vmatpush2.bf16.msra.mxu0 0
      %5863 = vmatprep.subr.bf16.mxu0 0
      %5864 = vmatpush2.bf16.msra.mxu0 0
      %5865 = vmatprep.subr.bf16.mxu0 0
      %5866 = vmatpush2.bf16.msra.mxu0 0
      %5867 = vmatprep.mubr.bf16.mxu0 0
      %5868 = vmatmul.mubr.bf16.gmra.mxu0 %v5830
      %v5869 = vpop.f32.mrf.mxu0
      %v5870 = vadd.f32 0.0, %v5869
      %v5871 = vpop.f32.mrf.mxu0
      %v5872 = vadd.f32 0.0, %v5871
      %v5873 = vpop.f32.mrf.mxu0
      %v5874 = vadd.f32 0.0, %v5873
      %v5875 = vpop.f32.mrf.mxu0
      %v5876 = vadd.f32 0.0, %v5875
      %5877 = vmatprep.mubr.bf16.mxu0 0
      %5878 = vmatmul.mubr.bf16.gmra.mxu0 %v5833
      %v5879 = vpop.f32.mrf.mxu0
      %v5880 = vadd.f32 0.0, %v5879
      %v5881 = vpop.f32.mrf.mxu0
      %v5882 = vadd.f32 0.0, %v5881
      %v5883 = vpop.f32.mrf.mxu0
      %v5884 = vadd.f32 0.0, %v5883
      %v5885 = vpop.f32.mrf.mxu0
      %v5886 = vadd.f32 0.0, %v5885
      %5887 = vdwg.mxu0
      %v5888 = vadd.f32 %v5798, %v5870
      %v5889 = vadd.f32 %v5799, %v5872
      %v5890 = vadd.f32 %v5800, %v5874
      %v5891 = vadd.f32 %v5801, %v5876
      %v5892 = vadd.f32 %v5802, %v5880
      %v5893 = vadd.f32 %v5803, %v5882
      %v5894 = vadd.f32 %v5804, %v5884
      %v5895 = vadd.f32 %v5805, %v5886
      %5896 = vrot.lane.b32.xlu0 %v5201, 127
      %v5897 = vpop.permute.xlu0 %5896
      %5898 = vrot.lane.b32.xlu0 %v5205, 127
      %v5899 = vpop.permute.xlu0 %5898
      %5900 = vrot.lane.b32.xlu0 %v5211, 127
      %v5901 = vpop.permute.xlu0 %5900
      %5902 = vrot.lane.b32.xlu0 %v5215, 127
      %v5903 = vpop.permute.xlu0 %5902
      %5904 = vrot.lane.b32.xlu0 %v5221, 127
      %v5905 = vpop.permute.xlu0 %5904
      %5906 = vrot.lane.b32.xlu0 %v5225, 127
      %v5907 = vpop.permute.xlu0 %5906
      %5908 = vrot.lane.b32.xlu0 %v5231, 127
      %v5909 = vpop.permute.xlu0 %5908
      %5910 = vrot.lane.b32.xlu0 %v5235, 127
      %v5911 = vpop.permute.xlu0 %5910
      %5912 = vrot.lane.b32.xlu0 %v5203, 127
      %v5913 = vpop.permute.xlu0 %5912
      %5914 = vrot.lane.b32.xlu0 %v5207, 127
      %v5915 = vpop.permute.xlu0 %5914
      %5916 = vrot.lane.b32.xlu0 %v5213, 127
      %v5917 = vpop.permute.xlu0 %5916
      %5918 = vrot.lane.b32.xlu0 %v5217, 127
      %v5919 = vpop.permute.xlu0 %5918
      %5920 = vrot.lane.b32.xlu0 %v5223, 127
      %v5921 = vpop.permute.xlu0 %5920
      %5922 = vrot.lane.b32.xlu0 %v5227, 127
      %v5923 = vpop.permute.xlu0 %5922
      %5924 = vrot.lane.b32.xlu0 %v5233, 127
      %v5925 = vpop.permute.xlu0 %5924
      %5926 = vrot.lane.b32.xlu0 %v5237, 127
      %v5927 = vpop.permute.xlu0 %5926
      %v5928 = vsel %vm1065, %v5897, %v5913
      %v5929 = vsel %vm1065, %v5899, %v5915
      %v5930 = vsel %vm1065, %v5901, %v5917
      %v5931 = vsel %vm1065, %v5903, %v5919
      %v5932 = vsel %vm1065, %v5905, %v5921
      %v5933 = vsel %vm1065, %v5907, %v5923
      %v5934 = vsel %vm1065, %v5909, %v5925
      %v5935 = vsel %vm1065, %v5911, %v5927
      %v5936 = vsel %vm1065, %v5913, %v5897
      %v5937 = vsel %vm1065, %v5915, %v5899
      %v5938 = vsel %vm1065, %v5917, %v5901
      %v5939 = vsel %vm1065, %v5919, %v5903
      %v5940 = vsel %vm1065, %v5921, %v5905
      %v5941 = vsel %vm1065, %v5923, %v5907
      %v5942 = vsel %vm1065, %v5925, %v5909
      %v5943 = vsel %vm1065, %v5927, %v5911
      %v5944 = vpack.c.bf16 %v5929, %v5928
      %v5945 = vpack.c.bf16 %v5937, %v5936
      %v5946 = vpack.c.bf16 %v5931, %v5930
      %v5947 = vpack.c.bf16 %v5939, %v5938
      %v5948 = vpack.c.bf16 %v5933, %v5932
      %v5949 = vpack.c.bf16 %v5941, %v5940
      %v5950 = vpack.c.bf16 %v5935, %v5934
      %v5951 = vpack.c.bf16 %v5943, %v5942
      %v5952 = vmul.bf16 %v5944, %v2873
      %v5953 = vmul.bf16 %v5945, %v2880
      %v5954 = vmul.bf16 %v5946, %v2873
      %v5955 = vmul.bf16 %v5947, %v2880
      %v5956 = vmul.bf16 %v5948, %v2873
      %v5957 = vmul.bf16 %v5949, %v2880
      %v5958 = vmul.bf16 %v5950, %v2873
      %v5959 = vmul.bf16 %v5951, %v2880
      %s5960 = scalar_lea.vmem %s12, 80
      %v5961 = vld [vmem:[%s5960] sm:$0xf]
      %v5962 = vld [vmem:[%s5960 + $0x4] sm:$0xf]
      %v5963 = vld [vmem:[%s5960 + $0x8] sm:$0xf]
      %v5964 = vld [vmem:[%s5960 + $0xc] sm:$0xf]
      %v5969 = vunpack.c.l.b16 %v5961
      %v5970 = vunpack.c.l.b16 %v5962
      %v5971 = vunpack.c.l.b16 %v5963
      %v5972 = vunpack.c.l.b16 %v5964
      %v5973 = vpack.c.b16 %v5970, %v5969
      %v5974 = vpack.c.b16 %v5972, %v5971
      %v5976 = vsel %vm1673, %v5973, 0
      %v5979 = vsel %vm1673, %v5974, 0
      %5981 = vmatprep.subr.bf16.mxu0 0
      %5982 = vmatpush1.bf16.msra.mxu0 0
      %5983 = vmatprep.subr.bf16.mxu0 0
      %5984 = vmatpush1.bf16.msra.mxu0 0
      %5985 = vmatprep.subr.bf16.mxu0 0
      %5986 = vmatpush1.bf16.msra.mxu0 0
      %5987 = vmatprep.subr.bf16.mxu0 0
      %5988 = vmatpush1.bf16.msra.mxu0 0
      %5989 = vmatprep.subr.bf16.mxu0 %v5959
      %5990 = vmatpush1.bf16.msra.mxu0 %v5958
      %5991 = vmatprep.subr.bf16.mxu0 %v5957
      %5992 = vmatpush1.bf16.msra.mxu0 %v5956
      %5993 = vmatprep.subr.bf16.mxu0 %v5955
      %5994 = vmatpush1.bf16.msra.mxu0 %v5954
      %5995 = vmatprep.subr.bf16.mxu0 %v5953
      %5996 = vmatpush1.bf16.msra.mxu0 %v5952
      %5997 = vmatprep.subr.bf16.mxu0 0
      %5998 = vmatpush2.bf16.msra.mxu0 0
      %5999 = vmatprep.subr.bf16.mxu0 0
      %6000 = vmatpush2.bf16.msra.mxu0 0
      %6001 = vmatprep.subr.bf16.mxu0 0
      %6002 = vmatpush2.bf16.msra.mxu0 0
      %6003 = vmatprep.subr.bf16.mxu0 0
      %6004 = vmatpush2.bf16.msra.mxu0 0
      %6005 = vmatprep.subr.bf16.mxu0 0
      %6006 = vmatpush2.bf16.msra.mxu0 0
      %6007 = vmatprep.subr.bf16.mxu0 0
      %6008 = vmatpush2.bf16.msra.mxu0 0
      %6009 = vmatprep.subr.bf16.mxu0 0
      %6010 = vmatpush2.bf16.msra.mxu0 0
      %6011 = vmatprep.subr.bf16.mxu0 0
      %6012 = vmatpush2.bf16.msra.mxu0 0
      %6013 = vmatprep.mubr.bf16.mxu0 0
      %6014 = vmatmul.mubr.bf16.gmra.mxu0 %v5976
      %v6015 = vpop.f32.mrf.mxu0
      %v6016 = vadd.f32 0.0, %v6015
      %v6017 = vpop.f32.mrf.mxu0
      %v6018 = vadd.f32 0.0, %v6017
      %v6019 = vpop.f32.mrf.mxu0
      %v6020 = vadd.f32 0.0, %v6019
      %v6021 = vpop.f32.mrf.mxu0
      %v6022 = vadd.f32 0.0, %v6021
      %6023 = vmatprep.mubr.bf16.mxu0 0
      %6024 = vmatmul.mubr.bf16.gmra.mxu0 %v5979
      %v6025 = vpop.f32.mrf.mxu0
      %v6026 = vadd.f32 0.0, %v6025
      %v6027 = vpop.f32.mrf.mxu0
      %v6028 = vadd.f32 0.0, %v6027
      %v6029 = vpop.f32.mrf.mxu0
      %v6030 = vadd.f32 0.0, %v6029
      %v6031 = vpop.f32.mrf.mxu0
      %v6032 = vadd.f32 0.0, %v6031
      %6033 = vdwg.mxu0
      %v6034 = vadd.f32 %v5888, %v6016
      %v6035 = vadd.f32 %v5889, %v6018
      %v6036 = vadd.f32 %v5890, %v6020
      %v6037 = vadd.f32 %v5891, %v6022
      %v6038 = vadd.f32 %v5892, %v6026
      %v6039 = vadd.f32 %v5893, %v6028
      %v6040 = vadd.f32 %v5894, %v6030
      %v6041 = vadd.f32 %v5895, %v6032
      %6042 = vrot.lane.b32.xlu0 %v5201, 113
      %v6043 = vpop.permute.xlu0 %6042
      %6044 = vrot.lane.b32.xlu0 %v5205, 113
      %v6045 = vpop.permute.xlu0 %6044
      %6046 = vrot.lane.b32.xlu0 %v5211, 113
      %v6047 = vpop.permute.xlu0 %6046
      %6048 = vrot.lane.b32.xlu0 %v5215, 113
      %v6049 = vpop.permute.xlu0 %6048
      %6050 = vrot.lane.b32.xlu0 %v5221, 113
      %v6051 = vpop.permute.xlu0 %6050
      %6052 = vrot.lane.b32.xlu0 %v5225, 113
      %v6053 = vpop.permute.xlu0 %6052
      %6054 = vrot.lane.b32.xlu0 %v5231, 113
      %v6055 = vpop.permute.xlu0 %6054
      %6056 = vrot.lane.b32.xlu0 %v5235, 113
      %v6057 = vpop.permute.xlu0 %6056
      %6058 = vrot.lane.b32.xlu0 %v5203, 113
      %v6059 = vpop.permute.xlu0 %6058
      %6060 = vrot.lane.b32.xlu0 %v5207, 113
      %v6061 = vpop.permute.xlu0 %6060
      %6062 = vrot.lane.b32.xlu0 %v5213, 113
      %v6063 = vpop.permute.xlu0 %6062
      %6064 = vrot.lane.b32.xlu0 %v5217, 113
      %v6065 = vpop.permute.xlu0 %6064
      %6066 = vrot.lane.b32.xlu0 %v5223, 113
      %v6067 = vpop.permute.xlu0 %6066
      %6068 = vrot.lane.b32.xlu0 %v5227, 113
      %v6069 = vpop.permute.xlu0 %6068
      %6070 = vrot.lane.b32.xlu0 %v5233, 113
      %v6071 = vpop.permute.xlu0 %6070
      %6072 = vrot.lane.b32.xlu0 %v5237, 113
      %v6073 = vpop.permute.xlu0 %6072
      %v6074 = vsel %vm1177, %v6043, %v6059
      %v6075 = vsel %vm1177, %v6045, %v6061
      %v6076 = vsel %vm1177, %v6047, %v6063
      %v6077 = vsel %vm1177, %v6049, %v6065
      %v6078 = vsel %vm1177, %v6051, %v6067
      %v6079 = vsel %vm1177, %v6053, %v6069
      %v6080 = vsel %vm1177, %v6055, %v6071
      %v6081 = vsel %vm1177, %v6057, %v6073
      %v6082 = vsel %vm1177, %v6059, %v6043
      %v6083 = vsel %vm1177, %v6061, %v6045
      %v6084 = vsel %vm1177, %v6063, %v6047
      %v6085 = vsel %vm1177, %v6065, %v6049
      %v6086 = vsel %vm1177, %v6067, %v6051
      %v6087 = vsel %vm1177, %v6069, %v6053
      %v6088 = vsel %vm1177, %v6071, %v6055
      %v6089 = vsel %vm1177, %v6073, %v6057
      %v6090 = vpack.c.bf16 %v6075, %v6074
      %v6091 = vpack.c.bf16 %v6083, %v6082
      %v6092 = vpack.c.bf16 %v6077, %v6076
      %v6093 = vpack.c.bf16 %v6085, %v6084
      %v6094 = vpack.c.bf16 %v6079, %v6078
      %v6095 = vpack.c.bf16 %v6087, %v6086
      %v6096 = vpack.c.bf16 %v6081, %v6080
      %v6097 = vpack.c.bf16 %v6089, %v6088
      %v6098 = vmul.bf16 %v6090, %v3104
      %v6099 = vmul.bf16 %v6091, %v3111
      %v6100 = vmul.bf16 %v6092, %v3104
      %v6101 = vmul.bf16 %v6093, %v3111
      %v6102 = vmul.bf16 %v6094, %v3104
      %v6103 = vmul.bf16 %v6095, %v3111
      %v6104 = vmul.bf16 %v6096, %v3104
      %v6105 = vmul.bf16 %v6097, %v3111
      %s6106 = scalar_lea.vmem %s12, 96
      %v6107 = vld [vmem:[%s6106] sm:$0xf]
      %v6108 = vld [vmem:[%s6106 + $0x4] sm:$0xf]
      %v6109 = vld [vmem:[%s6106 + $0x8] sm:$0xf]
      %v6110 = vld [vmem:[%s6106 + $0xc] sm:$0xf]
      %v6115 = vunpack.c.l.b16 %v6107
      %v6116 = vunpack.c.l.b16 %v6108
      %v6117 = vunpack.c.l.b16 %v6109
      %v6118 = vunpack.c.l.b16 %v6110
      %v6119 = vpack.c.b16 %v6116, %v6115
      %v6120 = vpack.c.b16 %v6118, %v6117
      %v6122 = vsel %vm1673, %v6119, 0
      %v6125 = vsel %vm1673, %v6120, 0
      %6127 = vmatprep.subr.bf16.mxu0 0
      %6128 = vmatpush1.bf16.msra.mxu0 0
      %6129 = vmatprep.subr.bf16.mxu0 0
      %6130 = vmatpush1.bf16.msra.mxu0 0
      %6131 = vmatprep.subr.bf16.mxu0 0
      %6132 = vmatpush1.bf16.msra.mxu0 0
      %6133 = vmatprep.subr.bf16.mxu0 0
      %6134 = vmatpush1.bf16.msra.mxu0 0
      %6135 = vmatprep.subr.bf16.mxu0 %v6105
      %6136 = vmatpush1.bf16.msra.mxu0 %v6104
      %6137 = vmatprep.subr.bf16.mxu0 %v6103
      %6138 = vmatpush1.bf16.msra.mxu0 %v6102
      %6139 = vmatprep.subr.bf16.mxu0 %v6101
      %6140 = vmatpush1.bf16.msra.mxu0 %v6100
      %6141 = vmatprep.subr.bf16.mxu0 %v6099
      %6142 = vmatpush1.bf16.msra.mxu0 %v6098
      %6143 = vmatprep.subr.bf16.mxu0 0
      %6144 = vmatpush2.bf16.msra.mxu0 0
      %6145 = vmatprep.subr.bf16.mxu0 0
      %6146 = vmatpush2.bf16.msra.mxu0 0
      %6147 = vmatprep.subr.bf16.mxu0 0
      %6148 = vmatpush2.bf16.msra.mxu0 0
      %6149 = vmatprep.subr.bf16.mxu0 0
      %6150 = vmatpush2.bf16.msra.mxu0 0
      %6151 = vmatprep.subr.bf16.mxu0 0
      %6152 = vmatpush2.bf16.msra.mxu0 0
      %6153 = vmatprep.subr.bf16.mxu0 0
      %6154 = vmatpush2.bf16.msra.mxu0 0
      %6155 = vmatprep.subr.bf16.mxu0 0
      %6156 = vmatpush2.bf16.msra.mxu0 0
      %6157 = vmatprep.subr.bf16.mxu0 0
      %6158 = vmatpush2.bf16.msra.mxu0 0
      %6159 = vmatprep.mubr.bf16.mxu0 0
      %6160 = vmatmul.mubr.bf16.gmra.mxu0 %v6122
      %v6161 = vpop.f32.mrf.mxu0
      %v6162 = vadd.f32 0.0, %v6161
      %v6163 = vpop.f32.mrf.mxu0
      %v6164 = vadd.f32 0.0, %v6163
      %v6165 = vpop.f32.mrf.mxu0
      %v6166 = vadd.f32 0.0, %v6165
      %v6167 = vpop.f32.mrf.mxu0
      %v6168 = vadd.f32 0.0, %v6167
      %6169 = vmatprep.mubr.bf16.mxu0 0
      %6170 = vmatmul.mubr.bf16.gmra.mxu0 %v6125
      %v6171 = vpop.f32.mrf.mxu0
      %v6172 = vadd.f32 0.0, %v6171
      %v6173 = vpop.f32.mrf.mxu0
      %v6174 = vadd.f32 0.0, %v6173
      %v6175 = vpop.f32.mrf.mxu0
      %v6176 = vadd.f32 0.0, %v6175
      %v6177 = vpop.f32.mrf.mxu0
      %v6178 = vadd.f32 0.0, %v6177
      %6179 = vdwg.mxu0
      %v6180 = vadd.f32 %v6034, %v6162
      %v6181 = vadd.f32 %v6035, %v6164
      %v6182 = vadd.f32 %v6036, %v6166
      %v6183 = vadd.f32 %v6037, %v6168
      %v6184 = vadd.f32 %v6038, %v6172
      %v6185 = vadd.f32 %v6039, %v6174
      %v6186 = vadd.f32 %v6040, %v6176
      %v6187 = vadd.f32 %v6041, %v6178
      %6188 = vrot.lane.b32.xlu0 %v5201, 112
      %v6189 = vpop.permute.xlu0 %6188
      %6190 = vrot.lane.b32.xlu0 %v5205, 112
      %v6191 = vpop.permute.xlu0 %6190
      %6192 = vrot.lane.b32.xlu0 %v5211, 112
      %v6193 = vpop.permute.xlu0 %6192
      %6194 = vrot.lane.b32.xlu0 %v5215, 112
      %v6195 = vpop.permute.xlu0 %6194
      %6196 = vrot.lane.b32.xlu0 %v5221, 112
      %v6197 = vpop.permute.xlu0 %6196
      %6198 = vrot.lane.b32.xlu0 %v5225, 112
      %v6199 = vpop.permute.xlu0 %6198
      %6200 = vrot.lane.b32.xlu0 %v5231, 112
      %v6201 = vpop.permute.xlu0 %6200
      %6202 = vrot.lane.b32.xlu0 %v5235, 112
      %v6203 = vpop.permute.xlu0 %6202
      %6204 = vrot.lane.b32.xlu0 %v5203, 112
      %v6205 = vpop.permute.xlu0 %6204
      %6206 = vrot.lane.b32.xlu0 %v5207, 112
      %v6207 = vpop.permute.xlu0 %6206
      %6208 = vrot.lane.b32.xlu0 %v5213, 112
      %v6209 = vpop.permute.xlu0 %6208
      %6210 = vrot.lane.b32.xlu0 %v5217, 112
      %v6211 = vpop.permute.xlu0 %6210
      %6212 = vrot.lane.b32.xlu0 %v5223, 112
      %v6213 = vpop.permute.xlu0 %6212
      %6214 = vrot.lane.b32.xlu0 %v5227, 112
      %v6215 = vpop.permute.xlu0 %6214
      %6216 = vrot.lane.b32.xlu0 %v5233, 112
      %v6217 = vpop.permute.xlu0 %6216
      %6218 = vrot.lane.b32.xlu0 %v5237, 112
      %v6219 = vpop.permute.xlu0 %6218
      %v6220 = vsel %vm1289, %v6189, %v6205
      %v6221 = vsel %vm1289, %v6191, %v6207
      %v6222 = vsel %vm1289, %v6193, %v6209
      %v6223 = vsel %vm1289, %v6195, %v6211
      %v6224 = vsel %vm1289, %v6197, %v6213
      %v6225 = vsel %vm1289, %v6199, %v6215
      %v6226 = vsel %vm1289, %v6201, %v6217
      %v6227 = vsel %vm1289, %v6203, %v6219
      %v6228 = vsel %vm1289, %v6205, %v6189
      %v6229 = vsel %vm1289, %v6207, %v6191
      %v6230 = vsel %vm1289, %v6209, %v6193
      %v6231 = vsel %vm1289, %v6211, %v6195
      %v6232 = vsel %vm1289, %v6213, %v6197
      %v6233 = vsel %vm1289, %v6215, %v6199
      %v6234 = vsel %vm1289, %v6217, %v6201
      %v6235 = vsel %vm1289, %v6219, %v6203
      %v6236 = vpack.c.bf16 %v6221, %v6220
      %v6237 = vpack.c.bf16 %v6229, %v6228
      %v6238 = vpack.c.bf16 %v6223, %v6222
      %v6239 = vpack.c.bf16 %v6231, %v6230
      %v6240 = vpack.c.bf16 %v6225, %v6224
      %v6241 = vpack.c.bf16 %v6233, %v6232
      %v6242 = vpack.c.bf16 %v6227, %v6226
      %v6243 = vpack.c.bf16 %v6235, %v6234
      %v6244 = vmul.bf16 %v6236, %v3335
      %v6245 = vmul.bf16 %v6237, %v3342
      %v6246 = vmul.bf16 %v6238, %v3335
      %v6247 = vmul.bf16 %v6239, %v3342
      %v6248 = vmul.bf16 %v6240, %v3335
      %v6249 = vmul.bf16 %v6241, %v3342
      %v6250 = vmul.bf16 %v6242, %v3335
      %v6251 = vmul.bf16 %v6243, %v3342
      %s6252 = scalar_lea.vmem %s12, 112
      %v6253 = vld [vmem:[%s6252] sm:$0xf]
      %v6254 = vld [vmem:[%s6252 + $0x4] sm:$0xf]
      %v6255 = vld [vmem:[%s6252 + $0x8] sm:$0xf]
      %v6256 = vld [vmem:[%s6252 + $0xc] sm:$0xf]
      %v6261 = vunpack.c.l.b16 %v6253
      %v6262 = vunpack.c.l.b16 %v6254
      %v6263 = vunpack.c.l.b16 %v6255
      %v6264 = vunpack.c.l.b16 %v6256
      %v6265 = vpack.c.b16 %v6262, %v6261
      %v6266 = vpack.c.b16 %v6264, %v6263
      %v6268 = vsel %vm1673, %v6265, 0
      %v6271 = vsel %vm1673, %v6266, 0
      %6273 = vmatprep.subr.bf16.mxu0 0
      %6274 = vmatpush1.bf16.msra.mxu0 0
      %6275 = vmatprep.subr.bf16.mxu0 0
      %6276 = vmatpush1.bf16.msra.mxu0 0
      %6277 = vmatprep.subr.bf16.mxu0 0
      %6278 = vmatpush1.bf16.msra.mxu0 0
      %6279 = vmatprep.subr.bf16.mxu0 0
      %6280 = vmatpush1.bf16.msra.mxu0 0
      %6281 = vmatprep.subr.bf16.mxu0 %v6251
      %6282 = vmatpush1.bf16.msra.mxu0 %v6250
      %6283 = vmatprep.subr.bf16.mxu0 %v6249
      %6284 = vmatpush1.bf16.msra.mxu0 %v6248
      %6285 = vmatprep.subr.bf16.mxu0 %v6247
      %6286 = vmatpush1.bf16.msra.mxu0 %v6246
      %6287 = vmatprep.subr.bf16.mxu0 %v6245
      %6288 = vmatpush1.bf16.msra.mxu0 %v6244
      %6289 = vmatprep.subr.bf16.mxu0 0
      %6290 = vmatpush2.bf16.msra.mxu0 0
      %6291 = vmatprep.subr.bf16.mxu0 0
      %6292 = vmatpush2.bf16.msra.mxu0 0
      %6293 = vmatprep.subr.bf16.mxu0 0
      %6294 = vmatpush2.bf16.msra.mxu0 0
      %6295 = vmatprep.subr.bf16.mxu0 0
      %6296 = vmatpush2.bf16.msra.mxu0 0
      %6297 = vmatprep.subr.bf16.mxu0 0
      %6298 = vmatpush2.bf16.msra.mxu0 0
      %6299 = vmatprep.subr.bf16.mxu0 0
      %6300 = vmatpush2.bf16.msra.mxu0 0
      %6301 = vmatprep.subr.bf16.mxu0 0
      %6302 = vmatpush2.bf16.msra.mxu0 0
      %6303 = vmatprep.subr.bf16.mxu0 0
      %6304 = vmatpush2.bf16.msra.mxu0 0
      %6305 = vmatprep.mubr.bf16.mxu0 0
      %6306 = vmatmul.mubr.bf16.gmra.mxu0 %v6268
      %v6307 = vpop.f32.mrf.mxu0
      %v6308 = vadd.f32 0.0, %v6307
      %v6309 = vpop.f32.mrf.mxu0
      %v6310 = vadd.f32 0.0, %v6309
      %v6311 = vpop.f32.mrf.mxu0
      %v6312 = vadd.f32 0.0, %v6311
      %v6313 = vpop.f32.mrf.mxu0
      %v6314 = vadd.f32 0.0, %v6313
      %6315 = vmatprep.mubr.bf16.mxu0 0
      %6316 = vmatmul.mubr.bf16.gmra.mxu0 %v6271
      %v6317 = vpop.f32.mrf.mxu0
      %v6318 = vadd.f32 0.0, %v6317
      %v6319 = vpop.f32.mrf.mxu0
      %v6320 = vadd.f32 0.0, %v6319
      %v6321 = vpop.f32.mrf.mxu0
      %v6322 = vadd.f32 0.0, %v6321
      %v6323 = vpop.f32.mrf.mxu0
      %v6324 = vadd.f32 0.0, %v6323
      %6325 = vdwg.mxu0
      %v6326 = vadd.f32 %v6180, %v6308
      %v6327 = vadd.f32 %v6181, %v6310
      %v6328 = vadd.f32 %v6182, %v6312
      %v6329 = vadd.f32 %v6183, %v6314
      %v6330 = vadd.f32 %v6184, %v6318
      %v6331 = vadd.f32 %v6185, %v6320
      %v6332 = vadd.f32 %v6186, %v6322
      %v6333 = vadd.f32 %v6187, %v6324
      %6334 = vrot.lane.b32.xlu0 %v5201, 111
      %v6335 = vpop.permute.xlu0 %6334
      %6336 = vrot.lane.b32.xlu0 %v5205, 111
      %v6337 = vpop.permute.xlu0 %6336
      %6338 = vrot.lane.b32.xlu0 %v5211, 111
      %v6339 = vpop.permute.xlu0 %6338
      %6340 = vrot.lane.b32.xlu0 %v5215, 111
      %v6341 = vpop.permute.xlu0 %6340
      %6342 = vrot.lane.b32.xlu0 %v5221, 111
      %v6343 = vpop.permute.xlu0 %6342
      %6344 = vrot.lane.b32.xlu0 %v5225, 111
      %v6345 = vpop.permute.xlu0 %6344
      %6346 = vrot.lane.b32.xlu0 %v5231, 111
      %v6347 = vpop.permute.xlu0 %6346
      %6348 = vrot.lane.b32.xlu0 %v5235, 111
      %v6349 = vpop.permute.xlu0 %6348
      %6350 = vrot.lane.b32.xlu0 %v5203, 111
      %v6351 = vpop.permute.xlu0 %6350
      %6352 = vrot.lane.b32.xlu0 %v5207, 111
      %v6353 = vpop.permute.xlu0 %6352
      %6354 = vrot.lane.b32.xlu0 %v5213, 111
      %v6355 = vpop.permute.xlu0 %6354
      %6356 = vrot.lane.b32.xlu0 %v5217, 111
      %v6357 = vpop.permute.xlu0 %6356
      %6358 = vrot.lane.b32.xlu0 %v5223, 111
      %v6359 = vpop.permute.xlu0 %6358
      %6360 = vrot.lane.b32.xlu0 %v5227, 111
      %v6361 = vpop.permute.xlu0 %6360
      %6362 = vrot.lane.b32.xlu0 %v5233, 111
      %v6363 = vpop.permute.xlu0 %6362
      %6364 = vrot.lane.b32.xlu0 %v5237, 111
      %v6365 = vpop.permute.xlu0 %6364
      %v6366 = vsel %vm1401, %v6335, %v6351
      %v6367 = vsel %vm1401, %v6337, %v6353
      %v6368 = vsel %vm1401, %v6339, %v6355
      %v6369 = vsel %vm1401, %v6341, %v6357
      %v6370 = vsel %vm1401, %v6343, %v6359
      %v6371 = vsel %vm1401, %v6345, %v6361
      %v6372 = vsel %vm1401, %v6347, %v6363
      %v6373 = vsel %vm1401, %v6349, %v6365
      %v6374 = vsel %vm1401, %v6351, %v6335
      %v6375 = vsel %vm1401, %v6353, %v6337
      %v6376 = vsel %vm1401, %v6355, %v6339
      %v6377 = vsel %vm1401, %v6357, %v6341
      %v6378 = vsel %vm1401, %v6359, %v6343
      %v6379 = vsel %vm1401, %v6361, %v6345
      %v6380 = vsel %vm1401, %v6363, %v6347
      %v6381 = vsel %vm1401, %v6365, %v6349
      %v6382 = vpack.c.bf16 %v6367, %v6366
      %v6383 = vpack.c.bf16 %v6375, %v6374
      %v6384 = vpack.c.bf16 %v6369, %v6368
      %v6385 = vpack.c.bf16 %v6377, %v6376
      %v6386 = vpack.c.bf16 %v6371, %v6370
      %v6387 = vpack.c.bf16 %v6379, %v6378
      %v6388 = vpack.c.bf16 %v6373, %v6372
      %v6389 = vpack.c.bf16 %v6381, %v6380
      %v6390 = vmul.bf16 %v6382, %v3566
      %v6391 = vmul.bf16 %v6383, %v3573
      %v6392 = vmul.bf16 %v6384, %v3566
      %v6393 = vmul.bf16 %v6385, %v3573
      %v6394 = vmul.bf16 %v6386, %v3566
      %v6395 = vmul.bf16 %v6387, %v3573
      %v6396 = vmul.bf16 %v6388, %v3566
      %v6397 = vmul.bf16 %v6389, %v3573
      %s6398 = scalar_lea.vmem %s12, 128
      %v6399 = vld [vmem:[%s6398] sm:$0xf]
      %v6400 = vld [vmem:[%s6398 + $0x4] sm:$0xf]
      %v6401 = vld [vmem:[%s6398 + $0x8] sm:$0xf]
      %v6402 = vld [vmem:[%s6398 + $0xc] sm:$0xf]
      %v6407 = vunpack.c.l.b16 %v6399
      %v6408 = vunpack.c.l.b16 %v6400
      %v6409 = vunpack.c.l.b16 %v6401
      %v6410 = vunpack.c.l.b16 %v6402
      %v6411 = vpack.c.b16 %v6408, %v6407
      %v6412 = vpack.c.b16 %v6410, %v6409
      %v6414 = vsel %vm1673, %v6411, 0
      %v6417 = vsel %vm1673, %v6412, 0
      %6419 = vmatprep.subr.bf16.mxu0 0
      %6420 = vmatpush1.bf16.msra.mxu0 0
      %6421 = vmatprep.subr.bf16.mxu0 0
      %6422 = vmatpush1.bf16.msra.mxu0 0
      %6423 = vmatprep.subr.bf16.mxu0 0
      %6424 = vmatpush1.bf16.msra.mxu0 0
      %6425 = vmatprep.subr.bf16.mxu0 0
      %6426 = vmatpush1.bf16.msra.mxu0 0
      %6427 = vmatprep.subr.bf16.mxu0 %v6397
      %6428 = vmatpush1.bf16.msra.mxu0 %v6396
      %6429 = vmatprep.subr.bf16.mxu0 %v6395
      %6430 = vmatpush1.bf16.msra.mxu0 %v6394
      %6431 = vmatprep.subr.bf16.mxu0 %v6393
      %6432 = vmatpush1.bf16.msra.mxu0 %v6392
      %6433 = vmatprep.subr.bf16.mxu0 %v6391
      %6434 = vmatpush1.bf16.msra.mxu0 %v6390
      %6435 = vmatprep.subr.bf16.mxu0 0
      %6436 = vmatpush2.bf16.msra.mxu0 0
      %6437 = vmatprep.subr.bf16.mxu0 0
      %6438 = vmatpush2.bf16.msra.mxu0 0
      %6439 = vmatprep.subr.bf16.mxu0 0
      %6440 = vmatpush2.bf16.msra.mxu0 0
      %6441 = vmatprep.subr.bf16.mxu0 0
      %6442 = vmatpush2.bf16.msra.mxu0 0
      %6443 = vmatprep.subr.bf16.mxu0 0
      %6444 = vmatpush2.bf16.msra.mxu0 0
      %6445 = vmatprep.subr.bf16.mxu0 0
      %6446 = vmatpush2.bf16.msra.mxu0 0
      %6447 = vmatprep.subr.bf16.mxu0 0
      %6448 = vmatpush2.bf16.msra.mxu0 0
      %6449 = vmatprep.subr.bf16.mxu0 0
      %6450 = vmatpush2.bf16.msra.mxu0 0
      %6451 = vmatprep.mubr.bf16.mxu0 0
      %6452 = vmatmul.mubr.bf16.gmra.mxu0 %v6414
      %v6453 = vpop.f32.mrf.mxu0
      %v6454 = vadd.f32 0.0, %v6453
      %v6455 = vpop.f32.mrf.mxu0
      %v6456 = vadd.f32 0.0, %v6455
      %v6457 = vpop.f32.mrf.mxu0
      %v6458 = vadd.f32 0.0, %v6457
      %v6459 = vpop.f32.mrf.mxu0
      %v6460 = vadd.f32 0.0, %v6459
      %6461 = vmatprep.mubr.bf16.mxu0 0
      %6462 = vmatmul.mubr.bf16.gmra.mxu0 %v6417
      %v6463 = vpop.f32.mrf.mxu0
      %v6464 = vadd.f32 0.0, %v6463
      %v6465 = vpop.f32.mrf.mxu0
      %v6466 = vadd.f32 0.0, %v6465
      %v6467 = vpop.f32.mrf.mxu0
      %v6468 = vadd.f32 0.0, %v6467
      %v6469 = vpop.f32.mrf.mxu0
      %v6470 = vadd.f32 0.0, %v6469
      %6471 = vdwg.mxu0
      %v6472 = vadd.f32 %v6326, %v6454
      %v6473 = vadd.f32 %v6327, %v6456
      %v6474 = vadd.f32 %v6328, %v6458
      %v6475 = vadd.f32 %v6329, %v6460
      %v6476 = vadd.f32 %v6330, %v6464
      %v6477 = vadd.f32 %v6331, %v6466
      %v6478 = vadd.f32 %v6332, %v6468
      %v6479 = vadd.f32 %v6333, %v6470
      %v6480 = vld [vmem:[%s13] sm:$0xff]
      %v6481 = vld [vmem:[%s13 + $0x8] sm:$0xff]
      %v6482 = vld [vmem:[%s13 + $0x10] sm:$0xff]
      %v6483 = vld [vmem:[%s13 + $0x18] sm:$0xff]
      %6485 = vset.pattern.permute.xlu0 0
      %6486 = vperm.xlu0 %6485, %v6480
      %v6487 = vpop.permute.xlu0 %6486
      %6490 = vset.pattern.permute.xlu0 0
      %6491 = vperm.xlu0 %6490, %v6481
      %v6492 = vpop.permute.xlu0 %6491
      %6495 = vset.pattern.permute.xlu0 0
      %6496 = vperm.xlu0 %6495, %v6482
      %v6497 = vpop.permute.xlu0 %6496
      %6500 = vset.pattern.permute.xlu0 0
      %6501 = vperm.xlu0 %6500, %v6483
      %v6502 = vpop.permute.xlu0 %6501
      %v6504 = vadd.f32 %v6472, %v6487
      %v6505 = vadd.f32 %v6473, %v6487
      %v6506 = vadd.f32 %v6474, %v6492
      %v6507 = vadd.f32 %v6475, %v6492
      %v6508 = vadd.f32 %v6476, %v6497
      %v6509 = vadd.f32 %v6477, %v6497
      %v6510 = vadd.f32 %v6478, %v6502
      %v6511 = vadd.f32 %v6479, %v6502
      %v6512 = vmax.f32 %v6504, 0.0
      %v6513 = vmax.f32 %v6505, 0.0
      %v6514 = vmax.f32 %v6506, 0.0
      %v6515 = vmax.f32 %v6507, 0.0
      %v6516 = vmax.f32 %v6508, 0.0
      %v6517 = vmax.f32 %v6509, 0.0
      %v6518 = vmax.f32 %v6510, 0.0
      %v6519 = vmax.f32 %v6511, 0.0
      %6520 = vrot.lane.b32.xlu0 %v6512, 17
      %v6521 = vpop.permute.xlu0 %6520
      %6522 = vrot.lane.b32.xlu0 %v6514, 17
      %v6523 = vpop.permute.xlu0 %6522
      %6524 = vrot.lane.b32.xlu0 %v6516, 17
      %v6525 = vpop.permute.xlu0 %6524
      %6526 = vrot.lane.b32.xlu0 %v6518, 17
      %v6527 = vpop.permute.xlu0 %6526
      %6528 = vrot.lane.b32.xlu0 %v6513, 17
      %v6529 = vpop.permute.xlu0 %6528
      %6530 = vrot.lane.b32.xlu0 %v6515, 17
      %v6531 = vpop.permute.xlu0 %6530
      %6532 = vrot.lane.b32.xlu0 %v6517, 17
      %v6533 = vpop.permute.xlu0 %6532
      %6534 = vrot.lane.b32.xlu0 %v6519, 17
      %v6535 = vpop.permute.xlu0 %6534
      %v6536 = vsel %vm538, %v6521, %v6529
      %v6537 = vsel %vm538, %v6523, %v6531
      %v6538 = vsel %vm538, %v6525, %v6533
      %v6539 = vsel %vm538, %v6527, %v6535
      %v6540 = vsel %vm538, %v6529, %v6521
      %v6541 = vsel %vm538, %v6531, %v6523
      %v6542 = vsel %vm538, %v6533, %v6525
      %v6543 = vsel %vm538, %v6535, %v6527
      %v6544 = vpack.c.bf16 %v6541, %v6540
      %v6545 = vpack.c.bf16 %v6537, %v6536
      %v6546 = vpack.c.bf16 %v6543, %v6542
      %v6547 = vpack.c.bf16 %v6539, %v6538
      %v6548 = vmul.bf16 %v6544, %v1844
      %v6549 = vmul.bf16 %v6545, %v1851
      %v6550 = vmul.bf16 %v6546, %v1844
      %v6551 = vmul.bf16 %v6547, %v1851
      %v6552 = vld [vmem:[%s14] sm:$0x1]
      %6553 = vrot.lane.b32.xlu0 %v6512, 16
      %v6554 = vpop.permute.xlu0 %6553
      %6555 = vrot.lane.b32.xlu0 %v6514, 16
      %v6556 = vpop.permute.xlu0 %6555
      %6557 = vrot.lane.b32.xlu0 %v6516, 16
      %v6558 = vpop.permute.xlu0 %6557
      %6559 = vrot.lane.b32.xlu0 %v6518, 16
      %v6560 = vpop.permute.xlu0 %6559
      %6561 = vrot.lane.b32.xlu0 %v6513, 16
      %v6562 = vpop.permute.xlu0 %6561
      %6563 = vrot.lane.b32.xlu0 %v6515, 16
      %v6564 = vpop.permute.xlu0 %6563
      %6565 = vrot.lane.b32.xlu0 %v6517, 16
      %v6566 = vpop.permute.xlu0 %6565
      %6567 = vrot.lane.b32.xlu0 %v6519, 16
      %v6568 = vpop.permute.xlu0 %6567
      %v6569 = vsel %vm648, %v6554, %v6562
      %v6570 = vsel %vm648, %v6556, %v6564
      %v6571 = vsel %vm648, %v6558, %v6566
      %v6572 = vsel %vm648, %v6560, %v6568
      %v6573 = vsel %vm648, %v6562, %v6554
      %v6574 = vsel %vm648, %v6564, %v6556
      %v6575 = vsel %vm648, %v6566, %v6558
      %v6576 = vsel %vm648, %v6568, %v6560
      %v6577 = vpack.c.bf16 %v6574, %v6573
      %v6578 = vpack.c.bf16 %v6570, %v6569
      %v6579 = vpack.c.bf16 %v6576, %v6575
      %v6580 = vpack.c.bf16 %v6572, %v6571
      %v6581 = vmul.bf16 %v6577, %v1953
      %v6582 = vmul.bf16 %v6578, %v1960
      %v6583 = vmul.bf16 %v6579, %v1953
      %v6584 = vmul.bf16 %v6580, %v1960
      %s6585 = scalar_lea.vmem %s14, 1
      %v6586 = vld [vmem:[%s6585] sm:$0x1]
      %v6588 = vsel %vm5153, %v6586, 0
      %6590 = vmatprep.subr.bf16.mxu0 0
      %6591 = vmatpush1.bf16.msra.mxu0 0
      %6592 = vmatprep.subr.bf16.mxu0 0
      %6593 = vmatpush1.bf16.msra.mxu0 0
      %6594 = vmatprep.subr.bf16.mxu0 0
      %6595 = vmatpush1.bf16.msra.mxu0 0
      %6596 = vmatprep.subr.bf16.mxu0 0
      %6597 = vmatpush1.bf16.msra.mxu0 0
      %6598 = vmatprep.subr.bf16.mxu0 0
      %6599 = vmatpush1.bf16.msra.mxu0 0
      %6600 = vmatprep.subr.bf16.mxu0 0
      %6601 = vmatpush1.bf16.msra.mxu0 0
      %6602 = vmatprep.subr.bf16.mxu0 %v6584
      %6603 = vmatpush1.bf16.msra.mxu0 %v6583
      %6604 = vmatprep.subr.bf16.mxu0 %v6582
      %6605 = vmatpush1.bf16.msra.mxu0 %v6581
      %6606 = vmatprep.subr.bf16.mxu0 0
      %6607 = vmatpush2.bf16.msra.mxu0 0
      %6608 = vmatprep.subr.bf16.mxu0 0
      %6609 = vmatpush2.bf16.msra.mxu0 0
      %6610 = vmatprep.subr.bf16.mxu0 0
      %6611 = vmatpush2.bf16.msra.mxu0 0
      %6612 = vmatprep.subr.bf16.mxu0 0
      %6613 = vmatpush2.bf16.msra.mxu0 0
      %6614 = vmatprep.subr.bf16.mxu0 0
      %6615 = vmatpush2.bf16.msra.mxu0 0
      %6616 = vmatprep.subr.bf16.mxu0 0
      %6617 = vmatpush2.bf16.msra.mxu0 0
      %6618 = vmatprep.subr.bf16.mxu0 0
      %6619 = vmatpush2.bf16.msra.mxu0 0
      %6620 = vmatprep.subr.bf16.mxu0 0
      %6621 = vmatpush2.bf16.msra.mxu0 0
      %6622 = vmatprep.mubr.bf16.mxu0 0
      %6623 = vmatmul.mubr.bf16.gmra.mxu0 %v6588
      %v6624 = vpop.f32.mrf.mxu0
      %v6625 = vadd.f32 0.0, %v6624
      %v6626 = vpop.f32.mrf.mxu0
      %v6627 = vadd.f32 0.0, %v6626
      %v6628 = vpop.f32.mrf.mxu0
      %v6629 = vpop.f32.mrf.mxu0
      %6630 = vdwg.mxu0
      %v6632 = vsel %vm5153, %v6552, 0
      %6634 = vmatprep.subr.bf16.mxu0 0
      %6635 = vmatpush1.bf16.msra.mxu0 0
      %6636 = vmatprep.subr.bf16.mxu0 0
      %6637 = vmatpush1.bf16.msra.mxu0 0
      %6638 = vmatprep.subr.bf16.mxu0 0
      %6639 = vmatpush1.bf16.msra.mxu0 0
      %6640 = vmatprep.subr.bf16.mxu0 0
      %6641 = vmatpush1.bf16.msra.mxu0 0
      %6642 = vmatprep.subr.bf16.mxu0 0
      %6643 = vmatpush1.bf16.msra.mxu0 0
      %6644 = vmatprep.subr.bf16.mxu0 0
      %6645 = vmatpush1.bf16.msra.mxu0 0
      %6646 = vmatprep.subr.bf16.mxu0 %v6551
      %6647 = vmatpush1.bf16.msra.mxu0 %v6550
      %6648 = vmatprep.subr.bf16.mxu0 %v6549
      %6649 = vmatpush1.bf16.msra.mxu0 %v6548
      %6650 = vmatprep.subr.bf16.mxu0 0
      %6651 = vmatpush2.bf16.msra.mxu0 0
      %6652 = vmatprep.subr.bf16.mxu0 0
      %6653 = vmatpush2.bf16.msra.mxu0 0
      %6654 = vmatprep.subr.bf16.mxu0 0
      %6655 = vmatpush2.bf16.msra.mxu0 0
      %6656 = vmatprep.subr.bf16.mxu0 0
      %6657 = vmatpush2.bf16.msra.mxu0 0
      %6658 = vmatprep.subr.bf16.mxu0 0
      %6659 = vmatpush2.bf16.msra.mxu0 0
      %6660 = vmatprep.subr.bf16.mxu0 0
      %6661 = vmatpush2.bf16.msra.mxu0 0
      %6662 = vmatprep.subr.bf16.mxu0 0
      %6663 = vmatpush2.bf16.msra.mxu0 0
      %6664 = vmatprep.subr.bf16.mxu0 0
      %6665 = vmatpush2.bf16.msra.mxu0 0
      %6666 = vmatprep.mubr.bf16.mxu0 0
      %6667 = vmatmul.mubr.bf16.gmra.mxu0 %v6632
      %v6668 = vpop.f32.mrf.mxu0
      %v6669 = vadd.f32 %v6625, %v6668
      %v6670 = vpop.f32.mrf.mxu0
      %v6671 = vadd.f32 %v6627, %v6670
      %v6672 = vpop.f32.mrf.mxu0
      %v6673 = vpop.f32.mrf.mxu0
      %6674 = vdwg.mxu0
      %6675 = vrot.lane.b32.xlu0 %v6512, 15
      %v6676 = vpop.permute.xlu0 %6675
      %6677 = vrot.lane.b32.xlu0 %v6514, 15
      %v6678 = vpop.permute.xlu0 %6677
      %6679 = vrot.lane.b32.xlu0 %v6516, 15
      %v6680 = vpop.permute.xlu0 %6679
      %6681 = vrot.lane.b32.xlu0 %v6518, 15
      %v6682 = vpop.permute.xlu0 %6681
      %6683 = vrot.lane.b32.xlu0 %v6513, 15
      %v6684 = vpop.permute.xlu0 %6683
      %6685 = vrot.lane.b32.xlu0 %v6515, 15
      %v6686 = vpop.permute.xlu0 %6685
      %6687 = vrot.lane.b32.xlu0 %v6517, 15
      %v6688 = vpop.permute.xlu0 %6687
      %6689 = vrot.lane.b32.xlu0 %v6519, 15
      %v6690 = vpop.permute.xlu0 %6689
      %v6691 = vsel %vm760, %v6676, %v6684
      %v6692 = vsel %vm760, %v6678, %v6686
      %v6693 = vsel %vm760, %v6680, %v6688
      %v6694 = vsel %vm760, %v6682, %v6690
      %v6695 = vsel %vm760, %v6684, %v6676
      %v6696 = vsel %vm760, %v6686, %v6678
      %v6697 = vsel %vm760, %v6688, %v6680
      %v6698 = vsel %vm760, %v6690, %v6682
      %v6699 = vpack.c.bf16 %v6696, %v6695
      %v6700 = vpack.c.bf16 %v6692, %v6691
      %v6701 = vpack.c.bf16 %v6698, %v6697
      %v6702 = vpack.c.bf16 %v6694, %v6693
      %v6703 = vmul.bf16 %v6699, %v2273
      %v6704 = vmul.bf16 %v6700, %v2280
      %v6705 = vmul.bf16 %v6701, %v2273
      %v6706 = vmul.bf16 %v6702, %v2280
      %s6707 = scalar_lea.vmem %s14, 2
      %v6708 = vld [vmem:[%s6707] sm:$0x1]
      %v6710 = vsel %vm5153, %v6708, 0
      %6712 = vmatprep.subr.bf16.mxu0 0
      %6713 = vmatpush1.bf16.msra.mxu0 0
      %6714 = vmatprep.subr.bf16.mxu0 0
      %6715 = vmatpush1.bf16.msra.mxu0 0
      %6716 = vmatprep.subr.bf16.mxu0 0
      %6717 = vmatpush1.bf16.msra.mxu0 0
      %6718 = vmatprep.subr.bf16.mxu0 0
      %6719 = vmatpush1.bf16.msra.mxu0 0
      %6720 = vmatprep.subr.bf16.mxu0 0
      %6721 = vmatpush1.bf16.msra.mxu0 0
      %6722 = vmatprep.subr.bf16.mxu0 0
      %6723 = vmatpush1.bf16.msra.mxu0 0
      %6724 = vmatprep.subr.bf16.mxu0 %v6706
      %6725 = vmatpush1.bf16.msra.mxu0 %v6705
      %6726 = vmatprep.subr.bf16.mxu0 %v6704
      %6727 = vmatpush1.bf16.msra.mxu0 %v6703
      %6728 = vmatprep.subr.bf16.mxu0 0
      %6729 = vmatpush2.bf16.msra.mxu0 0
      %6730 = vmatprep.subr.bf16.mxu0 0
      %6731 = vmatpush2.bf16.msra.mxu0 0
      %6732 = vmatprep.subr.bf16.mxu0 0
      %6733 = vmatpush2.bf16.msra.mxu0 0
      %6734 = vmatprep.subr.bf16.mxu0 0
      %6735 = vmatpush2.bf16.msra.mxu0 0
      %6736 = vmatprep.subr.bf16.mxu0 0
      %6737 = vmatpush2.bf16.msra.mxu0 0
      %6738 = vmatprep.subr.bf16.mxu0 0
      %6739 = vmatpush2.bf16.msra.mxu0 0
      %6740 = vmatprep.subr.bf16.mxu0 0
      %6741 = vmatpush2.bf16.msra.mxu0 0
      %6742 = vmatprep.subr.bf16.mxu0 0
      %6743 = vmatpush2.bf16.msra.mxu0 0
      %6744 = vmatprep.mubr.bf16.mxu0 0
      %6745 = vmatmul.mubr.bf16.gmra.mxu0 %v6710
      %v6746 = vpop.f32.mrf.mxu0
      %v6747 = vadd.f32 0.0, %v6746
      %v6748 = vpop.f32.mrf.mxu0
      %v6749 = vadd.f32 0.0, %v6748
      %v6750 = vpop.f32.mrf.mxu0
      %v6751 = vpop.f32.mrf.mxu0
      %6752 = vdwg.mxu0
      %v6753 = vadd.f32 %v6669, %v6747
      %v6754 = vadd.f32 %v6671, %v6749
      %6755 = vrot.lane.b32.xlu0 %v6512, 1
      %v6756 = vpop.permute.xlu0 %6755
      %6757 = vrot.lane.b32.xlu0 %v6514, 1
      %v6758 = vpop.permute.xlu0 %6757
      %6759 = vrot.lane.b32.xlu0 %v6516, 1
      %v6760 = vpop.permute.xlu0 %6759
      %6761 = vrot.lane.b32.xlu0 %v6518, 1
      %v6762 = vpop.permute.xlu0 %6761
      %6763 = vrot.lane.b32.xlu0 %v6513, 1
      %v6764 = vpop.permute.xlu0 %6763
      %6765 = vrot.lane.b32.xlu0 %v6515, 1
      %v6766 = vpop.permute.xlu0 %6765
      %6767 = vrot.lane.b32.xlu0 %v6517, 1
      %v6768 = vpop.permute.xlu0 %6767
      %6769 = vrot.lane.b32.xlu0 %v6519, 1
      %v6770 = vpop.permute.xlu0 %6769
      %v6771 = vsel %vm872, %v6756, %v6764
      %v6772 = vsel %vm872, %v6758, %v6766
      %v6773 = vsel %vm872, %v6760, %v6768
      %v6774 = vsel %vm872, %v6762, %v6770
      %v6775 = vsel %vm872, %v6764, %v6756
      %v6776 = vsel %vm872, %v6766, %v6758
      %v6777 = vsel %vm872, %v6768, %v6760
      %v6778 = vsel %vm872, %v6770, %v6762
      %v6779 = vpack.c.bf16 %v6776, %v6775
      %v6780 = vpack.c.bf16 %v6772, %v6771
      %v6781 = vpack.c.bf16 %v6778, %v6777
      %v6782 = vpack.c.bf16 %v6774, %v6773
      %v6783 = vmul.bf16 %v6779, %v2504
      %v6784 = vmul.bf16 %v6780, %v2511
      %v6785 = vmul.bf16 %v6781, %v2504
      %v6786 = vmul.bf16 %v6782, %v2511
      %s6787 = scalar_lea.vmem %s14, 3
      %v6788 = vld [vmem:[%s6787] sm:$0x1]
      %v6790 = vsel %vm5153, %v6788, 0
      %6792 = vmatprep.subr.bf16.mxu0 0
      %6793 = vmatpush1.bf16.msra.mxu0 0
      %6794 = vmatprep.subr.bf16.mxu0 0
      %6795 = vmatpush1.bf16.msra.mxu0 0
      %6796 = vmatprep.subr.bf16.mxu0 0
      %6797 = vmatpush1.bf16.msra.mxu0 0
      %6798 = vmatprep.subr.bf16.mxu0 0
      %6799 = vmatpush1.bf16.msra.mxu0 0
      %6800 = vmatprep.subr.bf16.mxu0 0
      %6801 = vmatpush1.bf16.msra.mxu0 0
      %6802 = vmatprep.subr.bf16.mxu0 0
      %6803 = vmatpush1.bf16.msra.mxu0 0
      %6804 = vmatprep.subr.bf16.mxu0 %v6786
      %6805 = vmatpush1.bf16.msra.mxu0 %v6785
      %6806 = vmatprep.subr.bf16.mxu0 %v6784
      %6807 = vmatpush1.bf16.msra.mxu0 %v6783
      %6808 = vmatprep.subr.bf16.mxu0 0
      %6809 = vmatpush2.bf16.msra.mxu0 0
      %6810 = vmatprep.subr.bf16.mxu0 0
      %6811 = vmatpush2.bf16.msra.mxu0 0
      %6812 = vmatprep.subr.bf16.mxu0 0
      %6813 = vmatpush2.bf16.msra.mxu0 0
      %6814 = vmatprep.subr.bf16.mxu0 0
      %6815 = vmatpush2.bf16.msra.mxu0 0
      %6816 = vmatprep.subr.bf16.mxu0 0
      %6817 = vmatpush2.bf16.msra.mxu0 0
      %6818 = vmatprep.subr.bf16.mxu0 0
      %6819 = vmatpush2.bf16.msra.mxu0 0
      %6820 = vmatprep.subr.bf16.mxu0 0
      %6821 = vmatpush2.bf16.msra.mxu0 0
      %6822 = vmatprep.subr.bf16.mxu0 0
      %6823 = vmatpush2.bf16.msra.mxu0 0
      %6824 = vmatprep.mubr.bf16.mxu0 0
      %6825 = vmatmul.mubr.bf16.gmra.mxu0 %v6790
      %v6826 = vpop.f32.mrf.mxu0
      %v6827 = vadd.f32 0.0, %v6826
      %v6828 = vpop.f32.mrf.mxu0
      %v6829 = vadd.f32 0.0, %v6828
      %v6830 = vpop.f32.mrf.mxu0
      %v6831 = vpop.f32.mrf.mxu0
      %6832 = vdwg.mxu0
      %v6833 = vadd.f32 %v6753, %v6827
      %v6834 = vadd.f32 %v6754, %v6829
      %v6835 = vpack.c.bf16 %v6514, %v6512
      %v6836 = vpack.c.bf16 %v6515, %v6513
      %v6837 = vpack.c.bf16 %v6518, %v6516
      %v6838 = vpack.c.bf16 %v6519, %v6517
      %s6839 = scalar_lea.vmem %s14, 4
      %v6840 = vld [vmem:[%s6839] sm:$0x1]
      %v6842 = vsel %vm5153, %v6840, 0
      %6844 = vmatprep.subr.bf16.mxu0 0
      %6845 = vmatpush1.bf16.msra.mxu0 0
      %6846 = vmatprep.subr.bf16.mxu0 0
      %6847 = vmatpush1.bf16.msra.mxu0 0
      %6848 = vmatprep.subr.bf16.mxu0 0
      %6849 = vmatpush1.bf16.msra.mxu0 0
      %6850 = vmatprep.subr.bf16.mxu0 0
      %6851 = vmatpush1.bf16.msra.mxu0 0
      %6852 = vmatprep.subr.bf16.mxu0 0
      %6853 = vmatpush1.bf16.msra.mxu0 0
      %6854 = vmatprep.subr.bf16.mxu0 0
      %6855 = vmatpush1.bf16.msra.mxu0 0
      %6856 = vmatprep.subr.bf16.mxu0 %v6838
      %6857 = vmatpush1.bf16.msra.mxu0 %v6837
      %6858 = vmatprep.subr.bf16.mxu0 %v6836
      %6859 = vmatpush1.bf16.msra.mxu0 %v6835
      %6860 = vmatprep.subr.bf16.mxu0 0
      %6861 = vmatpush2.bf16.msra.mxu0 0
      %6862 = vmatprep.subr.bf16.mxu0 0
      %6863 = vmatpush2.bf16.msra.mxu0 0
      %6864 = vmatprep.subr.bf16.mxu0 0
      %6865 = vmatpush2.bf16.msra.mxu0 0
      %6866 = vmatprep.subr.bf16.mxu0 0
      %6867 = vmatpush2.bf16.msra.mxu0 0
      %6868 = vmatprep.subr.bf16.mxu0 0
      %6869 = vmatpush2.bf16.msra.mxu0 0
      %6870 = vmatprep.subr.bf16.mxu0 0
      %6871 = vmatpush2.bf16.msra.mxu0 0
      %6872 = vmatprep.subr.bf16.mxu0 0
      %6873 = vmatpush2.bf16.msra.mxu0 0
      %6874 = vmatprep.subr.bf16.mxu0 0
      %6875 = vmatpush2.bf16.msra.mxu0 0
      %6876 = vmatprep.mubr.bf16.mxu0 0
      %6877 = vmatmul.mubr.bf16.gmra.mxu0 %v6842
      %v6878 = vpop.f32.mrf.mxu0
      %v6879 = vadd.f32 0.0, %v6878
      %v6880 = vpop.f32.mrf.mxu0
      %v6881 = vadd.f32 0.0, %v6880
      %v6882 = vpop.f32.mrf.mxu0
      %v6883 = vpop.f32.mrf.mxu0
      %6884 = vdwg.mxu0
      %v6885 = vadd.f32 %v6833, %v6879
      %v6886 = vadd.f32 %v6834, %v6881
      %6887 = vrot.lane.b32.xlu0 %v6512, 127
      %v6888 = vpop.permute.xlu0 %6887
      %6889 = vrot.lane.b32.xlu0 %v6514, 127
      %v6890 = vpop.permute.xlu0 %6889
      %6891 = vrot.lane.b32.xlu0 %v6516, 127
      %v6892 = vpop.permute.xlu0 %6891
      %6893 = vrot.lane.b32.xlu0 %v6518, 127
      %v6894 = vpop.permute.xlu0 %6893
      %6895 = vrot.lane.b32.xlu0 %v6513, 127
      %v6896 = vpop.permute.xlu0 %6895
      %6897 = vrot.lane.b32.xlu0 %v6515, 127
      %v6898 = vpop.permute.xlu0 %6897
      %6899 = vrot.lane.b32.xlu0 %v6517, 127
      %v6900 = vpop.permute.xlu0 %6899
      %6901 = vrot.lane.b32.xlu0 %v6519, 127
      %v6902 = vpop.permute.xlu0 %6901
      %v6903 = vsel %vm1065, %v6888, %v6896
      %v6904 = vsel %vm1065, %v6890, %v6898
      %v6905 = vsel %vm1065, %v6892, %v6900
      %v6906 = vsel %vm1065, %v6894, %v6902
      %v6907 = vsel %vm1065, %v6896, %v6888
      %v6908 = vsel %vm1065, %v6898, %v6890
      %v6909 = vsel %vm1065, %v6900, %v6892
      %v6910 = vsel %vm1065, %v6902, %v6894
      %v6911 = vpack.c.bf16 %v6904, %v6903
      %v6912 = vpack.c.bf16 %v6908, %v6907
      %v6913 = vpack.c.bf16 %v6906, %v6905
      %v6914 = vpack.c.bf16 %v6910, %v6909
      %v6915 = vmul.bf16 %v6911, %v2873
      %v6916 = vmul.bf16 %v6912, %v2880
      %v6917 = vmul.bf16 %v6913, %v2873
      %v6918 = vmul.bf16 %v6914, %v2880
      %s6919 = scalar_lea.vmem %s14, 5
      %v6920 = vld [vmem:[%s6919] sm:$0x1]
      %v6922 = vsel %vm5153, %v6920, 0
      %6924 = vmatprep.subr.bf16.mxu0 0
      %6925 = vmatpush1.bf16.msra.mxu0 0
      %6926 = vmatprep.subr.bf16.mxu0 0
      %6927 = vmatpush1.bf16.msra.mxu0 0
      %6928 = vmatprep.subr.bf16.mxu0 0
      %6929 = vmatpush1.bf16.msra.mxu0 0
      %6930 = vmatprep.subr.bf16.mxu0 0
      %6931 = vmatpush1.bf16.msra.mxu0 0
      %6932 = vmatprep.subr.bf16.mxu0 0
      %6933 = vmatpush1.bf16.msra.mxu0 0
      %6934 = vmatprep.subr.bf16.mxu0 0
      %6935 = vmatpush1.bf16.msra.mxu0 0
      %6936 = vmatprep.subr.bf16.mxu0 %v6918
      %6937 = vmatpush1.bf16.msra.mxu0 %v6917
      %6938 = vmatprep.subr.bf16.mxu0 %v6916
      %6939 = vmatpush1.bf16.msra.mxu0 %v6915
      %6940 = vmatprep.subr.bf16.mxu0 0
      %6941 = vmatpush2.bf16.msra.mxu0 0
      %6942 = vmatprep.subr.bf16.mxu0 0
      %6943 = vmatpush2.bf16.msra.mxu0 0
      %6944 = vmatprep.subr.bf16.mxu0 0
      %6945 = vmatpush2.bf16.msra.mxu0 0
      %6946 = vmatprep.subr.bf16.mxu0 0
      %6947 = vmatpush2.bf16.msra.mxu0 0
      %6948 = vmatprep.subr.bf16.mxu0 0
      %6949 = vmatpush2.bf16.msra.mxu0 0
      %6950 = vmatprep.subr.bf16.mxu0 0
      %6951 = vmatpush2.bf16.msra.mxu0 0
      %6952 = vmatprep.subr.bf16.mxu0 0
      %6953 = vmatpush2.bf16.msra.mxu0 0
      %6954 = vmatprep.subr.bf16.mxu0 0
      %6955 = vmatpush2.bf16.msra.mxu0 0
      %6956 = vmatprep.mubr.bf16.mxu0 0
      %6957 = vmatmul.mubr.bf16.gmra.mxu0 %v6922
      %v6958 = vpop.f32.mrf.mxu0
      %v6959 = vadd.f32 0.0, %v6958
      %v6960 = vpop.f32.mrf.mxu0
      %v6961 = vadd.f32 0.0, %v6960
      %v6962 = vpop.f32.mrf.mxu0
      %v6963 = vpop.f32.mrf.mxu0
      %6964 = vdwg.mxu0
      %v6965 = vadd.f32 %v6885, %v6959
      %v6966 = vadd.f32 %v6886, %v6961
      %6967 = vrot.lane.b32.xlu0 %v6512, 113
      %v6968 = vpop.permute.xlu0 %6967
      %6969 = vrot.lane.b32.xlu0 %v6514, 113
      %v6970 = vpop.permute.xlu0 %6969
      %6971 = vrot.lane.b32.xlu0 %v6516, 113
      %v6972 = vpop.permute.xlu0 %6971
      %6973 = vrot.lane.b32.xlu0 %v6518, 113
      %v6974 = vpop.permute.xlu0 %6973
      %6975 = vrot.lane.b32.xlu0 %v6513, 113
      %v6976 = vpop.permute.xlu0 %6975
      %6977 = vrot.lane.b32.xlu0 %v6515, 113
      %v6978 = vpop.permute.xlu0 %6977
      %6979 = vrot.lane.b32.xlu0 %v6517, 113
      %v6980 = vpop.permute.xlu0 %6979
      %6981 = vrot.lane.b32.xlu0 %v6519, 113
      %v6982 = vpop.permute.xlu0 %6981
      %v6983 = vsel %vm1177, %v6968, %v6976
      %v6984 = vsel %vm1177, %v6970, %v6978
      %v6985 = vsel %vm1177, %v6972, %v6980
      %v6986 = vsel %vm1177, %v6974, %v6982
      %v6987 = vsel %vm1177, %v6976, %v6968
      %v6988 = vsel %vm1177, %v6978, %v6970
      %v6989 = vsel %vm1177, %v6980, %v6972
      %v6990 = vsel %vm1177, %v6982, %v6974
      %v6991 = vpack.c.bf16 %v6984, %v6983
      %v6992 = vpack.c.bf16 %v6988, %v6987
      %v6993 = vpack.c.bf16 %v6986, %v6985
      %v6994 = vpack.c.bf16 %v6990, %v6989
      %v6995 = vmul.bf16 %v6991, %v3104
      %v6996 = vmul.bf16 %v6992, %v3111
      %v6997 = vmul.bf16 %v6993, %v3104
      %v6998 = vmul.bf16 %v6994, %v3111
      %s6999 = scalar_lea.vmem %s14, 6
      %v7000 = vld [vmem:[%s6999] sm:$0x1]
      %v7002 = vsel %vm5153, %v7000, 0
      %7004 = vmatprep.subr.bf16.mxu0 0
      %7005 = vmatpush1.bf16.msra.mxu0 0
      %7006 = vmatprep.subr.bf16.mxu0 0
      %7007 = vmatpush1.bf16.msra.mxu0 0
      %7008 = vmatprep.subr.bf16.mxu0 0
      %7009 = vmatpush1.bf16.msra.mxu0 0
      %7010 = vmatprep.subr.bf16.mxu0 0
      %7011 = vmatpush1.bf16.msra.mxu0 0
      %7012 = vmatprep.subr.bf16.mxu0 0
      %7013 = vmatpush1.bf16.msra.mxu0 0
      %7014 = vmatprep.subr.bf16.mxu0 0
      %7015 = vmatpush1.bf16.msra.mxu0 0
      %7016 = vmatprep.subr.bf16.mxu0 %v6998
      %7017 = vmatpush1.bf16.msra.mxu0 %v6997
      %7018 = vmatprep.subr.bf16.mxu0 %v6996
      %7019 = vmatpush1.bf16.msra.mxu0 %v6995
      %7020 = vmatprep.subr.bf16.mxu0 0
      %7021 = vmatpush2.bf16.msra.mxu0 0
      %7022 = vmatprep.subr.bf16.mxu0 0
      %7023 = vmatpush2.bf16.msra.mxu0 0
      %7024 = vmatprep.subr.bf16.mxu0 0
      %7025 = vmatpush2.bf16.msra.mxu0 0
      %7026 = vmatprep.subr.bf16.mxu0 0
      %7027 = vmatpush2.bf16.msra.mxu0 0
      %7028 = vmatprep.subr.bf16.mxu0 0
      %7029 = vmatpush2.bf16.msra.mxu0 0
      %7030 = vmatprep.subr.bf16.mxu0 0
      %7031 = vmatpush2.bf16.msra.mxu0 0
      %7032 = vmatprep.subr.bf16.mxu0 0
      %7033 = vmatpush2.bf16.msra.mxu0 0
      %7034 = vmatprep.subr.bf16.mxu0 0
      %7035 = vmatpush2.bf16.msra.mxu0 0
      %7036 = vmatprep.mubr.bf16.mxu0 0
      %7037 = vmatmul.mubr.bf16.gmra.mxu0 %v7002
      %v7038 = vpop.f32.mrf.mxu0
      %v7039 = vadd.f32 0.0, %v7038
      %v7040 = vpop.f32.mrf.mxu0
      %v7041 = vadd.f32 0.0, %v7040
      %v7042 = vpop.f32.mrf.mxu0
      %v7043 = vpop.f32.mrf.mxu0
      %7044 = vdwg.mxu0
      %v7045 = vadd.f32 %v6965, %v7039
      %v7046 = vadd.f32 %v6966, %v7041
      %7047 = vrot.lane.b32.xlu0 %v6512, 112
      %v7048 = vpop.permute.xlu0 %7047
      %7049 = vrot.lane.b32.xlu0 %v6514, 112
      %v7050 = vpop.permute.xlu0 %7049
      %7051 = vrot.lane.b32.xlu0 %v6516, 112
      %v7052 = vpop.permute.xlu0 %7051
      %7053 = vrot.lane.b32.xlu0 %v6518, 112
      %v7054 = vpop.permute.xlu0 %7053
      %7055 = vrot.lane.b32.xlu0 %v6513, 112
      %v7056 = vpop.permute.xlu0 %7055
      %7057 = vrot.lane.b32.xlu0 %v6515, 112
      %v7058 = vpop.permute.xlu0 %7057
      %7059 = vrot.lane.b32.xlu0 %v6517, 112
      %v7060 = vpop.permute.xlu0 %7059
      %7061 = vrot.lane.b32.xlu0 %v6519, 112
      %v7062 = vpop.permute.xlu0 %7061
      %v7063 = vsel %vm1289, %v7048, %v7056
      %v7064 = vsel %vm1289, %v7050, %v7058
      %v7065 = vsel %vm1289, %v7052, %v7060
      %v7066 = vsel %vm1289, %v7054, %v7062
      %v7067 = vsel %vm1289, %v7056, %v7048
      %v7068 = vsel %vm1289, %v7058, %v7050
      %v7069 = vsel %vm1289, %v7060, %v7052
      %v7070 = vsel %vm1289, %v7062, %v7054
      %v7071 = vpack.c.bf16 %v7064, %v7063
      %v7072 = vpack.c.bf16 %v7068, %v7067
      %v7073 = vpack.c.bf16 %v7066, %v7065
      %v7074 = vpack.c.bf16 %v7070, %v7069
      %v7075 = vmul.bf16 %v7071, %v3335
      %v7076 = vmul.bf16 %v7072, %v3342
      %v7077 = vmul.bf16 %v7073, %v3335
      %v7078 = vmul.bf16 %v7074, %v3342
      %s7079 = scalar_lea.vmem %s14, 7
      %v7080 = vld [vmem:[%s7079] sm:$0x1]
      %v7082 = vsel %vm5153, %v7080, 0
      %7084 = vmatprep.subr.bf16.mxu0 0
      %7085 = vmatpush1.bf16.msra.mxu0 0
      %7086 = vmatprep.subr.bf16.mxu0 0
      %7087 = vmatpush1.bf16.msra.mxu0 0
      %7088 = vmatprep.subr.bf16.mxu0 0
      %7089 = vmatpush1.bf16.msra.mxu0 0
      %7090 = vmatprep.subr.bf16.mxu0 0
      %7091 = vmatpush1.bf16.msra.mxu0 0
      %7092 = vmatprep.subr.bf16.mxu0 0
      %7093 = vmatpush1.bf16.msra.mxu0 0
      %7094 = vmatprep.subr.bf16.mxu0 0
      %7095 = vmatpush1.bf16.msra.mxu0 0
      %7096 = vmatprep.subr.bf16.mxu0 %v7078
      %7097 = vmatpush1.bf16.msra.mxu0 %v7077
      %7098 = vmatprep.subr.bf16.mxu0 %v7076
      %7099 = vmatpush1.bf16.msra.mxu0 %v7075
      %7100 = vmatprep.subr.bf16.mxu0 0
      %7101 = vmatpush2.bf16.msra.mxu0 0
      %7102 = vmatprep.subr.bf16.mxu0 0
      %7103 = vmatpush2.bf16.msra.mxu0 0
      %7104 = vmatprep.subr.bf16.mxu0 0
      %7105 = vmatpush2.bf16.msra.mxu0 0
      %7106 = vmatprep.subr.bf16.mxu0 0
      %7107 = vmatpush2.bf16.msra.mxu0 0
      %7108 = vmatprep.subr.bf16.mxu0 0
      %7109 = vmatpush2.bf16.msra.mxu0 0
      %7110 = vmatprep.subr.bf16.mxu0 0
      %7111 = vmatpush2.bf16.msra.mxu0 0
      %7112 = vmatprep.subr.bf16.mxu0 0
      %7113 = vmatpush2.bf16.msra.mxu0 0
      %7114 = vmatprep.subr.bf16.mxu0 0
      %7115 = vmatpush2.bf16.msra.mxu0 0
      %7116 = vmatprep.mubr.bf16.mxu0 0
      %7117 = vmatmul.mubr.bf16.gmra.mxu0 %v7082
      %v7118 = vpop.f32.mrf.mxu0
      %v7119 = vadd.f32 0.0, %v7118
      %v7120 = vpop.f32.mrf.mxu0
      %v7121 = vadd.f32 0.0, %v7120
      %v7122 = vpop.f32.mrf.mxu0
      %v7123 = vpop.f32.mrf.mxu0
      %7124 = vdwg.mxu0
      %v7125 = vadd.f32 %v7045, %v7119
      %v7126 = vadd.f32 %v7046, %v7121
      %7127 = vrot.lane.b32.xlu0 %v6512, 111
      %v7128 = vpop.permute.xlu0 %7127
      %7129 = vrot.lane.b32.xlu0 %v6514, 111
      %v7130 = vpop.permute.xlu0 %7129
      %7131 = vrot.lane.b32.xlu0 %v6516, 111
      %v7132 = vpop.permute.xlu0 %7131
      %7133 = vrot.lane.b32.xlu0 %v6518, 111
      %v7134 = vpop.permute.xlu0 %7133
      %7135 = vrot.lane.b32.xlu0 %v6513, 111
      %v7136 = vpop.permute.xlu0 %7135
      %7137 = vrot.lane.b32.xlu0 %v6515, 111
      %v7138 = vpop.permute.xlu0 %7137
      %7139 = vrot.lane.b32.xlu0 %v6517, 111
      %v7140 = vpop.permute.xlu0 %7139
      %7141 = vrot.lane.b32.xlu0 %v6519, 111
      %v7142 = vpop.permute.xlu0 %7141
      %v7143 = vsel %vm1401, %v7128, %v7136
      %v7144 = vsel %vm1401, %v7130, %v7138
      %v7145 = vsel %vm1401, %v7132, %v7140
      %v7146 = vsel %vm1401, %v7134, %v7142
      %v7147 = vsel %vm1401, %v7136, %v7128
      %v7148 = vsel %vm1401, %v7138, %v7130
      %v7149 = vsel %vm1401, %v7140, %v7132
      %v7150 = vsel %vm1401, %v7142, %v7134
      %v7151 = vpack.c.bf16 %v7144, %v7143
      %v7152 = vpack.c.bf16 %v7148, %v7147
      %v7153 = vpack.c.bf16 %v7146, %v7145
      %v7154 = vpack.c.bf16 %v7150, %v7149
      %v7155 = vmul.bf16 %v7151, %v3566
      %v7156 = vmul.bf16 %v7152, %v3573
      %v7157 = vmul.bf16 %v7153, %v3566
      %v7158 = vmul.bf16 %v7154, %v3573
      %s7159 = scalar_lea.vmem %s14, 8
      %v7160 = vld [vmem:[%s7159] sm:$0x1]
      %v7162 = vsel %vm5153, %v7160, 0
      %7164 = vmatprep.subr.bf16.mxu0 0
      %7165 = vmatpush1.bf16.msra.mxu0 0
      %7166 = vmatprep.subr.bf16.mxu0 0
      %7167 = vmatpush1.bf16.msra.mxu0 0
      %7168 = vmatprep.subr.bf16.mxu0 0
      %7169 = vmatpush1.bf16.msra.mxu0 0
      %7170 = vmatprep.subr.bf16.mxu0 0
      %7171 = vmatpush1.bf16.msra.mxu0 0
      %7172 = vmatprep.subr.bf16.mxu0 0
      %7173 = vmatpush1.bf16.msra.mxu0 0
      %7174 = vmatprep.subr.bf16.mxu0 0
      %7175 = vmatpush1.bf16.msra.mxu0 0
      %7176 = vmatprep.subr.bf16.mxu0 %v7158
      %7177 = vmatpush1.bf16.msra.mxu0 %v7157
      %7178 = vmatprep.subr.bf16.mxu0 %v7156
      %7179 = vmatpush1.bf16.msra.mxu0 %v7155
      %7180 = vmatprep.subr.bf16.mxu0 0
      %7181 = vmatpush2.bf16.msra.mxu0 0
      %7182 = vmatprep.subr.bf16.mxu0 0
      %7183 = vmatpush2.bf16.msra.mxu0 0
      %7184 = vmatprep.subr.bf16.mxu0 0
      %7185 = vmatpush2.bf16.msra.mxu0 0
      %7186 = vmatprep.subr.bf16.mxu0 0
      %7187 = vmatpush2.bf16.msra.mxu0 0
      %7188 = vmatprep.subr.bf16.mxu0 0
      %7189 = vmatpush2.bf16.msra.mxu0 0
      %7190 = vmatprep.subr.bf16.mxu0 0
      %7191 = vmatpush2.bf16.msra.mxu0 0
      %7192 = vmatprep.subr.bf16.mxu0 0
      %7193 = vmatpush2.bf16.msra.mxu0 0
      %7194 = vmatprep.subr.bf16.mxu0 0
      %7195 = vmatpush2.bf16.msra.mxu0 0
      %7196 = vmatprep.mubr.bf16.mxu0 0
      %7197 = vmatmul.mubr.bf16.gmra.mxu0 %v7162
      %v7198 = vpop.f32.mrf.mxu0
      %v7199 = vadd.f32 0.0, %v7198
      %v7200 = vpop.f32.mrf.mxu0
      %v7201 = vadd.f32 0.0, %v7200
      %v7202 = vpop.f32.mrf.mxu0
      %v7203 = vpop.f32.mrf.mxu0
      %7204 = vdwg.mxu0
      %v7205 = vadd.f32 %v7125, %v7199
      %v7206 = vadd.f32 %v7126, %v7201
      %v7207 = vld [vmem:[%s15] sm:$0x3]
      %7209 = vset.pattern.permute.xlu0 0
      %7210 = vperm.xlu0 %7209, %v7207
      %v7211 = vpop.permute.xlu0 %7210
      %v7213 = vadd.f32 %v7205, %v7211
      %v7214 = vadd.f32 %v7206, %v7211
      %v7217 = vcombine.low %v7213, %v7214
      %v7219 = vunpack.c.l.s4 1983009808
      %v7220 = vunpack.c.0.s8 %v7219
      %v7221 = vlaneseq
      %v7222 = vshrl.u32 %v7221, 7
      %v7223 = vsub.s32 %v7220, %v7222
      %v7224 = vrot.slane %v7217, %v7223
      %7226 = vst [vmem:[%s518] sm:$0xf] %v7224
      %p7227 = scmp.lt.s32.totalorder %s27, 1
      %s7228 = scalar_select %p7227, %s27, 1
      %s7229 = smul.addr %s7228, 2
      %s7230 = smul.addr %s7229, 2
      %s7231 = scalar_lea.vmem %s16, %s7230
      // Predicated region
      $region85: #{basemodel_forward.1} parent=83 // pred_check
        %p7232 = pneg %p386
      $region86: #{basemodel_forward.1} parent=83 // pred_check_branch
        %7234 = sbr.rel (%p7232) target = $region88
      $region87: #{basemodel_forward.1} parent=83 // pred_region
        _
      $region88: #{basemodel_forward.1} parent=83 // pred_fallthru
        _
    $region84: #{basemodel_forward.1} parent=5 // pred_fallthru
      _
    %p7235 = scmp.le.s32.totalorder 2, %s22
    // Predicated region
    $region89: #{basemodel_forward.1} parent=5 // pred_check
      %p7236 = pneg %p7235
    $region90: #{basemodel_forward.1} parent=5 // pred_check_branch
      %7238 = sbr.rel (%p7236) target = $region92
    $region91: #{basemodel_forward.1} parent=5 // pred_region
      %s7239 = ssub.s32 %s22, 2
      // Predicated region
      $region93: #{basemodel_forward.1} parent=91 // pred_check
        %p7240 = pneg %p392
      $region94: #{basemodel_forward.1} parent=91 // pred_check_branch
        %7242 = sbr.rel (%p7240) target = $region96
      $region95: #{basemodel_forward.1} parent=91 // pred_region
        %p7243 = scmp.lt.s32.totalorder %s28, 1
        %s7244 = scalar_select %p7243, %s28, 1
        %s7245 = smul.addr %s7244, 2
        %s7246 = smul.addr %s7245, 2
        %s7247 = scalar_lea.vmem %s16, %s7246
      $region96: #{basemodel_forward.1} parent=91 // pred_fallthru
        _
    $region92: #{basemodel_forward.1} parent=5 // pred_fallthru
      _
  $region6: #{basemodel_forward.1} parent=0 // loop_footer
    %s26 = sadd.s32 1, %s22
  $region7: #{basemodel_forward.1} parent=0 // loop_footer_branch
    %21 = sbr.rel target = $region3
  $region8: #{basemodel_forward.1} parent=0 // loop_exit
    _

</llo_original>
